<compile_context>
chip_gen: v5e
topology: v5e:2x2
jax: 0.10.0
libtpu: 0.0.40
codegen_flags: <defaults>
</compile_context>

<pallas_src>
import functools

import jax
import jax.numpy as jnp
from jax.experimental import pallas as pl
from jax.experimental.pallas import tpu as pltpu

# ----------------------------- configuration --------------------------------
D_MODEL = 256
NHEAD = 8
FFN = 512
NEG = -1e30          # finite stand-in for -inf in additive f32 masks
LN_EPS = 1e-5


def _fullspec(shape):
    """BlockSpec covering the whole array (grid=(1,))."""
    n = len(shape)
    return pl.BlockSpec(shape, lambda i, _n=n: (0,) * _n)


# ----------------------------- fused layer kernel ----------------------------
def _decoder_layer_kernel(
        x_ref, mem_ref, sam_ref, skp_ref, cam_ref, ckp_ref,
        wqkv_ref, bqkv_ref, wo1_ref, bo1_ref, g1_ref, be1_ref,
        wq_ref, bq_ref, wkv_ref, bkv_ref, wo2_ref, bo2_ref, g2_ref, be2_ref,
        w1_ref, b1_ref, w2_ref, b2_ref, g3_ref, be3_ref,
        o_ref, *, nhead, n_batch, eps):
    """Whole TransformerDecoderLayer forward for a (B*L, E) activation slab."""
    bf16, f32 = jnp.bfloat16, jnp.float32
    E = x_ref.shape[1]
    B = n_batch
    L = x_ref.shape[0] // B
    S = mem_ref.shape[0] // B
    Dh = E // nhead
    scale = float(Dh) ** -0.5

    def layer_norm(y, g, b):
        mu = jnp.mean(y, axis=-1, keepdims=True)
        var = jnp.mean(jnp.square(y - mu), axis=-1, keepdims=True)
        return (y - mu) * jax.lax.rsqrt(var + eps) * g + b

    def matmul(a_f32, w_ref, b_ref):
        # bf16 operands (cast on vregs, no wrapper-side convert), f32 accumulate.
        return (jnp.dot(a_f32.astype(bf16), w_ref[...],
                        preferred_element_type=f32) + b_ref[...])

    def mha(q_all, k_all, v_all, attn_mask, kpm, Lq, Lk):
        """q_all (B*Lq,E), k_all/v_all (B*Lk,E) f32; masks (Lq,Lk)/(B,Lk) f32."""
        rows = []
        for b in range(B):                                  # static unroll
            qb = q_all[b * Lq:(b + 1) * Lq, :] * scale      # f32 scaling
            kb = k_all[b * Lk:(b + 1) * Lk, :]
            vb = v_all[b * Lk:(b + 1) * Lk, :]
            mb = attn_mask + kpm[b:b + 1, :]                # (Lq, Lk) additive
            heads = []
            for h in range(nhead):                          # static unroll
                lo = h * Dh
                qh = qb[:, lo:lo + Dh].astype(bf16)         # (Lq, Dh)
                kh = kb[:, lo:lo + Dh].astype(bf16)         # (Lk, Dh)
                vh = vb[:, lo:lo + Dh].astype(bf16)
                s = jax.lax.dot_general(qh, kh, (((1,), (1,)), ((), ())),
                                        preferred_element_type=f32)  # (Lq, Lk)
                s = s + mb
                s = s - jnp.max(s, axis=-1, keepdims=True)
                p = jnp.exp(s)
                p = p * pl.reciprocal(jnp.sum(p, axis=-1, keepdims=True),
                                      approx=True)
                heads.append(jnp.dot(p.astype(bf16), vh,
                                     preferred_element_type=f32))     # (Lq, Dh)
            rows.append(jnp.concatenate(heads, axis=-1))    # lane-dense (Lq, E)
        return jnp.concatenate(rows, axis=0)                # (B*Lq, E)

    x = x_ref[...]                                          # (B*L, E) f32
    xm = mem_ref[...]                                       # (B*S, E) f32
    sam, skp = sam_ref[...], skp_ref[...]
    cam, ckp = cam_ref[...], ckp_ref[...]

    # ---- self-attention sublayer ----
    qkv = matmul(x, wqkv_ref, bqkv_ref)                     # (B*L, 3E)
    ctx = mha(qkv[:, :E], qkv[:, E:2 * E], qkv[:, 2 * E:], sam, skp, L, L)
    t1 = layer_norm(matmul(ctx, wo1_ref, bo1_ref) + x,
                    g1_ref[...], be1_ref[...])

    # ---- cross-attention sublayer ----
    qc = matmul(t1, wq_ref, bq_ref)                         # (B*L, E)
    kv = matmul(xm, wkv_ref, bkv_ref)                       # (B*S, 2E)
    ctxc = mha(qc, kv[:, :E], kv[:, E:], cam, ckp, L, S)
    t2 = layer_norm(matmul(ctxc, wo2_ref, bo2_ref) + t1,
                    g2_ref[...], be2_ref[...])

    # ---- feed-forward sublayer ----
    h1 = jnp.maximum(matmul(t2, w1_ref, b1_ref), 0.0)       # (B*L, F) f32
    t3 = layer_norm(matmul(h1, w2_ref, b2_ref) + t2,
                    g3_ref[...], be3_ref[...])
    o_ref[...] = t3.astype(o_ref.dtype)                     # lane-dense store


# ----------------------------- layer forward ---------------------------------
def _attn_mask_f32(mask, Lq, Lk):
    if mask is None:
        return jnp.zeros((Lq, Lk), jnp.float32)
    if mask.dtype == jnp.bool_:
        return jnp.where(mask, NEG, 0.0).astype(jnp.float32)
    return mask.astype(jnp.float32)


def _kpm_f32(kpm, B, Lk):
    if kpm is None:
        return jnp.zeros((B, Lk), jnp.float32)
    return jnp.where(kpm, NEG, 0.0).astype(jnp.float32)


def transformer_decoder_layer(params, tgt, memory, tgt_mask=None,
                              memory_mask=None, tgt_key_padding_mask=None,
                              memory_key_padding_mask=None, nhead=NHEAD):
    """Mirrors TransformerDecoderLayer.forward (eval dropout)."""
    L, B, E = tgt.shape
    S = memory.shape[0]

    # batch-major, lane-dense (rows, E) slabs (the only wrapper-side layout ops)
    x = jnp.transpose(tgt, (1, 0, 2)).reshape(B * L, E).astype(jnp.float32)
    m = jnp.transpose(memory, (1, 0, 2)).reshape(B * S, E).astype(jnp.float32)

    sam = _attn_mask_f32(tgt_mask, L, L)
    skp = _kpm_f32(tgt_key_padding_mask, B, L)
    cam = _attn_mask_f32(memory_mask, L, S)
    ckp = _kpm_f32(memory_key_padding_mask, B, S)

    p = params
    operands = [
        x, m, sam, skp, cam, ckp,
        p['w_qkv'], p['b_qkv'], p['w_out1'], p['b_out1'],
        p['norm1_w'], p['norm1_b'],
        p['w_q'], p['b_q'], p['w_kv'], p['b_kv'], p['w_out2'], p['b_out2'],
        p['norm2_w'], p['norm2_b'],
        p['w_lin1'], p['b_lin1'], p['w_lin2'], p['b_lin2'],
        p['norm3_w'], p['norm3_b'],
    ]

    out = pl.pallas_call(
        functools.partial(_decoder_layer_kernel, nhead=nhead, n_batch=B,
                          eps=LN_EPS),
        out_shape=jax.ShapeDtypeStruct((B * L, E), jnp.float32),
        grid=(1,),
        in_specs=[_fullspec(a.shape) for a in operands],
        out_specs=_fullspec((B * L, E)),
        compiler_params=pltpu.CompilerParams(
            dimension_semantics=("arbitrary",),
            vmem_limit_bytes=32 * 1024 * 1024),
    )(*operands)

    return out.reshape(B, L, E).transpose(1, 0, 2)          # back to (L, B, E)


@jax.jit
def decoder_layer_forward(params, tgt, memory, tgt_mask, tgt_key_padding_mask):
    return transformer_decoder_layer(params, tgt, memory,
                                     tgt_mask=tgt_mask,
                                     tgt_key_padding_mask=tgt_key_padding_mask,
                                     nhead=NHEAD)


# ----------------------------- parameters ------------------------------------
def init_params_torch_layout(key, d_model, nhead, dim_ff):
    """Random params in PyTorch's native layouts (out_features, in_features)."""
    E, F = d_model, dim_ff
    ks = iter(jax.random.split(key, 16))

    def nrm(shape, fan_in):
        return jax.random.normal(next(ks), shape, jnp.float32) * (1.0 / fan_in) ** 0.5

    def mha():
        return dict(in_proj_weight=nrm((3 * E, E), E),
                    in_proj_bias=jnp.zeros((3 * E,), jnp.float32),
                    out_proj_weight=nrm((E, E), E),
                    out_proj_bias=jnp.zeros((E,), jnp.float32))

    return dict(
        self_attn=mha(), multihead_attn=mha(),
        linear1_weight=nrm((F, E), E), linear1_bias=jnp.zeros((F,), jnp.float32),
        linear2_weight=nrm((E, F), F), linear2_bias=jnp.zeros((E,), jnp.float32),
        norm1_weight=jnp.ones((E,), jnp.float32), norm1_bias=jnp.zeros((E,), jnp.float32),
        norm2_weight=jnp.ones((E,), jnp.float32), norm2_bias=jnp.zeros((E,), jnp.float32),
        norm3_weight=jnp.ones((E,), jnp.float32), norm3_bias=jnp.zeros((E,), jnp.float32),
    )


def prepare_params(pt, d_model, nhead):
    """Pre-transpose to (in, out), cast matmul weights to bf16, biases/LN f32."""
    E = d_model
    sa, ca = pt['self_attn'], pt['multihead_attn']
    w_s = sa['in_proj_weight'].astype(jnp.float32)
    b_s = sa['in_proj_bias'].astype(jnp.float32)
    w_c = ca['in_proj_weight'].astype(jnp.float32)
    b_c = ca['in_proj_bias'].astype(jnp.float32)
    row = lambda v: v.reshape(1, -1).astype(jnp.float32)
    return dict(
        w_qkv=w_s.T.astype(jnp.bfloat16), b_qkv=row(b_s),                 # (E,3E)
        w_out1=sa['out_proj_weight'].T.astype(jnp.bfloat16),
        b_out1=row(sa['out_proj_bias']),
        w_q=w_c[:E].T.astype(jnp.bfloat16), b_q=row(b_c[:E]),             # (E,E)
        w_kv=w_c[E:].T.astype(jnp.bfloat16), b_kv=row(b_c[E:]),           # (E,2E)
        w_out2=ca['out_proj_weight'].T.astype(jnp.bfloat16),
        b_out2=row(ca['out_proj_bias']),
        w_lin1=pt['linear1_weight'].T.astype(jnp.bfloat16),
        b_lin1=row(pt['linear1_bias']),
        w_lin2=pt['linear2_weight'].T.astype(jnp.bfloat16),
        b_lin2=row(pt['linear2_bias']),
        norm1_w=row(pt['norm1_weight']), norm1_b=row(pt['norm1_bias']),
        norm2_w=row(pt['norm2_weight']), norm2_b=row(pt['norm2_bias']),
        norm3_w=row(pt['norm3_weight']), norm3_b=row(pt['norm3_bias']),
    )


# ----------------------------- f32 reference ---------------------------------
def reference_forward(pt, tgt, memory, tgt_mask, tgt_kpm, nhead):
    """Pure-JAX f32 reference of the same forward (eval dropout)."""
    E = tgt.shape[-1]
    Dh = E // nhead
    scale = Dh ** -0.5

    def ln(x, g, b):
        mu = x.mean(-1, keepdims=True)
        var = ((x - mu) ** 2).mean(-1, keepdims=True)
        return (x - mu) / jnp.sqrt(var + LN_EPS) * g + b

    def mha(q_in, kv_in, wi, bi, wo, bo, attn_mask, kpm):
        L, B, _ = q_in.shape
        S = kv_in.shape[0]
        q = q_in @ wi[:E].T + bi[:E]
        k = kv_in @ wi[E:2 * E].T + bi[E:2 * E]
        v = kv_in @ wi[2 * E:].T + bi[2 * E:]
        qh = q.reshape(L, B, nhead, Dh).transpose(1, 2, 0, 3) * scale
        kh = k.reshape(S, B, nhead, Dh).transpose(1, 2, 0, 3)
        vh = v.reshape(S, B, nhead, Dh).transpose(1, 2, 0, 3)
        s = jnp.einsum('bhld,bhsd->bhls', qh, kh)
        mask = jnp.zeros((B, 1, L, S), jnp.float32)
        if attn_mask is not None:
            mask = mask + attn_mask[None, None]
        if kpm is not None:
            mask = mask + jnp.where(kpm, NEG, 0.0)[:, None, None, :]
        p = jax.nn.softmax(s + mask, axis=-1)
        ctx = jnp.einsum('bhls,bhsd->bhld', p, vh)
        ctx = ctx.transpose(2, 0, 1, 3).reshape(L, B, E)
        return ctx @ wo.T + bo

    t = tgt
    a = mha(t, t, pt['self_attn']['in_proj_weight'], pt['self_attn']['in_proj_bias'],
            pt['self_attn']['out_proj_weight'], pt['self_attn']['out_proj_bias'],
            tgt_mask, tgt_kpm)
    t = ln(t + a, pt['norm1_weight'], pt['norm1_bias'])
    a = mha(t, memory, pt['multihead_attn']['in_proj_weight'],
            pt['multihead_attn']['in_proj_bias'],
            pt['multihead_attn']['out_proj_weight'],
            pt['multihead_attn']['out_proj_bias'], None, None)
    t = ln(t + a, pt['norm2_weight'], pt['norm2_bias'])
    h = jnp.maximum(t @ pt['linear1_weight'].T + pt['linear1_bias'], 0.0)
    f = h @ pt['linear2_weight'].T + pt['linear2_bias']
    return ln(t + f, pt['norm3_weight'], pt['norm3_bias'])


# ------------------------------------ main -----------------------------------
if __name__ == "__main__":
    key = jax.random.PRNGKey(0)
    k_param, k_tgt, k_mem = jax.random.split(key, 3)

    L, S, B = 8, 16, 2                                  # tgt len, memory len, batch
    pt_params = init_params_torch_layout(k_param, D_MODEL, NHEAD, FFN)
    params = prepare_params(pt_params, D_MODEL, NHEAD)

    tgt = jax.random.normal(k_tgt, (L, B, D_MODEL), jnp.float32)     # (L, B, E)
    memory = jax.random.normal(k_mem, (S, B, D_MODEL), jnp.float32)  # (S, B, E)

    # causal additive mask + one padded target position (batch 1, last token)
    causal = jnp.where(jnp.tril(jnp.ones((L, L), dtype=bool)), 0.0, NEG)
    causal = causal.astype(jnp.float32)
    tgt_kpm = jnp.zeros((B, L), dtype=bool).at[1, -1].set(True)

    out = decoder_layer_forward(params, tgt, memory, causal, tgt_kpm)
    out = jax.block_until_ready(out)

    assert out.shape == (L, B, D_MODEL), out.shape
    assert bool(jnp.all(jnp.isfinite(out)))

    ref = reference_forward(pt_params, tgt, memory, causal, tgt_kpm, NHEAD)
    max_err = float(jnp.max(jnp.abs(out - ref)))
    assert max_err < 0.15, f"max abs error vs f32 reference: {max_err}"

    print("KERNEL_OK")
</pallas_src>

<mosaic_0001>
module attributes {stable_mosaic.version = 11 : i64} {
  func.func @_decoder_layer_kernel(%arg0: i32, %arg1: memref<16x256xf32, #tpu.memory_space<vmem>>, %arg2: memref<32x256xf32, #tpu.memory_space<vmem>>, %arg3: memref<8x8xf32, #tpu.memory_space<vmem>>, %arg4: memref<2x8xf32, #tpu.memory_space<vmem>>, %arg5: memref<8x16xf32, #tpu.memory_space<vmem>>, %arg6: memref<2x16xf32, #tpu.memory_space<vmem>>, %arg7: memref<256x768xbf16, #tpu.memory_space<vmem>>, %arg8: memref<1x768xf32, #tpu.memory_space<vmem>>, %arg9: memref<256x256xbf16, #tpu.memory_space<vmem>>, %arg10: memref<1x256xf32, #tpu.memory_space<vmem>>, %arg11: memref<1x256xf32, #tpu.memory_space<vmem>>, %arg12: memref<1x256xf32, #tpu.memory_space<vmem>>, %arg13: memref<256x256xbf16, #tpu.memory_space<vmem>>, %arg14: memref<1x256xf32, #tpu.memory_space<vmem>>, %arg15: memref<256x512xbf16, #tpu.memory_space<vmem>>, %arg16: memref<1x512xf32, #tpu.memory_space<vmem>>, %arg17: memref<256x256xbf16, #tpu.memory_space<vmem>>, %arg18: memref<1x256xf32, #tpu.memory_space<vmem>>, %arg19: memref<1x256xf32, #tpu.memory_space<vmem>>, %arg20: memref<1x256xf32, #tpu.memory_space<vmem>>, %arg21: memref<256x512xbf16, #tpu.memory_space<vmem>>, %arg22: memref<1x512xf32, #tpu.memory_space<vmem>>, %arg23: memref<512x256xbf16, #tpu.memory_space<vmem>>, %arg24: memref<1x256xf32, #tpu.memory_space<vmem>>, %arg25: memref<1x256xf32, #tpu.memory_space<vmem>>, %arg26: memref<1x256xf32, #tpu.memory_space<vmem>>, %arg27: memref<16x256xf32, #tpu.memory_space<vmem>>) attributes {dimension_semantics = [#tpu.dimension_semantics<arbitrary>], iteration_bounds = array<i64: 1>, scalar_prefetch = 0 : i64, scratch_operands = 0 : i64, tpu.core_type = #tpu.core_type<tc>, window_params = [{pipeline_mode = #tpu.pipeline_mode<synchronous>, transform_indices = @transform_0, window_bounds = array<i64: 16, 256>}, {pipeline_mode = #tpu.pipeline_mode<synchronous>, transform_indices = @transform_1, window_bounds = array<i64: 32, 256>}, {pipeline_mode = #tpu.pipeline_mode<synchronous>, transform_indices = @transform_2, window_bounds = array<i64: 8, 8>}, {pipeline_mode = #tpu.pipeline_mode<synchronous>, transform_indices = @transform_3, window_bounds = array<i64: 2, 8>}, {pipeline_mode = #tpu.pipeline_mode<synchronous>, transform_indices = @transform_4, window_bounds = array<i64: 8, 16>}, {pipeline_mode = #tpu.pipeline_mode<synchronous>, transform_indices = @transform_5, window_bounds = array<i64: 2, 16>}, {pipeline_mode = #tpu.pipeline_mode<synchronous>, transform_indices = @transform_6, window_bounds = array<i64: 256, 768>}, {pipeline_mode = #tpu.pipeline_mode<synchronous>, transform_indices = @transform_7, window_bounds = array<i64: 1, 768>}, {pipeline_mode = #tpu.pipeline_mode<synchronous>, transform_indices = @transform_8, window_bounds = array<i64: 256, 256>}, {pipeline_mode = #tpu.pipeline_mode<synchronous>, transform_indices = @transform_9, window_bounds = array<i64: 1, 256>}, {pipeline_mode = #tpu.pipeline_mode<synchronous>, transform_indices = @transform_10, window_bounds = array<i64: 1, 256>}, {pipeline_mode = #tpu.pipeline_mode<synchronous>, transform_indices = @transform_11, window_bounds = array<i64: 1, 256>}, {pipeline_mode = #tpu.pipeline_mode<synchronous>, transform_indices = @transform_12, window_bounds = array<i64: 256, 256>}, {pipeline_mode = #tpu.pipeline_mode<synchronous>, transform_indices = @transform_13, window_bounds = array<i64: 1, 256>}, {pipeline_mode = #tpu.pipeline_mode<synchronous>, transform_indices = @transform_14, window_bounds = array<i64: 256, 512>}, {pipeline_mode = #tpu.pipeline_mode<synchronous>, transform_indices = @transform_15, window_bounds = array<i64: 1, 512>}, {pipeline_mode = #tpu.pipeline_mode<synchronous>, transform_indices = @transform_16, window_bounds = array<i64: 256, 256>}, {pipeline_mode = #tpu.pipeline_mode<synchronous>, transform_indices = @transform_17, window_bounds = array<i64: 1, 256>}, {pipeline_mode = #tpu.pipeline_mode<synchronous>, transform_indices = @transform_18, window_bounds = array<i64: 1, 256>}, {pipeline_mode = #tpu.pipeline_mode<synchronous>, transform_indices = @transform_19, window_bounds = array<i64: 1, 256>}, {pipeline_mode = #tpu.pipeline_mode<synchronous>, transform_indices = @transform_20, window_bounds = array<i64: 256, 512>}, {pipeline_mode = #tpu.pipeline_mode<synchronous>, transform_indices = @transform_21, window_bounds = array<i64: 1, 512>}, {pipeline_mode = #tpu.pipeline_mode<synchronous>, transform_indices = @transform_22, window_bounds = array<i64: 512, 256>}, {pipeline_mode = #tpu.pipeline_mode<synchronous>, transform_indices = @transform_23, window_bounds = array<i64: 1, 256>}, {pipeline_mode = #tpu.pipeline_mode<synchronous>, transform_indices = @transform_24, window_bounds = array<i64: 1, 256>}, {pipeline_mode = #tpu.pipeline_mode<synchronous>, transform_indices = @transform_25, window_bounds = array<i64: 1, 256>}, {pipeline_mode = #tpu.pipeline_mode<synchronous>, transform_indices = @transform_26, window_bounds = array<i64: 16, 256>}]} {
    %c0 = arith.constant 0 : index
    %c0_0 = arith.constant 0 : index
    %0 = vector.load %arg1[%c0, %c0_0] : memref<16x256xf32, #tpu.memory_space<vmem>>, vector<16x256xf32>
    %c0_1 = arith.constant 0 : index
    %c0_2 = arith.constant 0 : index
    %1 = vector.load %arg2[%c0_1, %c0_2] : memref<32x256xf32, #tpu.memory_space<vmem>>, vector<32x256xf32>
    %c0_3 = arith.constant 0 : index
    %c0_4 = arith.constant 0 : index
    %2 = vector.load %arg3[%c0_3, %c0_4] : memref<8x8xf32, #tpu.memory_space<vmem>>, vector<8x8xf32>
    %c0_5 = arith.constant 0 : index
    %c0_6 = arith.constant 0 : index
    %3 = vector.load %arg4[%c0_5, %c0_6] : memref<2x8xf32, #tpu.memory_space<vmem>>, vector<2x8xf32>
    %c0_7 = arith.constant 0 : index
    %c0_8 = arith.constant 0 : index
    %4 = vector.load %arg5[%c0_7, %c0_8] : memref<8x16xf32, #tpu.memory_space<vmem>>, vector<8x16xf32>
    %c0_9 = arith.constant 0 : index
    %c0_10 = arith.constant 0 : index
    %5 = vector.load %arg6[%c0_9, %c0_10] : memref<2x16xf32, #tpu.memory_space<vmem>>, vector<2x16xf32>
    %6 = arith.truncf %0 : vector<16x256xf32> to vector<16x256xbf16>
    %c0_11 = arith.constant 0 : index
    %c0_12 = arith.constant 0 : index
    %7 = vector.load %arg7[%c0_11, %c0_12] : memref<256x768xbf16, #tpu.memory_space<vmem>>, vector<256x768xbf16>
    %cst = arith.constant dense<0.000000e+00> : vector<16x768xf32>
    %8 = tpu.matmul %6, %7, %cst {dimension_numbers = #tpu.dot_dimension_numbers<[1], [0], [0], [1], [0, 0, 1, 1], [], []>} : vector<16x256xbf16>, vector<256x768xbf16>, vector<16x768xf32> -> vector<16x768xf32>
    %c0_13 = arith.constant 0 : index
    %c0_14 = arith.constant 0 : index
    %9 = vector.load %arg8[%c0_13, %c0_14] : memref<1x768xf32, #tpu.memory_space<vmem>>, vector<1x768xf32>
    %10 = vector.broadcast %9 : vector<1x768xf32> to vector<16x768xf32>
    %11 = arith.addf %8, %10 : vector<16x768xf32>
    %12 = vector.extract_strided_slice %11 {offsets = [0, 0], sizes = [16, 256], strides = [1, 1]} : vector<16x768xf32> to vector<16x256xf32>
    %13 = vector.extract_strided_slice %11 {offsets = [0, 256], sizes = [16, 256], strides = [1, 1]} : vector<16x768xf32> to vector<16x256xf32>
    %14 = vector.extract_strided_slice %11 {offsets = [0, 512], sizes = [16, 256], strides = [1, 1]} : vector<16x768xf32> to vector<16x256xf32>
    %15 = vector.extract_strided_slice %12 {offsets = [0, 0], sizes = [8, 256], strides = [1, 1]} : vector<16x256xf32> to vector<8x256xf32>
    %cst_15 = arith.constant 0.176776692 : f32
    %16 = vector.broadcast %cst_15 : f32 to vector<8x256xf32>
    %17 = arith.mulf %15, %16 : vector<8x256xf32>
    %18 = vector.extract_strided_slice %13 {offsets = [0, 0], sizes = [8, 256], strides = [1, 1]} : vector<16x256xf32> to vector<8x256xf32>
    %19 = vector.extract_strided_slice %14 {offsets = [0, 0], sizes = [8, 256], strides = [1, 1]} : vector<16x256xf32> to vector<8x256xf32>
    %20 = vector.extract_strided_slice %3 {offsets = [0, 0], sizes = [1, 8], strides = [1, 1]} : vector<2x8xf32> to vector<1x8xf32>
    %21 = vector.broadcast %20 : vector<1x8xf32> to vector<8x8xf32>
    %22 = arith.addf %2, %21 : vector<8x8xf32>
    %23 = vector.extract_strided_slice %17 {offsets = [0, 0], sizes = [8, 32], strides = [1, 1]} : vector<8x256xf32> to vector<8x32xf32>
    %24 = arith.truncf %23 : vector<8x32xf32> to vector<8x32xbf16>
    %25 = vector.extract_strided_slice %18 {offsets = [0, 0], sizes = [8, 32], strides = [1, 1]} : vector<8x256xf32> to vector<8x32xf32>
    %26 = arith.truncf %25 : vector<8x32xf32> to vector<8x32xbf16>
    %27 = vector.extract_strided_slice %19 {offsets = [0, 0], sizes = [8, 32], strides = [1, 1]} : vector<8x256xf32> to vector<8x32xf32>
    %28 = arith.truncf %27 : vector<8x32xf32> to vector<8x32xbf16>
    %cst_16 = arith.constant dense<0.000000e+00> : vector<8x8xf32>
    %29 = tpu.matmul %24, %26, %cst_16 {dimension_numbers = #tpu.dot_dimension_numbers<[1], [1], [0], [0], [0, 0, 1, 0], [], []>} : vector<8x32xbf16>, vector<8x32xbf16>, vector<8x8xf32> -> vector<8x8xf32>
    %30 = arith.addf %29, %22 : vector<8x8xf32>
    %cst_17 = arith.constant dense<0xFF800000> : vector<8xf32>
    %31 = vector.multi_reduction <maximumf>, %30, %cst_17 [1] : vector<8x8xf32> to vector<8xf32>
    %32 = vector.shape_cast %31 : vector<8xf32> to vector<8x1xf32>
    %33 = vector.broadcast %32 : vector<8x1xf32> to vector<8x8xf32>
    %34 = arith.subf %30, %33 : vector<8x8xf32>
    %35 = math.exp %34 : vector<8x8xf32>
    %cst_18 = arith.constant dense<0.000000e+00> : vector<8xf32>
    %36 = vector.multi_reduction <add>, %35, %cst_18 [1] : vector<8x8xf32> to vector<8xf32>
    %37 = vector.shape_cast %36 : vector<8xf32> to vector<8x1xf32>
    %38 = tpu.reciprocal %37 {approx = true} : vector<8x1xf32> -> vector<8x1xf32>
    %39 = vector.broadcast %38 : vector<8x1xf32> to vector<8x8xf32>
    %40 = arith.mulf %35, %39 : vector<8x8xf32>
    %41 = arith.truncf %40 : vector<8x8xf32> to vector<8x8xbf16>
    %cst_19 = arith.constant dense<0.000000e+00> : vector<8x32xf32>
    %42 = tpu.matmul %41, %28, %cst_19 {dimension_numbers = #tpu.dot_dimension_numbers<[1], [0], [0], [1], [0, 0, 1, 1], [], []>} : vector<8x8xbf16>, vector<8x32xbf16>, vector<8x32xf32> -> vector<8x32xf32>
    %43 = vector.extract_strided_slice %17 {offsets = [0, 32], sizes = [8, 32], strides = [1, 1]} : vector<8x256xf32> to vector<8x32xf32>
    %44 = arith.truncf %43 : vector<8x32xf32> to vector<8x32xbf16>
    %45 = vector.extract_strided_slice %18 {offsets = [0, 32], sizes = [8, 32], strides = [1, 1]} : vector<8x256xf32> to vector<8x32xf32>
    %46 = arith.truncf %45 : vector<8x32xf32> to vector<8x32xbf16>
    %47 = vector.extract_strided_slice %19 {offsets = [0, 32], sizes = [8, 32], strides = [1, 1]} : vector<8x256xf32> to vector<8x32xf32>
    %48 = arith.truncf %47 : vector<8x32xf32> to vector<8x32xbf16>
    %cst_20 = arith.constant dense<0.000000e+00> : vector<8x8xf32>
    %49 = tpu.matmul %44, %46, %cst_20 {dimension_numbers = #tpu.dot_dimension_numbers<[1], [1], [0], [0], [0, 0, 1, 0], [], []>} : vector<8x32xbf16>, vector<8x32xbf16>, vector<8x8xf32> -> vector<8x8xf32>
    %50 = arith.addf %49, %22 : vector<8x8xf32>
    %cst_21 = arith.constant dense<0xFF800000> : vector<8xf32>
    %51 = vector.multi_reduction <maximumf>, %50, %cst_21 [1] : vector<8x8xf32> to vector<8xf32>
    %52 = vector.shape_cast %51 : vector<8xf32> to vector<8x1xf32>
    %53 = vector.broadcast %52 : vector<8x1xf32> to vector<8x8xf32>
    %54 = arith.subf %50, %53 : vector<8x8xf32>
    %55 = math.exp %54 : vector<8x8xf32>
    %cst_22 = arith.constant dense<0.000000e+00> : vector<8xf32>
    %56 = vector.multi_reduction <add>, %55, %cst_22 [1] : vector<8x8xf32> to vector<8xf32>
    %57 = vector.shape_cast %56 : vector<8xf32> to vector<8x1xf32>
    %58 = tpu.reciprocal %57 {approx = true} : vector<8x1xf32> -> vector<8x1xf32>
    %59 = vector.broadcast %58 : vector<8x1xf32> to vector<8x8xf32>
    %60 = arith.mulf %55, %59 : vector<8x8xf32>
    %61 = arith.truncf %60 : vector<8x8xf32> to vector<8x8xbf16>
    %cst_23 = arith.constant dense<0.000000e+00> : vector<8x32xf32>
    %62 = tpu.matmul %61, %48, %cst_23 {dimension_numbers = #tpu.dot_dimension_numbers<[1], [0], [0], [1], [0, 0, 1, 1], [], []>} : vector<8x8xbf16>, vector<8x32xbf16>, vector<8x32xf32> -> vector<8x32xf32>
    %63 = vector.extract_strided_slice %17 {offsets = [0, 64], sizes = [8, 32], strides = [1, 1]} : vector<8x256xf32> to vector<8x32xf32>
    %64 = arith.truncf %63 : vector<8x32xf32> to vector<8x32xbf16>
    %65 = vector.extract_strided_slice %18 {offsets = [0, 64], sizes = [8, 32], strides = [1, 1]} : vector<8x256xf32> to vector<8x32xf32>
    %66 = arith.truncf %65 : vector<8x32xf32> to vector<8x32xbf16>
    %67 = vector.extract_strided_slice %19 {offsets = [0, 64], sizes = [8, 32], strides = [1, 1]} : vector<8x256xf32> to vector<8x32xf32>
    %68 = arith.truncf %67 : vector<8x32xf32> to vector<8x32xbf16>
    %cst_24 = arith.constant dense<0.000000e+00> : vector<8x8xf32>
    %69 = tpu.matmul %64, %66, %cst_24 {dimension_numbers = #tpu.dot_dimension_numbers<[1], [1], [0], [0], [0, 0, 1, 0], [], []>} : vector<8x32xbf16>, vector<8x32xbf16>, vector<8x8xf32> -> vector<8x8xf32>
    %70 = arith.addf %69, %22 : vector<8x8xf32>
    %cst_25 = arith.constant dense<0xFF800000> : vector<8xf32>
    %71 = vector.multi_reduction <maximumf>, %70, %cst_25 [1] : vector<8x8xf32> to vector<8xf32>
    %72 = vector.shape_cast %71 : vector<8xf32> to vector<8x1xf32>
    %73 = vector.broadcast %72 : vector<8x1xf32> to vector<8x8xf32>
    %74 = arith.subf %70, %73 : vector<8x8xf32>
    %75 = math.exp %74 : vector<8x8xf32>
    %cst_26 = arith.constant dense<0.000000e+00> : vector<8xf32>
    %76 = vector.multi_reduction <add>, %75, %cst_26 [1] : vector<8x8xf32> to vector<8xf32>
    %77 = vector.shape_cast %76 : vector<8xf32> to vector<8x1xf32>
    %78 = tpu.reciprocal %77 {approx = true} : vector<8x1xf32> -> vector<8x1xf32>
    %79 = vector.broadcast %78 : vector<8x1xf32> to vector<8x8xf32>
    %80 = arith.mulf %75, %79 : vector<8x8xf32>
    %81 = arith.truncf %80 : vector<8x8xf32> to vector<8x8xbf16>
    %cst_27 = arith.constant dense<0.000000e+00> : vector<8x32xf32>
    %82 = tpu.matmul %81, %68, %cst_27 {dimension_numbers = #tpu.dot_dimension_numbers<[1], [0], [0], [1], [0, 0, 1, 1], [], []>} : vector<8x8xbf16>, vector<8x32xbf16>, vector<8x32xf32> -> vector<8x32xf32>
    %83 = vector.extract_strided_slice %17 {offsets = [0, 96], sizes = [8, 32], strides = [1, 1]} : vector<8x256xf32> to vector<8x32xf32>
    %84 = arith.truncf %83 : vector<8x32xf32> to vector<8x32xbf16>
    %85 = vector.extract_strided_slice %18 {offsets = [0, 96], sizes = [8, 32], strides = [1, 1]} : vector<8x256xf32> to vector<8x32xf32>
    %86 = arith.truncf %85 : vector<8x32xf32> to vector<8x32xbf16>
    %87 = vector.extract_strided_slice %19 {offsets = [0, 96], sizes = [8, 32], strides = [1, 1]} : vector<8x256xf32> to vector<8x32xf32>
    %88 = arith.truncf %87 : vector<8x32xf32> to vector<8x32xbf16>
    %cst_28 = arith.constant dense<0.000000e+00> : vector<8x8xf32>
    %89 = tpu.matmul %84, %86, %cst_28 {dimension_numbers = #tpu.dot_dimension_numbers<[1], [1], [0], [0], [0, 0, 1, 0], [], []>} : vector<8x32xbf16>, vector<8x32xbf16>, vector<8x8xf32> -> vector<8x8xf32>
    %90 = arith.addf %89, %22 : vector<8x8xf32>
    %cst_29 = arith.constant dense<0xFF800000> : vector<8xf32>
    %91 = vector.multi_reduction <maximumf>, %90, %cst_29 [1] : vector<8x8xf32> to vector<8xf32>
    %92 = vector.shape_cast %91 : vector<8xf32> to vector<8x1xf32>
    %93 = vector.broadcast %92 : vector<8x1xf32> to vector<8x8xf32>
    %94 = arith.subf %90, %93 : vector<8x8xf32>
    %95 = math.exp %94 : vector<8x8xf32>
    %cst_30 = arith.constant dense<0.000000e+00> : vector<8xf32>
    %96 = vector.multi_reduction <add>, %95, %cst_30 [1] : vector<8x8xf32> to vector<8xf32>
    %97 = vector.shape_cast %96 : vector<8xf32> to vector<8x1xf32>
    %98 = tpu.reciprocal %97 {approx = true} : vector<8x1xf32> -> vector<8x1xf32>
    %99 = vector.broadcast %98 : vector<8x1xf32> to vector<8x8xf32>
    %100 = arith.mulf %95, %99 : vector<8x8xf32>
    %101 = arith.truncf %100 : vector<8x8xf32> to vector<8x8xbf16>
    %cst_31 = arith.constant dense<0.000000e+00> : vector<8x32xf32>
    %102 = tpu.matmul %101, %88, %cst_31 {dimension_numbers = #tpu.dot_dimension_numbers<[1], [0], [0], [1], [0, 0, 1, 1], [], []>} : vector<8x8xbf16>, vector<8x32xbf16>, vector<8x32xf32> -> vector<8x32xf32>
    %103 = vector.extract_strided_slice %17 {offsets = [0, 128], sizes = [8, 32], strides = [1, 1]} : vector<8x256xf32> to vector<8x32xf32>
    %104 = arith.truncf %103 : vector<8x32xf32> to vector<8x32xbf16>
    %105 = vector.extract_strided_slice %18 {offsets = [0, 128], sizes = [8, 32], strides = [1, 1]} : vector<8x256xf32> to vector<8x32xf32>
    %106 = arith.truncf %105 : vector<8x32xf32> to vector<8x32xbf16>
    %107 = vector.extract_strided_slice %19 {offsets = [0, 128], sizes = [8, 32], strides = [1, 1]} : vector<8x256xf32> to vector<8x32xf32>
    %108 = arith.truncf %107 : vector<8x32xf32> to vector<8x32xbf16>
    %cst_32 = arith.constant dense<0.000000e+00> : vector<8x8xf32>
    %109 = tpu.matmul %104, %106, %cst_32 {dimension_numbers = #tpu.dot_dimension_numbers<[1], [1], [0], [0], [0, 0, 1, 0], [], []>} : vector<8x32xbf16>, vector<8x32xbf16>, vector<8x8xf32> -> vector<8x8xf32>
    %110 = arith.addf %109, %22 : vector<8x8xf32>
    %cst_33 = arith.constant dense<0xFF800000> : vector<8xf32>
    %111 = vector.multi_reduction <maximumf>, %110, %cst_33 [1] : vector<8x8xf32> to vector<8xf32>
    %112 = vector.shape_cast %111 : vector<8xf32> to vector<8x1xf32>
    %113 = vector.broadcast %112 : vector<8x1xf32> to vector<8x8xf32>
    %114 = arith.subf %110, %113 : vector<8x8xf32>
    %115 = math.exp %114 : vector<8x8xf32>
    %cst_34 = arith.constant dense<0.000000e+00> : vector<8xf32>
    %116 = vector.multi_reduction <add>, %115, %cst_34 [1] : vector<8x8xf32> to vector<8xf32>
    %117 = vector.shape_cast %116 : vector<8xf32> to vector<8x1xf32>
    %118 = tpu.reciprocal %117 {approx = true} : vector<8x1xf32> -> vector<8x1xf32>
    %119 = vector.broadcast %118 : vector<8x1xf32> to vector<8x8xf32>
    %120 = arith.mulf %115, %119 : vector<8x8xf32>
    %121 = arith.truncf %120 : vector<8x8xf32> to vector<8x8xbf16>
    %cst_35 = arith.constant dense<0.000000e+00> : vector<8x32xf32>
    %122 = tpu.matmul %121, %108, %cst_35 {dimension_numbers = #tpu.dot_dimension_numbers<[1], [0], [0], [1], [0, 0, 1, 1], [], []>} : vector<8x8xbf16>, vector<8x32xbf16>, vector<8x32xf32> -> vector<8x32xf32>
    %123 = vector.extract_strided_slice %17 {offsets = [0, 160], sizes = [8, 32], strides = [1, 1]} : vector<8x256xf32> to vector<8x32xf32>
    %124 = arith.truncf %123 : vector<8x32xf32> to vector<8x32xbf16>
    %125 = vector.extract_strided_slice %18 {offsets = [0, 160], sizes = [8, 32], strides = [1, 1]} : vector<8x256xf32> to vector<8x32xf32>
    %126 = arith.truncf %125 : vector<8x32xf32> to vector<8x32xbf16>
    %127 = vector.extract_strided_slice %19 {offsets = [0, 160], sizes = [8, 32], strides = [1, 1]} : vector<8x256xf32> to vector<8x32xf32>
    %128 = arith.truncf %127 : vector<8x32xf32> to vector<8x32xbf16>
    %cst_36 = arith.constant dense<0.000000e+00> : vector<8x8xf32>
    %129 = tpu.matmul %124, %126, %cst_36 {dimension_numbers = #tpu.dot_dimension_numbers<[1], [1], [0], [0], [0, 0, 1, 0], [], []>} : vector<8x32xbf16>, vector<8x32xbf16>, vector<8x8xf32> -> vector<8x8xf32>
    %130 = arith.addf %129, %22 : vector<8x8xf32>
    %cst_37 = arith.constant dense<0xFF800000> : vector<8xf32>
    %131 = vector.multi_reduction <maximumf>, %130, %cst_37 [1] : vector<8x8xf32> to vector<8xf32>
    %132 = vector.shape_cast %131 : vector<8xf32> to vector<8x1xf32>
    %133 = vector.broadcast %132 : vector<8x1xf32> to vector<8x8xf32>
    %134 = arith.subf %130, %133 : vector<8x8xf32>
    %135 = math.exp %134 : vector<8x8xf32>
    %cst_38 = arith.constant dense<0.000000e+00> : vector<8xf32>
    %136 = vector.multi_reduction <add>, %135, %cst_38 [1] : vector<8x8xf32> to vector<8xf32>
    %137 = vector.shape_cast %136 : vector<8xf32> to vector<8x1xf32>
    %138 = tpu.reciprocal %137 {approx = true} : vector<8x1xf32> -> vector<8x1xf32>
    %139 = vector.broadcast %138 : vector<8x1xf32> to vector<8x8xf32>
    %140 = arith.mulf %135, %139 : vector<8x8xf32>
    %141 = arith.truncf %140 : vector<8x8xf32> to vector<8x8xbf16>
    %cst_39 = arith.constant dense<0.000000e+00> : vector<8x32xf32>
    %142 = tpu.matmul %141, %128, %cst_39 {dimension_numbers = #tpu.dot_dimension_numbers<[1], [0], [0], [1], [0, 0, 1, 1], [], []>} : vector<8x8xbf16>, vector<8x32xbf16>, vector<8x32xf32> -> vector<8x32xf32>
    %143 = vector.extract_strided_slice %17 {offsets = [0, 192], sizes = [8, 32], strides = [1, 1]} : vector<8x256xf32> to vector<8x32xf32>
    %144 = arith.truncf %143 : vector<8x32xf32> to vector<8x32xbf16>
    %145 = vector.extract_strided_slice %18 {offsets = [0, 192], sizes = [8, 32], strides = [1, 1]} : vector<8x256xf32> to vector<8x32xf32>
    %146 = arith.truncf %145 : vector<8x32xf32> to vector<8x32xbf16>
    %147 = vector.extract_strided_slice %19 {offsets = [0, 192], sizes = [8, 32], strides = [1, 1]} : vector<8x256xf32> to vector<8x32xf32>
    %148 = arith.truncf %147 : vector<8x32xf32> to vector<8x32xbf16>
    %cst_40 = arith.constant dense<0.000000e+00> : vector<8x8xf32>
    %149 = tpu.matmul %144, %146, %cst_40 {dimension_numbers = #tpu.dot_dimension_numbers<[1], [1], [0], [0], [0, 0, 1, 0], [], []>} : vector<8x32xbf16>, vector<8x32xbf16>, vector<8x8xf32> -> vector<8x8xf32>
    %150 = arith.addf %149, %22 : vector<8x8xf32>
    %cst_41 = arith.constant dense<0xFF800000> : vector<8xf32>
    %151 = vector.multi_reduction <maximumf>, %150, %cst_41 [1] : vector<8x8xf32> to vector<8xf32>
    %152 = vector.shape_cast %151 : vector<8xf32> to vector<8x1xf32>
    %153 = vector.broadcast %152 : vector<8x1xf32> to vector<8x8xf32>
    %154 = arith.subf %150, %153 : vector<8x8xf32>
    %155 = math.exp %154 : vector<8x8xf32>
    %cst_42 = arith.constant dense<0.000000e+00> : vector<8xf32>
    %156 = vector.multi_reduction <add>, %155, %cst_42 [1] : vector<8x8xf32> to vector<8xf32>
    %157 = vector.shape_cast %156 : vector<8xf32> to vector<8x1xf32>
    %158 = tpu.reciprocal %157 {approx = true} : vector<8x1xf32> -> vector<8x1xf32>
    %159 = vector.broadcast %158 : vector<8x1xf32> to vector<8x8xf32>
    %160 = arith.mulf %155, %159 : vector<8x8xf32>
    %161 = arith.truncf %160 : vector<8x8xf32> to vector<8x8xbf16>
    %cst_43 = arith.constant dense<0.000000e+00> : vector<8x32xf32>
    %162 = tpu.matmul %161, %148, %cst_43 {dimension_numbers = #tpu.dot_dimension_numbers<[1], [0], [0], [1], [0, 0, 1, 1], [], []>} : vector<8x8xbf16>, vector<8x32xbf16>, vector<8x32xf32> -> vector<8x32xf32>
    %163 = vector.extract_strided_slice %17 {offsets = [0, 224], sizes = [8, 32], strides = [1, 1]} : vector<8x256xf32> to vector<8x32xf32>
    %164 = arith.truncf %163 : vector<8x32xf32> to vector<8x32xbf16>
    %165 = vector.extract_strided_slice %18 {offsets = [0, 224], sizes = [8, 32], strides = [1, 1]} : vector<8x256xf32> to vector<8x32xf32>
    %166 = arith.truncf %165 : vector<8x32xf32> to vector<8x32xbf16>
    %167 = vector.extract_strided_slice %19 {offsets = [0, 224], sizes = [8, 32], strides = [1, 1]} : vector<8x256xf32> to vector<8x32xf32>
    %168 = arith.truncf %167 : vector<8x32xf32> to vector<8x32xbf16>
    %cst_44 = arith.constant dense<0.000000e+00> : vector<8x8xf32>
    %169 = tpu.matmul %164, %166, %cst_44 {dimension_numbers = #tpu.dot_dimension_numbers<[1], [1], [0], [0], [0, 0, 1, 0], [], []>} : vector<8x32xbf16>, vector<8x32xbf16>, vector<8x8xf32> -> vector<8x8xf32>
    %170 = arith.addf %169, %22 : vector<8x8xf32>
    %cst_45 = arith.constant dense<0xFF800000> : vector<8xf32>
    %171 = vector.multi_reduction <maximumf>, %170, %cst_45 [1] : vector<8x8xf32> to vector<8xf32>
    %172 = vector.shape_cast %171 : vector<8xf32> to vector<8x1xf32>
    %173 = vector.broadcast %172 : vector<8x1xf32> to vector<8x8xf32>
    %174 = arith.subf %170, %173 : vector<8x8xf32>
    %175 = math.exp %174 : vector<8x8xf32>
    %cst_46 = arith.constant dense<0.000000e+00> : vector<8xf32>
    %176 = vector.multi_reduction <add>, %175, %cst_46 [1] : vector<8x8xf32> to vector<8xf32>
    %177 = vector.shape_cast %176 : vector<8xf32> to vector<8x1xf32>
    %178 = tpu.reciprocal %177 {approx = true} : vector<8x1xf32> -> vector<8x1xf32>
    %179 = vector.broadcast %178 : vector<8x1xf32> to vector<8x8xf32>
    %180 = arith.mulf %175, %179 : vector<8x8xf32>
    %181 = arith.truncf %180 : vector<8x8xf32> to vector<8x8xbf16>
    %cst_47 = arith.constant dense<0.000000e+00> : vector<8x32xf32>
    %182 = tpu.matmul %181, %168, %cst_47 {dimension_numbers = #tpu.dot_dimension_numbers<[1], [0], [0], [1], [0, 0, 1, 1], [], []>} : vector<8x8xbf16>, vector<8x32xbf16>, vector<8x32xf32> -> vector<8x32xf32>
    %183 = tpu.concatenate %42, %62, %82, %102, %122, %142, %162, %182 in 1 : vector<8x32xf32>, vector<8x32xf32>, vector<8x32xf32>, vector<8x32xf32>, vector<8x32xf32>, vector<8x32xf32>, vector<8x32xf32>, vector<8x32xf32> -> vector<8x256xf32>
    %184 = vector.extract_strided_slice %12 {offsets = [8, 0], sizes = [8, 256], strides = [1, 1]} : vector<16x256xf32> to vector<8x256xf32>
    %cst_48 = arith.constant 0.176776692 : f32
    %185 = vector.broadcast %cst_48 : f32 to vector<8x256xf32>
    %186 = arith.mulf %184, %185 : vector<8x256xf32>
    %187 = vector.extract_strided_slice %13 {offsets = [8, 0], sizes = [8, 256], strides = [1, 1]} : vector<16x256xf32> to vector<8x256xf32>
    %188 = vector.extract_strided_slice %14 {offsets = [8, 0], sizes = [8, 256], strides = [1, 1]} : vector<16x256xf32> to vector<8x256xf32>
    %189 = vector.extract_strided_slice %3 {offsets = [1, 0], sizes = [1, 8], strides = [1, 1]} : vector<2x8xf32> to vector<1x8xf32>
    %190 = vector.broadcast %189 : vector<1x8xf32> to vector<8x8xf32>
    %191 = arith.addf %2, %190 : vector<8x8xf32>
    %192 = vector.extract_strided_slice %186 {offsets = [0, 0], sizes = [8, 32], strides = [1, 1]} : vector<8x256xf32> to vector<8x32xf32>
    %193 = arith.truncf %192 : vector<8x32xf32> to vector<8x32xbf16>
    %194 = vector.extract_strided_slice %187 {offsets = [0, 0], sizes = [8, 32], strides = [1, 1]} : vector<8x256xf32> to vector<8x32xf32>
    %195 = arith.truncf %194 : vector<8x32xf32> to vector<8x32xbf16>
    %196 = vector.extract_strided_slice %188 {offsets = [0, 0], sizes = [8, 32], strides = [1, 1]} : vector<8x256xf32> to vector<8x32xf32>
    %197 = arith.truncf %196 : vector<8x32xf32> to vector<8x32xbf16>
    %cst_49 = arith.constant dense<0.000000e+00> : vector<8x8xf32>
    %198 = tpu.matmul %193, %195, %cst_49 {dimension_numbers = #tpu.dot_dimension_numbers<[1], [1], [0], [0], [0, 0, 1, 0], [], []>} : vector<8x32xbf16>, vector<8x32xbf16>, vector<8x8xf32> -> vector<8x8xf32>
    %199 = arith.addf %198, %191 : vector<8x8xf32>
    %cst_50 = arith.constant dense<0xFF800000> : vector<8xf32>
    %200 = vector.multi_reduction <maximumf>, %199, %cst_50 [1] : vector<8x8xf32> to vector<8xf32>
    %201 = vector.shape_cast %200 : vector<8xf32> to vector<8x1xf32>
    %202 = vector.broadcast %201 : vector<8x1xf32> to vector<8x8xf32>
    %203 = arith.subf %199, %202 : vector<8x8xf32>
    %204 = math.exp %203 : vector<8x8xf32>
    %cst_51 = arith.constant dense<0.000000e+00> : vector<8xf32>
    %205 = vector.multi_reduction <add>, %204, %cst_51 [1] : vector<8x8xf32> to vector<8xf32>
    %206 = vector.shape_cast %205 : vector<8xf32> to vector<8x1xf32>
    %207 = tpu.reciprocal %206 {approx = true} : vector<8x1xf32> -> vector<8x1xf32>
    %208 = vector.broadcast %207 : vector<8x1xf32> to vector<8x8xf32>
    %209 = arith.mulf %204, %208 : vector<8x8xf32>
    %210 = arith.truncf %209 : vector<8x8xf32> to vector<8x8xbf16>
    %cst_52 = arith.constant dense<0.000000e+00> : vector<8x32xf32>
    %211 = tpu.matmul %210, %197, %cst_52 {dimension_numbers = #tpu.dot_dimension_numbers<[1], [0], [0], [1], [0, 0, 1, 1], [], []>} : vector<8x8xbf16>, vector<8x32xbf16>, vector<8x32xf32> -> vector<8x32xf32>
    %212 = vector.extract_strided_slice %186 {offsets = [0, 32], sizes = [8, 32], strides = [1, 1]} : vector<8x256xf32> to vector<8x32xf32>
    %213 = arith.truncf %212 : vector<8x32xf32> to vector<8x32xbf16>
    %214 = vector.extract_strided_slice %187 {offsets = [0, 32], sizes = [8, 32], strides = [1, 1]} : vector<8x256xf32> to vector<8x32xf32>
    %215 = arith.truncf %214 : vector<8x32xf32> to vector<8x32xbf16>
    %216 = vector.extract_strided_slice %188 {offsets = [0, 32], sizes = [8, 32], strides = [1, 1]} : vector<8x256xf32> to vector<8x32xf32>
    %217 = arith.truncf %216 : vector<8x32xf32> to vector<8x32xbf16>
    %cst_53 = arith.constant dense<0.000000e+00> : vector<8x8xf32>
    %218 = tpu.matmul %213, %215, %cst_53 {dimension_numbers = #tpu.dot_dimension_numbers<[1], [1], [0], [0], [0, 0, 1, 0], [], []>} : vector<8x32xbf16>, vector<8x32xbf16>, vector<8x8xf32> -> vector<8x8xf32>
    %219 = arith.addf %218, %191 : vector<8x8xf32>
    %cst_54 = arith.constant dense<0xFF800000> : vector<8xf32>
    %220 = vector.multi_reduction <maximumf>, %219, %cst_54 [1] : vector<8x8xf32> to vector<8xf32>
    %221 = vector.shape_cast %220 : vector<8xf32> to vector<8x1xf32>
    %222 = vector.broadcast %221 : vector<8x1xf32> to vector<8x8xf32>
    %223 = arith.subf %219, %222 : vector<8x8xf32>
    %224 = math.exp %223 : vector<8x8xf32>
    %cst_55 = arith.constant dense<0.000000e+00> : vector<8xf32>
    %225 = vector.multi_reduction <add>, %224, %cst_55 [1] : vector<8x8xf32> to vector<8xf32>
    %226 = vector.shape_cast %225 : vector<8xf32> to vector<8x1xf32>
    %227 = tpu.reciprocal %226 {approx = true} : vector<8x1xf32> -> vector<8x1xf32>
    %228 = vector.broadcast %227 : vector<8x1xf32> to vector<8x8xf32>
    %229 = arith.mulf %224, %228 : vector<8x8xf32>
    %230 = arith.truncf %229 : vector<8x8xf32> to vector<8x8xbf16>
    %cst_56 = arith.constant dense<0.000000e+00> : vector<8x32xf32>
    %231 = tpu.matmul %230, %217, %cst_56 {dimension_numbers = #tpu.dot_dimension_numbers<[1], [0], [0], [1], [0, 0, 1, 1], [], []>} : vector<8x8xbf16>, vector<8x32xbf16>, vector<8x32xf32> -> vector<8x32xf32>
    %232 = vector.extract_strided_slice %186 {offsets = [0, 64], sizes = [8, 32], strides = [1, 1]} : vector<8x256xf32> to vector<8x32xf32>
    %233 = arith.truncf %232 : vector<8x32xf32> to vector<8x32xbf16>
    %234 = vector.extract_strided_slice %187 {offsets = [0, 64], sizes = [8, 32], strides = [1, 1]} : vector<8x256xf32> to vector<8x32xf32>
    %235 = arith.truncf %234 : vector<8x32xf32> to vector<8x32xbf16>
    %236 = vector.extract_strided_slice %188 {offsets = [0, 64], sizes = [8, 32], strides = [1, 1]} : vector<8x256xf32> to vector<8x32xf32>
    %237 = arith.truncf %236 : vector<8x32xf32> to vector<8x32xbf16>
    %cst_57 = arith.constant dense<0.000000e+00> : vector<8x8xf32>
    %238 = tpu.matmul %233, %235, %cst_57 {dimension_numbers = #tpu.dot_dimension_numbers<[1], [1], [0], [0], [0, 0, 1, 0], [], []>} : vector<8x32xbf16>, vector<8x32xbf16>, vector<8x8xf32> -> vector<8x8xf32>
    %239 = arith.addf %238, %191 : vector<8x8xf32>
    %cst_58 = arith.constant dense<0xFF800000> : vector<8xf32>
    %240 = vector.multi_reduction <maximumf>, %239, %cst_58 [1] : vector<8x8xf32> to vector<8xf32>
    %241 = vector.shape_cast %240 : vector<8xf32> to vector<8x1xf32>
    %242 = vector.broadcast %241 : vector<8x1xf32> to vector<8x8xf32>
    %243 = arith.subf %239, %242 : vector<8x8xf32>
    %244 = math.exp %243 : vector<8x8xf32>
    %cst_59 = arith.constant dense<0.000000e+00> : vector<8xf32>
    %245 = vector.multi_reduction <add>, %244, %cst_59 [1] : vector<8x8xf32> to vector<8xf32>
    %246 = vector.shape_cast %245 : vector<8xf32> to vector<8x1xf32>
    %247 = tpu.reciprocal %246 {approx = true} : vector<8x1xf32> -> vector<8x1xf32>
    %248 = vector.broadcast %247 : vector<8x1xf32> to vector<8x8xf32>
    %249 = arith.mulf %244, %248 : vector<8x8xf32>
    %250 = arith.truncf %249 : vector<8x8xf32> to vector<8x8xbf16>
    %cst_60 = arith.constant dense<0.000000e+00> : vector<8x32xf32>
    %251 = tpu.matmul %250, %237, %cst_60 {dimension_numbers = #tpu.dot_dimension_numbers<[1], [0], [0], [1], [0, 0, 1, 1], [], []>} : vector<8x8xbf16>, vector<8x32xbf16>, vector<8x32xf32> -> vector<8x32xf32>
    %252 = vector.extract_strided_slice %186 {offsets = [0, 96], sizes = [8, 32], strides = [1, 1]} : vector<8x256xf32> to vector<8x32xf32>
    %253 = arith.truncf %252 : vector<8x32xf32> to vector<8x32xbf16>
    %254 = vector.extract_strided_slice %187 {offsets = [0, 96], sizes = [8, 32], strides = [1, 1]} : vector<8x256xf32> to vector<8x32xf32>
    %255 = arith.truncf %254 : vector<8x32xf32> to vector<8x32xbf16>
    %256 = vector.extract_strided_slice %188 {offsets = [0, 96], sizes = [8, 32], strides = [1, 1]} : vector<8x256xf32> to vector<8x32xf32>
    %257 = arith.truncf %256 : vector<8x32xf32> to vector<8x32xbf16>
    %cst_61 = arith.constant dense<0.000000e+00> : vector<8x8xf32>
    %258 = tpu.matmul %253, %255, %cst_61 {dimension_numbers = #tpu.dot_dimension_numbers<[1], [1], [0], [0], [0, 0, 1, 0], [], []>} : vector<8x32xbf16>, vector<8x32xbf16>, vector<8x8xf32> -> vector<8x8xf32>
    %259 = arith.addf %258, %191 : vector<8x8xf32>
    %cst_62 = arith.constant dense<0xFF800000> : vector<8xf32>
    %260 = vector.multi_reduction <maximumf>, %259, %cst_62 [1] : vector<8x8xf32> to vector<8xf32>
    %261 = vector.shape_cast %260 : vector<8xf32> to vector<8x1xf32>
    %262 = vector.broadcast %261 : vector<8x1xf32> to vector<8x8xf32>
    %263 = arith.subf %259, %262 : vector<8x8xf32>
    %264 = math.exp %263 : vector<8x8xf32>
    %cst_63 = arith.constant dense<0.000000e+00> : vector<8xf32>
    %265 = vector.multi_reduction <add>, %264, %cst_63 [1] : vector<8x8xf32> to vector<8xf32>
    %266 = vector.shape_cast %265 : vector<8xf32> to vector<8x1xf32>
    %267 = tpu.reciprocal %266 {approx = true} : vector<8x1xf32> -> vector<8x1xf32>
    %268 = vector.broadcast %267 : vector<8x1xf32> to vector<8x8xf32>
    %269 = arith.mulf %264, %268 : vector<8x8xf32>
    %270 = arith.truncf %269 : vector<8x8xf32> to vector<8x8xbf16>
    %cst_64 = arith.constant dense<0.000000e+00> : vector<8x32xf32>
    %271 = tpu.matmul %270, %257, %cst_64 {dimension_numbers = #tpu.dot_dimension_numbers<[1], [0], [0], [1], [0, 0, 1, 1], [], []>} : vector<8x8xbf16>, vector<8x32xbf16>, vector<8x32xf32> -> vector<8x32xf32>
    %272 = vector.extract_strided_slice %186 {offsets = [0, 128], sizes = [8, 32], strides = [1, 1]} : vector<8x256xf32> to vector<8x32xf32>
    %273 = arith.truncf %272 : vector<8x32xf32> to vector<8x32xbf16>
    %274 = vector.extract_strided_slice %187 {offsets = [0, 128], sizes = [8, 32], strides = [1, 1]} : vector<8x256xf32> to vector<8x32xf32>
    %275 = arith.truncf %274 : vector<8x32xf32> to vector<8x32xbf16>
    %276 = vector.extract_strided_slice %188 {offsets = [0, 128], sizes = [8, 32], strides = [1, 1]} : vector<8x256xf32> to vector<8x32xf32>
    %277 = arith.truncf %276 : vector<8x32xf32> to vector<8x32xbf16>
    %cst_65 = arith.constant dense<0.000000e+00> : vector<8x8xf32>
    %278 = tpu.matmul %273, %275, %cst_65 {dimension_numbers = #tpu.dot_dimension_numbers<[1], [1], [0], [0], [0, 0, 1, 0], [], []>} : vector<8x32xbf16>, vector<8x32xbf16>, vector<8x8xf32> -> vector<8x8xf32>
    %279 = arith.addf %278, %191 : vector<8x8xf32>
    %cst_66 = arith.constant dense<0xFF800000> : vector<8xf32>
    %280 = vector.multi_reduction <maximumf>, %279, %cst_66 [1] : vector<8x8xf32> to vector<8xf32>
    %281 = vector.shape_cast %280 : vector<8xf32> to vector<8x1xf32>
    %282 = vector.broadcast %281 : vector<8x1xf32> to vector<8x8xf32>
    %283 = arith.subf %279, %282 : vector<8x8xf32>
    %284 = math.exp %283 : vector<8x8xf32>
    %cst_67 = arith.constant dense<0.000000e+00> : vector<8xf32>
    %285 = vector.multi_reduction <add>, %284, %cst_67 [1] : vector<8x8xf32> to vector<8xf32>
    %286 = vector.shape_cast %285 : vector<8xf32> to vector<8x1xf32>
    %287 = tpu.reciprocal %286 {approx = true} : vector<8x1xf32> -> vector<8x1xf32>
    %288 = vector.broadcast %287 : vector<8x1xf32> to vector<8x8xf32>
    %289 = arith.mulf %284, %288 : vector<8x8xf32>
    %290 = arith.truncf %289 : vector<8x8xf32> to vector<8x8xbf16>
    %cst_68 = arith.constant dense<0.000000e+00> : vector<8x32xf32>
    %291 = tpu.matmul %290, %277, %cst_68 {dimension_numbers = #tpu.dot_dimension_numbers<[1], [0], [0], [1], [0, 0, 1, 1], [], []>} : vector<8x8xbf16>, vector<8x32xbf16>, vector<8x32xf32> -> vector<8x32xf32>
    %292 = vector.extract_strided_slice %186 {offsets = [0, 160], sizes = [8, 32], strides = [1, 1]} : vector<8x256xf32> to vector<8x32xf32>
    %293 = arith.truncf %292 : vector<8x32xf32> to vector<8x32xbf16>
    %294 = vector.extract_strided_slice %187 {offsets = [0, 160], sizes = [8, 32], strides = [1, 1]} : vector<8x256xf32> to vector<8x32xf32>
    %295 = arith.truncf %294 : vector<8x32xf32> to vector<8x32xbf16>
    %296 = vector.extract_strided_slice %188 {offsets = [0, 160], sizes = [8, 32], strides = [1, 1]} : vector<8x256xf32> to vector<8x32xf32>
    %297 = arith.truncf %296 : vector<8x32xf32> to vector<8x32xbf16>
    %cst_69 = arith.constant dense<0.000000e+00> : vector<8x8xf32>
    %298 = tpu.matmul %293, %295, %cst_69 {dimension_numbers = #tpu.dot_dimension_numbers<[1], [1], [0], [0], [0, 0, 1, 0], [], []>} : vector<8x32xbf16>, vector<8x32xbf16>, vector<8x8xf32> -> vector<8x8xf32>
    %299 = arith.addf %298, %191 : vector<8x8xf32>
    %cst_70 = arith.constant dense<0xFF800000> : vector<8xf32>
    %300 = vector.multi_reduction <maximumf>, %299, %cst_70 [1] : vector<8x8xf32> to vector<8xf32>
    %301 = vector.shape_cast %300 : vector<8xf32> to vector<8x1xf32>
    %302 = vector.broadcast %301 : vector<8x1xf32> to vector<8x8xf32>
    %303 = arith.subf %299, %302 : vector<8x8xf32>
    %304 = math.exp %303 : vector<8x8xf32>
    %cst_71 = arith.constant dense<0.000000e+00> : vector<8xf32>
    %305 = vector.multi_reduction <add>, %304, %cst_71 [1] : vector<8x8xf32> to vector<8xf32>
    %306 = vector.shape_cast %305 : vector<8xf32> to vector<8x1xf32>
    %307 = tpu.reciprocal %306 {approx = true} : vector<8x1xf32> -> vector<8x1xf32>
    %308 = vector.broadcast %307 : vector<8x1xf32> to vector<8x8xf32>
    %309 = arith.mulf %304, %308 : vector<8x8xf32>
    %310 = arith.truncf %309 : vector<8x8xf32> to vector<8x8xbf16>
    %cst_72 = arith.constant dense<0.000000e+00> : vector<8x32xf32>
    %311 = tpu.matmul %310, %297, %cst_72 {dimension_numbers = #tpu.dot_dimension_numbers<[1], [0], [0], [1], [0, 0, 1, 1], [], []>} : vector<8x8xbf16>, vector<8x32xbf16>, vector<8x32xf32> -> vector<8x32xf32>
    %312 = vector.extract_strided_slice %186 {offsets = [0, 192], sizes = [8, 32], strides = [1, 1]} : vector<8x256xf32> to vector<8x32xf32>
    %313 = arith.truncf %312 : vector<8x32xf32> to vector<8x32xbf16>
    %314 = vector.extract_strided_slice %187 {offsets = [0, 192], sizes = [8, 32], strides = [1, 1]} : vector<8x256xf32> to vector<8x32xf32>
    %315 = arith.truncf %314 : vector<8x32xf32> to vector<8x32xbf16>
    %316 = vector.extract_strided_slice %188 {offsets = [0, 192], sizes = [8, 32], strides = [1, 1]} : vector<8x256xf32> to vector<8x32xf32>
    %317 = arith.truncf %316 : vector<8x32xf32> to vector<8x32xbf16>
    %cst_73 = arith.constant dense<0.000000e+00> : vector<8x8xf32>
    %318 = tpu.matmul %313, %315, %cst_73 {dimension_numbers = #tpu.dot_dimension_numbers<[1], [1], [0], [0], [0, 0, 1, 0], [], []>} : vector<8x32xbf16>, vector<8x32xbf16>, vector<8x8xf32> -> vector<8x8xf32>
    %319 = arith.addf %318, %191 : vector<8x8xf32>
    %cst_74 = arith.constant dense<0xFF800000> : vector<8xf32>
    %320 = vector.multi_reduction <maximumf>, %319, %cst_74 [1] : vector<8x8xf32> to vector<8xf32>
    %321 = vector.shape_cast %320 : vector<8xf32> to vector<8x1xf32>
    %322 = vector.broadcast %321 : vector<8x1xf32> to vector<8x8xf32>
    %323 = arith.subf %319, %322 : vector<8x8xf32>
    %324 = math.exp %323 : vector<8x8xf32>
    %cst_75 = arith.constant dense<0.000000e+00> : vector<8xf32>
    %325 = vector.multi_reduction <add>, %324, %cst_75 [1] : vector<8x8xf32> to vector<8xf32>
    %326 = vector.shape_cast %325 : vector<8xf32> to vector<8x1xf32>
    %327 = tpu.reciprocal %326 {approx = true} : vector<8x1xf32> -> vector<8x1xf32>
    %328 = vector.broadcast %327 : vector<8x1xf32> to vector<8x8xf32>
    %329 = arith.mulf %324, %328 : vector<8x8xf32>
    %330 = arith.truncf %329 : vector<8x8xf32> to vector<8x8xbf16>
    %cst_76 = arith.constant dense<0.000000e+00> : vector<8x32xf32>
    %331 = tpu.matmul %330, %317, %cst_76 {dimension_numbers = #tpu.dot_dimension_numbers<[1], [0], [0], [1], [0, 0, 1, 1], [], []>} : vector<8x8xbf16>, vector<8x32xbf16>, vector<8x32xf32> -> vector<8x32xf32>
    %332 = vector.extract_strided_slice %186 {offsets = [0, 224], sizes = [8, 32], strides = [1, 1]} : vector<8x256xf32> to vector<8x32xf32>
    %333 = arith.truncf %332 : vector<8x32xf32> to vector<8x32xbf16>
    %334 = vector.extract_strided_slice %187 {offsets = [0, 224], sizes = [8, 32], strides = [1, 1]} : vector<8x256xf32> to vector<8x32xf32>
    %335 = arith.truncf %334 : vector<8x32xf32> to vector<8x32xbf16>
    %336 = vector.extract_strided_slice %188 {offsets = [0, 224], sizes = [8, 32], strides = [1, 1]} : vector<8x256xf32> to vector<8x32xf32>
    %337 = arith.truncf %336 : vector<8x32xf32> to vector<8x32xbf16>
    %cst_77 = arith.constant dense<0.000000e+00> : vector<8x8xf32>
    %338 = tpu.matmul %333, %335, %cst_77 {dimension_numbers = #tpu.dot_dimension_numbers<[1], [1], [0], [0], [0, 0, 1, 0], [], []>} : vector<8x32xbf16>, vector<8x32xbf16>, vector<8x8xf32> -> vector<8x8xf32>
    %339 = arith.addf %338, %191 : vector<8x8xf32>
    %cst_78 = arith.constant dense<0xFF800000> : vector<8xf32>
    %340 = vector.multi_reduction <maximumf>, %339, %cst_78 [1] : vector<8x8xf32> to vector<8xf32>
    %341 = vector.shape_cast %340 : vector<8xf32> to vector<8x1xf32>
    %342 = vector.broadcast %341 : vector<8x1xf32> to vector<8x8xf32>
    %343 = arith.subf %339, %342 : vector<8x8xf32>
    %344 = math.exp %343 : vector<8x8xf32>
    %cst_79 = arith.constant dense<0.000000e+00> : vector<8xf32>
    %345 = vector.multi_reduction <add>, %344, %cst_79 [1] : vector<8x8xf32> to vector<8xf32>
    %346 = vector.shape_cast %345 : vector<8xf32> to vector<8x1xf32>
    %347 = tpu.reciprocal %346 {approx = true} : vector<8x1xf32> -> vector<8x1xf32>
    %348 = vector.broadcast %347 : vector<8x1xf32> to vector<8x8xf32>
    %349 = arith.mulf %344, %348 : vector<8x8xf32>
    %350 = arith.truncf %349 : vector<8x8xf32> to vector<8x8xbf16>
    %cst_80 = arith.constant dense<0.000000e+00> : vector<8x32xf32>
    %351 = tpu.matmul %350, %337, %cst_80 {dimension_numbers = #tpu.dot_dimension_numbers<[1], [0], [0], [1], [0, 0, 1, 1], [], []>} : vector<8x8xbf16>, vector<8x32xbf16>, vector<8x32xf32> -> vector<8x32xf32>
    %352 = tpu.concatenate %211, %231, %251, %271, %291, %311, %331, %351 in 1 : vector<8x32xf32>, vector<8x32xf32>, vector<8x32xf32>, vector<8x32xf32>, vector<8x32xf32>, vector<8x32xf32>, vector<8x32xf32>, vector<8x32xf32> -> vector<8x256xf32>
    %353 = tpu.concatenate %183, %352 in 0 : vector<8x256xf32>, vector<8x256xf32> -> vector<16x256xf32>
    %354 = arith.truncf %353 : vector<16x256xf32> to vector<16x256xbf16>
    %c0_81 = arith.constant 0 : index
    %c0_82 = arith.constant 0 : index
    %355 = vector.load %arg9[%c0_81, %c0_82] : memref<256x256xbf16, #tpu.memory_space<vmem>>, vector<256x256xbf16>
    %cst_83 = arith.constant dense<0.000000e+00> : vector<16x256xf32>
    %356 = tpu.matmul %354, %355, %cst_83 {dimension_numbers = #tpu.dot_dimension_numbers<[1], [0], [0], [1], [0, 0, 1, 1], [], []>} : vector<16x256xbf16>, vector<256x256xbf16>, vector<16x256xf32> -> vector<16x256xf32>
    %c0_84 = arith.constant 0 : index
    %c0_85 = arith.constant 0 : index
    %357 = vector.load %arg10[%c0_84, %c0_85] : memref<1x256xf32, #tpu.memory_space<vmem>>, vector<1x256xf32>
    %358 = vector.broadcast %357 : vector<1x256xf32> to vector<16x256xf32>
    %359 = arith.addf %356, %358 : vector<16x256xf32>
    %360 = arith.addf %359, %0 : vector<16x256xf32>
    %c0_86 = arith.constant 0 : index
    %c0_87 = arith.constant 0 : index
    %361 = vector.load %arg11[%c0_86, %c0_87] : memref<1x256xf32, #tpu.memory_space<vmem>>, vector<1x256xf32>
    %c0_88 = arith.constant 0 : index
    %c0_89 = arith.constant 0 : index
    %362 = vector.load %arg12[%c0_88, %c0_89] : memref<1x256xf32, #tpu.memory_space<vmem>>, vector<1x256xf32>
    %cst_90 = arith.constant dense<0.000000e+00> : vector<16xf32>
    %363 = vector.multi_reduction <add>, %360, %cst_90 [1] : vector<16x256xf32> to vector<16xf32>
    %364 = vector.shape_cast %363 : vector<16xf32> to vector<16x1xf32>
    %cst_91 = arith.constant 2.560000e+02 : f32
    %365 = vector.broadcast %cst_91 : f32 to vector<16x1xf32>
    %366 = arith.divf %364, %365 : vector<16x1xf32>
    %367 = vector.broadcast %366 : vector<16x1xf32> to vector<16x256xf32>
    %368 = arith.subf %360, %367 : vector<16x256xf32>
    %369 = arith.mulf %368, %368 : vector<16x256xf32>
    %cst_92 = arith.constant dense<0.000000e+00> : vector<16xf32>
    %370 = vector.multi_reduction <add>, %369, %cst_92 [1] : vector<16x256xf32> to vector<16xf32>
    %371 = vector.shape_cast %370 : vector<16xf32> to vector<16x1xf32>
    %cst_93 = arith.constant 2.560000e+02 : f32
    %372 = vector.broadcast %cst_93 : f32 to vector<16x1xf32>
    %373 = arith.divf %371, %372 : vector<16x1xf32>
    %374 = vector.broadcast %366 : vector<16x1xf32> to vector<16x256xf32>
    %375 = arith.subf %360, %374 : vector<16x256xf32>
    %cst_94 = arith.constant 9.99999974E-6 : f32
    %376 = vector.broadcast %cst_94 : f32 to vector<16x1xf32>
    %377 = arith.addf %373, %376 : vector<16x1xf32>
    %378 = math.rsqrt %377 : vector<16x1xf32>
    %379 = vector.broadcast %378 : vector<16x1xf32> to vector<16x256xf32>
    %380 = arith.mulf %375, %379 : vector<16x256xf32>
    %381 = vector.broadcast %361 : vector<1x256xf32> to vector<16x256xf32>
    %382 = arith.mulf %380, %381 : vector<16x256xf32>
    %383 = vector.broadcast %362 : vector<1x256xf32> to vector<16x256xf32>
    %384 = arith.addf %382, %383 : vector<16x256xf32>
    %385 = arith.truncf %384 : vector<16x256xf32> to vector<16x256xbf16>
    %c0_95 = arith.constant 0 : index
    %c0_96 = arith.constant 0 : index
    %386 = vector.load %arg13[%c0_95, %c0_96] : memref<256x256xbf16, #tpu.memory_space<vmem>>, vector<256x256xbf16>
    %cst_97 = arith.constant dense<0.000000e+00> : vector<16x256xf32>
    %387 = tpu.matmul %385, %386, %cst_97 {dimension_numbers = #tpu.dot_dimension_numbers<[1], [0], [0], [1], [0, 0, 1, 1], [], []>} : vector<16x256xbf16>, vector<256x256xbf16>, vector<16x256xf32> -> vector<16x256xf32>
    %c0_98 = arith.constant 0 : index
    %c0_99 = arith.constant 0 : index
    %388 = vector.load %arg14[%c0_98, %c0_99] : memref<1x256xf32, #tpu.memory_space<vmem>>, vector<1x256xf32>
    %389 = vector.broadcast %388 : vector<1x256xf32> to vector<16x256xf32>
    %390 = arith.addf %387, %389 : vector<16x256xf32>
    %391 = arith.truncf %1 : vector<32x256xf32> to vector<32x256xbf16>
    %c0_100 = arith.constant 0 : index
    %c0_101 = arith.constant 0 : index
    %392 = vector.load %arg15[%c0_100, %c0_101] : memref<256x512xbf16, #tpu.memory_space<vmem>>, vector<256x512xbf16>
    %cst_102 = arith.constant dense<0.000000e+00> : vector<32x512xf32>
    %393 = tpu.matmul %391, %392, %cst_102 {dimension_numbers = #tpu.dot_dimension_numbers<[1], [0], [0], [1], [0, 0, 1, 1], [], []>} : vector<32x256xbf16>, vector<256x512xbf16>, vector<32x512xf32> -> vector<32x512xf32>
    %c0_103 = arith.constant 0 : index
    %c0_104 = arith.constant 0 : index
    %394 = vector.load %arg16[%c0_103, %c0_104] : memref<1x512xf32, #tpu.memory_space<vmem>>, vector<1x512xf32>
    %395 = vector.broadcast %394 : vector<1x512xf32> to vector<32x512xf32>
    %396 = arith.addf %393, %395 : vector<32x512xf32>
    %397 = vector.extract_strided_slice %396 {offsets = [0, 0], sizes = [32, 256], strides = [1, 1]} : vector<32x512xf32> to vector<32x256xf32>
    %398 = vector.extract_strided_slice %396 {offsets = [0, 256], sizes = [32, 256], strides = [1, 1]} : vector<32x512xf32> to vector<32x256xf32>
    %399 = vector.extract_strided_slice %390 {offsets = [0, 0], sizes = [8, 256], strides = [1, 1]} : vector<16x256xf32> to vector<8x256xf32>
    %cst_105 = arith.constant 0.176776692 : f32
    %400 = vector.broadcast %cst_105 : f32 to vector<8x256xf32>
    %401 = arith.mulf %399, %400 : vector<8x256xf32>
    %402 = vector.extract_strided_slice %397 {offsets = [0, 0], sizes = [16, 256], strides = [1, 1]} : vector<32x256xf32> to vector<16x256xf32>
    %403 = vector.extract_strided_slice %398 {offsets = [0, 0], sizes = [16, 256], strides = [1, 1]} : vector<32x256xf32> to vector<16x256xf32>
    %404 = vector.extract_strided_slice %5 {offsets = [0, 0], sizes = [1, 16], strides = [1, 1]} : vector<2x16xf32> to vector<1x16xf32>
    %405 = vector.broadcast %404 : vector<1x16xf32> to vector<8x16xf32>
    %406 = arith.addf %4, %405 : vector<8x16xf32>
    %407 = vector.extract_strided_slice %401 {offsets = [0, 0], sizes = [8, 32], strides = [1, 1]} : vector<8x256xf32> to vector<8x32xf32>
    %408 = arith.truncf %407 : vector<8x32xf32> to vector<8x32xbf16>
    %409 = vector.extract_strided_slice %402 {offsets = [0, 0], sizes = [16, 32], strides = [1, 1]} : vector<16x256xf32> to vector<16x32xf32>
    %410 = arith.truncf %409 : vector<16x32xf32> to vector<16x32xbf16>
    %411 = vector.extract_strided_slice %403 {offsets = [0, 0], sizes = [16, 32], strides = [1, 1]} : vector<16x256xf32> to vector<16x32xf32>
    %412 = arith.truncf %411 : vector<16x32xf32> to vector<16x32xbf16>
    %cst_106 = arith.constant dense<0.000000e+00> : vector<8x16xf32>
    %413 = tpu.matmul %408, %410, %cst_106 {dimension_numbers = #tpu.dot_dimension_numbers<[1], [1], [0], [0], [0, 0, 1, 0], [], []>} : vector<8x32xbf16>, vector<16x32xbf16>, vector<8x16xf32> -> vector<8x16xf32>
    %414 = arith.addf %413, %406 : vector<8x16xf32>
    %cst_107 = arith.constant dense<0xFF800000> : vector<8xf32>
    %415 = vector.multi_reduction <maximumf>, %414, %cst_107 [1] : vector<8x16xf32> to vector<8xf32>
    %416 = vector.shape_cast %415 : vector<8xf32> to vector<8x1xf32>
    %417 = vector.broadcast %416 : vector<8x1xf32> to vector<8x16xf32>
    %418 = arith.subf %414, %417 : vector<8x16xf32>
    %419 = math.exp %418 : vector<8x16xf32>
    %cst_108 = arith.constant dense<0.000000e+00> : vector<8xf32>
    %420 = vector.multi_reduction <add>, %419, %cst_108 [1] : vector<8x16xf32> to vector<8xf32>
    %421 = vector.shape_cast %420 : vector<8xf32> to vector<8x1xf32>
    %422 = tpu.reciprocal %421 {approx = true} : vector<8x1xf32> -> vector<8x1xf32>
    %423 = vector.broadcast %422 : vector<8x1xf32> to vector<8x16xf32>
    %424 = arith.mulf %419, %423 : vector<8x16xf32>
    %425 = arith.truncf %424 : vector<8x16xf32> to vector<8x16xbf16>
    %cst_109 = arith.constant dense<0.000000e+00> : vector<8x32xf32>
    %426 = tpu.matmul %425, %412, %cst_109 {dimension_numbers = #tpu.dot_dimension_numbers<[1], [0], [0], [1], [0, 0, 1, 1], [], []>} : vector<8x16xbf16>, vector<16x32xbf16>, vector<8x32xf32> -> vector<8x32xf32>
    %427 = vector.extract_strided_slice %401 {offsets = [0, 32], sizes = [8, 32], strides = [1, 1]} : vector<8x256xf32> to vector<8x32xf32>
    %428 = arith.truncf %427 : vector<8x32xf32> to vector<8x32xbf16>
    %429 = vector.extract_strided_slice %402 {offsets = [0, 32], sizes = [16, 32], strides = [1, 1]} : vector<16x256xf32> to vector<16x32xf32>
    %430 = arith.truncf %429 : vector<16x32xf32> to vector<16x32xbf16>
    %431 = vector.extract_strided_slice %403 {offsets = [0, 32], sizes = [16, 32], strides = [1, 1]} : vector<16x256xf32> to vector<16x32xf32>
    %432 = arith.truncf %431 : vector<16x32xf32> to vector<16x32xbf16>
    %cst_110 = arith.constant dense<0.000000e+00> : vector<8x16xf32>
    %433 = tpu.matmul %428, %430, %cst_110 {dimension_numbers = #tpu.dot_dimension_numbers<[1], [1], [0], [0], [0, 0, 1, 0], [], []>} : vector<8x32xbf16>, vector<16x32xbf16>, vector<8x16xf32> -> vector<8x16xf32>
    %434 = arith.addf %433, %406 : vector<8x16xf32>
    %cst_111 = arith.constant dense<0xFF800000> : vector<8xf32>
    %435 = vector.multi_reduction <maximumf>, %434, %cst_111 [1] : vector<8x16xf32> to vector<8xf32>
    %436 = vector.shape_cast %435 : vector<8xf32> to vector<8x1xf32>
    %437 = vector.broadcast %436 : vector<8x1xf32> to vector<8x16xf32>
    %438 = arith.subf %434, %437 : vector<8x16xf32>
    %439 = math.exp %438 : vector<8x16xf32>
    %cst_112 = arith.constant dense<0.000000e+00> : vector<8xf32>
    %440 = vector.multi_reduction <add>, %439, %cst_112 [1] : vector<8x16xf32> to vector<8xf32>
    %441 = vector.shape_cast %440 : vector<8xf32> to vector<8x1xf32>
    %442 = tpu.reciprocal %441 {approx = true} : vector<8x1xf32> -> vector<8x1xf32>
    %443 = vector.broadcast %442 : vector<8x1xf32> to vector<8x16xf32>
    %444 = arith.mulf %439, %443 : vector<8x16xf32>
    %445 = arith.truncf %444 : vector<8x16xf32> to vector<8x16xbf16>
    %cst_113 = arith.constant dense<0.000000e+00> : vector<8x32xf32>
    %446 = tpu.matmul %445, %432, %cst_113 {dimension_numbers = #tpu.dot_dimension_numbers<[1], [0], [0], [1], [0, 0, 1, 1], [], []>} : vector<8x16xbf16>, vector<16x32xbf16>, vector<8x32xf32> -> vector<8x32xf32>
    %447 = vector.extract_strided_slice %401 {offsets = [0, 64], sizes = [8, 32], strides = [1, 1]} : vector<8x256xf32> to vector<8x32xf32>
    %448 = arith.truncf %447 : vector<8x32xf32> to vector<8x32xbf16>
    %449 = vector.extract_strided_slice %402 {offsets = [0, 64], sizes = [16, 32], strides = [1, 1]} : vector<16x256xf32> to vector<16x32xf32>
    %450 = arith.truncf %449 : vector<16x32xf32> to vector<16x32xbf16>
    %451 = vector.extract_strided_slice %403 {offsets = [0, 64], sizes = [16, 32], strides = [1, 1]} : vector<16x256xf32> to vector<16x32xf32>
    %452 = arith.truncf %451 : vector<16x32xf32> to vector<16x32xbf16>
    %cst_114 = arith.constant dense<0.000000e+00> : vector<8x16xf32>
    %453 = tpu.matmul %448, %450, %cst_114 {dimension_numbers = #tpu.dot_dimension_numbers<[1], [1], [0], [0], [0, 0, 1, 0], [], []>} : vector<8x32xbf16>, vector<16x32xbf16>, vector<8x16xf32> -> vector<8x16xf32>
    %454 = arith.addf %453, %406 : vector<8x16xf32>
    %cst_115 = arith.constant dense<0xFF800000> : vector<8xf32>
    %455 = vector.multi_reduction <maximumf>, %454, %cst_115 [1] : vector<8x16xf32> to vector<8xf32>
    %456 = vector.shape_cast %455 : vector<8xf32> to vector<8x1xf32>
    %457 = vector.broadcast %456 : vector<8x1xf32> to vector<8x16xf32>
    %458 = arith.subf %454, %457 : vector<8x16xf32>
    %459 = math.exp %458 : vector<8x16xf32>
    %cst_116 = arith.constant dense<0.000000e+00> : vector<8xf32>
    %460 = vector.multi_reduction <add>, %459, %cst_116 [1] : vector<8x16xf32> to vector<8xf32>
    %461 = vector.shape_cast %460 : vector<8xf32> to vector<8x1xf32>
    %462 = tpu.reciprocal %461 {approx = true} : vector<8x1xf32> -> vector<8x1xf32>
    %463 = vector.broadcast %462 : vector<8x1xf32> to vector<8x16xf32>
    %464 = arith.mulf %459, %463 : vector<8x16xf32>
    %465 = arith.truncf %464 : vector<8x16xf32> to vector<8x16xbf16>
    %cst_117 = arith.constant dense<0.000000e+00> : vector<8x32xf32>
    %466 = tpu.matmul %465, %452, %cst_117 {dimension_numbers = #tpu.dot_dimension_numbers<[1], [0], [0], [1], [0, 0, 1, 1], [], []>} : vector<8x16xbf16>, vector<16x32xbf16>, vector<8x32xf32> -> vector<8x32xf32>
    %467 = vector.extract_strided_slice %401 {offsets = [0, 96], sizes = [8, 32], strides = [1, 1]} : vector<8x256xf32> to vector<8x32xf32>
    %468 = arith.truncf %467 : vector<8x32xf32> to vector<8x32xbf16>
    %469 = vector.extract_strided_slice %402 {offsets = [0, 96], sizes = [16, 32], strides = [1, 1]} : vector<16x256xf32> to vector<16x32xf32>
    %470 = arith.truncf %469 : vector<16x32xf32> to vector<16x32xbf16>
    %471 = vector.extract_strided_slice %403 {offsets = [0, 96], sizes = [16, 32], strides = [1, 1]} : vector<16x256xf32> to vector<16x32xf32>
    %472 = arith.truncf %471 : vector<16x32xf32> to vector<16x32xbf16>
    %cst_118 = arith.constant dense<0.000000e+00> : vector<8x16xf32>
    %473 = tpu.matmul %468, %470, %cst_118 {dimension_numbers = #tpu.dot_dimension_numbers<[1], [1], [0], [0], [0, 0, 1, 0], [], []>} : vector<8x32xbf16>, vector<16x32xbf16>, vector<8x16xf32> -> vector<8x16xf32>
    %474 = arith.addf %473, %406 : vector<8x16xf32>
    %cst_119 = arith.constant dense<0xFF800000> : vector<8xf32>
    %475 = vector.multi_reduction <maximumf>, %474, %cst_119 [1] : vector<8x16xf32> to vector<8xf32>
    %476 = vector.shape_cast %475 : vector<8xf32> to vector<8x1xf32>
    %477 = vector.broadcast %476 : vector<8x1xf32> to vector<8x16xf32>
    %478 = arith.subf %474, %477 : vector<8x16xf32>
    %479 = math.exp %478 : vector<8x16xf32>
    %cst_120 = arith.constant dense<0.000000e+00> : vector<8xf32>
    %480 = vector.multi_reduction <add>, %479, %cst_120 [1] : vector<8x16xf32> to vector<8xf32>
    %481 = vector.shape_cast %480 : vector<8xf32> to vector<8x1xf32>
    %482 = tpu.reciprocal %481 {approx = true} : vector<8x1xf32> -> vector<8x1xf32>
    %483 = vector.broadcast %482 : vector<8x1xf32> to vector<8x16xf32>
    %484 = arith.mulf %479, %483 : vector<8x16xf32>
    %485 = arith.truncf %484 : vector<8x16xf32> to vector<8x16xbf16>
    %cst_121 = arith.constant dense<0.000000e+00> : vector<8x32xf32>
    %486 = tpu.matmul %485, %472, %cst_121 {dimension_numbers = #tpu.dot_dimension_numbers<[1], [0], [0], [1], [0, 0, 1, 1], [], []>} : vector<8x16xbf16>, vector<16x32xbf16>, vector<8x32xf32> -> vector<8x32xf32>
    %487 = vector.extract_strided_slice %401 {offsets = [0, 128], sizes = [8, 32], strides = [1, 1]} : vector<8x256xf32> to vector<8x32xf32>
    %488 = arith.truncf %487 : vector<8x32xf32> to vector<8x32xbf16>
    %489 = vector.extract_strided_slice %402 {offsets = [0, 128], sizes = [16, 32], strides = [1, 1]} : vector<16x256xf32> to vector<16x32xf32>
    %490 = arith.truncf %489 : vector<16x32xf32> to vector<16x32xbf16>
    %491 = vector.extract_strided_slice %403 {offsets = [0, 128], sizes = [16, 32], strides = [1, 1]} : vector<16x256xf32> to vector<16x32xf32>
    %492 = arith.truncf %491 : vector<16x32xf32> to vector<16x32xbf16>
    %cst_122 = arith.constant dense<0.000000e+00> : vector<8x16xf32>
    %493 = tpu.matmul %488, %490, %cst_122 {dimension_numbers = #tpu.dot_dimension_numbers<[1], [1], [0], [0], [0, 0, 1, 0], [], []>} : vector<8x32xbf16>, vector<16x32xbf16>, vector<8x16xf32> -> vector<8x16xf32>
    %494 = arith.addf %493, %406 : vector<8x16xf32>
    %cst_123 = arith.constant dense<0xFF800000> : vector<8xf32>
    %495 = vector.multi_reduction <maximumf>, %494, %cst_123 [1] : vector<8x16xf32> to vector<8xf32>
    %496 = vector.shape_cast %495 : vector<8xf32> to vector<8x1xf32>
    %497 = vector.broadcast %496 : vector<8x1xf32> to vector<8x16xf32>
    %498 = arith.subf %494, %497 : vector<8x16xf32>
    %499 = math.exp %498 : vector<8x16xf32>
    %cst_124 = arith.constant dense<0.000000e+00> : vector<8xf32>
    %500 = vector.multi_reduction <add>, %499, %cst_124 [1] : vector<8x16xf32> to vector<8xf32>
    %501 = vector.shape_cast %500 : vector<8xf32> to vector<8x1xf32>
    %502 = tpu.reciprocal %501 {approx = true} : vector<8x1xf32> -> vector<8x1xf32>
    %503 = vector.broadcast %502 : vector<8x1xf32> to vector<8x16xf32>
    %504 = arith.mulf %499, %503 : vector<8x16xf32>
    %505 = arith.truncf %504 : vector<8x16xf32> to vector<8x16xbf16>
    %cst_125 = arith.constant dense<0.000000e+00> : vector<8x32xf32>
    %506 = tpu.matmul %505, %492, %cst_125 {dimension_numbers = #tpu.dot_dimension_numbers<[1], [0], [0], [1], [0, 0, 1, 1], [], []>} : vector<8x16xbf16>, vector<16x32xbf16>, vector<8x32xf32> -> vector<8x32xf32>
    %507 = vector.extract_strided_slice %401 {offsets = [0, 160], sizes = [8, 32], strides = [1, 1]} : vector<8x256xf32> to vector<8x32xf32>
    %508 = arith.truncf %507 : vector<8x32xf32> to vector<8x32xbf16>
    %509 = vector.extract_strided_slice %402 {offsets = [0, 160], sizes = [16, 32], strides = [1, 1]} : vector<16x256xf32> to vector<16x32xf32>
    %510 = arith.truncf %509 : vector<16x32xf32> to vector<16x32xbf16>
    %511 = vector.extract_strided_slice %403 {offsets = [0, 160], sizes = [16, 32], strides = [1, 1]} : vector<16x256xf32> to vector<16x32xf32>
    %512 = arith.truncf %511 : vector<16x32xf32> to vector<16x32xbf16>
    %cst_126 = arith.constant dense<0.000000e+00> : vector<8x16xf32>
    %513 = tpu.matmul %508, %510, %cst_126 {dimension_numbers = #tpu.dot_dimension_numbers<[1], [1], [0], [0], [0, 0, 1, 0], [], []>} : vector<8x32xbf16>, vector<16x32xbf16>, vector<8x16xf32> -> vector<8x16xf32>
    %514 = arith.addf %513, %406 : vector<8x16xf32>
    %cst_127 = arith.constant dense<0xFF800000> : vector<8xf32>
    %515 = vector.multi_reduction <maximumf>, %514, %cst_127 [1] : vector<8x16xf32> to vector<8xf32>
    %516 = vector.shape_cast %515 : vector<8xf32> to vector<8x1xf32>
    %517 = vector.broadcast %516 : vector<8x1xf32> to vector<8x16xf32>
    %518 = arith.subf %514, %517 : vector<8x16xf32>
    %519 = math.exp %518 : vector<8x16xf32>
    %cst_128 = arith.constant dense<0.000000e+00> : vector<8xf32>
    %520 = vector.multi_reduction <add>, %519, %cst_128 [1] : vector<8x16xf32> to vector<8xf32>
    %521 = vector.shape_cast %520 : vector<8xf32> to vector<8x1xf32>
    %522 = tpu.reciprocal %521 {approx = true} : vector<8x1xf32> -> vector<8x1xf32>
    %523 = vector.broadcast %522 : vector<8x1xf32> to vector<8x16xf32>
    %524 = arith.mulf %519, %523 : vector<8x16xf32>
    %525 = arith.truncf %524 : vector<8x16xf32> to vector<8x16xbf16>
    %cst_129 = arith.constant dense<0.000000e+00> : vector<8x32xf32>
    %526 = tpu.matmul %525, %512, %cst_129 {dimension_numbers = #tpu.dot_dimension_numbers<[1], [0], [0], [1], [0, 0, 1, 1], [], []>} : vector<8x16xbf16>, vector<16x32xbf16>, vector<8x32xf32> -> vector<8x32xf32>
    %527 = vector.extract_strided_slice %401 {offsets = [0, 192], sizes = [8, 32], strides = [1, 1]} : vector<8x256xf32> to vector<8x32xf32>
    %528 = arith.truncf %527 : vector<8x32xf32> to vector<8x32xbf16>
    %529 = vector.extract_strided_slice %402 {offsets = [0, 192], sizes = [16, 32], strides = [1, 1]} : vector<16x256xf32> to vector<16x32xf32>
    %530 = arith.truncf %529 : vector<16x32xf32> to vector<16x32xbf16>
    %531 = vector.extract_strided_slice %403 {offsets = [0, 192], sizes = [16, 32], strides = [1, 1]} : vector<16x256xf32> to vector<16x32xf32>
    %532 = arith.truncf %531 : vector<16x32xf32> to vector<16x32xbf16>
    %cst_130 = arith.constant dense<0.000000e+00> : vector<8x16xf32>
    %533 = tpu.matmul %528, %530, %cst_130 {dimension_numbers = #tpu.dot_dimension_numbers<[1], [1], [0], [0], [0, 0, 1, 0], [], []>} : vector<8x32xbf16>, vector<16x32xbf16>, vector<8x16xf32> -> vector<8x16xf32>
    %534 = arith.addf %533, %406 : vector<8x16xf32>
    %cst_131 = arith.constant dense<0xFF800000> : vector<8xf32>
    %535 = vector.multi_reduction <maximumf>, %534, %cst_131 [1] : vector<8x16xf32> to vector<8xf32>
    %536 = vector.shape_cast %535 : vector<8xf32> to vector<8x1xf32>
    %537 = vector.broadcast %536 : vector<8x1xf32> to vector<8x16xf32>
    %538 = arith.subf %534, %537 : vector<8x16xf32>
    %539 = math.exp %538 : vector<8x16xf32>
    %cst_132 = arith.constant dense<0.000000e+00> : vector<8xf32>
    %540 = vector.multi_reduction <add>, %539, %cst_132 [1] : vector<8x16xf32> to vector<8xf32>
    %541 = vector.shape_cast %540 : vector<8xf32> to vector<8x1xf32>
    %542 = tpu.reciprocal %541 {approx = true} : vector<8x1xf32> -> vector<8x1xf32>
    %543 = vector.broadcast %542 : vector<8x1xf32> to vector<8x16xf32>
    %544 = arith.mulf %539, %543 : vector<8x16xf32>
    %545 = arith.truncf %544 : vector<8x16xf32> to vector<8x16xbf16>
    %cst_133 = arith.constant dense<0.000000e+00> : vector<8x32xf32>
    %546 = tpu.matmul %545, %532, %cst_133 {dimension_numbers = #tpu.dot_dimension_numbers<[1], [0], [0], [1], [0, 0, 1, 1], [], []>} : vector<8x16xbf16>, vector<16x32xbf16>, vector<8x32xf32> -> vector<8x32xf32>
    %547 = vector.extract_strided_slice %401 {offsets = [0, 224], sizes = [8, 32], strides = [1, 1]} : vector<8x256xf32> to vector<8x32xf32>
    %548 = arith.truncf %547 : vector<8x32xf32> to vector<8x32xbf16>
    %549 = vector.extract_strided_slice %402 {offsets = [0, 224], sizes = [16, 32], strides = [1, 1]} : vector<16x256xf32> to vector<16x32xf32>
    %550 = arith.truncf %549 : vector<16x32xf32> to vector<16x32xbf16>
    %551 = vector.extract_strided_slice %403 {offsets = [0, 224], sizes = [16, 32], strides = [1, 1]} : vector<16x256xf32> to vector<16x32xf32>
    %552 = arith.truncf %551 : vector<16x32xf32> to vector<16x32xbf16>
    %cst_134 = arith.constant dense<0.000000e+00> : vector<8x16xf32>
    %553 = tpu.matmul %548, %550, %cst_134 {dimension_numbers = #tpu.dot_dimension_numbers<[1], [1], [0], [0], [0, 0, 1, 0], [], []>} : vector<8x32xbf16>, vector<16x32xbf16>, vector<8x16xf32> -> vector<8x16xf32>
    %554 = arith.addf %553, %406 : vector<8x16xf32>
    %cst_135 = arith.constant dense<0xFF800000> : vector<8xf32>
    %555 = vector.multi_reduction <maximumf>, %554, %cst_135 [1] : vector<8x16xf32> to vector<8xf32>
    %556 = vector.shape_cast %555 : vector<8xf32> to vector<8x1xf32>
    %557 = vector.broadcast %556 : vector<8x1xf32> to vector<8x16xf32>
    %558 = arith.subf %554, %557 : vector<8x16xf32>
    %559 = math.exp %558 : vector<8x16xf32>
    %cst_136 = arith.constant dense<0.000000e+00> : vector<8xf32>
    %560 = vector.multi_reduction <add>, %559, %cst_136 [1] : vector<8x16xf32> to vector<8xf32>
    %561 = vector.shape_cast %560 : vector<8xf32> to vector<8x1xf32>
    %562 = tpu.reciprocal %561 {approx = true} : vector<8x1xf32> -> vector<8x1xf32>
    %563 = vector.broadcast %562 : vector<8x1xf32> to vector<8x16xf32>
    %564 = arith.mulf %559, %563 : vector<8x16xf32>
    %565 = arith.truncf %564 : vector<8x16xf32> to vector<8x16xbf16>
    %cst_137 = arith.constant dense<0.000000e+00> : vector<8x32xf32>
    %566 = tpu.matmul %565, %552, %cst_137 {dimension_numbers = #tpu.dot_dimension_numbers<[1], [0], [0], [1], [0, 0, 1, 1], [], []>} : vector<8x16xbf16>, vector<16x32xbf16>, vector<8x32xf32> -> vector<8x32xf32>
    %567 = tpu.concatenate %426, %446, %466, %486, %506, %526, %546, %566 in 1 : vector<8x32xf32>, vector<8x32xf32>, vector<8x32xf32>, vector<8x32xf32>, vector<8x32xf32>, vector<8x32xf32>, vector<8x32xf32>, vector<8x32xf32> -> vector<8x256xf32>
    %568 = vector.extract_strided_slice %390 {offsets = [8, 0], sizes = [8, 256], strides = [1, 1]} : vector<16x256xf32> to vector<8x256xf32>
    %cst_138 = arith.constant 0.176776692 : f32
    %569 = vector.broadcast %cst_138 : f32 to vector<8x256xf32>
    %570 = arith.mulf %568, %569 : vector<8x256xf32>
    %571 = vector.extract_strided_slice %397 {offsets = [16, 0], sizes = [16, 256], strides = [1, 1]} : vector<32x256xf32> to vector<16x256xf32>
    %572 = vector.extract_strided_slice %398 {offsets = [16, 0], sizes = [16, 256], strides = [1, 1]} : vector<32x256xf32> to vector<16x256xf32>
    %573 = vector.extract_strided_slice %5 {offsets = [1, 0], sizes = [1, 16], strides = [1, 1]} : vector<2x16xf32> to vector<1x16xf32>
    %574 = vector.broadcast %573 : vector<1x16xf32> to vector<8x16xf32>
    %575 = arith.addf %4, %574 : vector<8x16xf32>
    %576 = vector.extract_strided_slice %570 {offsets = [0, 0], sizes = [8, 32], strides = [1, 1]} : vector<8x256xf32> to vector<8x32xf32>
    %577 = arith.truncf %576 : vector<8x32xf32> to vector<8x32xbf16>
    %578 = vector.extract_strided_slice %571 {offsets = [0, 0], sizes = [16, 32], strides = [1, 1]} : vector<16x256xf32> to vector<16x32xf32>
    %579 = arith.truncf %578 : vector<16x32xf32> to vector<16x32xbf16>
    %580 = vector.extract_strided_slice %572 {offsets = [0, 0], sizes = [16, 32], strides = [1, 1]} : vector<16x256xf32> to vector<16x32xf32>
    %581 = arith.truncf %580 : vector<16x32xf32> to vector<16x32xbf16>
    %cst_139 = arith.constant dense<0.000000e+00> : vector<8x16xf32>
    %582 = tpu.matmul %577, %579, %cst_139 {dimension_numbers = #tpu.dot_dimension_numbers<[1], [1], [0], [0], [0, 0, 1, 0], [], []>} : vector<8x32xbf16>, vector<16x32xbf16>, vector<8x16xf32> -> vector<8x16xf32>
    %583 = arith.addf %582, %575 : vector<8x16xf32>
    %cst_140 = arith.constant dense<0xFF800000> : vector<8xf32>
    %584 = vector.multi_reduction <maximumf>, %583, %cst_140 [1] : vector<8x16xf32> to vector<8xf32>
    %585 = vector.shape_cast %584 : vector<8xf32> to vector<8x1xf32>
    %586 = vector.broadcast %585 : vector<8x1xf32> to vector<8x16xf32>
    %587 = arith.subf %583, %586 : vector<8x16xf32>
    %588 = math.exp %587 : vector<8x16xf32>
    %cst_141 = arith.constant dense<0.000000e+00> : vector<8xf32>
    %589 = vector.multi_reduction <add>, %588, %cst_141 [1] : vector<8x16xf32> to vector<8xf32>
    %590 = vector.shape_cast %589 : vector<8xf32> to vector<8x1xf32>
    %591 = tpu.reciprocal %590 {approx = true} : vector<8x1xf32> -> vector<8x1xf32>
    %592 = vector.broadcast %591 : vector<8x1xf32> to vector<8x16xf32>
    %593 = arith.mulf %588, %592 : vector<8x16xf32>
    %594 = arith.truncf %593 : vector<8x16xf32> to vector<8x16xbf16>
    %cst_142 = arith.constant dense<0.000000e+00> : vector<8x32xf32>
    %595 = tpu.matmul %594, %581, %cst_142 {dimension_numbers = #tpu.dot_dimension_numbers<[1], [0], [0], [1], [0, 0, 1, 1], [], []>} : vector<8x16xbf16>, vector<16x32xbf16>, vector<8x32xf32> -> vector<8x32xf32>
    %596 = vector.extract_strided_slice %570 {offsets = [0, 32], sizes = [8, 32], strides = [1, 1]} : vector<8x256xf32> to vector<8x32xf32>
    %597 = arith.truncf %596 : vector<8x32xf32> to vector<8x32xbf16>
    %598 = vector.extract_strided_slice %571 {offsets = [0, 32], sizes = [16, 32], strides = [1, 1]} : vector<16x256xf32> to vector<16x32xf32>
    %599 = arith.truncf %598 : vector<16x32xf32> to vector<16x32xbf16>
    %600 = vector.extract_strided_slice %572 {offsets = [0, 32], sizes = [16, 32], strides = [1, 1]} : vector<16x256xf32> to vector<16x32xf32>
    %601 = arith.truncf %600 : vector<16x32xf32> to vector<16x32xbf16>
    %cst_143 = arith.constant dense<0.000000e+00> : vector<8x16xf32>
    %602 = tpu.matmul %597, %599, %cst_143 {dimension_numbers = #tpu.dot_dimension_numbers<[1], [1], [0], [0], [0, 0, 1, 0], [], []>} : vector<8x32xbf16>, vector<16x32xbf16>, vector<8x16xf32> -> vector<8x16xf32>
    %603 = arith.addf %602, %575 : vector<8x16xf32>
    %cst_144 = arith.constant dense<0xFF800000> : vector<8xf32>
    %604 = vector.multi_reduction <maximumf>, %603, %cst_144 [1] : vector<8x16xf32> to vector<8xf32>
    %605 = vector.shape_cast %604 : vector<8xf32> to vector<8x1xf32>
    %606 = vector.broadcast %605 : vector<8x1xf32> to vector<8x16xf32>
    %607 = arith.subf %603, %606 : vector<8x16xf32>
    %608 = math.exp %607 : vector<8x16xf32>
    %cst_145 = arith.constant dense<0.000000e+00> : vector<8xf32>
    %609 = vector.multi_reduction <add>, %608, %cst_145 [1] : vector<8x16xf32> to vector<8xf32>
    %610 = vector.shape_cast %609 : vector<8xf32> to vector<8x1xf32>
    %611 = tpu.reciprocal %610 {approx = true} : vector<8x1xf32> -> vector<8x1xf32>
    %612 = vector.broadcast %611 : vector<8x1xf32> to vector<8x16xf32>
    %613 = arith.mulf %608, %612 : vector<8x16xf32>
    %614 = arith.truncf %613 : vector<8x16xf32> to vector<8x16xbf16>
    %cst_146 = arith.constant dense<0.000000e+00> : vector<8x32xf32>
    %615 = tpu.matmul %614, %601, %cst_146 {dimension_numbers = #tpu.dot_dimension_numbers<[1], [0], [0], [1], [0, 0, 1, 1], [], []>} : vector<8x16xbf16>, vector<16x32xbf16>, vector<8x32xf32> -> vector<8x32xf32>
    %616 = vector.extract_strided_slice %570 {offsets = [0, 64], sizes = [8, 32], strides = [1, 1]} : vector<8x256xf32> to vector<8x32xf32>
    %617 = arith.truncf %616 : vector<8x32xf32> to vector<8x32xbf16>
    %618 = vector.extract_strided_slice %571 {offsets = [0, 64], sizes = [16, 32], strides = [1, 1]} : vector<16x256xf32> to vector<16x32xf32>
    %619 = arith.truncf %618 : vector<16x32xf32> to vector<16x32xbf16>
    %620 = vector.extract_strided_slice %572 {offsets = [0, 64], sizes = [16, 32], strides = [1, 1]} : vector<16x256xf32> to vector<16x32xf32>
    %621 = arith.truncf %620 : vector<16x32xf32> to vector<16x32xbf16>
    %cst_147 = arith.constant dense<0.000000e+00> : vector<8x16xf32>
    %622 = tpu.matmul %617, %619, %cst_147 {dimension_numbers = #tpu.dot_dimension_numbers<[1], [1], [0], [0], [0, 0, 1, 0], [], []>} : vector<8x32xbf16>, vector<16x32xbf16>, vector<8x16xf32> -> vector<8x16xf32>
    %623 = arith.addf %622, %575 : vector<8x16xf32>
    %cst_148 = arith.constant dense<0xFF800000> : vector<8xf32>
    %624 = vector.multi_reduction <maximumf>, %623, %cst_148 [1] : vector<8x16xf32> to vector<8xf32>
    %625 = vector.shape_cast %624 : vector<8xf32> to vector<8x1xf32>
    %626 = vector.broadcast %625 : vector<8x1xf32> to vector<8x16xf32>
    %627 = arith.subf %623, %626 : vector<8x16xf32>
    %628 = math.exp %627 : vector<8x16xf32>
    %cst_149 = arith.constant dense<0.000000e+00> : vector<8xf32>
    %629 = vector.multi_reduction <add>, %628, %cst_149 [1] : vector<8x16xf32> to vector<8xf32>
    %630 = vector.shape_cast %629 : vector<8xf32> to vector<8x1xf32>
    %631 = tpu.reciprocal %630 {approx = true} : vector<8x1xf32> -> vector<8x1xf32>
    %632 = vector.broadcast %631 : vector<8x1xf32> to vector<8x16xf32>
    %633 = arith.mulf %628, %632 : vector<8x16xf32>
    %634 = arith.truncf %633 : vector<8x16xf32> to vector<8x16xbf16>
    %cst_150 = arith.constant dense<0.000000e+00> : vector<8x32xf32>
    %635 = tpu.matmul %634, %621, %cst_150 {dimension_numbers = #tpu.dot_dimension_numbers<[1], [0], [0], [1], [0, 0, 1, 1], [], []>} : vector<8x16xbf16>, vector<16x32xbf16>, vector<8x32xf32> -> vector<8x32xf32>
    %636 = vector.extract_strided_slice %570 {offsets = [0, 96], sizes = [8, 32], strides = [1, 1]} : vector<8x256xf32> to vector<8x32xf32>
    %637 = arith.truncf %636 : vector<8x32xf32> to vector<8x32xbf16>
    %638 = vector.extract_strided_slice %571 {offsets = [0, 96], sizes = [16, 32], strides = [1, 1]} : vector<16x256xf32> to vector<16x32xf32>
    %639 = arith.truncf %638 : vector<16x32xf32> to vector<16x32xbf16>
    %640 = vector.extract_strided_slice %572 {offsets = [0, 96], sizes = [16, 32], strides = [1, 1]} : vector<16x256xf32> to vector<16x32xf32>
    %641 = arith.truncf %640 : vector<16x32xf32> to vector<16x32xbf16>
    %cst_151 = arith.constant dense<0.000000e+00> : vector<8x16xf32>
    %642 = tpu.matmul %637, %639, %cst_151 {dimension_numbers = #tpu.dot_dimension_numbers<[1], [1], [0], [0], [0, 0, 1, 0], [], []>} : vector<8x32xbf16>, vector<16x32xbf16>, vector<8x16xf32> -> vector<8x16xf32>
    %643 = arith.addf %642, %575 : vector<8x16xf32>
    %cst_152 = arith.constant dense<0xFF800000> : vector<8xf32>
    %644 = vector.multi_reduction <maximumf>, %643, %cst_152 [1] : vector<8x16xf32> to vector<8xf32>
    %645 = vector.shape_cast %644 : vector<8xf32> to vector<8x1xf32>
    %646 = vector.broadcast %645 : vector<8x1xf32> to vector<8x16xf32>
    %647 = arith.subf %643, %646 : vector<8x16xf32>
    %648 = math.exp %647 : vector<8x16xf32>
    %cst_153 = arith.constant dense<0.000000e+00> : vector<8xf32>
    %649 = vector.multi_reduction <add>, %648, %cst_153 [1] : vector<8x16xf32> to vector<8xf32>
    %650 = vector.shape_cast %649 : vector<8xf32> to vector<8x1xf32>
    %651 = tpu.reciprocal %650 {approx = true} : vector<8x1xf32> -> vector<8x1xf32>
    %652 = vector.broadcast %651 : vector<8x1xf32> to vector<8x16xf32>
    %653 = arith.mulf %648, %652 : vector<8x16xf32>
    %654 = arith.truncf %653 : vector<8x16xf32> to vector<8x16xbf16>
    %cst_154 = arith.constant dense<0.000000e+00> : vector<8x32xf32>
    %655 = tpu.matmul %654, %641, %cst_154 {dimension_numbers = #tpu.dot_dimension_numbers<[1], [0], [0], [1], [0, 0, 1, 1], [], []>} : vector<8x16xbf16>, vector<16x32xbf16>, vector<8x32xf32> -> vector<8x32xf32>
    %656 = vector.extract_strided_slice %570 {offsets = [0, 128], sizes = [8, 32], strides = [1, 1]} : vector<8x256xf32> to vector<8x32xf32>
    %657 = arith.truncf %656 : vector<8x32xf32> to vector<8x32xbf16>
    %658 = vector.extract_strided_slice %571 {offsets = [0, 128], sizes = [16, 32], strides = [1, 1]} : vector<16x256xf32> to vector<16x32xf32>
    %659 = arith.truncf %658 : vector<16x32xf32> to vector<16x32xbf16>
    %660 = vector.extract_strided_slice %572 {offsets = [0, 128], sizes = [16, 32], strides = [1, 1]} : vector<16x256xf32> to vector<16x32xf32>
    %661 = arith.truncf %660 : vector<16x32xf32> to vector<16x32xbf16>
    %cst_155 = arith.constant dense<0.000000e+00> : vector<8x16xf32>
    %662 = tpu.matmul %657, %659, %cst_155 {dimension_numbers = #tpu.dot_dimension_numbers<[1], [1], [0], [0], [0, 0, 1, 0], [], []>} : vector<8x32xbf16>, vector<16x32xbf16>, vector<8x16xf32> -> vector<8x16xf32>
    %663 = arith.addf %662, %575 : vector<8x16xf32>
    %cst_156 = arith.constant dense<0xFF800000> : vector<8xf32>
    %664 = vector.multi_reduction <maximumf>, %663, %cst_156 [1] : vector<8x16xf32> to vector<8xf32>
    %665 = vector.shape_cast %664 : vector<8xf32> to vector<8x1xf32>
    %666 = vector.broadcast %665 : vector<8x1xf32> to vector<8x16xf32>
    %667 = arith.subf %663, %666 : vector<8x16xf32>
    %668 = math.exp %667 : vector<8x16xf32>
    %cst_157 = arith.constant dense<0.000000e+00> : vector<8xf32>
    %669 = vector.multi_reduction <add>, %668, %cst_157 [1] : vector<8x16xf32> to vector<8xf32>
    %670 = vector.shape_cast %669 : vector<8xf32> to vector<8x1xf32>
    %671 = tpu.reciprocal %670 {approx = true} : vector<8x1xf32> -> vector<8x1xf32>
    %672 = vector.broadcast %671 : vector<8x1xf32> to vector<8x16xf32>
    %673 = arith.mulf %668, %672 : vector<8x16xf32>
    %674 = arith.truncf %673 : vector<8x16xf32> to vector<8x16xbf16>
    %cst_158 = arith.constant dense<0.000000e+00> : vector<8x32xf32>
    %675 = tpu.matmul %674, %661, %cst_158 {dimension_numbers = #tpu.dot_dimension_numbers<[1], [0], [0], [1], [0, 0, 1, 1], [], []>} : vector<8x16xbf16>, vector<16x32xbf16>, vector<8x32xf32> -> vector<8x32xf32>
    %676 = vector.extract_strided_slice %570 {offsets = [0, 160], sizes = [8, 32], strides = [1, 1]} : vector<8x256xf32> to vector<8x32xf32>
    %677 = arith.truncf %676 : vector<8x32xf32> to vector<8x32xbf16>
    %678 = vector.extract_strided_slice %571 {offsets = [0, 160], sizes = [16, 32], strides = [1, 1]} : vector<16x256xf32> to vector<16x32xf32>
    %679 = arith.truncf %678 : vector<16x32xf32> to vector<16x32xbf16>
    %680 = vector.extract_strided_slice %572 {offsets = [0, 160], sizes = [16, 32], strides = [1, 1]} : vector<16x256xf32> to vector<16x32xf32>
    %681 = arith.truncf %680 : vector<16x32xf32> to vector<16x32xbf16>
    %cst_159 = arith.constant dense<0.000000e+00> : vector<8x16xf32>
    %682 = tpu.matmul %677, %679, %cst_159 {dimension_numbers = #tpu.dot_dimension_numbers<[1], [1], [0], [0], [0, 0, 1, 0], [], []>} : vector<8x32xbf16>, vector<16x32xbf16>, vector<8x16xf32> -> vector<8x16xf32>
    %683 = arith.addf %682, %575 : vector<8x16xf32>
    %cst_160 = arith.constant dense<0xFF800000> : vector<8xf32>
    %684 = vector.multi_reduction <maximumf>, %683, %cst_160 [1] : vector<8x16xf32> to vector<8xf32>
    %685 = vector.shape_cast %684 : vector<8xf32> to vector<8x1xf32>
    %686 = vector.broadcast %685 : vector<8x1xf32> to vector<8x16xf32>
    %687 = arith.subf %683, %686 : vector<8x16xf32>
    %688 = math.exp %687 : vector<8x16xf32>
    %cst_161 = arith.constant dense<0.000000e+00> : vector<8xf32>
    %689 = vector.multi_reduction <add>, %688, %cst_161 [1] : vector<8x16xf32> to vector<8xf32>
    %690 = vector.shape_cast %689 : vector<8xf32> to vector<8x1xf32>
    %691 = tpu.reciprocal %690 {approx = true} : vector<8x1xf32> -> vector<8x1xf32>
    %692 = vector.broadcast %691 : vector<8x1xf32> to vector<8x16xf32>
    %693 = arith.mulf %688, %692 : vector<8x16xf32>
    %694 = arith.truncf %693 : vector<8x16xf32> to vector<8x16xbf16>
    %cst_162 = arith.constant dense<0.000000e+00> : vector<8x32xf32>
    %695 = tpu.matmul %694, %681, %cst_162 {dimension_numbers = #tpu.dot_dimension_numbers<[1], [0], [0], [1], [0, 0, 1, 1], [], []>} : vector<8x16xbf16>, vector<16x32xbf16>, vector<8x32xf32> -> vector<8x32xf32>
    %696 = vector.extract_strided_slice %570 {offsets = [0, 192], sizes = [8, 32], strides = [1, 1]} : vector<8x256xf32> to vector<8x32xf32>
    %697 = arith.truncf %696 : vector<8x32xf32> to vector<8x32xbf16>
    %698 = vector.extract_strided_slice %571 {offsets = [0, 192], sizes = [16, 32], strides = [1, 1]} : vector<16x256xf32> to vector<16x32xf32>
    %699 = arith.truncf %698 : vector<16x32xf32> to vector<16x32xbf16>
    %700 = vector.extract_strided_slice %572 {offsets = [0, 192], sizes = [16, 32], strides = [1, 1]} : vector<16x256xf32> to vector<16x32xf32>
    %701 = arith.truncf %700 : vector<16x32xf32> to vector<16x32xbf16>
    %cst_163 = arith.constant dense<0.000000e+00> : vector<8x16xf32>
    %702 = tpu.matmul %697, %699, %cst_163 {dimension_numbers = #tpu.dot_dimension_numbers<[1], [1], [0], [0], [0, 0, 1, 0], [], []>} : vector<8x32xbf16>, vector<16x32xbf16>, vector<8x16xf32> -> vector<8x16xf32>
    %703 = arith.addf %702, %575 : vector<8x16xf32>
    %cst_164 = arith.constant dense<0xFF800000> : vector<8xf32>
    %704 = vector.multi_reduction <maximumf>, %703, %cst_164 [1] : vector<8x16xf32> to vector<8xf32>
    %705 = vector.shape_cast %704 : vector<8xf32> to vector<8x1xf32>
    %706 = vector.broadcast %705 : vector<8x1xf32> to vector<8x16xf32>
    %707 = arith.subf %703, %706 : vector<8x16xf32>
    %708 = math.exp %707 : vector<8x16xf32>
    %cst_165 = arith.constant dense<0.000000e+00> : vector<8xf32>
    %709 = vector.multi_reduction <add>, %708, %cst_165 [1] : vector<8x16xf32> to vector<8xf32>
    %710 = vector.shape_cast %709 : vector<8xf32> to vector<8x1xf32>
    %711 = tpu.reciprocal %710 {approx = true} : vector<8x1xf32> -> vector<8x1xf32>
    %712 = vector.broadcast %711 : vector<8x1xf32> to vector<8x16xf32>
    %713 = arith.mulf %708, %712 : vector<8x16xf32>
    %714 = arith.truncf %713 : vector<8x16xf32> to vector<8x16xbf16>
    %cst_166 = arith.constant dense<0.000000e+00> : vector<8x32xf32>
    %715 = tpu.matmul %714, %701, %cst_166 {dimension_numbers = #tpu.dot_dimension_numbers<[1], [0], [0], [1], [0, 0, 1, 1], [], []>} : vector<8x16xbf16>, vector<16x32xbf16>, vector<8x32xf32> -> vector<8x32xf32>
    %716 = vector.extract_strided_slice %570 {offsets = [0, 224], sizes = [8, 32], strides = [1, 1]} : vector<8x256xf32> to vector<8x32xf32>
    %717 = arith.truncf %716 : vector<8x32xf32> to vector<8x32xbf16>
    %718 = vector.extract_strided_slice %571 {offsets = [0, 224], sizes = [16, 32], strides = [1, 1]} : vector<16x256xf32> to vector<16x32xf32>
    %719 = arith.truncf %718 : vector<16x32xf32> to vector<16x32xbf16>
    %720 = vector.extract_strided_slice %572 {offsets = [0, 224], sizes = [16, 32], strides = [1, 1]} : vector<16x256xf32> to vector<16x32xf32>
    %721 = arith.truncf %720 : vector<16x32xf32> to vector<16x32xbf16>
    %cst_167 = arith.constant dense<0.000000e+00> : vector<8x16xf32>
    %722 = tpu.matmul %717, %719, %cst_167 {dimension_numbers = #tpu.dot_dimension_numbers<[1], [1], [0], [0], [0, 0, 1, 0], [], []>} : vector<8x32xbf16>, vector<16x32xbf16>, vector<8x16xf32> -> vector<8x16xf32>
    %723 = arith.addf %722, %575 : vector<8x16xf32>
    %cst_168 = arith.constant dense<0xFF800000> : vector<8xf32>
    %724 = vector.multi_reduction <maximumf>, %723, %cst_168 [1] : vector<8x16xf32> to vector<8xf32>
    %725 = vector.shape_cast %724 : vector<8xf32> to vector<8x1xf32>
    %726 = vector.broadcast %725 : vector<8x1xf32> to vector<8x16xf32>
    %727 = arith.subf %723, %726 : vector<8x16xf32>
    %728 = math.exp %727 : vector<8x16xf32>
    %cst_169 = arith.constant dense<0.000000e+00> : vector<8xf32>
    %729 = vector.multi_reduction <add>, %728, %cst_169 [1] : vector<8x16xf32> to vector<8xf32>
    %730 = vector.shape_cast %729 : vector<8xf32> to vector<8x1xf32>
    %731 = tpu.reciprocal %730 {approx = true} : vector<8x1xf32> -> vector<8x1xf32>
    %732 = vector.broadcast %731 : vector<8x1xf32> to vector<8x16xf32>
    %733 = arith.mulf %728, %732 : vector<8x16xf32>
    %734 = arith.truncf %733 : vector<8x16xf32> to vector<8x16xbf16>
    %cst_170 = arith.constant dense<0.000000e+00> : vector<8x32xf32>
    %735 = tpu.matmul %734, %721, %cst_170 {dimension_numbers = #tpu.dot_dimension_numbers<[1], [0], [0], [1], [0, 0, 1, 1], [], []>} : vector<8x16xbf16>, vector<16x32xbf16>, vector<8x32xf32> -> vector<8x32xf32>
    %736 = tpu.concatenate %595, %615, %635, %655, %675, %695, %715, %735 in 1 : vector<8x32xf32>, vector<8x32xf32>, vector<8x32xf32>, vector<8x32xf32>, vector<8x32xf32>, vector<8x32xf32>, vector<8x32xf32>, vector<8x32xf32> -> vector<8x256xf32>
    %737 = tpu.concatenate %567, %736 in 0 : vector<8x256xf32>, vector<8x256xf32> -> vector<16x256xf32>
    %738 = arith.truncf %737 : vector<16x256xf32> to vector<16x256xbf16>
    %c0_171 = arith.constant 0 : index
    %c0_172 = arith.constant 0 : index
    %739 = vector.load %arg17[%c0_171, %c0_172] : memref<256x256xbf16, #tpu.memory_space<vmem>>, vector<256x256xbf16>
    %cst_173 = arith.constant dense<0.000000e+00> : vector<16x256xf32>
    %740 = tpu.matmul %738, %739, %cst_173 {dimension_numbers = #tpu.dot_dimension_numbers<[1], [0], [0], [1], [0, 0, 1, 1], [], []>} : vector<16x256xbf16>, vector<256x256xbf16>, vector<16x256xf32> -> vector<16x256xf32>
    %c0_174 = arith.constant 0 : index
    %c0_175 = arith.constant 0 : index
    %741 = vector.load %arg18[%c0_174, %c0_175] : memref<1x256xf32, #tpu.memory_space<vmem>>, vector<1x256xf32>
    %742 = vector.broadcast %741 : vector<1x256xf32> to vector<16x256xf32>
    %743 = arith.addf %740, %742 : vector<16x256xf32>
    %744 = arith.addf %743, %384 : vector<16x256xf32>
    %c0_176 = arith.constant 0 : index
    %c0_177 = arith.constant 0 : index
    %745 = vector.load %arg19[%c0_176, %c0_177] : memref<1x256xf32, #tpu.memory_space<vmem>>, vector<1x256xf32>
    %c0_178 = arith.constant 0 : index
    %c0_179 = arith.constant 0 : index
    %746 = vector.load %arg20[%c0_178, %c0_179] : memref<1x256xf32, #tpu.memory_space<vmem>>, vector<1x256xf32>
    %cst_180 = arith.constant dense<0.000000e+00> : vector<16xf32>
    %747 = vector.multi_reduction <add>, %744, %cst_180 [1] : vector<16x256xf32> to vector<16xf32>
    %748 = vector.shape_cast %747 : vector<16xf32> to vector<16x1xf32>
    %cst_181 = arith.constant 2.560000e+02 : f32
    %749 = vector.broadcast %cst_181 : f32 to vector<16x1xf32>
    %750 = arith.divf %748, %749 : vector<16x1xf32>
    %751 = vector.broadcast %750 : vector<16x1xf32> to vector<16x256xf32>
    %752 = arith.subf %744, %751 : vector<16x256xf32>
    %753 = arith.mulf %752, %752 : vector<16x256xf32>
    %cst_182 = arith.constant dense<0.000000e+00> : vector<16xf32>
    %754 = vector.multi_reduction <add>, %753, %cst_182 [1] : vector<16x256xf32> to vector<16xf32>
    %755 = vector.shape_cast %754 : vector<16xf32> to vector<16x1xf32>
    %cst_183 = arith.constant 2.560000e+02 : f32
    %756 = vector.broadcast %cst_183 : f32 to vector<16x1xf32>
    %757 = arith.divf %755, %756 : vector<16x1xf32>
    %758 = vector.broadcast %750 : vector<16x1xf32> to vector<16x256xf32>
    %759 = arith.subf %744, %758 : vector<16x256xf32>
    %cst_184 = arith.constant 9.99999974E-6 : f32
    %760 = vector.broadcast %cst_184 : f32 to vector<16x1xf32>
    %761 = arith.addf %757, %760 : vector<16x1xf32>
    %762 = math.rsqrt %761 : vector<16x1xf32>
    %763 = vector.broadcast %762 : vector<16x1xf32> to vector<16x256xf32>
    %764 = arith.mulf %759, %763 : vector<16x256xf32>
    %765 = vector.broadcast %745 : vector<1x256xf32> to vector<16x256xf32>
    %766 = arith.mulf %764, %765 : vector<16x256xf32>
    %767 = vector.broadcast %746 : vector<1x256xf32> to vector<16x256xf32>
    %768 = arith.addf %766, %767 : vector<16x256xf32>
    %769 = arith.truncf %768 : vector<16x256xf32> to vector<16x256xbf16>
    %c0_185 = arith.constant 0 : index
    %c0_186 = arith.constant 0 : index
    %770 = vector.load %arg21[%c0_185, %c0_186] : memref<256x512xbf16, #tpu.memory_space<vmem>>, vector<256x512xbf16>
    %cst_187 = arith.constant dense<0.000000e+00> : vector<16x512xf32>
    %771 = tpu.matmul %769, %770, %cst_187 {dimension_numbers = #tpu.dot_dimension_numbers<[1], [0], [0], [1], [0, 0, 1, 1], [], []>} : vector<16x256xbf16>, vector<256x512xbf16>, vector<16x512xf32> -> vector<16x512xf32>
    %c0_188 = arith.constant 0 : index
    %c0_189 = arith.constant 0 : index
    %772 = vector.load %arg22[%c0_188, %c0_189] : memref<1x512xf32, #tpu.memory_space<vmem>>, vector<1x512xf32>
    %773 = vector.broadcast %772 : vector<1x512xf32> to vector<16x512xf32>
    %774 = arith.addf %771, %773 : vector<16x512xf32>
    %cst_190 = arith.constant 0.000000e+00 : f32
    %775 = vector.broadcast %cst_190 : f32 to vector<16x512xf32>
    %776 = arith.maximumf %774, %775 : vector<16x512xf32>
    %777 = arith.truncf %776 : vector<16x512xf32> to vector<16x512xbf16>
    %c0_191 = arith.constant 0 : index
    %c0_192 = arith.constant 0 : index
    %778 = vector.load %arg23[%c0_191, %c0_192] : memref<512x256xbf16, #tpu.memory_space<vmem>>, vector<512x256xbf16>
    %cst_193 = arith.constant dense<0.000000e+00> : vector<16x256xf32>
    %779 = tpu.matmul %777, %778, %cst_193 {dimension_numbers = #tpu.dot_dimension_numbers<[1], [0], [0], [1], [0, 0, 1, 1], [], []>} : vector<16x512xbf16>, vector<512x256xbf16>, vector<16x256xf32> -> vector<16x256xf32>
    %c0_194 = arith.constant 0 : index
    %c0_195 = arith.constant 0 : index
    %780 = vector.load %arg24[%c0_194, %c0_195] : memref<1x256xf32, #tpu.memory_space<vmem>>, vector<1x256xf32>
    %781 = vector.broadcast %780 : vector<1x256xf32> to vector<16x256xf32>
    %782 = arith.addf %779, %781 : vector<16x256xf32>
    %783 = arith.addf %782, %768 : vector<16x256xf32>
    %c0_196 = arith.constant 0 : index
    %c0_197 = arith.constant 0 : index
    %784 = vector.load %arg25[%c0_196, %c0_197] : memref<1x256xf32, #tpu.memory_space<vmem>>, vector<1x256xf32>
    %c0_198 = arith.constant 0 : index
    %c0_199 = arith.constant 0 : index
    %785 = vector.load %arg26[%c0_198, %c0_199] : memref<1x256xf32, #tpu.memory_space<vmem>>, vector<1x256xf32>
    %cst_200 = arith.constant dense<0.000000e+00> : vector<16xf32>
    %786 = vector.multi_reduction <add>, %783, %cst_200 [1] : vector<16x256xf32> to vector<16xf32>
    %787 = vector.shape_cast %786 : vector<16xf32> to vector<16x1xf32>
    %cst_201 = arith.constant 2.560000e+02 : f32
    %788 = vector.broadcast %cst_201 : f32 to vector<16x1xf32>
    %789 = arith.divf %787, %788 : vector<16x1xf32>
    %790 = vector.broadcast %789 : vector<16x1xf32> to vector<16x256xf32>
    %791 = arith.subf %783, %790 : vector<16x256xf32>
    %792 = arith.mulf %791, %791 : vector<16x256xf32>
    %cst_202 = arith.constant dense<0.000000e+00> : vector<16xf32>
    %793 = vector.multi_reduction <add>, %792, %cst_202 [1] : vector<16x256xf32> to vector<16xf32>
    %794 = vector.shape_cast %793 : vector<16xf32> to vector<16x1xf32>
    %cst_203 = arith.constant 2.560000e+02 : f32
    %795 = vector.broadcast %cst_203 : f32 to vector<16x1xf32>
    %796 = arith.divf %794, %795 : vector<16x1xf32>
    %797 = vector.broadcast %789 : vector<16x1xf32> to vector<16x256xf32>
    %798 = arith.subf %783, %797 : vector<16x256xf32>
    %cst_204 = arith.constant 9.99999974E-6 : f32
    %799 = vector.broadcast %cst_204 : f32 to vector<16x1xf32>
    %800 = arith.addf %796, %799 : vector<16x1xf32>
    %801 = math.rsqrt %800 : vector<16x1xf32>
    %802 = vector.broadcast %801 : vector<16x1xf32> to vector<16x256xf32>
    %803 = arith.mulf %798, %802 : vector<16x256xf32>
    %804 = vector.broadcast %784 : vector<1x256xf32> to vector<16x256xf32>
    %805 = arith.mulf %803, %804 : vector<16x256xf32>
    %806 = vector.broadcast %785 : vector<1x256xf32> to vector<16x256xf32>
    %807 = arith.addf %805, %806 : vector<16x256xf32>
    %c0_205 = arith.constant 0 : index
    %c0_206 = arith.constant 0 : index
    %808 = vector.load %arg27[%c0_205, %c0_206] : memref<16x256xf32, #tpu.memory_space<vmem>>, vector<16x256xf32>
    tpu.vector_store %arg27[%c0_205, %c0_206], %807 {strides = array<i32>} : memref<16x256xf32, #tpu.memory_space<vmem>>, vector<16x256xf32>,
    return
  }
  func.func @transform_0(%arg0: i32) -> (i32, i32) {
    %c0_i32 = arith.constant 0 : i32
    %c0_i32_0 = arith.constant 0 : i32
    %c0_i32_1 = arith.constant 0 : i32
    return %c0_i32, %c0_i32_0 : i32, i32
  }
  func.func @transform_1(%arg0: i32) -> (i32, i32) {
    %c0_i32 = arith.constant 0 : i32
    %c0_i32_0 = arith.constant 0 : i32
    %c0_i32_1 = arith.constant 0 : i32
    return %c0_i32, %c0_i32_0 : i32, i32
  }
  func.func @transform_2(%arg0: i32) -> (i32, i32) {
    %c0_i32 = arith.constant 0 : i32
    %c0_i32_0 = arith.constant 0 : i32
    %c0_i32_1 = arith.constant 0 : i32
    return %c0_i32, %c0_i32_0 : i32, i32
  }
  func.func @transform_3(%arg0: i32) -> (i32, i32) {
    %c0_i32 = arith.constant 0 : i32
    %c0_i32_0 = arith.constant 0 : i32
    %c0_i32_1 = arith.constant 0 : i32
    return %c0_i32, %c0_i32_0 : i32, i32
  }
  func.func @transform_4(%arg0: i32) -> (i32, i32) {
    %c0_i32 = arith.constant 0 : i32
    %c0_i32_0 = arith.constant 0 : i32
    %c0_i32_1 = arith.constant 0 : i32
    return %c0_i32, %c0_i32_0 : i32, i32
  }
  func.func @transform_5(%arg0: i32) -> (i32, i32) {
    %c0_i32 = arith.constant 0 : i32
    %c0_i32_0 = arith.constant 0 : i32
    %c0_i32_1 = arith.constant 0 : i32
    return %c0_i32, %c0_i32_0 : i32, i32
  }
  func.func @transform_6(%arg0: i32) -> (i32, i32) {
    %c0_i32 = arith.constant 0 : i32
    %c0_i32_0 = arith.constant 0 : i32
    %c0_i32_1 = arith.constant 0 : i32
    return %c0_i32, %c0_i32_0 : i32, i32
  }
  func.func @transform_7(%arg0: i32) -> (i32, i32) {
    %c0_i32 = arith.constant 0 : i32
    %c0_i32_0 = arith.constant 0 : i32
    %c0_i32_1 = arith.constant 0 : i32
    return %c0_i32, %c0_i32_0 : i32, i32
  }
  func.func @transform_8(%arg0: i32) -> (i32, i32) {
    %c0_i32 = arith.constant 0 : i32
    %c0_i32_0 = arith.constant 0 : i32
    %c0_i32_1 = arith.constant 0 : i32
    return %c0_i32, %c0_i32_0 : i32, i32
  }
  func.func @transform_9(%arg0: i32) -> (i32, i32) {
    %c0_i32 = arith.constant 0 : i32
    %c0_i32_0 = arith.constant 0 : i32
    %c0_i32_1 = arith.constant 0 : i32
    return %c0_i32, %c0_i32_0 : i32, i32
  }
  func.func @transform_10(%arg0: i32) -> (i32, i32) {
    %c0_i32 = arith.constant 0 : i32
    %c0_i32_0 = arith.constant 0 : i32
    %c0_i32_1 = arith.constant 0 : i32
    return %c0_i32, %c0_i32_0 : i32, i32
  }
  func.func @transform_11(%arg0: i32) -> (i32, i32) {
    %c0_i32 = arith.constant 0 : i32
    %c0_i32_0 = arith.constant 0 : i32
    %c0_i32_1 = arith.constant 0 : i32
    return %c0_i32, %c0_i32_0 : i32, i32
  }
  func.func @transform_12(%arg0: i32) -> (i32, i32) {
    %c0_i32 = arith.constant 0 : i32
    %c0_i32_0 = arith.constant 0 : i32
    %c0_i32_1 = arith.constant 0 : i32
    return %c0_i32, %c0_i32_0 : i32, i32
  }
  func.func @transform_13(%arg0: i32) -> (i32, i32) {
    %c0_i32 = arith.constant 0 : i32
    %c0_i32_0 = arith.constant 0 : i32
    %c0_i32_1 = arith.constant 0 : i32
    return %c0_i32, %c0_i32_0 : i32, i32
  }
  func.func @transform_14(%arg0: i32) -> (i32, i32) {
    %c0_i32 = arith.constant 0 : i32
    %c0_i32_0 = arith.constant 0 : i32
    %c0_i32_1 = arith.constant 0 : i32
    return %c0_i32, %c0_i32_0 : i32, i32
  }
  func.func @transform_15(%arg0: i32) -> (i32, i32) {
    %c0_i32 = arith.constant 0 : i32
    %c0_i32_0 = arith.constant 0 : i32
    %c0_i32_1 = arith.constant 0 : i32
    return %c0_i32, %c0_i32_0 : i32, i32
  }
  func.func @transform_16(%arg0: i32) -> (i32, i32) {
    %c0_i32 = arith.constant 0 : i32
    %c0_i32_0 = arith.constant 0 : i32
    %c0_i32_1 = arith.constant 0 : i32
    return %c0_i32, %c0_i32_0 : i32, i32
  }
  func.func @transform_17(%arg0: i32) -> (i32, i32) {
    %c0_i32 = arith.constant 0 : i32
    %c0_i32_0 = arith.constant 0 : i32
    %c0_i32_1 = arith.constant 0 : i32
    return %c0_i32, %c0_i32_0 : i32, i32
  }
  func.func @transform_18(%arg0: i32) -> (i32, i32) {
    %c0_i32 = arith.constant 0 : i32
    %c0_i32_0 = arith.constant 0 : i32
    %c0_i32_1 = arith.constant 0 : i32
    return %c0_i32, %c0_i32_0 : i32, i32
  }
  func.func @transform_19(%arg0: i32) -> (i32, i32) {
    %c0_i32 = arith.constant 0 : i32
    %c0_i32_0 = arith.constant 0 : i32
    %c0_i32_1 = arith.constant 0 : i32
    return %c0_i32, %c0_i32_0 : i32, i32
  }
  func.func @transform_20(%arg0: i32) -> (i32, i32) {
    %c0_i32 = arith.constant 0 : i32
    %c0_i32_0 = arith.constant 0 : i32
    %c0_i32_1 = arith.constant 0 : i32
    return %c0_i32, %c0_i32_0 : i32, i32
  }
  func.func @transform_21(%arg0: i32) -> (i32, i32) {
    %c0_i32 = arith.constant 0 : i32
    %c0_i32_0 = arith.constant 0 : i32
    %c0_i32_1 = arith.constant 0 : i32
    return %c0_i32, %c0_i32_0 : i32, i32
  }
  func.func @transform_22(%arg0: i32) -> (i32, i32) {
    %c0_i32 = arith.constant 0 : i32
    %c0_i32_0 = arith.constant 0 : i32
    %c0_i32_1 = arith.constant 0 : i32
    return %c0_i32, %c0_i32_0 : i32, i32
  }
  func.func @transform_23(%arg0: i32) -> (i32, i32) {
    %c0_i32 = arith.constant 0 : i32
    %c0_i32_0 = arith.constant 0 : i32
    %c0_i32_1 = arith.constant 0 : i32
    return %c0_i32, %c0_i32_0 : i32, i32
  }
  func.func @transform_24(%arg0: i32) -> (i32, i32) {
    %c0_i32 = arith.constant 0 : i32
    %c0_i32_0 = arith.constant 0 : i32
    %c0_i32_1 = arith.constant 0 : i32
    return %c0_i32, %c0_i32_0 : i32, i32
  }
  func.func @transform_25(%arg0: i32) -> (i32, i32) {
    %c0_i32 = arith.constant 0 : i32
    %c0_i32_0 = arith.constant 0 : i32
    %c0_i32_1 = arith.constant 0 : i32
    return %c0_i32, %c0_i32_0 : i32, i32
  }
  func.func @transform_26(%arg0: i32) -> (i32, i32) {
    %c0_i32 = arith.constant 0 : i32
    %c0_i32_0 = arith.constant 0 : i32
    %c0_i32_1 = arith.constant 0 : i32
    return %c0_i32, %c0_i32_0 : i32, i32
  }
}

</mosaic_0001>

<llo_original>
// kernel: decoder_layer_forward.1
$region0: #{decoder_layer_forward.1}
  #allocation0 [shape = 'u32[]', space=smem, size = 0x4, offset = 0x4, fixed_abs, tag = 'smem constant byte address 0x4 - core index']
  #allocation1 [shape = 'u32[72,128]{1,0:T(1,128)}', space=vmem, size = 0x9000, scoped, tag = 'internal scratch']
  %s0 = inlined_call_operand.vmem [shape: f32[16,256], index: 0, kind: input, shape index: {}]
  %s1 = inlined_call_operand.vmem [shape: f32[32,256], index: 1, kind: input, shape index: {}]
  %s2 = inlined_call_operand.vmem [shape: f32[8,8], index: 2, kind: input, shape index: {}]
  %s3 = inlined_call_operand.vmem [shape: f32[2,8], index: 3, kind: input, shape index: {}]
  %s4 = inlined_call_operand.vmem [shape: f32[8,16], index: 4, kind: input, shape index: {}]
  %s5 = inlined_call_operand.vmem [shape: f32[2,16], index: 5, kind: input, shape index: {}]
  %s6 = inlined_call_operand.hbm [shape: bf16[256,768], index: 6, kind: input, shape index: {}]
  %s7 = inlined_call_operand.vmem [shape: f32[1,768], index: 7, kind: input, shape index: {}]
  %s8 = inlined_call_operand.hbm [shape: bf16[256,256], index: 8, kind: input, shape index: {}]
  %s9 = inlined_call_operand.vmem [shape: f32[1,256], index: 9, kind: input, shape index: {}]
  %s10 = inlined_call_operand.vmem [shape: f32[1,256], index: 10, kind: input, shape index: {}]
  %s11 = inlined_call_operand.vmem [shape: f32[1,256], index: 11, kind: input, shape index: {}]
  %s12 = inlined_call_operand.hbm [shape: bf16[256,256], index: 12, kind: input, shape index: {}]
  %s13 = inlined_call_operand.vmem [shape: f32[1,256], index: 13, kind: input, shape index: {}]
  %s14 = inlined_call_operand.hbm [shape: bf16[256,512], index: 14, kind: input, shape index: {}]
  %s15 = inlined_call_operand.vmem [shape: f32[1,512], index: 15, kind: input, shape index: {}]
  %s16 = inlined_call_operand.hbm [shape: bf16[256,256], index: 16, kind: input, shape index: {}]
  %s17 = inlined_call_operand.vmem [shape: f32[1,256], index: 17, kind: input, shape index: {}]
  %s18 = inlined_call_operand.vmem [shape: f32[1,256], index: 18, kind: input, shape index: {}]
  %s19 = inlined_call_operand.vmem [shape: f32[1,256], index: 19, kind: input, shape index: {}]
  %s20 = inlined_call_operand.hbm [shape: bf16[256,512], index: 20, kind: input, shape index: {}]
  %s21 = inlined_call_operand.vmem [shape: f32[1,512], index: 21, kind: input, shape index: {}]
  %s22 = inlined_call_operand.hbm [shape: bf16[512,256], index: 22, kind: input, shape index: {}]
  %s23 = inlined_call_operand.vmem [shape: f32[1,256], index: 23, kind: input, shape index: {}]
  %s24 = inlined_call_operand.vmem [shape: f32[1,256], index: 24, kind: input, shape index: {}]
  %s25 = inlined_call_operand.vmem [shape: f32[1,256], index: 25, kind: input, shape index: {}]
  %s26 = inlined_call_operand.vmem [shape: f32[16,256], index: 26, kind: output, shape index: {}]
  %s27 = sld [smem:[#allocation0]]
  $region142: #{decoder_layer_forward.1} parent=0
    _
  %s29 = ssub.s32 1, %s27
  %s30 = scalar_select 0, %s29, %s27
  $region1: #{decoder_layer_forward.1} parent=0
    #allocation2 [shape = 'u8[393216]{0}', space=vmem, size = 0x60000, scoped, tag = 'input window, operand 6, single buffered']
    #allocation3 [shape = 's32[1]{0}', space=sflag, size = 0x4, scoped, tag = 'scoped memory for decoder_layer_forward.1']
    #allocation4 [shape = 'u8[131072]{0}', space=vmem, size = 0x20000, scoped, tag = 'input window, operand 8, single buffered']
    #allocation5 [shape = 's32[1]{0}', space=sflag, size = 0x4, scoped, tag = 'scoped memory for decoder_layer_forward.1']
    #allocation6 [shape = 'u8[131072]{0}', space=vmem, size = 0x20000, scoped, tag = 'input window, operand 12, single buffered']
    #allocation7 [shape = 'u8[262144]{0}', space=vmem, size = 0x40000, scoped, tag = 'input window, operand 14, single buffered']
    #allocation8 [shape = 's32[1]{0}', space=sflag, size = 0x4, scoped, tag = 'scoped memory for decoder_layer_forward.1']
    #allocation9 [shape = 'u8[131072]{0}', space=vmem, size = 0x20000, scoped, tag = 'input window, operand 16, single buffered']
    #allocation10 [shape = 'u8[262144]{0}', space=vmem, size = 0x40000, scoped, tag = 'input window, operand 20, single buffered']
    #allocation11 [shape = 's32[1]{0}', space=sflag, size = 0x4, scoped, tag = 'scoped memory for decoder_layer_forward.1']
    #allocation12 [shape = 'u8[262144]{0}', space=vmem, size = 0x40000, scoped, tag = 'input window, operand 22, single buffered']
    %31 = vsyncpa [#allocation3], 0
    %32 = vsyncpa [#allocation5], 0
    %33 = vsyncpa [#allocation8], 0
    %34 = vsyncpa [#allocation11], 0
    // Predicated region
    $region2: #{decoder_layer_forward.1} parent=1 // pred_check
      _
    $region3: #{decoder_layer_forward.1} parent=1 // pred_check_branch
      %36 = sbr.rel (0) target = $region5
    $region4: #{decoder_layer_forward.1} parent=1 // pred_region
      _
    $region5: #{decoder_layer_forward.1} parent=1 // pred_fallthru
      _
    // Predicated region
    $region6: #{decoder_layer_forward.1} parent=1 // pred_check
      _
    $region7: #{decoder_layer_forward.1} parent=1 // pred_check_branch
      %38 = sbr.rel (0) target = $region9
    $region8: #{decoder_layer_forward.1} parent=1 // pred_region
      _
    $region9: #{decoder_layer_forward.1} parent=1 // pred_fallthru
      _
    // Predicated region
    $region10: #{decoder_layer_forward.1} parent=1 // pred_check
      _
    $region11: #{decoder_layer_forward.1} parent=1 // pred_check_branch
      %40 = sbr.rel (0) target = $region13
    $region12: #{decoder_layer_forward.1} parent=1 // pred_region
      _
    $region13: #{decoder_layer_forward.1} parent=1 // pred_fallthru
      _
    // Predicated region
    $region14: #{decoder_layer_forward.1} parent=1 // pred_check
      _
    $region15: #{decoder_layer_forward.1} parent=1 // pred_check_branch
      %42 = sbr.rel (0) target = $region17
    $region16: #{decoder_layer_forward.1} parent=1 // pred_region
      _
    $region17: #{decoder_layer_forward.1} parent=1 // pred_fallthru
      _
    // Predicated region
    $region18: #{decoder_layer_forward.1} parent=1 // pred_check
      _
    $region19: #{decoder_layer_forward.1} parent=1 // pred_check_branch
      %44 = sbr.rel (0) target = $region21
    $region20: #{decoder_layer_forward.1} parent=1 // pred_region
      _
    $region21: #{decoder_layer_forward.1} parent=1 // pred_fallthru
      _
    // Predicated region
    $region22: #{decoder_layer_forward.1} parent=1 // pred_check
      _
    $region23: #{decoder_layer_forward.1} parent=1 // pred_check_branch
      %46 = sbr.rel (0) target = $region25
    $region24: #{decoder_layer_forward.1} parent=1 // pred_region
      _
    $region25: #{decoder_layer_forward.1} parent=1 // pred_fallthru
      _
    // Predicated region
    $region26: #{decoder_layer_forward.1} parent=1 // pred_check
      _
    $region27: #{decoder_layer_forward.1} parent=1 // pred_check_branch
      %48 = sbr.rel (0) target = $region29
    $region28: #{decoder_layer_forward.1} parent=1 // pred_region
      %50 = vsyncadd [#allocation3], 0
      %s51 = sshll.u32 %s6, 4
      %s52 = int_to_ptr.hbm [resolvable:$true] %s51
      %s53 = sshll.u32 [#allocation2], 4
      %s54 = int_to_ptr.vmem [resolvable:$true] %s53
      %59 = dma.hbm_to_vmem [thread:$0]  %s52, 12288, %s54, [#allocation3], 384, 384, 24
    $region29: #{decoder_layer_forward.1} parent=1 // pred_fallthru
      _
    // Predicated region
    $region30: #{decoder_layer_forward.1} parent=1 // pred_check
      _
    $region31: #{decoder_layer_forward.1} parent=1 // pred_check_branch
      %61 = sbr.rel (0) target = $region33
    $region32: #{decoder_layer_forward.1} parent=1 // pred_region
      _
    $region33: #{decoder_layer_forward.1} parent=1 // pred_fallthru
      _
    // Predicated region
    $region34: #{decoder_layer_forward.1} parent=1 // pred_check
      _
    $region35: #{decoder_layer_forward.1} parent=1 // pred_check_branch
      %63 = sbr.rel (0) target = $region37
    $region36: #{decoder_layer_forward.1} parent=1 // pred_region
      %65 = vsyncadd [#allocation5], 0
      %s66 = sshll.u32 %s8, 4
      %s67 = int_to_ptr.hbm [resolvable:$true] %s66
      %s68 = sshll.u32 [#allocation4], 4
      %s69 = int_to_ptr.vmem [resolvable:$true] %s68
      %74 = dma.hbm_to_vmem [thread:$0]  %s67, 4096, %s69, [#allocation5], 128, 128, 8
    $region37: #{decoder_layer_forward.1} parent=1 // pred_fallthru
      _
    // Predicated region
    $region38: #{decoder_layer_forward.1} parent=1 // pred_check
      _
    $region39: #{decoder_layer_forward.1} parent=1 // pred_check_branch
      %76 = sbr.rel (0) target = $region41
    $region40: #{decoder_layer_forward.1} parent=1 // pred_region
      _
    $region41: #{decoder_layer_forward.1} parent=1 // pred_fallthru
      _
    // Predicated region
    $region42: #{decoder_layer_forward.1} parent=1 // pred_check
      _
    $region43: #{decoder_layer_forward.1} parent=1 // pred_check_branch
      %78 = sbr.rel (0) target = $region45
    $region44: #{decoder_layer_forward.1} parent=1 // pred_region
      _
    $region45: #{decoder_layer_forward.1} parent=1 // pred_fallthru
      _
    // Predicated region
    $region46: #{decoder_layer_forward.1} parent=1 // pred_check
      _
    $region47: #{decoder_layer_forward.1} parent=1 // pred_check_branch
      %80 = sbr.rel (0) target = $region49
    $region48: #{decoder_layer_forward.1} parent=1 // pred_region
      _
    $region49: #{decoder_layer_forward.1} parent=1 // pred_fallthru
      _
    // Predicated region
    $region50: #{decoder_layer_forward.1} parent=1 // pred_check
      _
    $region51: #{decoder_layer_forward.1} parent=1 // pred_check_branch
      %82 = sbr.rel (0) target = $region53
    $region52: #{decoder_layer_forward.1} parent=1 // pred_region
      %84 = vsyncadd [#allocation5], 0
      %s85 = sshll.u32 %s12, 4
      %s86 = int_to_ptr.hbm [resolvable:$true] %s85
      %s87 = sshll.u32 [#allocation6], 4
      %s88 = int_to_ptr.vmem [resolvable:$true] %s87
      %93 = dma.hbm_to_vmem [thread:$0]  %s86, 4096, %s88, [#allocation5], 128, 128, 8
    $region53: #{decoder_layer_forward.1} parent=1 // pred_fallthru
      _
    // Predicated region
    $region54: #{decoder_layer_forward.1} parent=1 // pred_check
      _
    $region55: #{decoder_layer_forward.1} parent=1 // pred_check_branch
      %95 = sbr.rel (0) target = $region57
    $region56: #{decoder_layer_forward.1} parent=1 // pred_region
      _
    $region57: #{decoder_layer_forward.1} parent=1 // pred_fallthru
      _
    // Predicated region
    $region58: #{decoder_layer_forward.1} parent=1 // pred_check
      _
    $region59: #{decoder_layer_forward.1} parent=1 // pred_check_branch
      %97 = sbr.rel (0) target = $region61
    $region60: #{decoder_layer_forward.1} parent=1 // pred_region
      %99 = vsyncadd [#allocation8], 0
      %s100 = sshll.u32 %s14, 4
      %s101 = int_to_ptr.hbm [resolvable:$true] %s100
      %s102 = sshll.u32 [#allocation7], 4
      %s103 = int_to_ptr.vmem [resolvable:$true] %s102
      %108 = dma.hbm_to_vmem [thread:$0]  %s101, 8192, %s103, [#allocation8], 256, 256, 16
    $region61: #{decoder_layer_forward.1} parent=1 // pred_fallthru
      _
    // Predicated region
    $region62: #{decoder_layer_forward.1} parent=1 // pred_check
      _
    $region63: #{decoder_layer_forward.1} parent=1 // pred_check_branch
      %110 = sbr.rel (0) target = $region65
    $region64: #{decoder_layer_forward.1} parent=1 // pred_region
      _
    $region65: #{decoder_layer_forward.1} parent=1 // pred_fallthru
      _
    // Predicated region
    $region66: #{decoder_layer_forward.1} parent=1 // pred_check
      _
    $region67: #{decoder_layer_forward.1} parent=1 // pred_check_branch
      %112 = sbr.rel (0) target = $region69
    $region68: #{decoder_layer_forward.1} parent=1 // pred_region
      %114 = vsyncadd [#allocation8], 0
      %s115 = sshll.u32 %s16, 4
      %s116 = int_to_ptr.hbm [resolvable:$true] %s115
      %s117 = sshll.u32 [#allocation9], 4
      %s118 = int_to_ptr.vmem [resolvable:$true] %s117
      %123 = dma.hbm_to_vmem [thread:$0]  %s116, 4096, %s118, [#allocation8], 128, 128, 8
    $region69: #{decoder_layer_forward.1} parent=1 // pred_fallthru
      _
    // Predicated region
    $region70: #{decoder_layer_forward.1} parent=1 // pred_check
      _
    $region71: #{decoder_layer_forward.1} parent=1 // pred_check_branch
      %125 = sbr.rel (0) target = $region73
    $region72: #{decoder_layer_forward.1} parent=1 // pred_region
      _
    $region73: #{decoder_layer_forward.1} parent=1 // pred_fallthru
      _
    // Predicated region
    $region74: #{decoder_layer_forward.1} parent=1 // pred_check
      _
    $region75: #{decoder_layer_forward.1} parent=1 // pred_check_branch
      %127 = sbr.rel (0) target = $region77
    $region76: #{decoder_layer_forward.1} parent=1 // pred_region
      _
    $region77: #{decoder_layer_forward.1} parent=1 // pred_fallthru
      _
    // Predicated region
    $region78: #{decoder_layer_forward.1} parent=1 // pred_check
      _
    $region79: #{decoder_layer_forward.1} parent=1 // pred_check_branch
      %129 = sbr.rel (0) target = $region81
    $region80: #{decoder_layer_forward.1} parent=1 // pred_region
      _
    $region81: #{decoder_layer_forward.1} parent=1 // pred_fallthru
      _
    // Predicated region
    $region82: #{decoder_layer_forward.1} parent=1 // pred_check
      _
    $region83: #{decoder_layer_forward.1} parent=1 // pred_check_branch
      %131 = sbr.rel (0) target = $region85
    $region84: #{decoder_layer_forward.1} parent=1 // pred_region
      %133 = vsyncadd [#allocation11], 0
      %s134 = sshll.u32 %s20, 4
      %s135 = int_to_ptr.hbm [resolvable:$true] %s134
      %s136 = sshll.u32 [#allocation10], 4
      %s137 = int_to_ptr.vmem [resolvable:$true] %s136
      %142 = dma.hbm_to_vmem [thread:$0]  %s135, 8192, %s137, [#allocation11], 256, 256, 16
    $region85: #{decoder_layer_forward.1} parent=1 // pred_fallthru
      _
    // Predicated region
    $region86: #{decoder_layer_forward.1} parent=1 // pred_check
      _
    $region87: #{decoder_layer_forward.1} parent=1 // pred_check_branch
      %144 = sbr.rel (0) target = $region89
    $region88: #{decoder_layer_forward.1} parent=1 // pred_region
      _
    $region89: #{decoder_layer_forward.1} parent=1 // pred_fallthru
      _
    // Predicated region
    $region90: #{decoder_layer_forward.1} parent=1 // pred_check
      _
    $region91: #{decoder_layer_forward.1} parent=1 // pred_check_branch
      %146 = sbr.rel (0) target = $region93
    $region92: #{decoder_layer_forward.1} parent=1 // pred_region
      %148 = vsyncadd [#allocation11], 0
      %s149 = sshll.u32 %s22, 4
      %s150 = int_to_ptr.hbm [resolvable:$true] %s149
      %s151 = sshll.u32 [#allocation12], 4
      %s152 = int_to_ptr.vmem [resolvable:$true] %s151
      %157 = dma.hbm_to_vmem [thread:$0]  %s150, 8192, %s152, [#allocation11], 128, 128, 8
    $region93: #{decoder_layer_forward.1} parent=1 // pred_fallthru
      _
    // Predicated region
    $region94: #{decoder_layer_forward.1} parent=1 // pred_check
      _
    $region95: #{decoder_layer_forward.1} parent=1 // pred_check_branch
      %159 = sbr.rel (0) target = $region97
    $region96: #{decoder_layer_forward.1} parent=1 // pred_region
      _
    $region97: #{decoder_layer_forward.1} parent=1 // pred_fallthru
      _
    // Predicated region
    $region98: #{decoder_layer_forward.1} parent=1 // pred_check
      _
    $region99: #{decoder_layer_forward.1} parent=1 // pred_check_branch
      %161 = sbr.rel (0) target = $region101
    $region100: #{decoder_layer_forward.1} parent=1 // pred_region
      _
    $region101: #{decoder_layer_forward.1} parent=1 // pred_fallthru
      _
    // Predicated region
    $region102: #{decoder_layer_forward.1} parent=1 // pred_check
      _
    $region103: #{decoder_layer_forward.1} parent=1 // pred_check_branch
      %163 = sbr.rel (0) target = $region105
    $region104: #{decoder_layer_forward.1} parent=1 // pred_region
      _
    $region105: #{decoder_layer_forward.1} parent=1 // pred_fallthru
      _
    // Predicated region
    $region106: #{decoder_layer_forward.1} parent=1 // pred_check
      _
    $region107: #{decoder_layer_forward.1} parent=1 // pred_check_branch
      %165 = sbr.rel (0) target = $region109
    $region108: #{decoder_layer_forward.1} parent=1 // pred_region
      %167 = dma.done [#allocation3], 12288
    $region109: #{decoder_layer_forward.1} parent=1 // pred_fallthru
      _
    // Predicated region
    $region110: #{decoder_layer_forward.1} parent=1 // pred_check
      _
    $region111: #{decoder_layer_forward.1} parent=1 // pred_check_branch
      %169 = sbr.rel (0) target = $region113
    $region112: #{decoder_layer_forward.1} parent=1 // pred_region
      %171 = dma.done [#allocation5], 4096
    $region113: #{decoder_layer_forward.1} parent=1 // pred_fallthru
      _
    // Predicated region
    $region114: #{decoder_layer_forward.1} parent=1 // pred_check
      _
    $region115: #{decoder_layer_forward.1} parent=1 // pred_check_branch
      %173 = sbr.rel (0) target = $region117
    $region116: #{decoder_layer_forward.1} parent=1 // pred_region
      %175 = dma.done [#allocation5], 4096
    $region117: #{decoder_layer_forward.1} parent=1 // pred_fallthru
      _
    // Predicated region
    $region118: #{decoder_layer_forward.1} parent=1 // pred_check
      _
    $region119: #{decoder_layer_forward.1} parent=1 // pred_check_branch
      %177 = sbr.rel (0) target = $region121
    $region120: #{decoder_layer_forward.1} parent=1 // pred_region
      %179 = dma.done [#allocation8], 8192
    $region121: #{decoder_layer_forward.1} parent=1 // pred_fallthru
      _
    // Predicated region
    $region122: #{decoder_layer_forward.1} parent=1 // pred_check
      _
    $region123: #{decoder_layer_forward.1} parent=1 // pred_check_branch
      %181 = sbr.rel (0) target = $region125
    $region124: #{decoder_layer_forward.1} parent=1 // pred_region
      %183 = dma.done [#allocation8], 4096
    $region125: #{decoder_layer_forward.1} parent=1 // pred_fallthru
      _
    // Predicated region
    $region126: #{decoder_layer_forward.1} parent=1 // pred_check
      _
    $region127: #{decoder_layer_forward.1} parent=1 // pred_check_branch
      %185 = sbr.rel (0) target = $region129
    $region128: #{decoder_layer_forward.1} parent=1 // pred_region
      %187 = dma.done [#allocation11], 8192
    $region129: #{decoder_layer_forward.1} parent=1 // pred_fallthru
      _
    // Predicated region
    $region130: #{decoder_layer_forward.1} parent=1 // pred_check
      _
    $region131: #{decoder_layer_forward.1} parent=1 // pred_check_branch
      %189 = sbr.rel (0) target = $region133
    $region132: #{decoder_layer_forward.1} parent=1 // pred_region
      %191 = dma.done [#allocation11], 8192
    $region133: #{decoder_layer_forward.1} parent=1 // pred_fallthru
      _
    %v193 = vld [vmem:[%s0] sm:$0xff]
    %v194 = vld [vmem:[%s0 + $0x8] sm:$0xff]
    %v195 = vld [vmem:[%s0 + $0x10] sm:$0xff]
    %v196 = vld [vmem:[%s0 + $0x18] sm:$0xff]
    %v197 = vld [vmem:[%s1] sm:$0xff]
    %v198 = vld [vmem:[%s1 + $0x8] sm:$0xff]
    %v199 = vld [vmem:[%s1 + $0x10] sm:$0xff]
    %v200 = vld [vmem:[%s1 + $0x18] sm:$0xff]
    %v201 = vld [vmem:[%s1 + $0x20] sm:$0xff]
    %v202 = vld [vmem:[%s1 + $0x28] sm:$0xff]
    %v203 = vld [vmem:[%s1 + $0x30] sm:$0xff]
    %v204 = vld [vmem:[%s1 + $0x38] sm:$0xff]
    %v205 = vld [vmem:[%s2] sm:$0xff]
    %v206 = vld [vmem:[%s3] sm:$0x3]
    %v207 = vld [vmem:[%s4] sm:$0xff]
    %v208 = vld [vmem:[%s5] sm:$0x3]
    %v209 = vpack.c.bf16 %v195, %v193
    %v210 = vpack.c.bf16 %v196, %v194
    %v211 = vld [vmem:[#allocation2] sm:$0xff]
    %v212 = vld [vmem:[#allocation2 + $0x8] sm:$0xff]
    %v213 = vld [vmem:[#allocation2 + $0x10] sm:$0xff]
    %v214 = vld [vmem:[#allocation2 + $0x18] sm:$0xff]
    %v215 = vld [vmem:[#allocation2 + $0x20] sm:$0xff]
    %v216 = vld [vmem:[#allocation2 + $0x28] sm:$0xff]
    %v217 = vld [vmem:[#allocation2 + $0x30] sm:$0xff]
    %v218 = vld [vmem:[#allocation2 + $0x38] sm:$0xff]
    %v219 = vld [vmem:[#allocation2 + $0x40] sm:$0xff]
    %v220 = vld [vmem:[#allocation2 + $0x48] sm:$0xff]
    %v221 = vld [vmem:[#allocation2 + $0x50] sm:$0xff]
    %v222 = vld [vmem:[#allocation2 + $0x58] sm:$0xff]
    %v223 = vld [vmem:[#allocation2 + $0x60] sm:$0xff]
    %v224 = vld [vmem:[#allocation2 + $0x68] sm:$0xff]
    %v225 = vld [vmem:[#allocation2 + $0x70] sm:$0xff]
    %v226 = vld [vmem:[#allocation2 + $0x78] sm:$0xff]
    %v227 = vld [vmem:[#allocation2 + $0x80] sm:$0xff]
    %v228 = vld [vmem:[#allocation2 + $0x88] sm:$0xff]
    %v229 = vld [vmem:[#allocation2 + $0x90] sm:$0xff]
    %v230 = vld [vmem:[#allocation2 + $0x98] sm:$0xff]
    %v231 = vld [vmem:[#allocation2 + $0xa0] sm:$0xff]
    %v232 = vld [vmem:[#allocation2 + $0xa8] sm:$0xff]
    %v233 = vld [vmem:[#allocation2 + $0xb0] sm:$0xff]
    %v234 = vld [vmem:[#allocation2 + $0xb8] sm:$0xff]
    %v235 = vld [vmem:[#allocation2 + $0xc0] sm:$0xff]
    %v236 = vld [vmem:[#allocation2 + $0xc8] sm:$0xff]
    %v237 = vld [vmem:[#allocation2 + $0xd0] sm:$0xff]
    %v238 = vld [vmem:[#allocation2 + $0xd8] sm:$0xff]
    %v239 = vld [vmem:[#allocation2 + $0xe0] sm:$0xff]
    %v240 = vld [vmem:[#allocation2 + $0xe8] sm:$0xff]
    %v241 = vld [vmem:[#allocation2 + $0xf0] sm:$0xff]
    %v242 = vld [vmem:[#allocation2 + $0xf8] sm:$0xff]
    %v243 = vld [vmem:[#allocation2 + $0x100] sm:$0xff]
    %v244 = vld [vmem:[#allocation2 + $0x108] sm:$0xff]
    %v245 = vld [vmem:[#allocation2 + $0x110] sm:$0xff]
    %v246 = vld [vmem:[#allocation2 + $0x118] sm:$0xff]
    %v247 = vld [vmem:[#allocation2 + $0x120] sm:$0xff]
    %v248 = vld [vmem:[#allocation2 + $0x128] sm:$0xff]
    %v249 = vld [vmem:[#allocation2 + $0x130] sm:$0xff]
    %v250 = vld [vmem:[#allocation2 + $0x138] sm:$0xff]
    %v251 = vld [vmem:[#allocation2 + $0x140] sm:$0xff]
    %v252 = vld [vmem:[#allocation2 + $0x148] sm:$0xff]
    %v253 = vld [vmem:[#allocation2 + $0x150] sm:$0xff]
    %v254 = vld [vmem:[#allocation2 + $0x158] sm:$0xff]
    %v255 = vld [vmem:[#allocation2 + $0x160] sm:$0xff]
    %v256 = vld [vmem:[#allocation2 + $0x168] sm:$0xff]
    %v257 = vld [vmem:[#allocation2 + $0x170] sm:$0xff]
    %v258 = vld [vmem:[#allocation2 + $0x178] sm:$0xff]
    %v259 = vld [vmem:[#allocation2 + $0x180] sm:$0xff]
    %v260 = vld [vmem:[#allocation2 + $0x188] sm:$0xff]
    %v261 = vld [vmem:[#allocation2 + $0x190] sm:$0xff]
    %v262 = vld [vmem:[#allocation2 + $0x198] sm:$0xff]
    %v263 = vld [vmem:[#allocation2 + $0x1a0] sm:$0xff]
    %v264 = vld [vmem:[#allocation2 + $0x1a8] sm:$0xff]
    %v265 = vld [vmem:[#allocation2 + $0x1b0] sm:$0xff]
    %v266 = vld [vmem:[#allocation2 + $0x1b8] sm:$0xff]
    %v267 = vld [vmem:[#allocation2 + $0x1c0] sm:$0xff]
    %v268 = vld [vmem:[#allocation2 + $0x1c8] sm:$0xff]
    %v269 = vld [vmem:[#allocation2 + $0x1d0] sm:$0xff]
    %v270 = vld [vmem:[#allocation2 + $0x1d8] sm:$0xff]
    %v271 = vld [vmem:[#allocation2 + $0x1e0] sm:$0xff]
    %v272 = vld [vmem:[#allocation2 + $0x1e8] sm:$0xff]
    %v273 = vld [vmem:[#allocation2 + $0x1f0] sm:$0xff]
    %v274 = vld [vmem:[#allocation2 + $0x1f8] sm:$0xff]
    %v275 = vld [vmem:[#allocation2 + $0x200] sm:$0xff]
    %v276 = vld [vmem:[#allocation2 + $0x208] sm:$0xff]
    %v277 = vld [vmem:[#allocation2 + $0x210] sm:$0xff]
    %v278 = vld [vmem:[#allocation2 + $0x218] sm:$0xff]
    %v279 = vld [vmem:[#allocation2 + $0x220] sm:$0xff]
    %v280 = vld [vmem:[#allocation2 + $0x228] sm:$0xff]
    %v281 = vld [vmem:[#allocation2 + $0x230] sm:$0xff]
    %v282 = vld [vmem:[#allocation2 + $0x238] sm:$0xff]
    %v283 = vld [vmem:[#allocation2 + $0x240] sm:$0xff]
    %v284 = vld [vmem:[#allocation2 + $0x248] sm:$0xff]
    %v285 = vld [vmem:[#allocation2 + $0x250] sm:$0xff]
    %v286 = vld [vmem:[#allocation2 + $0x258] sm:$0xff]
    %v287 = vld [vmem:[#allocation2 + $0x260] sm:$0xff]
    %v288 = vld [vmem:[#allocation2 + $0x268] sm:$0xff]
    %v289 = vld [vmem:[#allocation2 + $0x270] sm:$0xff]
    %v290 = vld [vmem:[#allocation2 + $0x278] sm:$0xff]
    %v291 = vld [vmem:[#allocation2 + $0x280] sm:$0xff]
    %v292 = vld [vmem:[#allocation2 + $0x288] sm:$0xff]
    %v293 = vld [vmem:[#allocation2 + $0x290] sm:$0xff]
    %v294 = vld [vmem:[#allocation2 + $0x298] sm:$0xff]
    %v295 = vld [vmem:[#allocation2 + $0x2a0] sm:$0xff]
    %v296 = vld [vmem:[#allocation2 + $0x2a8] sm:$0xff]
    %v297 = vld [vmem:[#allocation2 + $0x2b0] sm:$0xff]
    %v298 = vld [vmem:[#allocation2 + $0x2b8] sm:$0xff]
    %v299 = vld [vmem:[#allocation2 + $0x2c0] sm:$0xff]
    %v300 = vld [vmem:[#allocation2 + $0x2c8] sm:$0xff]
    %v301 = vld [vmem:[#allocation2 + $0x2d0] sm:$0xff]
    %v302 = vld [vmem:[#allocation2 + $0x2d8] sm:$0xff]
    %v303 = vld [vmem:[#allocation2 + $0x2e0] sm:$0xff]
    %v304 = vld [vmem:[#allocation2 + $0x2e8] sm:$0xff]
    %v305 = vld [vmem:[#allocation2 + $0x2f0] sm:$0xff]
    %v306 = vld [vmem:[#allocation2 + $0x2f8] sm:$0xff]
    %v307 = vld [vmem:[%s7] sm:$0x3f]
    %v309 = vperm.slane %v307, 0
    %v310 = vperm.slane %v307, 1
    %v311 = vperm.slane %v307, 2
    %v312 = vperm.slane %v307, 3
    %v313 = vperm.slane %v307, 4
    %v314 = vperm.slane %v307, 5
    %v417 = vunpack.c.l.b16 %v211
    %v418 = vunpack.c.h.b16 %v211
    %v419 = vunpack.c.l.b16 %v212
    %v420 = vunpack.c.h.b16 %v212
    %v421 = vunpack.c.l.b16 %v213
    %v422 = vunpack.c.h.b16 %v213
    %v423 = vunpack.c.l.b16 %v214
    %v424 = vunpack.c.h.b16 %v214
    %v425 = vunpack.c.l.b16 %v215
    %v426 = vunpack.c.h.b16 %v215
    %v427 = vunpack.c.l.b16 %v216
    %v428 = vunpack.c.h.b16 %v216
    %v429 = vunpack.c.l.b16 %v217
    %v430 = vunpack.c.h.b16 %v217
    %v431 = vunpack.c.l.b16 %v218
    %v432 = vunpack.c.h.b16 %v218
    %v433 = vunpack.c.l.b16 %v219
    %v434 = vunpack.c.h.b16 %v219
    %v435 = vunpack.c.l.b16 %v220
    %v436 = vunpack.c.h.b16 %v220
    %v437 = vunpack.c.l.b16 %v221
    %v438 = vunpack.c.h.b16 %v221
    %v439 = vunpack.c.l.b16 %v222
    %v440 = vunpack.c.h.b16 %v222
    %v441 = vunpack.c.l.b16 %v223
    %v442 = vunpack.c.h.b16 %v223
    %v443 = vunpack.c.l.b16 %v224
    %v444 = vunpack.c.h.b16 %v224
    %v445 = vunpack.c.l.b16 %v225
    %v446 = vunpack.c.h.b16 %v225
    %v447 = vunpack.c.l.b16 %v226
    %v448 = vunpack.c.h.b16 %v226
    %v449 = vunpack.c.l.b16 %v227
    %v450 = vunpack.c.h.b16 %v227
    %v451 = vunpack.c.l.b16 %v228
    %v452 = vunpack.c.h.b16 %v228
    %v453 = vunpack.c.l.b16 %v229
    %v454 = vunpack.c.h.b16 %v229
    %v455 = vunpack.c.l.b16 %v230
    %v456 = vunpack.c.h.b16 %v230
    %v457 = vunpack.c.l.b16 %v231
    %v458 = vunpack.c.h.b16 %v231
    %v459 = vunpack.c.l.b16 %v232
    %v460 = vunpack.c.h.b16 %v232
    %v461 = vunpack.c.l.b16 %v233
    %v462 = vunpack.c.h.b16 %v233
    %v463 = vunpack.c.l.b16 %v234
    %v464 = vunpack.c.h.b16 %v234
    %v465 = vunpack.c.l.b16 %v235
    %v466 = vunpack.c.h.b16 %v235
    %v467 = vunpack.c.l.b16 %v236
    %v468 = vunpack.c.h.b16 %v236
    %v469 = vunpack.c.l.b16 %v237
    %v470 = vunpack.c.h.b16 %v237
    %v471 = vunpack.c.l.b16 %v238
    %v472 = vunpack.c.h.b16 %v238
    %v473 = vunpack.c.l.b16 %v239
    %v474 = vunpack.c.h.b16 %v239
    %v475 = vunpack.c.l.b16 %v240
    %v476 = vunpack.c.h.b16 %v240
    %v477 = vunpack.c.l.b16 %v241
    %v478 = vunpack.c.h.b16 %v241
    %v479 = vunpack.c.l.b16 %v242
    %v480 = vunpack.c.h.b16 %v242
    %v481 = vunpack.c.l.b16 %v243
    %v482 = vunpack.c.h.b16 %v243
    %v483 = vunpack.c.l.b16 %v244
    %v484 = vunpack.c.h.b16 %v244
    %v485 = vunpack.c.l.b16 %v245
    %v486 = vunpack.c.h.b16 %v245
    %v487 = vunpack.c.l.b16 %v246
    %v488 = vunpack.c.h.b16 %v246
    %v489 = vunpack.c.l.b16 %v247
    %v490 = vunpack.c.h.b16 %v247
    %v491 = vunpack.c.l.b16 %v248
    %v492 = vunpack.c.h.b16 %v248
    %v493 = vunpack.c.l.b16 %v249
    %v494 = vunpack.c.h.b16 %v249
    %v495 = vunpack.c.l.b16 %v250
    %v496 = vunpack.c.h.b16 %v250
    %v497 = vunpack.c.l.b16 %v251
    %v498 = vunpack.c.h.b16 %v251
    %v499 = vunpack.c.l.b16 %v252
    %v500 = vunpack.c.h.b16 %v252
    %v501 = vunpack.c.l.b16 %v253
    %v502 = vunpack.c.h.b16 %v253
    %v503 = vunpack.c.l.b16 %v254
    %v504 = vunpack.c.h.b16 %v254
    %v505 = vunpack.c.l.b16 %v255
    %v506 = vunpack.c.h.b16 %v255
    %v507 = vunpack.c.l.b16 %v256
    %v508 = vunpack.c.h.b16 %v256
    %v509 = vunpack.c.l.b16 %v257
    %v510 = vunpack.c.h.b16 %v257
    %v511 = vunpack.c.l.b16 %v258
    %v512 = vunpack.c.h.b16 %v258
    %v513 = vunpack.c.l.b16 %v259
    %v514 = vunpack.c.h.b16 %v259
    %v515 = vunpack.c.l.b16 %v260
    %v516 = vunpack.c.h.b16 %v260
    %v517 = vunpack.c.l.b16 %v261
    %v518 = vunpack.c.h.b16 %v261
    %v519 = vunpack.c.l.b16 %v262
    %v520 = vunpack.c.h.b16 %v262
    %v521 = vunpack.c.l.b16 %v263
    %v522 = vunpack.c.h.b16 %v263
    %v523 = vunpack.c.l.b16 %v264
    %v524 = vunpack.c.h.b16 %v264
    %v525 = vunpack.c.l.b16 %v265
    %v526 = vunpack.c.h.b16 %v265
    %v527 = vunpack.c.l.b16 %v266
    %v528 = vunpack.c.h.b16 %v266
    %v529 = vunpack.c.l.b16 %v267
    %v530 = vunpack.c.h.b16 %v267
    %v531 = vunpack.c.l.b16 %v268
    %v532 = vunpack.c.h.b16 %v268
    %v533 = vunpack.c.l.b16 %v269
    %v534 = vunpack.c.h.b16 %v269
    %v535 = vunpack.c.l.b16 %v270
    %v536 = vunpack.c.h.b16 %v270
    %v537 = vunpack.c.l.b16 %v271
    %v538 = vunpack.c.h.b16 %v271
    %v539 = vunpack.c.l.b16 %v272
    %v540 = vunpack.c.h.b16 %v272
    %v541 = vunpack.c.l.b16 %v273
    %v542 = vunpack.c.h.b16 %v273
    %v543 = vunpack.c.l.b16 %v274
    %v544 = vunpack.c.h.b16 %v274
    %v545 = vunpack.c.l.b16 %v275
    %v546 = vunpack.c.h.b16 %v275
    %v547 = vunpack.c.l.b16 %v276
    %v548 = vunpack.c.h.b16 %v276
    %v549 = vunpack.c.l.b16 %v277
    %v550 = vunpack.c.h.b16 %v277
    %v551 = vunpack.c.l.b16 %v278
    %v552 = vunpack.c.h.b16 %v278
    %v553 = vunpack.c.l.b16 %v279
    %v554 = vunpack.c.h.b16 %v279
    %v555 = vunpack.c.l.b16 %v280
    %v556 = vunpack.c.h.b16 %v280
    %v557 = vunpack.c.l.b16 %v281
    %v558 = vunpack.c.h.b16 %v281
    %v559 = vunpack.c.l.b16 %v282
    %v560 = vunpack.c.h.b16 %v282
    %v561 = vunpack.c.l.b16 %v283
    %v562 = vunpack.c.h.b16 %v283
    %v563 = vunpack.c.l.b16 %v284
    %v564 = vunpack.c.h.b16 %v284
    %v565 = vunpack.c.l.b16 %v285
    %v566 = vunpack.c.h.b16 %v285
    %v567 = vunpack.c.l.b16 %v286
    %v568 = vunpack.c.h.b16 %v286
    %v569 = vunpack.c.l.b16 %v287
    %v570 = vunpack.c.h.b16 %v287
    %v571 = vunpack.c.l.b16 %v288
    %v572 = vunpack.c.h.b16 %v288
    %v573 = vunpack.c.l.b16 %v289
    %v574 = vunpack.c.h.b16 %v289
    %v575 = vunpack.c.l.b16 %v290
    %v576 = vunpack.c.h.b16 %v290
    %v577 = vunpack.c.l.b16 %v291
    %v578 = vunpack.c.h.b16 %v291
    %v579 = vunpack.c.l.b16 %v292
    %v580 = vunpack.c.h.b16 %v292
    %v581 = vunpack.c.l.b16 %v293
    %v582 = vunpack.c.h.b16 %v293
    %v583 = vunpack.c.l.b16 %v294
    %v584 = vunpack.c.h.b16 %v294
    %v585 = vunpack.c.l.b16 %v295
    %v586 = vunpack.c.h.b16 %v295
    %v587 = vunpack.c.l.b16 %v296
    %v588 = vunpack.c.h.b16 %v296
    %v589 = vunpack.c.l.b16 %v297
    %v590 = vunpack.c.h.b16 %v297
    %v591 = vunpack.c.l.b16 %v298
    %v592 = vunpack.c.h.b16 %v298
    %v593 = vunpack.c.l.b16 %v299
    %v594 = vunpack.c.h.b16 %v299
    %v595 = vunpack.c.l.b16 %v300
    %v596 = vunpack.c.h.b16 %v300
    %v597 = vunpack.c.l.b16 %v301
    %v598 = vunpack.c.h.b16 %v301
    %v599 = vunpack.c.l.b16 %v302
    %v600 = vunpack.c.h.b16 %v302
    %v601 = vunpack.c.l.b16 %v303
    %v602 = vunpack.c.h.b16 %v303
    %v603 = vunpack.c.l.b16 %v304
    %v604 = vunpack.c.h.b16 %v304
    %v605 = vunpack.c.l.b16 %v305
    %v606 = vunpack.c.h.b16 %v305
    %v607 = vunpack.c.l.b16 %v306
    %v608 = vunpack.c.h.b16 %v306
    %v609 = vpack.c.b16 %v423, %v417
    %v610 = vpack.c.b16 %v424, %v418
    %v611 = vpack.c.b16 %v425, %v419
    %v612 = vpack.c.b16 %v426, %v420
    %v613 = vpack.c.b16 %v427, %v421
    %v614 = vpack.c.b16 %v428, %v422
    %v615 = vpack.c.b16 %v435, %v429
    %v616 = vpack.c.b16 %v436, %v430
    %v617 = vpack.c.b16 %v437, %v431
    %v618 = vpack.c.b16 %v438, %v432
    %v619 = vpack.c.b16 %v439, %v433
    %v620 = vpack.c.b16 %v440, %v434
    %v621 = vpack.c.b16 %v447, %v441
    %v622 = vpack.c.b16 %v448, %v442
    %v623 = vpack.c.b16 %v449, %v443
    %v624 = vpack.c.b16 %v450, %v444
    %v625 = vpack.c.b16 %v451, %v445
    %v626 = vpack.c.b16 %v452, %v446
    %v627 = vpack.c.b16 %v459, %v453
    %v628 = vpack.c.b16 %v460, %v454
    %v629 = vpack.c.b16 %v461, %v455
    %v630 = vpack.c.b16 %v462, %v456
    %v631 = vpack.c.b16 %v463, %v457
    %v632 = vpack.c.b16 %v464, %v458
    %v633 = vpack.c.b16 %v471, %v465
    %v634 = vpack.c.b16 %v472, %v466
    %v635 = vpack.c.b16 %v473, %v467
    %v636 = vpack.c.b16 %v474, %v468
    %v637 = vpack.c.b16 %v475, %v469
    %v638 = vpack.c.b16 %v476, %v470
    %v639 = vpack.c.b16 %v483, %v477
    %v640 = vpack.c.b16 %v484, %v478
    %v641 = vpack.c.b16 %v485, %v479
    %v642 = vpack.c.b16 %v486, %v480
    %v643 = vpack.c.b16 %v487, %v481
    %v644 = vpack.c.b16 %v488, %v482
    %v645 = vpack.c.b16 %v495, %v489
    %v646 = vpack.c.b16 %v496, %v490
    %v647 = vpack.c.b16 %v497, %v491
    %v648 = vpack.c.b16 %v498, %v492
    %v649 = vpack.c.b16 %v499, %v493
    %v650 = vpack.c.b16 %v500, %v494
    %v651 = vpack.c.b16 %v507, %v501
    %v652 = vpack.c.b16 %v508, %v502
    %v653 = vpack.c.b16 %v509, %v503
    %v654 = vpack.c.b16 %v510, %v504
    %v655 = vpack.c.b16 %v511, %v505
    %v656 = vpack.c.b16 %v512, %v506
    %v657 = vpack.c.b16 %v519, %v513
    %v658 = vpack.c.b16 %v520, %v514
    %v659 = vpack.c.b16 %v521, %v515
    %v660 = vpack.c.b16 %v522, %v516
    %v661 = vpack.c.b16 %v523, %v517
    %v662 = vpack.c.b16 %v524, %v518
    %v663 = vpack.c.b16 %v531, %v525
    %v664 = vpack.c.b16 %v532, %v526
    %v665 = vpack.c.b16 %v533, %v527
    %v666 = vpack.c.b16 %v534, %v528
    %v667 = vpack.c.b16 %v535, %v529
    %v668 = vpack.c.b16 %v536, %v530
    %v669 = vpack.c.b16 %v543, %v537
    %v670 = vpack.c.b16 %v544, %v538
    %v671 = vpack.c.b16 %v545, %v539
    %v672 = vpack.c.b16 %v546, %v540
    %v673 = vpack.c.b16 %v547, %v541
    %v674 = vpack.c.b16 %v548, %v542
    %v675 = vpack.c.b16 %v555, %v549
    %v676 = vpack.c.b16 %v556, %v550
    %v677 = vpack.c.b16 %v557, %v551
    %v678 = vpack.c.b16 %v558, %v552
    %v679 = vpack.c.b16 %v559, %v553
    %v680 = vpack.c.b16 %v560, %v554
    %v681 = vpack.c.b16 %v567, %v561
    %v682 = vpack.c.b16 %v568, %v562
    %v683 = vpack.c.b16 %v569, %v563
    %v684 = vpack.c.b16 %v570, %v564
    %v685 = vpack.c.b16 %v571, %v565
    %v686 = vpack.c.b16 %v572, %v566
    %v687 = vpack.c.b16 %v579, %v573
    %v688 = vpack.c.b16 %v580, %v574
    %v689 = vpack.c.b16 %v581, %v575
    %v690 = vpack.c.b16 %v582, %v576
    %v691 = vpack.c.b16 %v583, %v577
    %v692 = vpack.c.b16 %v584, %v578
    %v693 = vpack.c.b16 %v591, %v585
    %v694 = vpack.c.b16 %v592, %v586
    %v695 = vpack.c.b16 %v593, %v587
    %v696 = vpack.c.b16 %v594, %v588
    %v697 = vpack.c.b16 %v595, %v589
    %v698 = vpack.c.b16 %v596, %v590
    %v699 = vpack.c.b16 %v603, %v597
    %v700 = vpack.c.b16 %v604, %v598
    %v701 = vpack.c.b16 %v605, %v599
    %v702 = vpack.c.b16 %v606, %v600
    %v703 = vpack.c.b16 %v607, %v601
    %v704 = vpack.c.b16 %v608, %v602
    %801 = vmatpush.bf16.msra.mxu0 %v651
    %802 = vmatpush.bf16.msra.mxu0 %v645
    %803 = vmatpush.bf16.msra.mxu0 %v639
    %804 = vmatpush.bf16.msra.mxu0 %v633
    %805 = vmatpush.bf16.msra.mxu0 %v627
    %806 = vmatpush.bf16.msra.mxu0 %v621
    %807 = vmatpush.bf16.msra.mxu0 %v615
    %808 = vmatpush.bf16.msra.mxu0 %v609
    %809 = vmatmul.bf16.gmra.mxu0 %v209
    %v810 = vpop.f32.mrf.mxu0
    %v811 = vadd.f32 %v309, %v810
    %v812 = vpop.f32.mrf.mxu0
    %v813 = vadd.f32 %v309, %v812
    %814 = vdwg.mxu0
    %815 = vmatpush.bf16.msra.mxu0 %v699
    %816 = vmatpush.bf16.msra.mxu0 %v693
    %817 = vmatpush.bf16.msra.mxu0 %v687
    %818 = vmatpush.bf16.msra.mxu0 %v681
    %819 = vmatpush.bf16.msra.mxu0 %v675
    %820 = vmatpush.bf16.msra.mxu0 %v669
    %821 = vmatpush.bf16.msra.mxu0 %v663
    %822 = vmatpush.bf16.msra.mxu0 %v657
    %823 = vmatmul.bf16.gmra.mxu0 %v210
    %v824 = vpop.f32.mrf.mxu0
    %v825 = vadd.f32 %v811, %v824
    %v826 = vpop.f32.mrf.mxu0
    %v827 = vadd.f32 %v813, %v826
    %828 = vdwg.mxu0
    %829 = vmatpush.bf16.msra.mxu0 %v652
    %830 = vmatpush.bf16.msra.mxu0 %v646
    %831 = vmatpush.bf16.msra.mxu0 %v640
    %832 = vmatpush.bf16.msra.mxu0 %v634
    %833 = vmatpush.bf16.msra.mxu0 %v628
    %834 = vmatpush.bf16.msra.mxu0 %v622
    %835 = vmatpush.bf16.msra.mxu0 %v616
    %836 = vmatpush.bf16.msra.mxu0 %v610
    %837 = vmatmul.bf16.gmra.mxu0 %v209
    %v838 = vpop.f32.mrf.mxu0
    %v839 = vadd.f32 %v310, %v838
    %v840 = vpop.f32.mrf.mxu0
    %v841 = vadd.f32 %v310, %v840
    %842 = vdwg.mxu0
    %843 = vmatpush.bf16.msra.mxu0 %v700
    %844 = vmatpush.bf16.msra.mxu0 %v694
    %845 = vmatpush.bf16.msra.mxu0 %v688
    %846 = vmatpush.bf16.msra.mxu0 %v682
    %847 = vmatpush.bf16.msra.mxu0 %v676
    %848 = vmatpush.bf16.msra.mxu0 %v670
    %849 = vmatpush.bf16.msra.mxu0 %v664
    %850 = vmatpush.bf16.msra.mxu0 %v658
    %851 = vmatmul.bf16.gmra.mxu0 %v210
    %v852 = vpop.f32.mrf.mxu0
    %v853 = vadd.f32 %v839, %v852
    %v854 = vpop.f32.mrf.mxu0
    %v855 = vadd.f32 %v841, %v854
    %856 = vdwg.mxu0
    %857 = vmatpush.bf16.msra.mxu0 %v653
    %858 = vmatpush.bf16.msra.mxu0 %v647
    %859 = vmatpush.bf16.msra.mxu0 %v641
    %860 = vmatpush.bf16.msra.mxu0 %v635
    %861 = vmatpush.bf16.msra.mxu0 %v629
    %862 = vmatpush.bf16.msra.mxu0 %v623
    %863 = vmatpush.bf16.msra.mxu0 %v617
    %864 = vmatpush.bf16.msra.mxu0 %v611
    %865 = vmatmul.bf16.gmra.mxu0 %v209
    %v866 = vpop.f32.mrf.mxu0
    %v867 = vadd.f32 %v311, %v866
    %v868 = vpop.f32.mrf.mxu0
    %v869 = vadd.f32 %v311, %v868
    %870 = vdwg.mxu0
    %871 = vmatpush.bf16.msra.mxu0 %v701
    %872 = vmatpush.bf16.msra.mxu0 %v695
    %873 = vmatpush.bf16.msra.mxu0 %v689
    %874 = vmatpush.bf16.msra.mxu0 %v683
    %875 = vmatpush.bf16.msra.mxu0 %v677
    %876 = vmatpush.bf16.msra.mxu0 %v671
    %877 = vmatpush.bf16.msra.mxu0 %v665
    %878 = vmatpush.bf16.msra.mxu0 %v659
    %879 = vmatmul.bf16.gmra.mxu0 %v210
    %v880 = vpop.f32.mrf.mxu0
    %v881 = vadd.f32 %v867, %v880
    %v882 = vpop.f32.mrf.mxu0
    %v883 = vadd.f32 %v869, %v882
    %884 = vdwg.mxu0
    %885 = vmatpush.bf16.msra.mxu0 %v654
    %886 = vmatpush.bf16.msra.mxu0 %v648
    %887 = vmatpush.bf16.msra.mxu0 %v642
    %888 = vmatpush.bf16.msra.mxu0 %v636
    %889 = vmatpush.bf16.msra.mxu0 %v630
    %890 = vmatpush.bf16.msra.mxu0 %v624
    %891 = vmatpush.bf16.msra.mxu0 %v618
    %892 = vmatpush.bf16.msra.mxu0 %v612
    %893 = vmatmul.bf16.gmra.mxu0 %v209
    %v894 = vpop.f32.mrf.mxu0
    %v895 = vadd.f32 %v312, %v894
    %v896 = vpop.f32.mrf.mxu0
    %v897 = vadd.f32 %v312, %v896
    %898 = vdwg.mxu0
    %899 = vmatpush.bf16.msra.mxu0 %v702
    %900 = vmatpush.bf16.msra.mxu0 %v696
    %901 = vmatpush.bf16.msra.mxu0 %v690
    %902 = vmatpush.bf16.msra.mxu0 %v684
    %903 = vmatpush.bf16.msra.mxu0 %v678
    %904 = vmatpush.bf16.msra.mxu0 %v672
    %905 = vmatpush.bf16.msra.mxu0 %v666
    %906 = vmatpush.bf16.msra.mxu0 %v660
    %907 = vmatmul.bf16.gmra.mxu0 %v210
    %v908 = vpop.f32.mrf.mxu0
    %v909 = vadd.f32 %v895, %v908
    %v910 = vpop.f32.mrf.mxu0
    %v911 = vadd.f32 %v897, %v910
    %912 = vdwg.mxu0
    %913 = vmatpush.bf16.msra.mxu0 %v655
    %914 = vmatpush.bf16.msra.mxu0 %v649
    %915 = vmatpush.bf16.msra.mxu0 %v643
    %916 = vmatpush.bf16.msra.mxu0 %v637
    %917 = vmatpush.bf16.msra.mxu0 %v631
    %918 = vmatpush.bf16.msra.mxu0 %v625
    %919 = vmatpush.bf16.msra.mxu0 %v619
    %920 = vmatpush.bf16.msra.mxu0 %v613
    %921 = vmatmul.bf16.gmra.mxu0 %v209
    %v922 = vpop.f32.mrf.mxu0
    %v923 = vadd.f32 %v313, %v922
    %v924 = vpop.f32.mrf.mxu0
    %v925 = vadd.f32 %v313, %v924
    %926 = vdwg.mxu0
    %927 = vmatpush.bf16.msra.mxu0 %v703
    %928 = vmatpush.bf16.msra.mxu0 %v697
    %929 = vmatpush.bf16.msra.mxu0 %v691
    %930 = vmatpush.bf16.msra.mxu0 %v685
    %931 = vmatpush.bf16.msra.mxu0 %v679
    %932 = vmatpush.bf16.msra.mxu0 %v673
    %933 = vmatpush.bf16.msra.mxu0 %v667
    %934 = vmatpush.bf16.msra.mxu0 %v661
    %935 = vmatmul.bf16.gmra.mxu0 %v210
    %v936 = vpop.f32.mrf.mxu0
    %v937 = vadd.f32 %v923, %v936
    %v938 = vpop.f32.mrf.mxu0
    %v939 = vadd.f32 %v925, %v938
    %940 = vdwg.mxu0
    %941 = vmatpush.bf16.msra.mxu0 %v656
    %942 = vmatpush.bf16.msra.mxu0 %v650
    %943 = vmatpush.bf16.msra.mxu0 %v644
    %944 = vmatpush.bf16.msra.mxu0 %v638
    %945 = vmatpush.bf16.msra.mxu0 %v632
    %946 = vmatpush.bf16.msra.mxu0 %v626
    %947 = vmatpush.bf16.msra.mxu0 %v620
    %948 = vmatpush.bf16.msra.mxu0 %v614
    %949 = vmatmul.bf16.gmra.mxu0 %v209
    %v950 = vpop.f32.mrf.mxu0
    %v951 = vadd.f32 %v314, %v950
    %v952 = vpop.f32.mrf.mxu0
    %v953 = vadd.f32 %v314, %v952
    %954 = vdwg.mxu0
    %955 = vmatpush.bf16.msra.mxu0 %v704
    %956 = vmatpush.bf16.msra.mxu0 %v698
    %957 = vmatpush.bf16.msra.mxu0 %v692
    %958 = vmatpush.bf16.msra.mxu0 %v686
    %959 = vmatpush.bf16.msra.mxu0 %v680
    %960 = vmatpush.bf16.msra.mxu0 %v674
    %961 = vmatpush.bf16.msra.mxu0 %v668
    %962 = vmatpush.bf16.msra.mxu0 %v662
    %963 = vmatmul.bf16.gmra.mxu0 %v210
    %v964 = vpop.f32.mrf.mxu0
    %v965 = vadd.f32 %v951, %v964
    %v966 = vpop.f32.mrf.mxu0
    %v967 = vadd.f32 %v953, %v966
    %968 = vdwg.mxu0
    %v969 = vmul.f32 %v825, 0.17677669
    %v970 = vmul.f32 %v853, 0.17677669
    %v971 = vperm.slane %v206, 0
    %v972 = vadd.f32 %v205, %v971
    %v973 = vpack.c.bf16 %v969, %v969
    %v974 = vpack.c.bf16 %v881, %v881
    %v975 = vpack.c.bf16 %v937, %v937
    %vm976 = vcmask 261120
    %v978 = vsel %vm976, %v973, 0
    %v981 = vsel %vm976, %v974, 0
    %983 = vmatpush.bf16.xpose.msra.mxu0 0
    %984 = vmatpush.bf16.xpose.msra.mxu0 0
    %985 = vmatpush.bf16.xpose.msra.mxu0 0
    %986 = vmatpush.bf16.xpose.msra.mxu0 0
    %987 = vmatpush.bf16.xpose.msra.mxu0 0
    %988 = vmatpush.bf16.xpose.msra.mxu0 0
    %989 = vmatpush.bf16.xpose.msra.mxu0 0
    %990 = vmatpush.bf16.xpose.msra.mxu0 %v981
    %991 = vmatmul.bf16.gmra.mxu0 %v978
    %v992 = vpop.f32.mrf.mxu0
    %v993 = vadd.f32 %v972, %v992
    %v994 = vpop.f32.mrf.mxu0
    %995 = vdwg.mxu0
    %vm996 = vcmask 64512
    %v997 = vsel %vm996, %v993, -inf
    %998 = vmax.xlane.f32.xlu0 %v997
    %v999 = vpop.xlane.xlu0 %998
    %v1000 = vsub.f32 %v993, %v999
    %v1001 = vmul.f32 %v1000, 1.442695
    %v1002 = vpow.pop %v1001
    %v1003 = vsel %vm996, %v1002, 0.0
    %1004 = vadd.xlane.f32.xlu0 %v1003
    %v1005 = vpop.xlane.xlu0 %1004
    %v1006 = vrcp.pop %v1005
    %v1007 = vmul.f32 %v1002, %v1006
    %v1008 = vpack.c.bf16 %v1007, %v1007
    %v1010 = vsel %vm996, %v1008, 0
    %vm1012 = vcmask 1043456
    %v1014 = vsel %vm1012, %v975, 0
    %1016 = vmatpush.bf16.msra.mxu0 0
    %1017 = vmatpush.bf16.msra.mxu0 0
    %1018 = vmatpush.bf16.msra.mxu0 0
    %1019 = vmatpush.bf16.msra.mxu0 0
    %1020 = vmatpush.bf16.msra.mxu0 0
    %1021 = vmatpush.bf16.msra.mxu0 0
    %1022 = vmatpush.bf16.msra.mxu0 0
    %1023 = vmatpush.bf16.msra.mxu0 %v1014
    %1024 = vmatmul.bf16.gmra.mxu0 %v1010
    %v1025 = vpop.f32.mrf.mxu0
    %v1026 = vadd.f32 0.0, %v1025
    %v1027 = vpop.f32.mrf.mxu0
    %1028 = vdwg.mxu0
    %1030 = vrot.lane.b32.xlu0 %v973, 96
    %v1031 = vpop.permute.xlu0 %1030
    %1033 = vrot.lane.b32.xlu0 %v974, 96
    %v1034 = vpop.permute.xlu0 %1033
    %v1036 = vsel %vm976, %v1031, 0
    %v1039 = vsel %vm976, %v1034, 0
    %1041 = vmatpush.bf16.xpose.msra.mxu0 0
    %1042 = vmatpush.bf16.xpose.msra.mxu0 0
    %1043 = vmatpush.bf16.xpose.msra.mxu0 0
    %1044 = vmatpush.bf16.xpose.msra.mxu0 0
    %1045 = vmatpush.bf16.xpose.msra.mxu0 0
    %1046 = vmatpush.bf16.xpose.msra.mxu0 0
    %1047 = vmatpush.bf16.xpose.msra.mxu0 0
    %1048 = vmatpush.bf16.xpose.msra.mxu0 %v1039
    %1049 = vmatmul.bf16.gmra.mxu0 %v1036
    %v1050 = vpop.f32.mrf.mxu0
    %v1051 = vadd.f32 %v972, %v1050
    %v1052 = vpop.f32.mrf.mxu0
    %1053 = vdwg.mxu0
    %v1054 = vsel %vm996, %v1051, -inf
    %1055 = vmax.xlane.f32.xlu0 %v1054
    %v1056 = vpop.xlane.xlu0 %1055
    %v1057 = vsub.f32 %v1051, %v1056
    %v1058 = vmul.f32 %v1057, 1.442695
    %v1059 = vpow.pop %v1058
    %v1060 = vsel %vm996, %v1059, 0.0
    %1061 = vadd.xlane.f32.xlu0 %v1060
    %v1062 = vpop.xlane.xlu0 %1061
    %v1063 = vrcp.pop %v1062
    %v1064 = vmul.f32 %v1059, %v1063
    %v1065 = vpack.c.bf16 %v1064, %v1064
    %1067 = vrot.lane.b32.xlu0 %v975, 96
    %v1068 = vpop.permute.xlu0 %1067
    %v1070 = vsel %vm996, %v1065, 0
    %v1073 = vsel %vm1012, %v1068, 0
    %1075 = vmatpush.bf16.msra.mxu0 0
    %1076 = vmatpush.bf16.msra.mxu0 0
    %1077 = vmatpush.bf16.msra.mxu0 0
    %1078 = vmatpush.bf16.msra.mxu0 0
    %1079 = vmatpush.bf16.msra.mxu0 0
    %1080 = vmatpush.bf16.msra.mxu0 0
    %1081 = vmatpush.bf16.msra.mxu0 0
    %1082 = vmatpush.bf16.msra.mxu0 %v1073
    %1083 = vmatmul.bf16.gmra.mxu0 %v1070
    %v1084 = vpop.f32.mrf.mxu0
    %v1085 = vadd.f32 0.0, %v1084
    %v1086 = vpop.f32.mrf.mxu0
    %1087 = vdwg.mxu0
    %1088 = vrot.lane.b32.xlu0 %v973, 64
    %v1089 = vpop.permute.xlu0 %1088
    %1090 = vrot.lane.b32.xlu0 %v974, 64
    %v1091 = vpop.permute.xlu0 %1090
    %v1093 = vsel %vm976, %v1089, 0
    %v1096 = vsel %vm976, %v1091, 0
    %1098 = vmatpush.bf16.xpose.msra.mxu0 0
    %1099 = vmatpush.bf16.xpose.msra.mxu0 0
    %1100 = vmatpush.bf16.xpose.msra.mxu0 0
    %1101 = vmatpush.bf16.xpose.msra.mxu0 0
    %1102 = vmatpush.bf16.xpose.msra.mxu0 0
    %1103 = vmatpush.bf16.xpose.msra.mxu0 0
    %1104 = vmatpush.bf16.xpose.msra.mxu0 0
    %1105 = vmatpush.bf16.xpose.msra.mxu0 %v1096
    %1106 = vmatmul.bf16.gmra.mxu0 %v1093
    %v1107 = vpop.f32.mrf.mxu0
    %v1108 = vadd.f32 %v972, %v1107
    %v1109 = vpop.f32.mrf.mxu0
    %1110 = vdwg.mxu0
    %v1111 = vsel %vm996, %v1108, -inf
    %1112 = vmax.xlane.f32.xlu0 %v1111
    %v1113 = vpop.xlane.xlu0 %1112
    %v1114 = vsub.f32 %v1108, %v1113
    %v1115 = vmul.f32 %v1114, 1.442695
    %v1116 = vpow.pop %v1115
    %v1117 = vsel %vm996, %v1116, 0.0
    %1118 = vadd.xlane.f32.xlu0 %v1117
    %v1119 = vpop.xlane.xlu0 %1118
    %v1120 = vrcp.pop %v1119
    %v1121 = vmul.f32 %v1116, %v1120
    %v1122 = vpack.c.bf16 %v1121, %v1121
    %1123 = vrot.lane.b32.xlu0 %v975, 64
    %v1124 = vpop.permute.xlu0 %1123
    %v1126 = vsel %vm996, %v1122, 0
    %v1129 = vsel %vm1012, %v1124, 0
    %1131 = vmatpush.bf16.msra.mxu0 0
    %1132 = vmatpush.bf16.msra.mxu0 0
    %1133 = vmatpush.bf16.msra.mxu0 0
    %1134 = vmatpush.bf16.msra.mxu0 0
    %1135 = vmatpush.bf16.msra.mxu0 0
    %1136 = vmatpush.bf16.msra.mxu0 0
    %1137 = vmatpush.bf16.msra.mxu0 0
    %1138 = vmatpush.bf16.msra.mxu0 %v1129
    %1139 = vmatmul.bf16.gmra.mxu0 %v1126
    %v1140 = vpop.f32.mrf.mxu0
    %v1141 = vadd.f32 0.0, %v1140
    %v1142 = vpop.f32.mrf.mxu0
    %1143 = vdwg.mxu0
    %1144 = vrot.lane.b32.xlu0 %v973, 32
    %v1145 = vpop.permute.xlu0 %1144
    %1146 = vrot.lane.b32.xlu0 %v974, 32
    %v1147 = vpop.permute.xlu0 %1146
    %v1149 = vsel %vm976, %v1145, 0
    %v1152 = vsel %vm976, %v1147, 0
    %1154 = vmatpush.bf16.xpose.msra.mxu0 0
    %1155 = vmatpush.bf16.xpose.msra.mxu0 0
    %1156 = vmatpush.bf16.xpose.msra.mxu0 0
    %1157 = vmatpush.bf16.xpose.msra.mxu0 0
    %1158 = vmatpush.bf16.xpose.msra.mxu0 0
    %1159 = vmatpush.bf16.xpose.msra.mxu0 0
    %1160 = vmatpush.bf16.xpose.msra.mxu0 0
    %1161 = vmatpush.bf16.xpose.msra.mxu0 %v1152
    %1162 = vmatmul.bf16.gmra.mxu0 %v1149
    %v1163 = vpop.f32.mrf.mxu0
    %v1164 = vadd.f32 %v972, %v1163
    %v1165 = vpop.f32.mrf.mxu0
    %1166 = vdwg.mxu0
    %v1167 = vsel %vm996, %v1164, -inf
    %1168 = vmax.xlane.f32.xlu0 %v1167
    %v1169 = vpop.xlane.xlu0 %1168
    %v1170 = vsub.f32 %v1164, %v1169
    %v1171 = vmul.f32 %v1170, 1.442695
    %v1172 = vpow.pop %v1171
    %v1173 = vsel %vm996, %v1172, 0.0
    %1174 = vadd.xlane.f32.xlu0 %v1173
    %v1175 = vpop.xlane.xlu0 %1174
    %v1176 = vrcp.pop %v1175
    %v1177 = vmul.f32 %v1172, %v1176
    %v1178 = vpack.c.bf16 %v1177, %v1177
    %1179 = vrot.lane.b32.xlu0 %v975, 32
    %v1180 = vpop.permute.xlu0 %1179
    %v1182 = vsel %vm996, %v1178, 0
    %v1185 = vsel %vm1012, %v1180, 0
    %1187 = vmatpush.bf16.msra.mxu0 0
    %1188 = vmatpush.bf16.msra.mxu0 0
    %1189 = vmatpush.bf16.msra.mxu0 0
    %1190 = vmatpush.bf16.msra.mxu0 0
    %1191 = vmatpush.bf16.msra.mxu0 0
    %1192 = vmatpush.bf16.msra.mxu0 0
    %1193 = vmatpush.bf16.msra.mxu0 0
    %1194 = vmatpush.bf16.msra.mxu0 %v1185
    %1195 = vmatmul.bf16.gmra.mxu0 %v1182
    %v1196 = vpop.f32.mrf.mxu0
    %v1197 = vadd.f32 0.0, %v1196
    %v1198 = vpop.f32.mrf.mxu0
    %1199 = vdwg.mxu0
    %v1200 = vpack.c.bf16 %v970, %v970
    %v1201 = vpack.c.bf16 %v909, %v909
    %v1202 = vpack.c.bf16 %v965, %v965
    %v1204 = vsel %vm976, %v1200, 0
    %v1207 = vsel %vm976, %v1201, 0
    %1209 = vmatpush.bf16.xpose.msra.mxu0 0
    %1210 = vmatpush.bf16.xpose.msra.mxu0 0
    %1211 = vmatpush.bf16.xpose.msra.mxu0 0
    %1212 = vmatpush.bf16.xpose.msra.mxu0 0
    %1213 = vmatpush.bf16.xpose.msra.mxu0 0
    %1214 = vmatpush.bf16.xpose.msra.mxu0 0
    %1215 = vmatpush.bf16.xpose.msra.mxu0 0
    %1216 = vmatpush.bf16.xpose.msra.mxu0 %v1207
    %1217 = vmatmul.bf16.gmra.mxu0 %v1204
    %v1218 = vpop.f32.mrf.mxu0
    %v1219 = vadd.f32 %v972, %v1218
    %v1220 = vpop.f32.mrf.mxu0
    %1221 = vdwg.mxu0
    %v1222 = vsel %vm996, %v1219, -inf
    %1223 = vmax.xlane.f32.xlu0 %v1222
    %v1224 = vpop.xlane.xlu0 %1223
    %v1225 = vsub.f32 %v1219, %v1224
    %v1226 = vmul.f32 %v1225, 1.442695
    %v1227 = vpow.pop %v1226
    %v1228 = vsel %vm996, %v1227, 0.0
    %1229 = vadd.xlane.f32.xlu0 %v1228
    %v1230 = vpop.xlane.xlu0 %1229
    %v1231 = vrcp.pop %v1230
    %v1232 = vmul.f32 %v1227, %v1231
    %v1233 = vpack.c.bf16 %v1232, %v1232
    %v1235 = vsel %vm996, %v1233, 0
    %v1238 = vsel %vm1012, %v1202, 0
    %1240 = vmatpush.bf16.msra.mxu0 0
    %1241 = vmatpush.bf16.msra.mxu0 0
    %1242 = vmatpush.bf16.msra.mxu0 0
    %1243 = vmatpush.bf16.msra.mxu0 0
    %1244 = vmatpush.bf16.msra.mxu0 0
    %1245 = vmatpush.bf16.msra.mxu0 0
    %1246 = vmatpush.bf16.msra.mxu0 0
    %1247 = vmatpush.bf16.msra.mxu0 %v1238
    %1248 = vmatmul.bf16.gmra.mxu0 %v1235
    %v1249 = vpop.f32.mrf.mxu0
    %v1250 = vadd.f32 0.0, %v1249
    %v1251 = vpop.f32.mrf.mxu0
    %1252 = vdwg.mxu0
    %1254 = vrot.lane.b32.xlu0 %v1200, 96
    %v1255 = vpop.permute.xlu0 %1254
    %1257 = vrot.lane.b32.xlu0 %v1201, 96
    %v1258 = vpop.permute.xlu0 %1257
    %v1260 = vsel %vm976, %v1255, 0
    %v1263 = vsel %vm976, %v1258, 0
    %1265 = vmatpush.bf16.xpose.msra.mxu0 0
    %1266 = vmatpush.bf16.xpose.msra.mxu0 0
    %1267 = vmatpush.bf16.xpose.msra.mxu0 0
    %1268 = vmatpush.bf16.xpose.msra.mxu0 0
    %1269 = vmatpush.bf16.xpose.msra.mxu0 0
    %1270 = vmatpush.bf16.xpose.msra.mxu0 0
    %1271 = vmatpush.bf16.xpose.msra.mxu0 0
    %1272 = vmatpush.bf16.xpose.msra.mxu0 %v1263
    %1273 = vmatmul.bf16.gmra.mxu0 %v1260
    %v1274 = vpop.f32.mrf.mxu0
    %v1275 = vadd.f32 %v972, %v1274
    %v1276 = vpop.f32.mrf.mxu0
    %1277 = vdwg.mxu0
    %v1278 = vsel %vm996, %v1275, -inf
    %1279 = vmax.xlane.f32.xlu0 %v1278
    %v1280 = vpop.xlane.xlu0 %1279
    %v1281 = vsub.f32 %v1275, %v1280
    %v1282 = vmul.f32 %v1281, 1.442695
    %v1283 = vpow.pop %v1282
    %v1284 = vsel %vm996, %v1283, 0.0
    %1285 = vadd.xlane.f32.xlu0 %v1284
    %v1286 = vpop.xlane.xlu0 %1285
    %v1287 = vrcp.pop %v1286
    %v1288 = vmul.f32 %v1283, %v1287
    %v1289 = vpack.c.bf16 %v1288, %v1288
    %1291 = vrot.lane.b32.xlu0 %v1202, 96
    %v1292 = vpop.permute.xlu0 %1291
    %v1294 = vsel %vm996, %v1289, 0
    %v1297 = vsel %vm1012, %v1292, 0
    %1299 = vmatpush.bf16.msra.mxu0 0
    %1300 = vmatpush.bf16.msra.mxu0 0
    %1301 = vmatpush.bf16.msra.mxu0 0
    %1302 = vmatpush.bf16.msra.mxu0 0
    %1303 = vmatpush.bf16.msra.mxu0 0
    %1304 = vmatpush.bf16.msra.mxu0 0
    %1305 = vmatpush.bf16.msra.mxu0 0
    %1306 = vmatpush.bf16.msra.mxu0 %v1297
    %1307 = vmatmul.bf16.gmra.mxu0 %v1294
    %v1308 = vpop.f32.mrf.mxu0
    %v1309 = vadd.f32 0.0, %v1308
    %v1310 = vpop.f32.mrf.mxu0
    %1311 = vdwg.mxu0
    %1312 = vrot.lane.b32.xlu0 %v1200, 64
    %v1313 = vpop.permute.xlu0 %1312
    %1314 = vrot.lane.b32.xlu0 %v1201, 64
    %v1315 = vpop.permute.xlu0 %1314
    %v1317 = vsel %vm976, %v1313, 0
    %v1320 = vsel %vm976, %v1315, 0
    %1322 = vmatpush.bf16.xpose.msra.mxu0 0
    %1323 = vmatpush.bf16.xpose.msra.mxu0 0
    %1324 = vmatpush.bf16.xpose.msra.mxu0 0
    %1325 = vmatpush.bf16.xpose.msra.mxu0 0
    %1326 = vmatpush.bf16.xpose.msra.mxu0 0
    %1327 = vmatpush.bf16.xpose.msra.mxu0 0
    %1328 = vmatpush.bf16.xpose.msra.mxu0 0
    %1329 = vmatpush.bf16.xpose.msra.mxu0 %v1320
    %1330 = vmatmul.bf16.gmra.mxu0 %v1317
    %v1331 = vpop.f32.mrf.mxu0
    %v1332 = vadd.f32 %v972, %v1331
    %v1333 = vpop.f32.mrf.mxu0
    %1334 = vdwg.mxu0
    %v1335 = vsel %vm996, %v1332, -inf
    %1336 = vmax.xlane.f32.xlu0 %v1335
    %v1337 = vpop.xlane.xlu0 %1336
    %v1338 = vsub.f32 %v1332, %v1337
    %v1339 = vmul.f32 %v1338, 1.442695
    %v1340 = vpow.pop %v1339
    %v1341 = vsel %vm996, %v1340, 0.0
    %1342 = vadd.xlane.f32.xlu0 %v1341
    %v1343 = vpop.xlane.xlu0 %1342
    %v1344 = vrcp.pop %v1343
    %v1345 = vmul.f32 %v1340, %v1344
    %v1346 = vpack.c.bf16 %v1345, %v1345
    %1347 = vrot.lane.b32.xlu0 %v1202, 64
    %v1348 = vpop.permute.xlu0 %1347
    %v1350 = vsel %vm996, %v1346, 0
    %v1353 = vsel %vm1012, %v1348, 0
    %1355 = vmatpush.bf16.msra.mxu0 0
    %1356 = vmatpush.bf16.msra.mxu0 0
    %1357 = vmatpush.bf16.msra.mxu0 0
    %1358 = vmatpush.bf16.msra.mxu0 0
    %1359 = vmatpush.bf16.msra.mxu0 0
    %1360 = vmatpush.bf16.msra.mxu0 0
    %1361 = vmatpush.bf16.msra.mxu0 0
    %1362 = vmatpush.bf16.msra.mxu0 %v1353
    %1363 = vmatmul.bf16.gmra.mxu0 %v1350
    %v1364 = vpop.f32.mrf.mxu0
    %v1365 = vadd.f32 0.0, %v1364
    %v1366 = vpop.f32.mrf.mxu0
    %1367 = vdwg.mxu0
    %1368 = vrot.lane.b32.xlu0 %v1200, 32
    %v1369 = vpop.permute.xlu0 %1368
    %1370 = vrot.lane.b32.xlu0 %v1201, 32
    %v1371 = vpop.permute.xlu0 %1370
    %v1373 = vsel %vm976, %v1369, 0
    %v1376 = vsel %vm976, %v1371, 0
    %1378 = vmatpush.bf16.xpose.msra.mxu0 0
    %1379 = vmatpush.bf16.xpose.msra.mxu0 0
    %1380 = vmatpush.bf16.xpose.msra.mxu0 0
    %1381 = vmatpush.bf16.xpose.msra.mxu0 0
    %1382 = vmatpush.bf16.xpose.msra.mxu0 0
    %1383 = vmatpush.bf16.xpose.msra.mxu0 0
    %1384 = vmatpush.bf16.xpose.msra.mxu0 0
    %1385 = vmatpush.bf16.xpose.msra.mxu0 %v1376
    %1386 = vmatmul.bf16.gmra.mxu0 %v1373
    %v1387 = vpop.f32.mrf.mxu0
    %v1388 = vadd.f32 %v972, %v1387
    %v1389 = vpop.f32.mrf.mxu0
    %1390 = vdwg.mxu0
    %v1391 = vsel %vm996, %v1388, -inf
    %1392 = vmax.xlane.f32.xlu0 %v1391
    %v1393 = vpop.xlane.xlu0 %1392
    %v1394 = vsub.f32 %v1388, %v1393
    %v1395 = vmul.f32 %v1394, 1.442695
    %v1396 = vpow.pop %v1395
    %v1397 = vsel %vm996, %v1396, 0.0
    %1398 = vadd.xlane.f32.xlu0 %v1397
    %v1399 = vpop.xlane.xlu0 %1398
    %v1400 = vrcp.pop %v1399
    %v1401 = vmul.f32 %v1396, %v1400
    %v1402 = vpack.c.bf16 %v1401, %v1401
    %1403 = vrot.lane.b32.xlu0 %v1202, 32
    %v1404 = vpop.permute.xlu0 %1403
    %v1406 = vsel %vm996, %v1402, 0
    %v1409 = vsel %vm1012, %v1404, 0
    %1411 = vmatpush.bf16.msra.mxu0 0
    %1412 = vmatpush.bf16.msra.mxu0 0
    %1413 = vmatpush.bf16.msra.mxu0 0
    %1414 = vmatpush.bf16.msra.mxu0 0
    %1415 = vmatpush.bf16.msra.mxu0 0
    %1416 = vmatpush.bf16.msra.mxu0 0
    %1417 = vmatpush.bf16.msra.mxu0 0
    %1418 = vmatpush.bf16.msra.mxu0 %v1409
    %1419 = vmatmul.bf16.gmra.mxu0 %v1406
    %v1420 = vpop.f32.mrf.mxu0
    %v1421 = vadd.f32 0.0, %v1420
    %v1422 = vpop.f32.mrf.mxu0
    %1423 = vdwg.mxu0
    %1425 = vrot.lane.b32.xlu0 %v1085, 32
    %v1426 = vpop.permute.xlu0 %1425
    %1429 = vrot.lane.b32.xlu0 %v1141, 64
    %v1430 = vpop.permute.xlu0 %1429
    %1433 = vrot.lane.b32.xlu0 %v1197, 96
    %v1434 = vpop.permute.xlu0 %1433
    %1437 = vrot.lane.b32.xlu0 %v1309, 32
    %v1438 = vpop.permute.xlu0 %1437
    %1441 = vrot.lane.b32.xlu0 %v1365, 64
    %v1442 = vpop.permute.xlu0 %1441
    %1445 = vrot.lane.b32.xlu0 %v1421, 96
    %v1446 = vpop.permute.xlu0 %1445
    %v1448 = vsel %vm976, %v1026, %v1426
    %vm1449 = vcmask 523264
    %v1450 = vsel %vm1449, %v1448, %v1430
    %vm1451 = vcmask 785408
    %v1452 = vsel %vm1451, %v1450, %v1434
    %v1453 = vsel %vm976, %v1250, %v1438
    %v1454 = vsel %vm1449, %v1453, %v1442
    %v1455 = vsel %vm1451, %v1454, %v1446
    %v1456 = vmul.f32 %v827, 0.17677669
    %v1457 = vmul.f32 %v855, 0.17677669
    %v1458 = vperm.slane %v206, 1
    %v1459 = vadd.f32 %v205, %v1458
    %v1460 = vpack.c.bf16 %v1456, %v1456
    %v1461 = vpack.c.bf16 %v883, %v883
    %v1462 = vpack.c.bf16 %v939, %v939
    %v1464 = vsel %vm976, %v1460, 0
    %v1467 = vsel %vm976, %v1461, 0
    %1469 = vmatpush.bf16.xpose.msra.mxu0 0
    %1470 = vmatpush.bf16.xpose.msra.mxu0 0
    %1471 = vmatpush.bf16.xpose.msra.mxu0 0
    %1472 = vmatpush.bf16.xpose.msra.mxu0 0
    %1473 = vmatpush.bf16.xpose.msra.mxu0 0
    %1474 = vmatpush.bf16.xpose.msra.mxu0 0
    %1475 = vmatpush.bf16.xpose.msra.mxu0 0
    %1476 = vmatpush.bf16.xpose.msra.mxu0 %v1467
    %1477 = vmatmul.bf16.gmra.mxu0 %v1464
    %v1478 = vpop.f32.mrf.mxu0
    %v1479 = vadd.f32 %v1459, %v1478
    %v1480 = vpop.f32.mrf.mxu0
    %1481 = vdwg.mxu0
    %v1482 = vsel %vm996, %v1479, -inf
    %1483 = vmax.xlane.f32.xlu0 %v1482
    %v1484 = vpop.xlane.xlu0 %1483
    %v1485 = vsub.f32 %v1479, %v1484
    %v1486 = vmul.f32 %v1485, 1.442695
    %v1487 = vpow.pop %v1486
    %v1488 = vsel %vm996, %v1487, 0.0
    %1489 = vadd.xlane.f32.xlu0 %v1488
    %v1490 = vpop.xlane.xlu0 %1489
    %v1491 = vrcp.pop %v1490
    %v1492 = vmul.f32 %v1487, %v1491
    %v1493 = vpack.c.bf16 %v1492, %v1492
    %v1495 = vsel %vm996, %v1493, 0
    %v1498 = vsel %vm1012, %v1462, 0
    %1500 = vmatpush.bf16.msra.mxu0 0
    %1501 = vmatpush.bf16.msra.mxu0 0
    %1502 = vmatpush.bf16.msra.mxu0 0
    %1503 = vmatpush.bf16.msra.mxu0 0
    %1504 = vmatpush.bf16.msra.mxu0 0
    %1505 = vmatpush.bf16.msra.mxu0 0
    %1506 = vmatpush.bf16.msra.mxu0 0
    %1507 = vmatpush.bf16.msra.mxu0 %v1498
    %1508 = vmatmul.bf16.gmra.mxu0 %v1495
    %v1509 = vpop.f32.mrf.mxu0
    %v1510 = vadd.f32 0.0, %v1509
    %v1511 = vpop.f32.mrf.mxu0
    %1512 = vdwg.mxu0
    %1514 = vrot.lane.b32.xlu0 %v1460, 96
    %v1515 = vpop.permute.xlu0 %1514
    %1517 = vrot.lane.b32.xlu0 %v1461, 96
    %v1518 = vpop.permute.xlu0 %1517
    %v1520 = vsel %vm976, %v1515, 0
    %v1523 = vsel %vm976, %v1518, 0
    %1525 = vmatpush.bf16.xpose.msra.mxu0 0
    %1526 = vmatpush.bf16.xpose.msra.mxu0 0
    %1527 = vmatpush.bf16.xpose.msra.mxu0 0
    %1528 = vmatpush.bf16.xpose.msra.mxu0 0
    %1529 = vmatpush.bf16.xpose.msra.mxu0 0
    %1530 = vmatpush.bf16.xpose.msra.mxu0 0
    %1531 = vmatpush.bf16.xpose.msra.mxu0 0
    %1532 = vmatpush.bf16.xpose.msra.mxu0 %v1523
    %1533 = vmatmul.bf16.gmra.mxu0 %v1520
    %v1534 = vpop.f32.mrf.mxu0
    %v1535 = vadd.f32 %v1459, %v1534
    %v1536 = vpop.f32.mrf.mxu0
    %1537 = vdwg.mxu0
    %v1538 = vsel %vm996, %v1535, -inf
    %1539 = vmax.xlane.f32.xlu0 %v1538
    %v1540 = vpop.xlane.xlu0 %1539
    %v1541 = vsub.f32 %v1535, %v1540
    %v1542 = vmul.f32 %v1541, 1.442695
    %v1543 = vpow.pop %v1542
    %v1544 = vsel %vm996, %v1543, 0.0
    %1545 = vadd.xlane.f32.xlu0 %v1544
    %v1546 = vpop.xlane.xlu0 %1545
    %v1547 = vrcp.pop %v1546
    %v1548 = vmul.f32 %v1543, %v1547
    %v1549 = vpack.c.bf16 %v1548, %v1548
    %1551 = vrot.lane.b32.xlu0 %v1462, 96
    %v1552 = vpop.permute.xlu0 %1551
    %v1554 = vsel %vm996, %v1549, 0
    %v1557 = vsel %vm1012, %v1552, 0
    %1559 = vmatpush.bf16.msra.mxu0 0
    %1560 = vmatpush.bf16.msra.mxu0 0
    %1561 = vmatpush.bf16.msra.mxu0 0
    %1562 = vmatpush.bf16.msra.mxu0 0
    %1563 = vmatpush.bf16.msra.mxu0 0
    %1564 = vmatpush.bf16.msra.mxu0 0
    %1565 = vmatpush.bf16.msra.mxu0 0
    %1566 = vmatpush.bf16.msra.mxu0 %v1557
    %1567 = vmatmul.bf16.gmra.mxu0 %v1554
    %v1568 = vpop.f32.mrf.mxu0
    %v1569 = vadd.f32 0.0, %v1568
    %v1570 = vpop.f32.mrf.mxu0
    %1571 = vdwg.mxu0
    %1572 = vrot.lane.b32.xlu0 %v1460, 64
    %v1573 = vpop.permute.xlu0 %1572
    %1574 = vrot.lane.b32.xlu0 %v1461, 64
    %v1575 = vpop.permute.xlu0 %1574
    %v1577 = vsel %vm976, %v1573, 0
    %v1580 = vsel %vm976, %v1575, 0
    %1582 = vmatpush.bf16.xpose.msra.mxu0 0
    %1583 = vmatpush.bf16.xpose.msra.mxu0 0
    %1584 = vmatpush.bf16.xpose.msra.mxu0 0
    %1585 = vmatpush.bf16.xpose.msra.mxu0 0
    %1586 = vmatpush.bf16.xpose.msra.mxu0 0
    %1587 = vmatpush.bf16.xpose.msra.mxu0 0
    %1588 = vmatpush.bf16.xpose.msra.mxu0 0
    %1589 = vmatpush.bf16.xpose.msra.mxu0 %v1580
    %1590 = vmatmul.bf16.gmra.mxu0 %v1577
    %v1591 = vpop.f32.mrf.mxu0
    %v1592 = vadd.f32 %v1459, %v1591
    %v1593 = vpop.f32.mrf.mxu0
    %1594 = vdwg.mxu0
    %v1595 = vsel %vm996, %v1592, -inf
    %1596 = vmax.xlane.f32.xlu0 %v1595
    %v1597 = vpop.xlane.xlu0 %1596
    %v1598 = vsub.f32 %v1592, %v1597
    %v1599 = vmul.f32 %v1598, 1.442695
    %v1600 = vpow.pop %v1599
    %v1601 = vsel %vm996, %v1600, 0.0
    %1602 = vadd.xlane.f32.xlu0 %v1601
    %v1603 = vpop.xlane.xlu0 %1602
    %v1604 = vrcp.pop %v1603
    %v1605 = vmul.f32 %v1600, %v1604
    %v1606 = vpack.c.bf16 %v1605, %v1605
    %1607 = vrot.lane.b32.xlu0 %v1462, 64
    %v1608 = vpop.permute.xlu0 %1607
    %v1610 = vsel %vm996, %v1606, 0
    %v1613 = vsel %vm1012, %v1608, 0
    %1615 = vmatpush.bf16.msra.mxu0 0
    %1616 = vmatpush.bf16.msra.mxu0 0
    %1617 = vmatpush.bf16.msra.mxu0 0
    %1618 = vmatpush.bf16.msra.mxu0 0
    %1619 = vmatpush.bf16.msra.mxu0 0
    %1620 = vmatpush.bf16.msra.mxu0 0
    %1621 = vmatpush.bf16.msra.mxu0 0
    %1622 = vmatpush.bf16.msra.mxu0 %v1613
    %1623 = vmatmul.bf16.gmra.mxu0 %v1610
    %v1624 = vpop.f32.mrf.mxu0
    %v1625 = vadd.f32 0.0, %v1624
    %v1626 = vpop.f32.mrf.mxu0
    %1627 = vdwg.mxu0
    %1628 = vrot.lane.b32.xlu0 %v1460, 32
    %v1629 = vpop.permute.xlu0 %1628
    %1630 = vrot.lane.b32.xlu0 %v1461, 32
    %v1631 = vpop.permute.xlu0 %1630
    %v1633 = vsel %vm976, %v1629, 0
    %v1636 = vsel %vm976, %v1631, 0
    %1638 = vmatpush.bf16.xpose.msra.mxu0 0
    %1639 = vmatpush.bf16.xpose.msra.mxu0 0
    %1640 = vmatpush.bf16.xpose.msra.mxu0 0
    %1641 = vmatpush.bf16.xpose.msra.mxu0 0
    %1642 = vmatpush.bf16.xpose.msra.mxu0 0
    %1643 = vmatpush.bf16.xpose.msra.mxu0 0
    %1644 = vmatpush.bf16.xpose.msra.mxu0 0
    %1645 = vmatpush.bf16.xpose.msra.mxu0 %v1636
    %1646 = vmatmul.bf16.gmra.mxu0 %v1633
    %v1647 = vpop.f32.mrf.mxu0
    %v1648 = vadd.f32 %v1459, %v1647
    %v1649 = vpop.f32.mrf.mxu0
    %1650 = vdwg.mxu0
    %v1651 = vsel %vm996, %v1648, -inf
    %1652 = vmax.xlane.f32.xlu0 %v1651
    %v1653 = vpop.xlane.xlu0 %1652
    %v1654 = vsub.f32 %v1648, %v1653
    %v1655 = vmul.f32 %v1654, 1.442695
    %v1656 = vpow.pop %v1655
    %v1657 = vsel %vm996, %v1656, 0.0
    %1658 = vadd.xlane.f32.xlu0 %v1657
    %v1659 = vpop.xlane.xlu0 %1658
    %v1660 = vrcp.pop %v1659
    %v1661 = vmul.f32 %v1656, %v1660
    %v1662 = vpack.c.bf16 %v1661, %v1661
    %1663 = vrot.lane.b32.xlu0 %v1462, 32
    %v1664 = vpop.permute.xlu0 %1663
    %v1666 = vsel %vm996, %v1662, 0
    %v1669 = vsel %vm1012, %v1664, 0
    %1671 = vmatpush.bf16.msra.mxu0 0
    %1672 = vmatpush.bf16.msra.mxu0 0
    %1673 = vmatpush.bf16.msra.mxu0 0
    %1674 = vmatpush.bf16.msra.mxu0 0
    %1675 = vmatpush.bf16.msra.mxu0 0
    %1676 = vmatpush.bf16.msra.mxu0 0
    %1677 = vmatpush.bf16.msra.mxu0 0
    %1678 = vmatpush.bf16.msra.mxu0 %v1669
    %1679 = vmatmul.bf16.gmra.mxu0 %v1666
    %v1680 = vpop.f32.mrf.mxu0
    %v1681 = vadd.f32 0.0, %v1680
    %v1682 = vpop.f32.mrf.mxu0
    %1683 = vdwg.mxu0
    %v1684 = vpack.c.bf16 %v1457, %v1457
    %v1685 = vpack.c.bf16 %v911, %v911
    %v1686 = vpack.c.bf16 %v967, %v967
    %v1688 = vsel %vm976, %v1684, 0
    %v1691 = vsel %vm976, %v1685, 0
    %1693 = vmatpush.bf16.xpose.msra.mxu0 0
    %1694 = vmatpush.bf16.xpose.msra.mxu0 0
    %1695 = vmatpush.bf16.xpose.msra.mxu0 0
    %1696 = vmatpush.bf16.xpose.msra.mxu0 0
    %1697 = vmatpush.bf16.xpose.msra.mxu0 0
    %1698 = vmatpush.bf16.xpose.msra.mxu0 0
    %1699 = vmatpush.bf16.xpose.msra.mxu0 0
    %1700 = vmatpush.bf16.xpose.msra.mxu0 %v1691
    %1701 = vmatmul.bf16.gmra.mxu0 %v1688
    %v1702 = vpop.f32.mrf.mxu0
    %v1703 = vadd.f32 %v1459, %v1702
    %v1704 = vpop.f32.mrf.mxu0
    %1705 = vdwg.mxu0
    %v1706 = vsel %vm996, %v1703, -inf
    %1707 = vmax.xlane.f32.xlu0 %v1706
    %v1708 = vpop.xlane.xlu0 %1707
    %v1709 = vsub.f32 %v1703, %v1708
    %v1710 = vmul.f32 %v1709, 1.442695
    %v1711 = vpow.pop %v1710
    %v1712 = vsel %vm996, %v1711, 0.0
    %1713 = vadd.xlane.f32.xlu0 %v1712
    %v1714 = vpop.xlane.xlu0 %1713
    %v1715 = vrcp.pop %v1714
    %v1716 = vmul.f32 %v1711, %v1715
    %v1717 = vpack.c.bf16 %v1716, %v1716
    %v1719 = vsel %vm996, %v1717, 0
    %v1722 = vsel %vm1012, %v1686, 0
    %1724 = vmatpush.bf16.msra.mxu0 0
    %1725 = vmatpush.bf16.msra.mxu0 0
    %1726 = vmatpush.bf16.msra.mxu0 0
    %1727 = vmatpush.bf16.msra.mxu0 0
    %1728 = vmatpush.bf16.msra.mxu0 0
    %1729 = vmatpush.bf16.msra.mxu0 0
    %1730 = vmatpush.bf16.msra.mxu0 0
    %1731 = vmatpush.bf16.msra.mxu0 %v1722
    %1732 = vmatmul.bf16.gmra.mxu0 %v1719
    %v1733 = vpop.f32.mrf.mxu0
    %v1734 = vadd.f32 0.0, %v1733
    %v1735 = vpop.f32.mrf.mxu0
    %1736 = vdwg.mxu0
    %1738 = vrot.lane.b32.xlu0 %v1684, 96
    %v1739 = vpop.permute.xlu0 %1738
    %1741 = vrot.lane.b32.xlu0 %v1685, 96
    %v1742 = vpop.permute.xlu0 %1741
    %v1744 = vsel %vm976, %v1739, 0
    %v1747 = vsel %vm976, %v1742, 0
    %1749 = vmatpush.bf16.xpose.msra.mxu0 0
    %1750 = vmatpush.bf16.xpose.msra.mxu0 0
    %1751 = vmatpush.bf16.xpose.msra.mxu0 0
    %1752 = vmatpush.bf16.xpose.msra.mxu0 0
    %1753 = vmatpush.bf16.xpose.msra.mxu0 0
    %1754 = vmatpush.bf16.xpose.msra.mxu0 0
    %1755 = vmatpush.bf16.xpose.msra.mxu0 0
    %1756 = vmatpush.bf16.xpose.msra.mxu0 %v1747
    %1757 = vmatmul.bf16.gmra.mxu0 %v1744
    %v1758 = vpop.f32.mrf.mxu0
    %v1759 = vadd.f32 %v1459, %v1758
    %v1760 = vpop.f32.mrf.mxu0
    %1761 = vdwg.mxu0
    %v1762 = vsel %vm996, %v1759, -inf
    %1763 = vmax.xlane.f32.xlu0 %v1762
    %v1764 = vpop.xlane.xlu0 %1763
    %v1765 = vsub.f32 %v1759, %v1764
    %v1766 = vmul.f32 %v1765, 1.442695
    %v1767 = vpow.pop %v1766
    %v1768 = vsel %vm996, %v1767, 0.0
    %1769 = vadd.xlane.f32.xlu0 %v1768
    %v1770 = vpop.xlane.xlu0 %1769
    %v1771 = vrcp.pop %v1770
    %v1772 = vmul.f32 %v1767, %v1771
    %v1773 = vpack.c.bf16 %v1772, %v1772
    %1775 = vrot.lane.b32.xlu0 %v1686, 96
    %v1776 = vpop.permute.xlu0 %1775
    %v1778 = vsel %vm996, %v1773, 0
    %v1781 = vsel %vm1012, %v1776, 0
    %1783 = vmatpush.bf16.msra.mxu0 0
    %1784 = vmatpush.bf16.msra.mxu0 0
    %1785 = vmatpush.bf16.msra.mxu0 0
    %1786 = vmatpush.bf16.msra.mxu0 0
    %1787 = vmatpush.bf16.msra.mxu0 0
    %1788 = vmatpush.bf16.msra.mxu0 0
    %1789 = vmatpush.bf16.msra.mxu0 0
    %1790 = vmatpush.bf16.msra.mxu0 %v1781
    %1791 = vmatmul.bf16.gmra.mxu0 %v1778
    %v1792 = vpop.f32.mrf.mxu0
    %v1793 = vadd.f32 0.0, %v1792
    %v1794 = vpop.f32.mrf.mxu0
    %1795 = vdwg.mxu0
    %1796 = vrot.lane.b32.xlu0 %v1684, 64
    %v1797 = vpop.permute.xlu0 %1796
    %1798 = vrot.lane.b32.xlu0 %v1685, 64
    %v1799 = vpop.permute.xlu0 %1798
    %v1801 = vsel %vm976, %v1797, 0
    %v1804 = vsel %vm976, %v1799, 0
    %1806 = vmatpush.bf16.xpose.msra.mxu0 0
    %1807 = vmatpush.bf16.xpose.msra.mxu0 0
    %1808 = vmatpush.bf16.xpose.msra.mxu0 0
    %1809 = vmatpush.bf16.xpose.msra.mxu0 0
    %1810 = vmatpush.bf16.xpose.msra.mxu0 0
    %1811 = vmatpush.bf16.xpose.msra.mxu0 0
    %1812 = vmatpush.bf16.xpose.msra.mxu0 0
    %1813 = vmatpush.bf16.xpose.msra.mxu0 %v1804
    %1814 = vmatmul.bf16.gmra.mxu0 %v1801
    %v1815 = vpop.f32.mrf.mxu0
    %v1816 = vadd.f32 %v1459, %v1815
    %v1817 = vpop.f32.mrf.mxu0
    %1818 = vdwg.mxu0
    %v1819 = vsel %vm996, %v1816, -inf
    %1820 = vmax.xlane.f32.xlu0 %v1819
    %v1821 = vpop.xlane.xlu0 %1820
    %v1822 = vsub.f32 %v1816, %v1821
    %v1823 = vmul.f32 %v1822, 1.442695
    %v1824 = vpow.pop %v1823
    %v1825 = vsel %vm996, %v1824, 0.0
    %1826 = vadd.xlane.f32.xlu0 %v1825
    %v1827 = vpop.xlane.xlu0 %1826
    %v1828 = vrcp.pop %v1827
    %v1829 = vmul.f32 %v1824, %v1828
    %v1830 = vpack.c.bf16 %v1829, %v1829
    %1831 = vrot.lane.b32.xlu0 %v1686, 64
    %v1832 = vpop.permute.xlu0 %1831
    %v1834 = vsel %vm996, %v1830, 0
    %v1837 = vsel %vm1012, %v1832, 0
    %1839 = vmatpush.bf16.msra.mxu0 0
    %1840 = vmatpush.bf16.msra.mxu0 0
    %1841 = vmatpush.bf16.msra.mxu0 0
    %1842 = vmatpush.bf16.msra.mxu0 0
    %1843 = vmatpush.bf16.msra.mxu0 0
    %1844 = vmatpush.bf16.msra.mxu0 0
    %1845 = vmatpush.bf16.msra.mxu0 0
    %1846 = vmatpush.bf16.msra.mxu0 %v1837
    %1847 = vmatmul.bf16.gmra.mxu0 %v1834
    %v1848 = vpop.f32.mrf.mxu0
    %v1849 = vadd.f32 0.0, %v1848
    %v1850 = vpop.f32.mrf.mxu0
    %1851 = vdwg.mxu0
    %1852 = vrot.lane.b32.xlu0 %v1684, 32
    %v1853 = vpop.permute.xlu0 %1852
    %1854 = vrot.lane.b32.xlu0 %v1685, 32
    %v1855 = vpop.permute.xlu0 %1854
    %v1857 = vsel %vm976, %v1853, 0
    %v1860 = vsel %vm976, %v1855, 0
    %1862 = vmatpush.bf16.xpose.msra.mxu0 0
    %1863 = vmatpush.bf16.xpose.msra.mxu0 0
    %1864 = vmatpush.bf16.xpose.msra.mxu0 0
    %1865 = vmatpush.bf16.xpose.msra.mxu0 0
    %1866 = vmatpush.bf16.xpose.msra.mxu0 0
    %1867 = vmatpush.bf16.xpose.msra.mxu0 0
    %1868 = vmatpush.bf16.xpose.msra.mxu0 0
    %1869 = vmatpush.bf16.xpose.msra.mxu0 %v1860
    %1870 = vmatmul.bf16.gmra.mxu0 %v1857
    %v1871 = vpop.f32.mrf.mxu0
    %v1872 = vadd.f32 %v1459, %v1871
    %v1873 = vpop.f32.mrf.mxu0
    %1874 = vdwg.mxu0
    %v1875 = vsel %vm996, %v1872, -inf
    %1876 = vmax.xlane.f32.xlu0 %v1875
    %v1877 = vpop.xlane.xlu0 %1876
    %v1878 = vsub.f32 %v1872, %v1877
    %v1879 = vmul.f32 %v1878, 1.442695
    %v1880 = vpow.pop %v1879
    %v1881 = vsel %vm996, %v1880, 0.0
    %1882 = vadd.xlane.f32.xlu0 %v1881
    %v1883 = vpop.xlane.xlu0 %1882
    %v1884 = vrcp.pop %v1883
    %v1885 = vmul.f32 %v1880, %v1884
    %v1886 = vpack.c.bf16 %v1885, %v1885
    %1887 = vrot.lane.b32.xlu0 %v1686, 32
    %v1888 = vpop.permute.xlu0 %1887
    %v1890 = vsel %vm996, %v1886, 0
    %v1893 = vsel %vm1012, %v1888, 0
    %1895 = vmatpush.bf16.msra.mxu0 0
    %1896 = vmatpush.bf16.msra.mxu0 0
    %1897 = vmatpush.bf16.msra.mxu0 0
    %1898 = vmatpush.bf16.msra.mxu0 0
    %1899 = vmatpush.bf16.msra.mxu0 0
    %1900 = vmatpush.bf16.msra.mxu0 0
    %1901 = vmatpush.bf16.msra.mxu0 0
    %1902 = vmatpush.bf16.msra.mxu0 %v1893
    %1903 = vmatmul.bf16.gmra.mxu0 %v1890
    %v1904 = vpop.f32.mrf.mxu0
    %v1905 = vadd.f32 0.0, %v1904
    %v1906 = vpop.f32.mrf.mxu0
    %1907 = vdwg.mxu0
    %1909 = vrot.lane.b32.xlu0 %v1569, 32
    %v1910 = vpop.permute.xlu0 %1909
    %1913 = vrot.lane.b32.xlu0 %v1625, 64
    %v1914 = vpop.permute.xlu0 %1913
    %1917 = vrot.lane.b32.xlu0 %v1681, 96
    %v1918 = vpop.permute.xlu0 %1917
    %1921 = vrot.lane.b32.xlu0 %v1793, 32
    %v1922 = vpop.permute.xlu0 %1921
    %1925 = vrot.lane.b32.xlu0 %v1849, 64
    %v1926 = vpop.permute.xlu0 %1925
    %1929 = vrot.lane.b32.xlu0 %v1905, 96
    %v1930 = vpop.permute.xlu0 %1929
    %v1932 = vsel %vm976, %v1510, %v1910
    %v1933 = vsel %vm1449, %v1932, %v1914
    %v1934 = vsel %vm1451, %v1933, %v1918
    %v1935 = vsel %vm976, %v1734, %v1922
    %v1936 = vsel %vm1449, %v1935, %v1926
    %v1937 = vsel %vm1451, %v1936, %v1930
    %v1938 = vpack.c.bf16 %v1934, %v1452
    %v1939 = vpack.c.bf16 %v1937, %v1455
    %v1940 = vld [vmem:[#allocation4] sm:$0xff]
    %v1941 = vld [vmem:[#allocation4 + $0x8] sm:$0xff]
    %v1942 = vld [vmem:[#allocation4 + $0x10] sm:$0xff]
    %v1943 = vld [vmem:[#allocation4 + $0x18] sm:$0xff]
    %v1944 = vld [vmem:[#allocation4 + $0x20] sm:$0xff]
    %v1945 = vld [vmem:[#allocation4 + $0x28] sm:$0xff]
    %v1946 = vld [vmem:[#allocation4 + $0x30] sm:$0xff]
    %v1947 = vld [vmem:[#allocation4 + $0x38] sm:$0xff]
    %v1948 = vld [vmem:[#allocation4 + $0x40] sm:$0xff]
    %v1949 = vld [vmem:[#allocation4 + $0x48] sm:$0xff]
    %v1950 = vld [vmem:[#allocation4 + $0x50] sm:$0xff]
    %v1951 = vld [vmem:[#allocation4 + $0x58] sm:$0xff]
    %v1952 = vld [vmem:[#allocation4 + $0x60] sm:$0xff]
    %v1953 = vld [vmem:[#allocation4 + $0x68] sm:$0xff]
    %v1954 = vld [vmem:[#allocation4 + $0x70] sm:$0xff]
    %v1955 = vld [vmem:[#allocation4 + $0x78] sm:$0xff]
    %v1956 = vld [vmem:[#allocation4 + $0x80] sm:$0xff]
    %v1957 = vld [vmem:[#allocation4 + $0x88] sm:$0xff]
    %v1958 = vld [vmem:[#allocation4 + $0x90] sm:$0xff]
    %v1959 = vld [vmem:[#allocation4 + $0x98] sm:$0xff]
    %v1960 = vld [vmem:[#allocation4 + $0xa0] sm:$0xff]
    %v1961 = vld [vmem:[#allocation4 + $0xa8] sm:$0xff]
    %v1962 = vld [vmem:[#allocation4 + $0xb0] sm:$0xff]
    %v1963 = vld [vmem:[#allocation4 + $0xb8] sm:$0xff]
    %v1964 = vld [vmem:[#allocation4 + $0xc0] sm:$0xff]
    %v1965 = vld [vmem:[#allocation4 + $0xc8] sm:$0xff]
    %v1966 = vld [vmem:[#allocation4 + $0xd0] sm:$0xff]
    %v1967 = vld [vmem:[#allocation4 + $0xd8] sm:$0xff]
    %v1968 = vld [vmem:[#allocation4 + $0xe0] sm:$0xff]
    %v1969 = vld [vmem:[#allocation4 + $0xe8] sm:$0xff]
    %v1970 = vld [vmem:[#allocation4 + $0xf0] sm:$0xff]
    %v1971 = vld [vmem:[#allocation4 + $0xf8] sm:$0xff]
    %v1972 = vld [vmem:[%s9] sm:$0x3]
    %v1974 = vperm.slane %v1972, 0
    %v1975 = vperm.slane %v1972, 1
    %v2010 = vunpack.c.l.b16 %v1940
    %v2011 = vunpack.c.h.b16 %v1940
    %v2012 = vunpack.c.l.b16 %v1941
    %v2013 = vunpack.c.h.b16 %v1941
    %v2014 = vunpack.c.l.b16 %v1942
    %v2015 = vunpack.c.h.b16 %v1942
    %v2016 = vunpack.c.l.b16 %v1943
    %v2017 = vunpack.c.h.b16 %v1943
    %v2018 = vunpack.c.l.b16 %v1944
    %v2019 = vunpack.c.h.b16 %v1944
    %v2020 = vunpack.c.l.b16 %v1945
    %v2021 = vunpack.c.h.b16 %v1945
    %v2022 = vunpack.c.l.b16 %v1946
    %v2023 = vunpack.c.h.b16 %v1946
    %v2024 = vunpack.c.l.b16 %v1947
    %v2025 = vunpack.c.h.b16 %v1947
    %v2026 = vunpack.c.l.b16 %v1948
    %v2027 = vunpack.c.h.b16 %v1948
    %v2028 = vunpack.c.l.b16 %v1949
    %v2029 = vunpack.c.h.b16 %v1949
    %v2030 = vunpack.c.l.b16 %v1950
    %v2031 = vunpack.c.h.b16 %v1950
    %v2032 = vunpack.c.l.b16 %v1951
    %v2033 = vunpack.c.h.b16 %v1951
    %v2034 = vunpack.c.l.b16 %v1952
    %v2035 = vunpack.c.h.b16 %v1952
    %v2036 = vunpack.c.l.b16 %v1953
    %v2037 = vunpack.c.h.b16 %v1953
    %v2038 = vunpack.c.l.b16 %v1954
    %v2039 = vunpack.c.h.b16 %v1954
    %v2040 = vunpack.c.l.b16 %v1955
    %v2041 = vunpack.c.h.b16 %v1955
    %v2042 = vunpack.c.l.b16 %v1956
    %v2043 = vunpack.c.h.b16 %v1956
    %v2044 = vunpack.c.l.b16 %v1957
    %v2045 = vunpack.c.h.b16 %v1957
    %v2046 = vunpack.c.l.b16 %v1958
    %v2047 = vunpack.c.h.b16 %v1958
    %v2048 = vunpack.c.l.b16 %v1959
    %v2049 = vunpack.c.h.b16 %v1959
    %v2050 = vunpack.c.l.b16 %v1960
    %v2051 = vunpack.c.h.b16 %v1960
    %v2052 = vunpack.c.l.b16 %v1961
    %v2053 = vunpack.c.h.b16 %v1961
    %v2054 = vunpack.c.l.b16 %v1962
    %v2055 = vunpack.c.h.b16 %v1962
    %v2056 = vunpack.c.l.b16 %v1963
    %v2057 = vunpack.c.h.b16 %v1963
    %v2058 = vunpack.c.l.b16 %v1964
    %v2059 = vunpack.c.h.b16 %v1964
    %v2060 = vunpack.c.l.b16 %v1965
    %v2061 = vunpack.c.h.b16 %v1965
    %v2062 = vunpack.c.l.b16 %v1966
    %v2063 = vunpack.c.h.b16 %v1966
    %v2064 = vunpack.c.l.b16 %v1967
    %v2065 = vunpack.c.h.b16 %v1967
    %v2066 = vunpack.c.l.b16 %v1968
    %v2067 = vunpack.c.h.b16 %v1968
    %v2068 = vunpack.c.l.b16 %v1969
    %v2069 = vunpack.c.h.b16 %v1969
    %v2070 = vunpack.c.l.b16 %v1970
    %v2071 = vunpack.c.h.b16 %v1970
    %v2072 = vunpack.c.l.b16 %v1971
    %v2073 = vunpack.c.h.b16 %v1971
    %v2074 = vpack.c.b16 %v2012, %v2010
    %v2075 = vpack.c.b16 %v2013, %v2011
    %v2076 = vpack.c.b16 %v2016, %v2014
    %v2077 = vpack.c.b16 %v2017, %v2015
    %v2078 = vpack.c.b16 %v2020, %v2018
    %v2079 = vpack.c.b16 %v2021, %v2019
    %v2080 = vpack.c.b16 %v2024, %v2022
    %v2081 = vpack.c.b16 %v2025, %v2023
    %v2082 = vpack.c.b16 %v2028, %v2026
    %v2083 = vpack.c.b16 %v2029, %v2027
    %v2084 = vpack.c.b16 %v2032, %v2030
    %v2085 = vpack.c.b16 %v2033, %v2031
    %v2086 = vpack.c.b16 %v2036, %v2034
    %v2087 = vpack.c.b16 %v2037, %v2035
    %v2088 = vpack.c.b16 %v2040, %v2038
    %v2089 = vpack.c.b16 %v2041, %v2039
    %v2090 = vpack.c.b16 %v2044, %v2042
    %v2091 = vpack.c.b16 %v2045, %v2043
    %v2092 = vpack.c.b16 %v2048, %v2046
    %v2093 = vpack.c.b16 %v2049, %v2047
    %v2094 = vpack.c.b16 %v2052, %v2050
    %v2095 = vpack.c.b16 %v2053, %v2051
    %v2096 = vpack.c.b16 %v2056, %v2054
    %v2097 = vpack.c.b16 %v2057, %v2055
    %v2098 = vpack.c.b16 %v2060, %v2058
    %v2099 = vpack.c.b16 %v2061, %v2059
    %v2100 = vpack.c.b16 %v2064, %v2062
    %v2101 = vpack.c.b16 %v2065, %v2063
    %v2102 = vpack.c.b16 %v2068, %v2066
    %v2103 = vpack.c.b16 %v2069, %v2067
    %v2104 = vpack.c.b16 %v2072, %v2070
    %v2105 = vpack.c.b16 %v2073, %v2071
    %2138 = vmatpush.bf16.msra.mxu0 %v2088
    %2139 = vmatpush.bf16.msra.mxu0 %v2086
    %2140 = vmatpush.bf16.msra.mxu0 %v2084
    %2141 = vmatpush.bf16.msra.mxu0 %v2082
    %2142 = vmatpush.bf16.msra.mxu0 %v2080
    %2143 = vmatpush.bf16.msra.mxu0 %v2078
    %2144 = vmatpush.bf16.msra.mxu0 %v2076
    %2145 = vmatpush.bf16.msra.mxu0 %v2074
    %2146 = vmatmul.bf16.gmra.mxu0 %v1938
    %v2147 = vpop.f32.mrf.mxu0
    %v2148 = vadd.f32 %v1974, %v2147
    %v2149 = vpop.f32.mrf.mxu0
    %v2150 = vadd.f32 %v1974, %v2149
    %2151 = vdwg.mxu0
    %2152 = vmatpush.bf16.msra.mxu0 %v2104
    %2153 = vmatpush.bf16.msra.mxu0 %v2102
    %2154 = vmatpush.bf16.msra.mxu0 %v2100
    %2155 = vmatpush.bf16.msra.mxu0 %v2098
    %2156 = vmatpush.bf16.msra.mxu0 %v2096
    %2157 = vmatpush.bf16.msra.mxu0 %v2094
    %2158 = vmatpush.bf16.msra.mxu0 %v2092
    %2159 = vmatpush.bf16.msra.mxu0 %v2090
    %2160 = vmatmul.bf16.gmra.mxu0 %v1939
    %v2161 = vpop.f32.mrf.mxu0
    %v2162 = vadd.f32 %v2148, %v2161
    %v2163 = vpop.f32.mrf.mxu0
    %v2164 = vadd.f32 %v2150, %v2163
    %2165 = vdwg.mxu0
    %2166 = vmatpush.bf16.msra.mxu0 %v2089
    %2167 = vmatpush.bf16.msra.mxu0 %v2087
    %2168 = vmatpush.bf16.msra.mxu0 %v2085
    %2169 = vmatpush.bf16.msra.mxu0 %v2083
    %2170 = vmatpush.bf16.msra.mxu0 %v2081
    %2171 = vmatpush.bf16.msra.mxu0 %v2079
    %2172 = vmatpush.bf16.msra.mxu0 %v2077
    %2173 = vmatpush.bf16.msra.mxu0 %v2075
    %2174 = vmatmul.bf16.gmra.mxu0 %v1938
    %v2175 = vpop.f32.mrf.mxu0
    %v2176 = vadd.f32 %v1975, %v2175
    %v2177 = vpop.f32.mrf.mxu0
    %v2178 = vadd.f32 %v1975, %v2177
    %2179 = vdwg.mxu0
    %2180 = vmatpush.bf16.msra.mxu0 %v2105
    %2181 = vmatpush.bf16.msra.mxu0 %v2103
    %2182 = vmatpush.bf16.msra.mxu0 %v2101
    %2183 = vmatpush.bf16.msra.mxu0 %v2099
    %2184 = vmatpush.bf16.msra.mxu0 %v2097
    %2185 = vmatpush.bf16.msra.mxu0 %v2095
    %2186 = vmatpush.bf16.msra.mxu0 %v2093
    %2187 = vmatpush.bf16.msra.mxu0 %v2091
    %2188 = vmatmul.bf16.gmra.mxu0 %v1939
    %v2189 = vpop.f32.mrf.mxu0
    %v2190 = vadd.f32 %v2176, %v2189
    %v2191 = vpop.f32.mrf.mxu0
    %v2192 = vadd.f32 %v2178, %v2191
    %2193 = vdwg.mxu0
    %v2194 = vadd.f32 %v2162, %v193
    %v2195 = vadd.f32 %v2190, %v194
    %v2196 = vadd.f32 %v2164, %v195
    %v2197 = vadd.f32 %v2192, %v196
    %v2198 = vld [vmem:[%s10] sm:$0x3]
    %v2199 = vld [vmem:[%s11] sm:$0x3]
    %v2200 = vadd.f32 %v2194, %v2195
    %2201 = vadd.xlane.f32.xlu0 %v2200
    %v2202 = vpop.xlane.xlu0 %2201
    %v2203 = vadd.f32 %v2196, %v2197
    %2204 = vadd.xlane.f32.xlu0 %v2203
    %v2205 = vpop.xlane.xlu0 %2204
    %v2206 = vrcp.pop 256.0
    %v2207 = vmul.f32 256.0, %v2206
    %v2208 = vsub.f32 1.0, %v2207
    %v2209 = vmul.f32 %v2206, %v2208
    %v2210 = vadd.f32 %v2206, %v2209
    %vm2211 = vweird.f32 %v2206
    %v2212 = vsel %vm2211, %v2206, %v2210
    %v2213 = vmul.f32 %v2202, %v2212
    %v2214 = vmul.f32 %v2205, %v2212
    %v2215 = vsub.f32 %v2194, %v2213
    %v2216 = vsub.f32 %v2195, %v2213
    %v2217 = vsub.f32 %v2196, %v2214
    %v2218 = vsub.f32 %v2197, %v2214
    %v2219 = vmul.f32 %v2215, %v2215
    %v2220 = vmul.f32 %v2216, %v2216
    %v2221 = vmul.f32 %v2217, %v2217
    %v2222 = vmul.f32 %v2218, %v2218
    %v2223 = vadd.f32 %v2219, %v2220
    %2224 = vadd.xlane.f32.xlu0 %v2223
    %v2225 = vpop.xlane.xlu0 %2224
    %v2226 = vadd.f32 %v2221, %v2222
    %2227 = vadd.xlane.f32.xlu0 %v2226
    %v2228 = vpop.xlane.xlu0 %2227
    %v2229 = vmul.f32 %v2225, %v2212
    %v2230 = vmul.f32 %v2228, %v2212
    %v2231 = vadd.f32 %v2229, 1e-05
    %v2232 = vadd.f32 %v2230, 1e-05
    %v2233 = vrsqrt.pop %v2231
    %v2234 = vmul.f32 %v2233, %v2231
    %v2235 = vmul.f32 %v2234, %v2233
    %v2236 = vmul.f32 0.5, %v2235
    %v2237 = vsub.f32 1.5, %v2236
    %v2238 = vmul.f32 %v2233, %v2237
    %vm2239 = vweird.f32 %v2231
    %vm2240 = vweird.f32 %v2233
    %vm2241 = vmor %vm2239, %vm2240
    %v2242 = vsel %vm2241, %v2233, %v2238
    %v2243 = vrsqrt.pop %v2232
    %v2244 = vmul.f32 %v2243, %v2232
    %v2245 = vmul.f32 %v2244, %v2243
    %v2246 = vmul.f32 0.5, %v2245
    %v2247 = vsub.f32 1.5, %v2246
    %v2248 = vmul.f32 %v2243, %v2247
    %vm2249 = vweird.f32 %v2232
    %vm2250 = vweird.f32 %v2243
    %vm2251 = vmor %vm2249, %vm2250
    %v2252 = vsel %vm2251, %v2243, %v2248
    %v2253 = vmul.f32 %v2215, %v2242
    %v2254 = vmul.f32 %v2216, %v2242
    %v2255 = vmul.f32 %v2217, %v2252
    %v2256 = vmul.f32 %v2218, %v2252
    %v2258 = vperm.slane %v2198, 0
    %v2259 = vperm.slane %v2198, 1
    %v2262 = vmul.f32 %v2253, %v2258
    %v2263 = vmul.f32 %v2254, %v2259
    %v2264 = vmul.f32 %v2255, %v2258
    %v2265 = vmul.f32 %v2256, %v2259
    %v2267 = vperm.slane %v2199, 0
    %v2268 = vperm.slane %v2199, 1
    %v2271 = vadd.f32 %v2262, %v2267
    %v2272 = vadd.f32 %v2263, %v2268
    %v2273 = vadd.f32 %v2264, %v2267
    %v2274 = vadd.f32 %v2265, %v2268
    %v2275 = vpack.c.bf16 %v2273, %v2271
    %v2276 = vpack.c.bf16 %v2274, %v2272
    %v2277 = vld [vmem:[#allocation6] sm:$0xff]
    %v2278 = vld [vmem:[#allocation6 + $0x8] sm:$0xff]
    %v2279 = vld [vmem:[#allocation6 + $0x10] sm:$0xff]
    %v2280 = vld [vmem:[#allocation6 + $0x18] sm:$0xff]
    %v2281 = vld [vmem:[#allocation6 + $0x20] sm:$0xff]
    %v2282 = vld [vmem:[#allocation6 + $0x28] sm:$0xff]
    %v2283 = vld [vmem:[#allocation6 + $0x30] sm:$0xff]
    %v2284 = vld [vmem:[#allocation6 + $0x38] sm:$0xff]
    %v2285 = vld [vmem:[#allocation6 + $0x40] sm:$0xff]
    %v2286 = vld [vmem:[#allocation6 + $0x48] sm:$0xff]
    %v2287 = vld [vmem:[#allocation6 + $0x50] sm:$0xff]
    %v2288 = vld [vmem:[#allocation6 + $0x58] sm:$0xff]
    %v2289 = vld [vmem:[#allocation6 + $0x60] sm:$0xff]
    %v2290 = vld [vmem:[#allocation6 + $0x68] sm:$0xff]
    %v2291 = vld [vmem:[#allocation6 + $0x70] sm:$0xff]
    %v2292 = vld [vmem:[#allocation6 + $0x78] sm:$0xff]
    %v2293 = vld [vmem:[#allocation6 + $0x80] sm:$0xff]
    %v2294 = vld [vmem:[#allocation6 + $0x88] sm:$0xff]
    %v2295 = vld [vmem:[#allocation6 + $0x90] sm:$0xff]
    %v2296 = vld [vmem:[#allocation6 + $0x98] sm:$0xff]
    %v2297 = vld [vmem:[#allocation6 + $0xa0] sm:$0xff]
    %v2298 = vld [vmem:[#allocation6 + $0xa8] sm:$0xff]
    %v2299 = vld [vmem:[#allocation6 + $0xb0] sm:$0xff]
    %v2300 = vld [vmem:[#allocation6 + $0xb8] sm:$0xff]
    %v2301 = vld [vmem:[#allocation6 + $0xc0] sm:$0xff]
    %v2302 = vld [vmem:[#allocation6 + $0xc8] sm:$0xff]
    %v2303 = vld [vmem:[#allocation6 + $0xd0] sm:$0xff]
    %v2304 = vld [vmem:[#allocation6 + $0xd8] sm:$0xff]
    %v2305 = vld [vmem:[#allocation6 + $0xe0] sm:$0xff]
    %v2306 = vld [vmem:[#allocation6 + $0xe8] sm:$0xff]
    %v2307 = vld [vmem:[#allocation6 + $0xf0] sm:$0xff]
    %v2308 = vld [vmem:[#allocation6 + $0xf8] sm:$0xff]
    %v2309 = vld [vmem:[%s13] sm:$0x3]
    %v2311 = vperm.slane %v2309, 0
    %v2312 = vperm.slane %v2309, 1
    %v2347 = vunpack.c.l.b16 %v2277
    %v2348 = vunpack.c.h.b16 %v2277
    %v2349 = vunpack.c.l.b16 %v2278
    %v2350 = vunpack.c.h.b16 %v2278
    %v2351 = vunpack.c.l.b16 %v2279
    %v2352 = vunpack.c.h.b16 %v2279
    %v2353 = vunpack.c.l.b16 %v2280
    %v2354 = vunpack.c.h.b16 %v2280
    %v2355 = vunpack.c.l.b16 %v2281
    %v2356 = vunpack.c.h.b16 %v2281
    %v2357 = vunpack.c.l.b16 %v2282
    %v2358 = vunpack.c.h.b16 %v2282
    %v2359 = vunpack.c.l.b16 %v2283
    %v2360 = vunpack.c.h.b16 %v2283
    %v2361 = vunpack.c.l.b16 %v2284
    %v2362 = vunpack.c.h.b16 %v2284
    %v2363 = vunpack.c.l.b16 %v2285
    %v2364 = vunpack.c.h.b16 %v2285
    %v2365 = vunpack.c.l.b16 %v2286
    %v2366 = vunpack.c.h.b16 %v2286
    %v2367 = vunpack.c.l.b16 %v2287
    %v2368 = vunpack.c.h.b16 %v2287
    %v2369 = vunpack.c.l.b16 %v2288
    %v2370 = vunpack.c.h.b16 %v2288
    %v2371 = vunpack.c.l.b16 %v2289
    %v2372 = vunpack.c.h.b16 %v2289
    %v2373 = vunpack.c.l.b16 %v2290
    %v2374 = vunpack.c.h.b16 %v2290
    %v2375 = vunpack.c.l.b16 %v2291
    %v2376 = vunpack.c.h.b16 %v2291
    %v2377 = vunpack.c.l.b16 %v2292
    %v2378 = vunpack.c.h.b16 %v2292
    %v2379 = vunpack.c.l.b16 %v2293
    %v2380 = vunpack.c.h.b16 %v2293
    %v2381 = vunpack.c.l.b16 %v2294
    %v2382 = vunpack.c.h.b16 %v2294
    %v2383 = vunpack.c.l.b16 %v2295
    %v2384 = vunpack.c.h.b16 %v2295
    %v2385 = vunpack.c.l.b16 %v2296
    %v2386 = vunpack.c.h.b16 %v2296
    %v2387 = vunpack.c.l.b16 %v2297
    %v2388 = vunpack.c.h.b16 %v2297
    %v2389 = vunpack.c.l.b16 %v2298
    %v2390 = vunpack.c.h.b16 %v2298
    %v2391 = vunpack.c.l.b16 %v2299
    %v2392 = vunpack.c.h.b16 %v2299
    %v2393 = vunpack.c.l.b16 %v2300
    %v2394 = vunpack.c.h.b16 %v2300
    %v2395 = vunpack.c.l.b16 %v2301
    %v2396 = vunpack.c.h.b16 %v2301
    %v2397 = vunpack.c.l.b16 %v2302
    %v2398 = vunpack.c.h.b16 %v2302
    %v2399 = vunpack.c.l.b16 %v2303
    %v2400 = vunpack.c.h.b16 %v2303
    %v2401 = vunpack.c.l.b16 %v2304
    %v2402 = vunpack.c.h.b16 %v2304
    %v2403 = vunpack.c.l.b16 %v2305
    %v2404 = vunpack.c.h.b16 %v2305
    %v2405 = vunpack.c.l.b16 %v2306
    %v2406 = vunpack.c.h.b16 %v2306
    %v2407 = vunpack.c.l.b16 %v2307
    %v2408 = vunpack.c.h.b16 %v2307
    %v2409 = vunpack.c.l.b16 %v2308
    %v2410 = vunpack.c.h.b16 %v2308
    %v2411 = vpack.c.b16 %v2349, %v2347
    %v2412 = vpack.c.b16 %v2350, %v2348
    %v2413 = vpack.c.b16 %v2353, %v2351
    %v2414 = vpack.c.b16 %v2354, %v2352
    %v2415 = vpack.c.b16 %v2357, %v2355
    %v2416 = vpack.c.b16 %v2358, %v2356
    %v2417 = vpack.c.b16 %v2361, %v2359
    %v2418 = vpack.c.b16 %v2362, %v2360
    %v2419 = vpack.c.b16 %v2365, %v2363
    %v2420 = vpack.c.b16 %v2366, %v2364
    %v2421 = vpack.c.b16 %v2369, %v2367
    %v2422 = vpack.c.b16 %v2370, %v2368
    %v2423 = vpack.c.b16 %v2373, %v2371
    %v2424 = vpack.c.b16 %v2374, %v2372
    %v2425 = vpack.c.b16 %v2377, %v2375
    %v2426 = vpack.c.b16 %v2378, %v2376
    %v2427 = vpack.c.b16 %v2381, %v2379
    %v2428 = vpack.c.b16 %v2382, %v2380
    %v2429 = vpack.c.b16 %v2385, %v2383
    %v2430 = vpack.c.b16 %v2386, %v2384
    %v2431 = vpack.c.b16 %v2389, %v2387
    %v2432 = vpack.c.b16 %v2390, %v2388
    %v2433 = vpack.c.b16 %v2393, %v2391
    %v2434 = vpack.c.b16 %v2394, %v2392
    %v2435 = vpack.c.b16 %v2397, %v2395
    %v2436 = vpack.c.b16 %v2398, %v2396
    %v2437 = vpack.c.b16 %v2401, %v2399
    %v2438 = vpack.c.b16 %v2402, %v2400
    %v2439 = vpack.c.b16 %v2405, %v2403
    %v2440 = vpack.c.b16 %v2406, %v2404
    %v2441 = vpack.c.b16 %v2409, %v2407
    %v2442 = vpack.c.b16 %v2410, %v2408
    %2475 = vmatpush.bf16.msra.mxu0 %v2425
    %2476 = vmatpush.bf16.msra.mxu0 %v2423
    %2477 = vmatpush.bf16.msra.mxu0 %v2421
    %2478 = vmatpush.bf16.msra.mxu0 %v2419
    %2479 = vmatpush.bf16.msra.mxu0 %v2417
    %2480 = vmatpush.bf16.msra.mxu0 %v2415
    %2481 = vmatpush.bf16.msra.mxu0 %v2413
    %2482 = vmatpush.bf16.msra.mxu0 %v2411
    %2483 = vmatmul.bf16.gmra.mxu0 %v2275
    %v2484 = vpop.f32.mrf.mxu0
    %v2485 = vadd.f32 %v2311, %v2484
    %v2486 = vpop.f32.mrf.mxu0
    %v2487 = vadd.f32 %v2311, %v2486
    %2488 = vdwg.mxu0
    %2489 = vmatpush.bf16.msra.mxu0 %v2441
    %2490 = vmatpush.bf16.msra.mxu0 %v2439
    %2491 = vmatpush.bf16.msra.mxu0 %v2437
    %2492 = vmatpush.bf16.msra.mxu0 %v2435
    %2493 = vmatpush.bf16.msra.mxu0 %v2433
    %2494 = vmatpush.bf16.msra.mxu0 %v2431
    %2495 = vmatpush.bf16.msra.mxu0 %v2429
    %2496 = vmatpush.bf16.msra.mxu0 %v2427
    %2497 = vmatmul.bf16.gmra.mxu0 %v2276
    %v2498 = vpop.f32.mrf.mxu0
    %v2499 = vadd.f32 %v2485, %v2498
    %v2500 = vpop.f32.mrf.mxu0
    %v2501 = vadd.f32 %v2487, %v2500
    %2502 = vdwg.mxu0
    %2503 = vmatpush.bf16.msra.mxu0 %v2426
    %2504 = vmatpush.bf16.msra.mxu0 %v2424
    %2505 = vmatpush.bf16.msra.mxu0 %v2422
    %2506 = vmatpush.bf16.msra.mxu0 %v2420
    %2507 = vmatpush.bf16.msra.mxu0 %v2418
    %2508 = vmatpush.bf16.msra.mxu0 %v2416
    %2509 = vmatpush.bf16.msra.mxu0 %v2414
    %2510 = vmatpush.bf16.msra.mxu0 %v2412
    %2511 = vmatmul.bf16.gmra.mxu0 %v2275
    %v2512 = vpop.f32.mrf.mxu0
    %v2513 = vadd.f32 %v2312, %v2512
    %v2514 = vpop.f32.mrf.mxu0
    %v2515 = vadd.f32 %v2312, %v2514
    %2516 = vdwg.mxu0
    %2517 = vmatpush.bf16.msra.mxu0 %v2442
    %2518 = vmatpush.bf16.msra.mxu0 %v2440
    %2519 = vmatpush.bf16.msra.mxu0 %v2438
    %2520 = vmatpush.bf16.msra.mxu0 %v2436
    %2521 = vmatpush.bf16.msra.mxu0 %v2434
    %2522 = vmatpush.bf16.msra.mxu0 %v2432
    %2523 = vmatpush.bf16.msra.mxu0 %v2430
    %2524 = vmatpush.bf16.msra.mxu0 %v2428
    %2525 = vmatmul.bf16.gmra.mxu0 %v2276
    %v2526 = vpop.f32.mrf.mxu0
    %v2527 = vadd.f32 %v2513, %v2526
    %v2528 = vpop.f32.mrf.mxu0
    %v2529 = vadd.f32 %v2515, %v2528
    %2530 = vdwg.mxu0
    %v2531 = vpack.c.bf16 %v199, %v197
    %v2532 = vpack.c.bf16 %v200, %v198
    %v2533 = vpack.c.bf16 %v203, %v201
    %v2534 = vpack.c.bf16 %v204, %v202
    %v2535 = vld [vmem:[#allocation7] sm:$0xff]
    %v2536 = vld [vmem:[#allocation7 + $0x8] sm:$0xff]
    %v2537 = vld [vmem:[#allocation7 + $0x10] sm:$0xff]
    %v2538 = vld [vmem:[#allocation7 + $0x18] sm:$0xff]
    %v2539 = vld [vmem:[#allocation7 + $0x20] sm:$0xff]
    %v2540 = vld [vmem:[#allocation7 + $0x28] sm:$0xff]
    %v2541 = vld [vmem:[#allocation7 + $0x30] sm:$0xff]
    %v2542 = vld [vmem:[#allocation7 + $0x38] sm:$0xff]
    %v2543 = vld [vmem:[#allocation7 + $0x40] sm:$0xff]
    %v2544 = vld [vmem:[#allocation7 + $0x48] sm:$0xff]
    %v2545 = vld [vmem:[#allocation7 + $0x50] sm:$0xff]
    %v2546 = vld [vmem:[#allocation7 + $0x58] sm:$0xff]
    %v2547 = vld [vmem:[#allocation7 + $0x60] sm:$0xff]
    %v2548 = vld [vmem:[#allocation7 + $0x68] sm:$0xff]
    %v2549 = vld [vmem:[#allocation7 + $0x70] sm:$0xff]
    %v2550 = vld [vmem:[#allocation7 + $0x78] sm:$0xff]
    %v2551 = vld [vmem:[#allocation7 + $0x80] sm:$0xff]
    %v2552 = vld [vmem:[#allocation7 + $0x88] sm:$0xff]
    %v2553 = vld [vmem:[#allocation7 + $0x90] sm:$0xff]
    %v2554 = vld [vmem:[#allocation7 + $0x98] sm:$0xff]
    %v2555 = vld [vmem:[#allocation7 + $0xa0] sm:$0xff]
    %v2556 = vld [vmem:[#allocation7 + $0xa8] sm:$0xff]
    %v2557 = vld [vmem:[#allocation7 + $0xb0] sm:$0xff]
    %v2558 = vld [vmem:[#allocation7 + $0xb8] sm:$0xff]
    %v2559 = vld [vmem:[#allocation7 + $0xc0] sm:$0xff]
    %v2560 = vld [vmem:[#allocation7 + $0xc8] sm:$0xff]
    %v2561 = vld [vmem:[#allocation7 + $0xd0] sm:$0xff]
    %v2562 = vld [vmem:[#allocation7 + $0xd8] sm:$0xff]
    %v2563 = vld [vmem:[#allocation7 + $0xe0] sm:$0xff]
    %v2564 = vld [vmem:[#allocation7 + $0xe8] sm:$0xff]
    %v2565 = vld [vmem:[#allocation7 + $0xf0] sm:$0xff]
    %v2566 = vld [vmem:[#allocation7 + $0xf8] sm:$0xff]
    %v2567 = vld [vmem:[#allocation7 + $0x100] sm:$0xff]
    %v2568 = vld [vmem:[#allocation7 + $0x108] sm:$0xff]
    %v2569 = vld [vmem:[#allocation7 + $0x110] sm:$0xff]
    %v2570 = vld [vmem:[#allocation7 + $0x118] sm:$0xff]
    %v2571 = vld [vmem:[#allocation7 + $0x120] sm:$0xff]
    %v2572 = vld [vmem:[#allocation7 + $0x128] sm:$0xff]
    %v2573 = vld [vmem:[#allocation7 + $0x130] sm:$0xff]
    %v2574 = vld [vmem:[#allocation7 + $0x138] sm:$0xff]
    %v2575 = vld [vmem:[#allocation7 + $0x140] sm:$0xff]
    %v2576 = vld [vmem:[#allocation7 + $0x148] sm:$0xff]
    %v2577 = vld [vmem:[#allocation7 + $0x150] sm:$0xff]
    %v2578 = vld [vmem:[#allocation7 + $0x158] sm:$0xff]
    %v2579 = vld [vmem:[#allocation7 + $0x160] sm:$0xff]
    %v2580 = vld [vmem:[#allocation7 + $0x168] sm:$0xff]
    %v2581 = vld [vmem:[#allocation7 + $0x170] sm:$0xff]
    %v2582 = vld [vmem:[#allocation7 + $0x178] sm:$0xff]
    %v2583 = vld [vmem:[#allocation7 + $0x180] sm:$0xff]
    %v2584 = vld [vmem:[#allocation7 + $0x188] sm:$0xff]
    %v2585 = vld [vmem:[#allocation7 + $0x190] sm:$0xff]
    %v2586 = vld [vmem:[#allocation7 + $0x198] sm:$0xff]
    %v2587 = vld [vmem:[#allocation7 + $0x1a0] sm:$0xff]
    %v2588 = vld [vmem:[#allocation7 + $0x1a8] sm:$0xff]
    %v2589 = vld [vmem:[#allocation7 + $0x1b0] sm:$0xff]
    %v2590 = vld [vmem:[#allocation7 + $0x1b8] sm:$0xff]
    %v2591 = vld [vmem:[#allocation7 + $0x1c0] sm:$0xff]
    %v2592 = vld [vmem:[#allocation7 + $0x1c8] sm:$0xff]
    %v2593 = vld [vmem:[#allocation7 + $0x1d0] sm:$0xff]
    %v2594 = vld [vmem:[#allocation7 + $0x1d8] sm:$0xff]
    %v2595 = vld [vmem:[#allocation7 + $0x1e0] sm:$0xff]
    %v2596 = vld [vmem:[#allocation7 + $0x1e8] sm:$0xff]
    %v2597 = vld [vmem:[#allocation7 + $0x1f0] sm:$0xff]
    %v2598 = vld [vmem:[#allocation7 + $0x1f8] sm:$0xff]
    %v2599 = vld [vmem:[%s15] sm:$0xf]
    %v2601 = vperm.slane %v2599, 0
    %v2602 = vperm.slane %v2599, 1
    %v2603 = vperm.slane %v2599, 2
    %v2604 = vperm.slane %v2599, 3
    %v2673 = vunpack.c.l.b16 %v2535
    %v2674 = vunpack.c.h.b16 %v2535
    %v2675 = vunpack.c.l.b16 %v2536
    %v2676 = vunpack.c.h.b16 %v2536
    %v2677 = vunpack.c.l.b16 %v2537
    %v2678 = vunpack.c.h.b16 %v2537
    %v2679 = vunpack.c.l.b16 %v2538
    %v2680 = vunpack.c.h.b16 %v2538
    %v2681 = vunpack.c.l.b16 %v2539
    %v2682 = vunpack.c.h.b16 %v2539
    %v2683 = vunpack.c.l.b16 %v2540
    %v2684 = vunpack.c.h.b16 %v2540
    %v2685 = vunpack.c.l.b16 %v2541
    %v2686 = vunpack.c.h.b16 %v2541
    %v2687 = vunpack.c.l.b16 %v2542
    %v2688 = vunpack.c.h.b16 %v2542
    %v2689 = vunpack.c.l.b16 %v2543
    %v2690 = vunpack.c.h.b16 %v2543
    %v2691 = vunpack.c.l.b16 %v2544
    %v2692 = vunpack.c.h.b16 %v2544
    %v2693 = vunpack.c.l.b16 %v2545
    %v2694 = vunpack.c.h.b16 %v2545
    %v2695 = vunpack.c.l.b16 %v2546
    %v2696 = vunpack.c.h.b16 %v2546
    %v2697 = vunpack.c.l.b16 %v2547
    %v2698 = vunpack.c.h.b16 %v2547
    %v2699 = vunpack.c.l.b16 %v2548
    %v2700 = vunpack.c.h.b16 %v2548
    %v2701 = vunpack.c.l.b16 %v2549
    %v2702 = vunpack.c.h.b16 %v2549
    %v2703 = vunpack.c.l.b16 %v2550
    %v2704 = vunpack.c.h.b16 %v2550
    %v2705 = vunpack.c.l.b16 %v2551
    %v2706 = vunpack.c.h.b16 %v2551
    %v2707 = vunpack.c.l.b16 %v2552
    %v2708 = vunpack.c.h.b16 %v2552
    %v2709 = vunpack.c.l.b16 %v2553
    %v2710 = vunpack.c.h.b16 %v2553
    %v2711 = vunpack.c.l.b16 %v2554
    %v2712 = vunpack.c.h.b16 %v2554
    %v2713 = vunpack.c.l.b16 %v2555
    %v2714 = vunpack.c.h.b16 %v2555
    %v2715 = vunpack.c.l.b16 %v2556
    %v2716 = vunpack.c.h.b16 %v2556
    %v2717 = vunpack.c.l.b16 %v2557
    %v2718 = vunpack.c.h.b16 %v2557
    %v2719 = vunpack.c.l.b16 %v2558
    %v2720 = vunpack.c.h.b16 %v2558
    %v2721 = vunpack.c.l.b16 %v2559
    %v2722 = vunpack.c.h.b16 %v2559
    %v2723 = vunpack.c.l.b16 %v2560
    %v2724 = vunpack.c.h.b16 %v2560
    %v2725 = vunpack.c.l.b16 %v2561
    %v2726 = vunpack.c.h.b16 %v2561
    %v2727 = vunpack.c.l.b16 %v2562
    %v2728 = vunpack.c.h.b16 %v2562
    %v2729 = vunpack.c.l.b16 %v2563
    %v2730 = vunpack.c.h.b16 %v2563
    %v2731 = vunpack.c.l.b16 %v2564
    %v2732 = vunpack.c.h.b16 %v2564
    %v2733 = vunpack.c.l.b16 %v2565
    %v2734 = vunpack.c.h.b16 %v2565
    %v2735 = vunpack.c.l.b16 %v2566
    %v2736 = vunpack.c.h.b16 %v2566
    %v2737 = vunpack.c.l.b16 %v2567
    %v2738 = vunpack.c.h.b16 %v2567
    %v2739 = vunpack.c.l.b16 %v2568
    %v2740 = vunpack.c.h.b16 %v2568
    %v2741 = vunpack.c.l.b16 %v2569
    %v2742 = vunpack.c.h.b16 %v2569
    %v2743 = vunpack.c.l.b16 %v2570
    %v2744 = vunpack.c.h.b16 %v2570
    %v2745 = vunpack.c.l.b16 %v2571
    %v2746 = vunpack.c.h.b16 %v2571
    %v2747 = vunpack.c.l.b16 %v2572
    %v2748 = vunpack.c.h.b16 %v2572
    %v2749 = vunpack.c.l.b16 %v2573
    %v2750 = vunpack.c.h.b16 %v2573
    %v2751 = vunpack.c.l.b16 %v2574
    %v2752 = vunpack.c.h.b16 %v2574
    %v2753 = vunpack.c.l.b16 %v2575
    %v2754 = vunpack.c.h.b16 %v2575
    %v2755 = vunpack.c.l.b16 %v2576
    %v2756 = vunpack.c.h.b16 %v2576
    %v2757 = vunpack.c.l.b16 %v2577
    %v2758 = vunpack.c.h.b16 %v2577
    %v2759 = vunpack.c.l.b16 %v2578
    %v2760 = vunpack.c.h.b16 %v2578
    %v2761 = vunpack.c.l.b16 %v2579
    %v2762 = vunpack.c.h.b16 %v2579
    %v2763 = vunpack.c.l.b16 %v2580
    %v2764 = vunpack.c.h.b16 %v2580
    %v2765 = vunpack.c.l.b16 %v2581
    %v2766 = vunpack.c.h.b16 %v2581
    %v2767 = vunpack.c.l.b16 %v2582
    %v2768 = vunpack.c.h.b16 %v2582
    %v2769 = vunpack.c.l.b16 %v2583
    %v2770 = vunpack.c.h.b16 %v2583
    %v2771 = vunpack.c.l.b16 %v2584
    %v2772 = vunpack.c.h.b16 %v2584
    %v2773 = vunpack.c.l.b16 %v2585
    %v2774 = vunpack.c.h.b16 %v2585
    %v2775 = vunpack.c.l.b16 %v2586
    %v2776 = vunpack.c.h.b16 %v2586
    %v2777 = vunpack.c.l.b16 %v2587
    %v2778 = vunpack.c.h.b16 %v2587
    %v2779 = vunpack.c.l.b16 %v2588
    %v2780 = vunpack.c.h.b16 %v2588
    %v2781 = vunpack.c.l.b16 %v2589
    %v2782 = vunpack.c.h.b16 %v2589
    %v2783 = vunpack.c.l.b16 %v2590
    %v2784 = vunpack.c.h.b16 %v2590
    %v2785 = vunpack.c.l.b16 %v2591
    %v2786 = vunpack.c.h.b16 %v2591
    %v2787 = vunpack.c.l.b16 %v2592
    %v2788 = vunpack.c.h.b16 %v2592
    %v2789 = vunpack.c.l.b16 %v2593
    %v2790 = vunpack.c.h.b16 %v2593
    %v2791 = vunpack.c.l.b16 %v2594
    %v2792 = vunpack.c.h.b16 %v2594
    %v2793 = vunpack.c.l.b16 %v2595
    %v2794 = vunpack.c.h.b16 %v2595
    %v2795 = vunpack.c.l.b16 %v2596
    %v2796 = vunpack.c.h.b16 %v2596
    %v2797 = vunpack.c.l.b16 %v2597
    %v2798 = vunpack.c.h.b16 %v2597
    %v2799 = vunpack.c.l.b16 %v2598
    %v2800 = vunpack.c.h.b16 %v2598
    %v2801 = vpack.c.b16 %v2677, %v2673
    %v2802 = vpack.c.b16 %v2678, %v2674
    %v2803 = vpack.c.b16 %v2679, %v2675
    %v2804 = vpack.c.b16 %v2680, %v2676
    %v2805 = vpack.c.b16 %v2685, %v2681
    %v2806 = vpack.c.b16 %v2686, %v2682
    %v2807 = vpack.c.b16 %v2687, %v2683
    %v2808 = vpack.c.b16 %v2688, %v2684
    %v2809 = vpack.c.b16 %v2693, %v2689
    %v2810 = vpack.c.b16 %v2694, %v2690
    %v2811 = vpack.c.b16 %v2695, %v2691
    %v2812 = vpack.c.b16 %v2696, %v2692
    %v2813 = vpack.c.b16 %v2701, %v2697
    %v2814 = vpack.c.b16 %v2702, %v2698
    %v2815 = vpack.c.b16 %v2703, %v2699
    %v2816 = vpack.c.b16 %v2704, %v2700
    %v2817 = vpack.c.b16 %v2709, %v2705
    %v2818 = vpack.c.b16 %v2710, %v2706
    %v2819 = vpack.c.b16 %v2711, %v2707
    %v2820 = vpack.c.b16 %v2712, %v2708
    %v2821 = vpack.c.b16 %v2717, %v2713
    %v2822 = vpack.c.b16 %v2718, %v2714
    %v2823 = vpack.c.b16 %v2719, %v2715
    %v2824 = vpack.c.b16 %v2720, %v2716
    %v2825 = vpack.c.b16 %v2725, %v2721
    %v2826 = vpack.c.b16 %v2726, %v2722
    %v2827 = vpack.c.b16 %v2727, %v2723
    %v2828 = vpack.c.b16 %v2728, %v2724
    %v2829 = vpack.c.b16 %v2733, %v2729
    %v2830 = vpack.c.b16 %v2734, %v2730
    %v2831 = vpack.c.b16 %v2735, %v2731
    %v2832 = vpack.c.b16 %v2736, %v2732
    %v2833 = vpack.c.b16 %v2741, %v2737
    %v2834 = vpack.c.b16 %v2742, %v2738
    %v2835 = vpack.c.b16 %v2743, %v2739
    %v2836 = vpack.c.b16 %v2744, %v2740
    %v2837 = vpack.c.b16 %v2749, %v2745
    %v2838 = vpack.c.b16 %v2750, %v2746
    %v2839 = vpack.c.b16 %v2751, %v2747
    %v2840 = vpack.c.b16 %v2752, %v2748
    %v2841 = vpack.c.b16 %v2757, %v2753
    %v2842 = vpack.c.b16 %v2758, %v2754
    %v2843 = vpack.c.b16 %v2759, %v2755
    %v2844 = vpack.c.b16 %v2760, %v2756
    %v2845 = vpack.c.b16 %v2765, %v2761
    %v2846 = vpack.c.b16 %v2766, %v2762
    %v2847 = vpack.c.b16 %v2767, %v2763
    %v2848 = vpack.c.b16 %v2768, %v2764
    %v2849 = vpack.c.b16 %v2773, %v2769
    %v2850 = vpack.c.b16 %v2774, %v2770
    %v2851 = vpack.c.b16 %v2775, %v2771
    %v2852 = vpack.c.b16 %v2776, %v2772
    %v2853 = vpack.c.b16 %v2781, %v2777
    %v2854 = vpack.c.b16 %v2782, %v2778
    %v2855 = vpack.c.b16 %v2783, %v2779
    %v2856 = vpack.c.b16 %v2784, %v2780
    %v2857 = vpack.c.b16 %v2789, %v2785
    %v2858 = vpack.c.b16 %v2790, %v2786
    %v2859 = vpack.c.b16 %v2791, %v2787
    %v2860 = vpack.c.b16 %v2792, %v2788
    %v2861 = vpack.c.b16 %v2797, %v2793
    %v2862 = vpack.c.b16 %v2798, %v2794
    %v2863 = vpack.c.b16 %v2799, %v2795
    %v2864 = vpack.c.b16 %v2800, %v2796
    %2929 = vmatpush.bf16.msra.mxu0 %v2829
    %2930 = vmatpush.bf16.msra.mxu0 %v2825
    %2931 = vmatpush.bf16.msra.mxu0 %v2821
    %2932 = vmatpush.bf16.msra.mxu0 %v2817
    %2933 = vmatpush.bf16.msra.mxu0 %v2813
    %2934 = vmatpush.bf16.msra.mxu0 %v2809
    %2935 = vmatpush.bf16.msra.mxu0 %v2805
    %2936 = vmatpush.bf16.msra.mxu0 %v2801
    %2937 = vmatmul.bf16.gmra.mxu0 %v2531
    %v2938 = vpop.f32.mrf.mxu0
    %v2939 = vadd.f32 %v2601, %v2938
    %v2940 = vpop.f32.mrf.mxu0
    %v2941 = vadd.f32 %v2601, %v2940
    %2942 = vmatmul.bf16.gmra.mxu0 %v2533
    %v2943 = vpop.f32.mrf.mxu0
    %v2944 = vadd.f32 %v2601, %v2943
    %v2945 = vpop.f32.mrf.mxu0
    %v2946 = vadd.f32 %v2601, %v2945
    %2947 = vdwg.mxu0
    %2948 = vmatpush.bf16.msra.mxu0 %v2861
    %2949 = vmatpush.bf16.msra.mxu0 %v2857
    %2950 = vmatpush.bf16.msra.mxu0 %v2853
    %2951 = vmatpush.bf16.msra.mxu0 %v2849
    %2952 = vmatpush.bf16.msra.mxu0 %v2845
    %2953 = vmatpush.bf16.msra.mxu0 %v2841
    %2954 = vmatpush.bf16.msra.mxu0 %v2837
    %2955 = vmatpush.bf16.msra.mxu0 %v2833
    %2956 = vmatmul.bf16.gmra.mxu0 %v2532
    %v2957 = vpop.f32.mrf.mxu0
    %v2958 = vadd.f32 %v2939, %v2957
    %v2959 = vpop.f32.mrf.mxu0
    %v2960 = vadd.f32 %v2941, %v2959
    %2961 = vmatmul.bf16.gmra.mxu0 %v2534
    %v2962 = vpop.f32.mrf.mxu0
    %v2963 = vadd.f32 %v2944, %v2962
    %v2964 = vpop.f32.mrf.mxu0
    %v2965 = vadd.f32 %v2946, %v2964
    %2966 = vdwg.mxu0
    %2967 = vmatpush.bf16.msra.mxu0 %v2830
    %2968 = vmatpush.bf16.msra.mxu0 %v2826
    %2969 = vmatpush.bf16.msra.mxu0 %v2822
    %2970 = vmatpush.bf16.msra.mxu0 %v2818
    %2971 = vmatpush.bf16.msra.mxu0 %v2814
    %2972 = vmatpush.bf16.msra.mxu0 %v2810
    %2973 = vmatpush.bf16.msra.mxu0 %v2806
    %2974 = vmatpush.bf16.msra.mxu0 %v2802
    %2975 = vmatmul.bf16.gmra.mxu0 %v2531
    %v2976 = vpop.f32.mrf.mxu0
    %v2977 = vadd.f32 %v2602, %v2976
    %v2978 = vpop.f32.mrf.mxu0
    %v2979 = vadd.f32 %v2602, %v2978
    %2980 = vmatmul.bf16.gmra.mxu0 %v2533
    %v2981 = vpop.f32.mrf.mxu0
    %v2982 = vadd.f32 %v2602, %v2981
    %v2983 = vpop.f32.mrf.mxu0
    %v2984 = vadd.f32 %v2602, %v2983
    %2985 = vdwg.mxu0
    %2986 = vmatpush.bf16.msra.mxu0 %v2862
    %2987 = vmatpush.bf16.msra.mxu0 %v2858
    %2988 = vmatpush.bf16.msra.mxu0 %v2854
    %2989 = vmatpush.bf16.msra.mxu0 %v2850
    %2990 = vmatpush.bf16.msra.mxu0 %v2846
    %2991 = vmatpush.bf16.msra.mxu0 %v2842
    %2992 = vmatpush.bf16.msra.mxu0 %v2838
    %2993 = vmatpush.bf16.msra.mxu0 %v2834
    %2994 = vmatmul.bf16.gmra.mxu0 %v2532
    %v2995 = vpop.f32.mrf.mxu0
    %v2996 = vadd.f32 %v2977, %v2995
    %v2997 = vpop.f32.mrf.mxu0
    %v2998 = vadd.f32 %v2979, %v2997
    %2999 = vmatmul.bf16.gmra.mxu0 %v2534
    %v3000 = vpop.f32.mrf.mxu0
    %v3001 = vadd.f32 %v2982, %v3000
    %v3002 = vpop.f32.mrf.mxu0
    %v3003 = vadd.f32 %v2984, %v3002
    %3004 = vdwg.mxu0
    %3005 = vmatpush.bf16.msra.mxu0 %v2831
    %3006 = vmatpush.bf16.msra.mxu0 %v2827
    %3007 = vmatpush.bf16.msra.mxu0 %v2823
    %3008 = vmatpush.bf16.msra.mxu0 %v2819
    %3009 = vmatpush.bf16.msra.mxu0 %v2815
    %3010 = vmatpush.bf16.msra.mxu0 %v2811
    %3011 = vmatpush.bf16.msra.mxu0 %v2807
    %3012 = vmatpush.bf16.msra.mxu0 %v2803
    %3013 = vmatmul.bf16.gmra.mxu0 %v2531
    %v3014 = vpop.f32.mrf.mxu0
    %v3015 = vadd.f32 %v2603, %v3014
    %v3016 = vpop.f32.mrf.mxu0
    %v3017 = vadd.f32 %v2603, %v3016
    %3018 = vmatmul.bf16.gmra.mxu0 %v2533
    %v3019 = vpop.f32.mrf.mxu0
    %v3020 = vadd.f32 %v2603, %v3019
    %v3021 = vpop.f32.mrf.mxu0
    %v3022 = vadd.f32 %v2603, %v3021
    %3023 = vdwg.mxu0
    %3024 = vmatpush.bf16.msra.mxu0 %v2863
    %3025 = vmatpush.bf16.msra.mxu0 %v2859
    %3026 = vmatpush.bf16.msra.mxu0 %v2855
    %3027 = vmatpush.bf16.msra.mxu0 %v2851
    %3028 = vmatpush.bf16.msra.mxu0 %v2847
    %3029 = vmatpush.bf16.msra.mxu0 %v2843
    %3030 = vmatpush.bf16.msra.mxu0 %v2839
    %3031 = vmatpush.bf16.msra.mxu0 %v2835
    %3032 = vmatmul.bf16.gmra.mxu0 %v2532
    %v3033 = vpop.f32.mrf.mxu0
    %v3034 = vadd.f32 %v3015, %v3033
    %v3035 = vpop.f32.mrf.mxu0
    %v3036 = vadd.f32 %v3017, %v3035
    %3037 = vmatmul.bf16.gmra.mxu0 %v2534
    %v3038 = vpop.f32.mrf.mxu0
    %v3039 = vadd.f32 %v3020, %v3038
    %v3040 = vpop.f32.mrf.mxu0
    %v3041 = vadd.f32 %v3022, %v3040
    %3042 = vdwg.mxu0
    %3043 = vmatpush.bf16.msra.mxu0 %v2832
    %3044 = vmatpush.bf16.msra.mxu0 %v2828
    %3045 = vmatpush.bf16.msra.mxu0 %v2824
    %3046 = vmatpush.bf16.msra.mxu0 %v2820
    %3047 = vmatpush.bf16.msra.mxu0 %v2816
    %3048 = vmatpush.bf16.msra.mxu0 %v2812
    %3049 = vmatpush.bf16.msra.mxu0 %v2808
    %3050 = vmatpush.bf16.msra.mxu0 %v2804
    %3051 = vmatmul.bf16.gmra.mxu0 %v2531
    %v3052 = vpop.f32.mrf.mxu0
    %v3053 = vadd.f32 %v2604, %v3052
    %v3054 = vpop.f32.mrf.mxu0
    %v3055 = vadd.f32 %v2604, %v3054
    %3056 = vmatmul.bf16.gmra.mxu0 %v2533
    %v3057 = vpop.f32.mrf.mxu0
    %v3058 = vadd.f32 %v2604, %v3057
    %v3059 = vpop.f32.mrf.mxu0
    %v3060 = vadd.f32 %v2604, %v3059
    %3061 = vdwg.mxu0
    %3062 = vmatpush.bf16.msra.mxu0 %v2864
    %3063 = vmatpush.bf16.msra.mxu0 %v2860
    %3064 = vmatpush.bf16.msra.mxu0 %v2856
    %3065 = vmatpush.bf16.msra.mxu0 %v2852
    %3066 = vmatpush.bf16.msra.mxu0 %v2848
    %3067 = vmatpush.bf16.msra.mxu0 %v2844
    %3068 = vmatpush.bf16.msra.mxu0 %v2840
    %3069 = vmatpush.bf16.msra.mxu0 %v2836
    %3070 = vmatmul.bf16.gmra.mxu0 %v2532
    %v3071 = vpop.f32.mrf.mxu0
    %v3072 = vadd.f32 %v3053, %v3071
    %v3073 = vpop.f32.mrf.mxu0
    %v3074 = vadd.f32 %v3055, %v3073
    %3075 = vmatmul.bf16.gmra.mxu0 %v2534
    %v3076 = vpop.f32.mrf.mxu0
    %v3077 = vadd.f32 %v3058, %v3076
    %v3078 = vpop.f32.mrf.mxu0
    %v3079 = vadd.f32 %v3060, %v3078
    %3080 = vdwg.mxu0
    %v3081 = vmul.f32 %v2499, 0.17677669
    %v3082 = vmul.f32 %v2527, 0.17677669
    %v3083 = vperm.slane %v208, 0
    %v3084 = vadd.f32 %v207, %v3083
    %v3085 = vpack.c.bf16 %v3081, %v3081
    %v3086 = vpack.c.bf16 %v2960, %v2958
    %v3087 = vpack.c.bf16 %v3036, %v3034
    %v3089 = vsel %vm976, %v3085, 0
    %v3092 = vsel %vm976, %v3086, 0
    %3094 = vmatpush.bf16.xpose.msra.mxu0 0
    %3095 = vmatpush.bf16.xpose.msra.mxu0 0
    %3096 = vmatpush.bf16.xpose.msra.mxu0 0
    %3097 = vmatpush.bf16.xpose.msra.mxu0 0
    %3098 = vmatpush.bf16.xpose.msra.mxu0 0
    %3099 = vmatpush.bf16.xpose.msra.mxu0 0
    %3100 = vmatpush.bf16.xpose.msra.mxu0 0
    %3101 = vmatpush.bf16.xpose.msra.mxu0 %v3092
    %3102 = vmatmul.bf16.gmra.mxu0 %v3089
    %v3103 = vpop.f32.mrf.mxu0
    %v3104 = vadd.f32 %v3084, %v3103
    %v3105 = vpop.f32.mrf.mxu0
    %3106 = vdwg.mxu0
    %vm3107 = vcmask 130048
    %v3108 = vsel %vm3107, %v3104, -inf
    %3109 = vmax.xlane.f32.xlu0 %v3108
    %v3110 = vpop.xlane.xlu0 %3109
    %v3111 = vsub.f32 %v3104, %v3110
    %v3112 = vmul.f32 %v3111, 1.442695
    %v3113 = vpow.pop %v3112
    %v3114 = vsel %vm3107, %v3113, 0.0
    %3115 = vadd.xlane.f32.xlu0 %v3114
    %v3116 = vpop.xlane.xlu0 %3115
    %v3117 = vrcp.pop %v3116
    %v3118 = vmul.f32 %v3113, %v3117
    %v3119 = vpack.c.bf16 %v3118, %v3118
    %v3121 = vsel %vm3107, %v3119, 0
    %3123 = vmatpush.bf16.msra.mxu0 0
    %3124 = vmatpush.bf16.msra.mxu0 0
    %3125 = vmatpush.bf16.msra.mxu0 0
    %3126 = vmatpush.bf16.msra.mxu0 0
    %3127 = vmatpush.bf16.msra.mxu0 0
    %3128 = vmatpush.bf16.msra.mxu0 0
    %3129 = vmatpush.bf16.msra.mxu0 0
    %3130 = vmatpush.bf16.msra.mxu0 %v3087
    %3131 = vmatmul.bf16.gmra.mxu0 %v3121
    %v3132 = vpop.f32.mrf.mxu0
    %v3133 = vadd.f32 0.0, %v3132
    %v3134 = vpop.f32.mrf.mxu0
    %3135 = vdwg.mxu0
    %3137 = vrot.lane.b32.xlu0 %v3085, 96
    %v3138 = vpop.permute.xlu0 %3137
    %3140 = vrot.lane.b32.xlu0 %v3086, 96
    %v3141 = vpop.permute.xlu0 %3140
    %v3143 = vsel %vm976, %v3138, 0
    %v3146 = vsel %vm976, %v3141, 0
    %3148 = vmatpush.bf16.xpose.msra.mxu0 0
    %3149 = vmatpush.bf16.xpose.msra.mxu0 0
    %3150 = vmatpush.bf16.xpose.msra.mxu0 0
    %3151 = vmatpush.bf16.xpose.msra.mxu0 0
    %3152 = vmatpush.bf16.xpose.msra.mxu0 0
    %3153 = vmatpush.bf16.xpose.msra.mxu0 0
    %3154 = vmatpush.bf16.xpose.msra.mxu0 0
    %3155 = vmatpush.bf16.xpose.msra.mxu0 %v3146
    %3156 = vmatmul.bf16.gmra.mxu0 %v3143
    %v3157 = vpop.f32.mrf.mxu0
    %v3158 = vadd.f32 %v3084, %v3157
    %v3159 = vpop.f32.mrf.mxu0
    %3160 = vdwg.mxu0
    %v3161 = vsel %vm3107, %v3158, -inf
    %3162 = vmax.xlane.f32.xlu0 %v3161
    %v3163 = vpop.xlane.xlu0 %3162
    %v3164 = vsub.f32 %v3158, %v3163
    %v3165 = vmul.f32 %v3164, 1.442695
    %v3166 = vpow.pop %v3165
    %v3167 = vsel %vm3107, %v3166, 0.0
    %3168 = vadd.xlane.f32.xlu0 %v3167
    %v3169 = vpop.xlane.xlu0 %3168
    %v3170 = vrcp.pop %v3169
    %v3171 = vmul.f32 %v3166, %v3170
    %v3172 = vpack.c.bf16 %v3171, %v3171
    %3174 = vrot.lane.b32.xlu0 %v3087, 96
    %v3175 = vpop.permute.xlu0 %3174
    %v3178 = vsel %vm3107, %v3172, 0
    %3180 = vmatpush.bf16.msra.mxu0 0
    %3181 = vmatpush.bf16.msra.mxu0 0
    %3182 = vmatpush.bf16.msra.mxu0 0
    %3183 = vmatpush.bf16.msra.mxu0 0
    %3184 = vmatpush.bf16.msra.mxu0 0
    %3185 = vmatpush.bf16.msra.mxu0 0
    %3186 = vmatpush.bf16.msra.mxu0 0
    %3187 = vmatpush.bf16.msra.mxu0 %v3175
    %3188 = vmatmul.bf16.gmra.mxu0 %v3178
    %v3189 = vpop.f32.mrf.mxu0
    %v3190 = vadd.f32 0.0, %v3189
    %v3191 = vpop.f32.mrf.mxu0
    %3192 = vdwg.mxu0
    %3193 = vrot.lane.b32.xlu0 %v3085, 64
    %v3194 = vpop.permute.xlu0 %3193
    %3195 = vrot.lane.b32.xlu0 %v3086, 64
    %v3196 = vpop.permute.xlu0 %3195
    %v3198 = vsel %vm976, %v3194, 0
    %v3201 = vsel %vm976, %v3196, 0
    %3203 = vmatpush.bf16.xpose.msra.mxu0 0
    %3204 = vmatpush.bf16.xpose.msra.mxu0 0
    %3205 = vmatpush.bf16.xpose.msra.mxu0 0
    %3206 = vmatpush.bf16.xpose.msra.mxu0 0
    %3207 = vmatpush.bf16.xpose.msra.mxu0 0
    %3208 = vmatpush.bf16.xpose.msra.mxu0 0
    %3209 = vmatpush.bf16.xpose.msra.mxu0 0
    %3210 = vmatpush.bf16.xpose.msra.mxu0 %v3201
    %3211 = vmatmul.bf16.gmra.mxu0 %v3198
    %v3212 = vpop.f32.mrf.mxu0
    %v3213 = vadd.f32 %v3084, %v3212
    %v3214 = vpop.f32.mrf.mxu0
    %3215 = vdwg.mxu0
    %v3216 = vsel %vm3107, %v3213, -inf
    %3217 = vmax.xlane.f32.xlu0 %v3216
    %v3218 = vpop.xlane.xlu0 %3217
    %v3219 = vsub.f32 %v3213, %v3218
    %v3220 = vmul.f32 %v3219, 1.442695
    %v3221 = vpow.pop %v3220
    %v3222 = vsel %vm3107, %v3221, 0.0
    %3223 = vadd.xlane.f32.xlu0 %v3222
    %v3224 = vpop.xlane.xlu0 %3223
    %v3225 = vrcp.pop %v3224
    %v3226 = vmul.f32 %v3221, %v3225
    %v3227 = vpack.c.bf16 %v3226, %v3226
    %3228 = vrot.lane.b32.xlu0 %v3087, 64
    %v3229 = vpop.permute.xlu0 %3228
    %v3232 = vsel %vm3107, %v3227, 0
    %3234 = vmatpush.bf16.msra.mxu0 0
    %3235 = vmatpush.bf16.msra.mxu0 0
    %3236 = vmatpush.bf16.msra.mxu0 0
    %3237 = vmatpush.bf16.msra.mxu0 0
    %3238 = vmatpush.bf16.msra.mxu0 0
    %3239 = vmatpush.bf16.msra.mxu0 0
    %3240 = vmatpush.bf16.msra.mxu0 0
    %3241 = vmatpush.bf16.msra.mxu0 %v3229
    %3242 = vmatmul.bf16.gmra.mxu0 %v3232
    %v3243 = vpop.f32.mrf.mxu0
    %v3244 = vadd.f32 0.0, %v3243
    %v3245 = vpop.f32.mrf.mxu0
    %3246 = vdwg.mxu0
    %3247 = vrot.lane.b32.xlu0 %v3085, 32
    %v3248 = vpop.permute.xlu0 %3247
    %3249 = vrot.lane.b32.xlu0 %v3086, 32
    %v3250 = vpop.permute.xlu0 %3249
    %v3252 = vsel %vm976, %v3248, 0
    %v3255 = vsel %vm976, %v3250, 0
    %3257 = vmatpush.bf16.xpose.msra.mxu0 0
    %3258 = vmatpush.bf16.xpose.msra.mxu0 0
    %3259 = vmatpush.bf16.xpose.msra.mxu0 0
    %3260 = vmatpush.bf16.xpose.msra.mxu0 0
    %3261 = vmatpush.bf16.xpose.msra.mxu0 0
    %3262 = vmatpush.bf16.xpose.msra.mxu0 0
    %3263 = vmatpush.bf16.xpose.msra.mxu0 0
    %3264 = vmatpush.bf16.xpose.msra.mxu0 %v3255
    %3265 = vmatmul.bf16.gmra.mxu0 %v3252
    %v3266 = vpop.f32.mrf.mxu0
    %v3267 = vadd.f32 %v3084, %v3266
    %v3268 = vpop.f32.mrf.mxu0
    %3269 = vdwg.mxu0
    %v3270 = vsel %vm3107, %v3267, -inf
    %3271 = vmax.xlane.f32.xlu0 %v3270
    %v3272 = vpop.xlane.xlu0 %3271
    %v3273 = vsub.f32 %v3267, %v3272
    %v3274 = vmul.f32 %v3273, 1.442695
    %v3275 = vpow.pop %v3274
    %v3276 = vsel %vm3107, %v3275, 0.0
    %3277 = vadd.xlane.f32.xlu0 %v3276
    %v3278 = vpop.xlane.xlu0 %3277
    %v3279 = vrcp.pop %v3278
    %v3280 = vmul.f32 %v3275, %v3279
    %v3281 = vpack.c.bf16 %v3280, %v3280
    %3282 = vrot.lane.b32.xlu0 %v3087, 32
    %v3283 = vpop.permute.xlu0 %3282
    %v3286 = vsel %vm3107, %v3281, 0
    %3288 = vmatpush.bf16.msra.mxu0 0
    %3289 = vmatpush.bf16.msra.mxu0 0
    %3290 = vmatpush.bf16.msra.mxu0 0
    %3291 = vmatpush.bf16.msra.mxu0 0
    %3292 = vmatpush.bf16.msra.mxu0 0
    %3293 = vmatpush.bf16.msra.mxu0 0
    %3294 = vmatpush.bf16.msra.mxu0 0
    %3295 = vmatpush.bf16.msra.mxu0 %v3283
    %3296 = vmatmul.bf16.gmra.mxu0 %v3286
    %v3297 = vpop.f32.mrf.mxu0
    %v3298 = vadd.f32 0.0, %v3297
    %v3299 = vpop.f32.mrf.mxu0
    %3300 = vdwg.mxu0
    %v3301 = vpack.c.bf16 %v3082, %v3082
    %v3302 = vpack.c.bf16 %v2998, %v2996
    %v3303 = vpack.c.bf16 %v3074, %v3072
    %v3305 = vsel %vm976, %v3301, 0
    %v3308 = vsel %vm976, %v3302, 0
    %3310 = vmatpush.bf16.xpose.msra.mxu0 0
    %3311 = vmatpush.bf16.xpose.msra.mxu0 0
    %3312 = vmatpush.bf16.xpose.msra.mxu0 0
    %3313 = vmatpush.bf16.xpose.msra.mxu0 0
    %3314 = vmatpush.bf16.xpose.msra.mxu0 0
    %3315 = vmatpush.bf16.xpose.msra.mxu0 0
    %3316 = vmatpush.bf16.xpose.msra.mxu0 0
    %3317 = vmatpush.bf16.xpose.msra.mxu0 %v3308
    %3318 = vmatmul.bf16.gmra.mxu0 %v3305
    %v3319 = vpop.f32.mrf.mxu0
    %v3320 = vadd.f32 %v3084, %v3319
    %v3321 = vpop.f32.mrf.mxu0
    %3322 = vdwg.mxu0
    %v3323 = vsel %vm3107, %v3320, -inf
    %3324 = vmax.xlane.f32.xlu0 %v3323
    %v3325 = vpop.xlane.xlu0 %3324
    %v3326 = vsub.f32 %v3320, %v3325
    %v3327 = vmul.f32 %v3326, 1.442695
    %v3328 = vpow.pop %v3327
    %v3329 = vsel %vm3107, %v3328, 0.0
    %3330 = vadd.xlane.f32.xlu0 %v3329
    %v3331 = vpop.xlane.xlu0 %3330
    %v3332 = vrcp.pop %v3331
    %v3333 = vmul.f32 %v3328, %v3332
    %v3334 = vpack.c.bf16 %v3333, %v3333
    %v3336 = vsel %vm3107, %v3334, 0
    %3338 = vmatpush.bf16.msra.mxu0 0
    %3339 = vmatpush.bf16.msra.mxu0 0
    %3340 = vmatpush.bf16.msra.mxu0 0
    %3341 = vmatpush.bf16.msra.mxu0 0
    %3342 = vmatpush.bf16.msra.mxu0 0
    %3343 = vmatpush.bf16.msra.mxu0 0
    %3344 = vmatpush.bf16.msra.mxu0 0
    %3345 = vmatpush.bf16.msra.mxu0 %v3303
    %3346 = vmatmul.bf16.gmra.mxu0 %v3336
    %v3347 = vpop.f32.mrf.mxu0
    %v3348 = vadd.f32 0.0, %v3347
    %v3349 = vpop.f32.mrf.mxu0
    %3350 = vdwg.mxu0
    %3352 = vrot.lane.b32.xlu0 %v3301, 96
    %v3353 = vpop.permute.xlu0 %3352
    %3355 = vrot.lane.b32.xlu0 %v3302, 96
    %v3356 = vpop.permute.xlu0 %3355
    %v3358 = vsel %vm976, %v3353, 0
    %v3361 = vsel %vm976, %v3356, 0
    %3363 = vmatpush.bf16.xpose.msra.mxu0 0
    %3364 = vmatpush.bf16.xpose.msra.mxu0 0
    %3365 = vmatpush.bf16.xpose.msra.mxu0 0
    %3366 = vmatpush.bf16.xpose.msra.mxu0 0
    %3367 = vmatpush.bf16.xpose.msra.mxu0 0
    %3368 = vmatpush.bf16.xpose.msra.mxu0 0
    %3369 = vmatpush.bf16.xpose.msra.mxu0 0
    %3370 = vmatpush.bf16.xpose.msra.mxu0 %v3361
    %3371 = vmatmul.bf16.gmra.mxu0 %v3358
    %v3372 = vpop.f32.mrf.mxu0
    %v3373 = vadd.f32 %v3084, %v3372
    %v3374 = vpop.f32.mrf.mxu0
    %3375 = vdwg.mxu0
    %v3376 = vsel %vm3107, %v3373, -inf
    %3377 = vmax.xlane.f32.xlu0 %v3376
    %v3378 = vpop.xlane.xlu0 %3377
    %v3379 = vsub.f32 %v3373, %v3378
    %v3380 = vmul.f32 %v3379, 1.442695
    %v3381 = vpow.pop %v3380
    %v3382 = vsel %vm3107, %v3381, 0.0
    %3383 = vadd.xlane.f32.xlu0 %v3382
    %v3384 = vpop.xlane.xlu0 %3383
    %v3385 = vrcp.pop %v3384
    %v3386 = vmul.f32 %v3381, %v3385
    %v3387 = vpack.c.bf16 %v3386, %v3386
    %3389 = vrot.lane.b32.xlu0 %v3303, 96
    %v3390 = vpop.permute.xlu0 %3389
    %v3393 = vsel %vm3107, %v3387, 0
    %3395 = vmatpush.bf16.msra.mxu0 0
    %3396 = vmatpush.bf16.msra.mxu0 0
    %3397 = vmatpush.bf16.msra.mxu0 0
    %3398 = vmatpush.bf16.msra.mxu0 0
    %3399 = vmatpush.bf16.msra.mxu0 0
    %3400 = vmatpush.bf16.msra.mxu0 0
    %3401 = vmatpush.bf16.msra.mxu0 0
    %3402 = vmatpush.bf16.msra.mxu0 %v3390
    %3403 = vmatmul.bf16.gmra.mxu0 %v3393
    %v3404 = vpop.f32.mrf.mxu0
    %v3405 = vadd.f32 0.0, %v3404
    %v3406 = vpop.f32.mrf.mxu0
    %3407 = vdwg.mxu0
    %3408 = vrot.lane.b32.xlu0 %v3301, 64
    %v3409 = vpop.permute.xlu0 %3408
    %3410 = vrot.lane.b32.xlu0 %v3302, 64
    %v3411 = vpop.permute.xlu0 %3410
    %v3413 = vsel %vm976, %v3409, 0
    %v3416 = vsel %vm976, %v3411, 0
    %3418 = vmatpush.bf16.xpose.msra.mxu0 0
    %3419 = vmatpush.bf16.xpose.msra.mxu0 0
    %3420 = vmatpush.bf16.xpose.msra.mxu0 0
    %3421 = vmatpush.bf16.xpose.msra.mxu0 0
    %3422 = vmatpush.bf16.xpose.msra.mxu0 0
    %3423 = vmatpush.bf16.xpose.msra.mxu0 0
    %3424 = vmatpush.bf16.xpose.msra.mxu0 0
    %3425 = vmatpush.bf16.xpose.msra.mxu0 %v3416
    %3426 = vmatmul.bf16.gmra.mxu0 %v3413
    %v3427 = vpop.f32.mrf.mxu0
    %v3428 = vadd.f32 %v3084, %v3427
    %v3429 = vpop.f32.mrf.mxu0
    %3430 = vdwg.mxu0
    %v3431 = vsel %vm3107, %v3428, -inf
    %3432 = vmax.xlane.f32.xlu0 %v3431
    %v3433 = vpop.xlane.xlu0 %3432
    %v3434 = vsub.f32 %v3428, %v3433
    %v3435 = vmul.f32 %v3434, 1.442695
    %v3436 = vpow.pop %v3435
    %v3437 = vsel %vm3107, %v3436, 0.0
    %3438 = vadd.xlane.f32.xlu0 %v3437
    %v3439 = vpop.xlane.xlu0 %3438
    %v3440 = vrcp.pop %v3439
    %v3441 = vmul.f32 %v3436, %v3440
    %v3442 = vpack.c.bf16 %v3441, %v3441
    %3443 = vrot.lane.b32.xlu0 %v3303, 64
    %v3444 = vpop.permute.xlu0 %3443
    %v3447 = vsel %vm3107, %v3442, 0
    %3449 = vmatpush.bf16.msra.mxu0 0
    %3450 = vmatpush.bf16.msra.mxu0 0
    %3451 = vmatpush.bf16.msra.mxu0 0
    %3452 = vmatpush.bf16.msra.mxu0 0
    %3453 = vmatpush.bf16.msra.mxu0 0
    %3454 = vmatpush.bf16.msra.mxu0 0
    %3455 = vmatpush.bf16.msra.mxu0 0
    %3456 = vmatpush.bf16.msra.mxu0 %v3444
    %3457 = vmatmul.bf16.gmra.mxu0 %v3447
    %v3458 = vpop.f32.mrf.mxu0
    %v3459 = vadd.f32 0.0, %v3458
    %v3460 = vpop.f32.mrf.mxu0
    %3461 = vdwg.mxu0
    %3462 = vrot.lane.b32.xlu0 %v3301, 32
    %v3463 = vpop.permute.xlu0 %3462
    %3464 = vrot.lane.b32.xlu0 %v3302, 32
    %v3465 = vpop.permute.xlu0 %3464
    %v3467 = vsel %vm976, %v3463, 0
    %v3470 = vsel %vm976, %v3465, 0
    %3472 = vmatpush.bf16.xpose.msra.mxu0 0
    %3473 = vmatpush.bf16.xpose.msra.mxu0 0
    %3474 = vmatpush.bf16.xpose.msra.mxu0 0
    %3475 = vmatpush.bf16.xpose.msra.mxu0 0
    %3476 = vmatpush.bf16.xpose.msra.mxu0 0
    %3477 = vmatpush.bf16.xpose.msra.mxu0 0
    %3478 = vmatpush.bf16.xpose.msra.mxu0 0
    %3479 = vmatpush.bf16.xpose.msra.mxu0 %v3470
    %3480 = vmatmul.bf16.gmra.mxu0 %v3467
    %v3481 = vpop.f32.mrf.mxu0
    %v3482 = vadd.f32 %v3084, %v3481
    %v3483 = vpop.f32.mrf.mxu0
    %3484 = vdwg.mxu0
    %v3485 = vsel %vm3107, %v3482, -inf
    %3486 = vmax.xlane.f32.xlu0 %v3485
    %v3487 = vpop.xlane.xlu0 %3486
    %v3488 = vsub.f32 %v3482, %v3487
    %v3489 = vmul.f32 %v3488, 1.442695
    %v3490 = vpow.pop %v3489
    %v3491 = vsel %vm3107, %v3490, 0.0
    %3492 = vadd.xlane.f32.xlu0 %v3491
    %v3493 = vpop.xlane.xlu0 %3492
    %v3494 = vrcp.pop %v3493
    %v3495 = vmul.f32 %v3490, %v3494
    %v3496 = vpack.c.bf16 %v3495, %v3495
    %3497 = vrot.lane.b32.xlu0 %v3303, 32
    %v3498 = vpop.permute.xlu0 %3497
    %v3501 = vsel %vm3107, %v3496, 0
    %3503 = vmatpush.bf16.msra.mxu0 0
    %3504 = vmatpush.bf16.msra.mxu0 0
    %3505 = vmatpush.bf16.msra.mxu0 0
    %3506 = vmatpush.bf16.msra.mxu0 0
    %3507 = vmatpush.bf16.msra.mxu0 0
    %3508 = vmatpush.bf16.msra.mxu0 0
    %3509 = vmatpush.bf16.msra.mxu0 0
    %3510 = vmatpush.bf16.msra.mxu0 %v3498
    %3511 = vmatmul.bf16.gmra.mxu0 %v3501
    %v3512 = vpop.f32.mrf.mxu0
    %v3513 = vadd.f32 0.0, %v3512
    %v3514 = vpop.f32.mrf.mxu0
    %3515 = vdwg.mxu0
    %3517 = vrot.lane.b32.xlu0 %v3190, 32
    %v3518 = vpop.permute.xlu0 %3517
    %3521 = vrot.lane.b32.xlu0 %v3244, 64
    %v3522 = vpop.permute.xlu0 %3521
    %3525 = vrot.lane.b32.xlu0 %v3298, 96
    %v3526 = vpop.permute.xlu0 %3525
    %3529 = vrot.lane.b32.xlu0 %v3405, 32
    %v3530 = vpop.permute.xlu0 %3529
    %3533 = vrot.lane.b32.xlu0 %v3459, 64
    %v3534 = vpop.permute.xlu0 %3533
    %3537 = vrot.lane.b32.xlu0 %v3513, 96
    %v3538 = vpop.permute.xlu0 %3537
    %v3540 = vsel %vm976, %v3133, %v3518
    %v3541 = vsel %vm1449, %v3540, %v3522
    %v3542 = vsel %vm1451, %v3541, %v3526
    %v3543 = vsel %vm976, %v3348, %v3530
    %v3544 = vsel %vm1449, %v3543, %v3534
    %v3545 = vsel %vm1451, %v3544, %v3538
    %v3546 = vmul.f32 %v2501, 0.17677669
    %v3547 = vmul.f32 %v2529, 0.17677669
    %v3548 = vperm.slane %v208, 1
    %v3549 = vadd.f32 %v207, %v3548
    %v3550 = vpack.c.bf16 %v3546, %v3546
    %v3551 = vpack.c.bf16 %v2965, %v2963
    %v3552 = vpack.c.bf16 %v3041, %v3039
    %v3554 = vsel %vm976, %v3550, 0
    %v3557 = vsel %vm976, %v3551, 0
    %3559 = vmatpush.bf16.xpose.msra.mxu0 0
    %3560 = vmatpush.bf16.xpose.msra.mxu0 0
    %3561 = vmatpush.bf16.xpose.msra.mxu0 0
    %3562 = vmatpush.bf16.xpose.msra.mxu0 0
    %3563 = vmatpush.bf16.xpose.msra.mxu0 0
    %3564 = vmatpush.bf16.xpose.msra.mxu0 0
    %3565 = vmatpush.bf16.xpose.msra.mxu0 0
    %3566 = vmatpush.bf16.xpose.msra.mxu0 %v3557
    %3567 = vmatmul.bf16.gmra.mxu0 %v3554
    %v3568 = vpop.f32.mrf.mxu0
    %v3569 = vadd.f32 %v3549, %v3568
    %v3570 = vpop.f32.mrf.mxu0
    %3571 = vdwg.mxu0
    %v3572 = vsel %vm3107, %v3569, -inf
    %3573 = vmax.xlane.f32.xlu0 %v3572
    %v3574 = vpop.xlane.xlu0 %3573
    %v3575 = vsub.f32 %v3569, %v3574
    %v3576 = vmul.f32 %v3575, 1.442695
    %v3577 = vpow.pop %v3576
    %v3578 = vsel %vm3107, %v3577, 0.0
    %3579 = vadd.xlane.f32.xlu0 %v3578
    %v3580 = vpop.xlane.xlu0 %3579
    %v3581 = vrcp.pop %v3580
    %v3582 = vmul.f32 %v3577, %v3581
    %v3583 = vpack.c.bf16 %v3582, %v3582
    %v3585 = vsel %vm3107, %v3583, 0
    %3587 = vmatpush.bf16.msra.mxu0 0
    %3588 = vmatpush.bf16.msra.mxu0 0
    %3589 = vmatpush.bf16.msra.mxu0 0
    %3590 = vmatpush.bf16.msra.mxu0 0
    %3591 = vmatpush.bf16.msra.mxu0 0
    %3592 = vmatpush.bf16.msra.mxu0 0
    %3593 = vmatpush.bf16.msra.mxu0 0
    %3594 = vmatpush.bf16.msra.mxu0 %v3552
    %3595 = vmatmul.bf16.gmra.mxu0 %v3585
    %v3596 = vpop.f32.mrf.mxu0
    %v3597 = vadd.f32 0.0, %v3596
    %v3598 = vpop.f32.mrf.mxu0
    %3599 = vdwg.mxu0
    %3601 = vrot.lane.b32.xlu0 %v3550, 96
    %v3602 = vpop.permute.xlu0 %3601
    %3604 = vrot.lane.b32.xlu0 %v3551, 96
    %v3605 = vpop.permute.xlu0 %3604
    %v3607 = vsel %vm976, %v3602, 0
    %v3610 = vsel %vm976, %v3605, 0
    %3612 = vmatpush.bf16.xpose.msra.mxu0 0
    %3613 = vmatpush.bf16.xpose.msra.mxu0 0
    %3614 = vmatpush.bf16.xpose.msra.mxu0 0
    %3615 = vmatpush.bf16.xpose.msra.mxu0 0
    %3616 = vmatpush.bf16.xpose.msra.mxu0 0
    %3617 = vmatpush.bf16.xpose.msra.mxu0 0
    %3618 = vmatpush.bf16.xpose.msra.mxu0 0
    %3619 = vmatpush.bf16.xpose.msra.mxu0 %v3610
    %3620 = vmatmul.bf16.gmra.mxu0 %v3607
    %v3621 = vpop.f32.mrf.mxu0
    %v3622 = vadd.f32 %v3549, %v3621
    %v3623 = vpop.f32.mrf.mxu0
    %3624 = vdwg.mxu0
    %v3625 = vsel %vm3107, %v3622, -inf
    %3626 = vmax.xlane.f32.xlu0 %v3625
    %v3627 = vpop.xlane.xlu0 %3626
    %v3628 = vsub.f32 %v3622, %v3627
    %v3629 = vmul.f32 %v3628, 1.442695
    %v3630 = vpow.pop %v3629
    %v3631 = vsel %vm3107, %v3630, 0.0
    %3632 = vadd.xlane.f32.xlu0 %v3631
    %v3633 = vpop.xlane.xlu0 %3632
    %v3634 = vrcp.pop %v3633
    %v3635 = vmul.f32 %v3630, %v3634
    %v3636 = vpack.c.bf16 %v3635, %v3635
    %3638 = vrot.lane.b32.xlu0 %v3552, 96
    %v3639 = vpop.permute.xlu0 %3638
    %v3642 = vsel %vm3107, %v3636, 0
    %3644 = vmatpush.bf16.msra.mxu0 0
    %3645 = vmatpush.bf16.msra.mxu0 0
    %3646 = vmatpush.bf16.msra.mxu0 0
    %3647 = vmatpush.bf16.msra.mxu0 0
    %3648 = vmatpush.bf16.msra.mxu0 0
    %3649 = vmatpush.bf16.msra.mxu0 0
    %3650 = vmatpush.bf16.msra.mxu0 0
    %3651 = vmatpush.bf16.msra.mxu0 %v3639
    %3652 = vmatmul.bf16.gmra.mxu0 %v3642
    %v3653 = vpop.f32.mrf.mxu0
    %v3654 = vadd.f32 0.0, %v3653
    %v3655 = vpop.f32.mrf.mxu0
    %3656 = vdwg.mxu0
    %3657 = vrot.lane.b32.xlu0 %v3550, 64
    %v3658 = vpop.permute.xlu0 %3657
    %3659 = vrot.lane.b32.xlu0 %v3551, 64
    %v3660 = vpop.permute.xlu0 %3659
    %v3662 = vsel %vm976, %v3658, 0
    %v3665 = vsel %vm976, %v3660, 0
    %3667 = vmatpush.bf16.xpose.msra.mxu0 0
    %3668 = vmatpush.bf16.xpose.msra.mxu0 0
    %3669 = vmatpush.bf16.xpose.msra.mxu0 0
    %3670 = vmatpush.bf16.xpose.msra.mxu0 0
    %3671 = vmatpush.bf16.xpose.msra.mxu0 0
    %3672 = vmatpush.bf16.xpose.msra.mxu0 0
    %3673 = vmatpush.bf16.xpose.msra.mxu0 0
    %3674 = vmatpush.bf16.xpose.msra.mxu0 %v3665
    %3675 = vmatmul.bf16.gmra.mxu0 %v3662
    %v3676 = vpop.f32.mrf.mxu0
    %v3677 = vadd.f32 %v3549, %v3676
    %v3678 = vpop.f32.mrf.mxu0
    %3679 = vdwg.mxu0
    %v3680 = vsel %vm3107, %v3677, -inf
    %3681 = vmax.xlane.f32.xlu0 %v3680
    %v3682 = vpop.xlane.xlu0 %3681
    %v3683 = vsub.f32 %v3677, %v3682
    %v3684 = vmul.f32 %v3683, 1.442695
    %v3685 = vpow.pop %v3684
    %v3686 = vsel %vm3107, %v3685, 0.0
    %3687 = vadd.xlane.f32.xlu0 %v3686
    %v3688 = vpop.xlane.xlu0 %3687
    %v3689 = vrcp.pop %v3688
    %v3690 = vmul.f32 %v3685, %v3689
    %v3691 = vpack.c.bf16 %v3690, %v3690
    %3692 = vrot.lane.b32.xlu0 %v3552, 64
    %v3693 = vpop.permute.xlu0 %3692
    %v3696 = vsel %vm3107, %v3691, 0
    %3698 = vmatpush.bf16.msra.mxu0 0
    %3699 = vmatpush.bf16.msra.mxu0 0
    %3700 = vmatpush.bf16.msra.mxu0 0
    %3701 = vmatpush.bf16.msra.mxu0 0
    %3702 = vmatpush.bf16.msra.mxu0 0
    %3703 = vmatpush.bf16.msra.mxu0 0
    %3704 = vmatpush.bf16.msra.mxu0 0
    %3705 = vmatpush.bf16.msra.mxu0 %v3693
    %3706 = vmatmul.bf16.gmra.mxu0 %v3696
    %v3707 = vpop.f32.mrf.mxu0
    %v3708 = vadd.f32 0.0, %v3707
    %v3709 = vpop.f32.mrf.mxu0
    %3710 = vdwg.mxu0
    %3711 = vrot.lane.b32.xlu0 %v3550, 32
    %v3712 = vpop.permute.xlu0 %3711
    %3713 = vrot.lane.b32.xlu0 %v3551, 32
    %v3714 = vpop.permute.xlu0 %3713
    %v3716 = vsel %vm976, %v3712, 0
    %v3719 = vsel %vm976, %v3714, 0
    %3721 = vmatpush.bf16.xpose.msra.mxu0 0
    %3722 = vmatpush.bf16.xpose.msra.mxu0 0
    %3723 = vmatpush.bf16.xpose.msra.mxu0 0
    %3724 = vmatpush.bf16.xpose.msra.mxu0 0
    %3725 = vmatpush.bf16.xpose.msra.mxu0 0
    %3726 = vmatpush.bf16.xpose.msra.mxu0 0
    %3727 = vmatpush.bf16.xpose.msra.mxu0 0
    %3728 = vmatpush.bf16.xpose.msra.mxu0 %v3719
    %3729 = vmatmul.bf16.gmra.mxu0 %v3716
    %v3730 = vpop.f32.mrf.mxu0
    %v3731 = vadd.f32 %v3549, %v3730
    %v3732 = vpop.f32.mrf.mxu0
    %3733 = vdwg.mxu0
    %v3734 = vsel %vm3107, %v3731, -inf
    %3735 = vmax.xlane.f32.xlu0 %v3734
    %v3736 = vpop.xlane.xlu0 %3735
    %v3737 = vsub.f32 %v3731, %v3736
    %v3738 = vmul.f32 %v3737, 1.442695
    %v3739 = vpow.pop %v3738
    %v3740 = vsel %vm3107, %v3739, 0.0
    %3741 = vadd.xlane.f32.xlu0 %v3740
    %v3742 = vpop.xlane.xlu0 %3741
    %v3743 = vrcp.pop %v3742
    %v3744 = vmul.f32 %v3739, %v3743
    %v3745 = vpack.c.bf16 %v3744, %v3744
    %3746 = vrot.lane.b32.xlu0 %v3552, 32
    %v3747 = vpop.permute.xlu0 %3746
    %v3750 = vsel %vm3107, %v3745, 0
    %3752 = vmatpush.bf16.msra.mxu0 0
    %3753 = vmatpush.bf16.msra.mxu0 0
    %3754 = vmatpush.bf16.msra.mxu0 0
    %3755 = vmatpush.bf16.msra.mxu0 0
    %3756 = vmatpush.bf16.msra.mxu0 0
    %3757 = vmatpush.bf16.msra.mxu0 0
    %3758 = vmatpush.bf16.msra.mxu0 0
    %3759 = vmatpush.bf16.msra.mxu0 %v3747
    %3760 = vmatmul.bf16.gmra.mxu0 %v3750
    %v3761 = vpop.f32.mrf.mxu0
    %v3762 = vadd.f32 0.0, %v3761
    %v3763 = vpop.f32.mrf.mxu0
    %3764 = vdwg.mxu0
    %v3765 = vpack.c.bf16 %v3547, %v3547
    %v3766 = vpack.c.bf16 %v3003, %v3001
    %v3767 = vpack.c.bf16 %v3079, %v3077
    %v3769 = vsel %vm976, %v3765, 0
    %v3772 = vsel %vm976, %v3766, 0
    %3774 = vmatpush.bf16.xpose.msra.mxu0 0
    %3775 = vmatpush.bf16.xpose.msra.mxu0 0
    %3776 = vmatpush.bf16.xpose.msra.mxu0 0
    %3777 = vmatpush.bf16.xpose.msra.mxu0 0
    %3778 = vmatpush.bf16.xpose.msra.mxu0 0
    %3779 = vmatpush.bf16.xpose.msra.mxu0 0
    %3780 = vmatpush.bf16.xpose.msra.mxu0 0
    %3781 = vmatpush.bf16.xpose.msra.mxu0 %v3772
    %3782 = vmatmul.bf16.gmra.mxu0 %v3769
    %v3783 = vpop.f32.mrf.mxu0
    %v3784 = vadd.f32 %v3549, %v3783
    %v3785 = vpop.f32.mrf.mxu0
    %3786 = vdwg.mxu0
    %v3787 = vsel %vm3107, %v3784, -inf
    %3788 = vmax.xlane.f32.xlu0 %v3787
    %v3789 = vpop.xlane.xlu0 %3788
    %v3790 = vsub.f32 %v3784, %v3789
    %v3791 = vmul.f32 %v3790, 1.442695
    %v3792 = vpow.pop %v3791
    %v3793 = vsel %vm3107, %v3792, 0.0
    %3794 = vadd.xlane.f32.xlu0 %v3793
    %v3795 = vpop.xlane.xlu0 %3794
    %v3796 = vrcp.pop %v3795
    %v3797 = vmul.f32 %v3792, %v3796
    %v3798 = vpack.c.bf16 %v3797, %v3797
    %v3800 = vsel %vm3107, %v3798, 0
    %3802 = vmatpush.bf16.msra.mxu0 0
    %3803 = vmatpush.bf16.msra.mxu0 0
    %3804 = vmatpush.bf16.msra.mxu0 0
    %3805 = vmatpush.bf16.msra.mxu0 0
    %3806 = vmatpush.bf16.msra.mxu0 0
    %3807 = vmatpush.bf16.msra.mxu0 0
    %3808 = vmatpush.bf16.msra.mxu0 0
    %3809 = vmatpush.bf16.msra.mxu0 %v3767
    %3810 = vmatmul.bf16.gmra.mxu0 %v3800
    %v3811 = vpop.f32.mrf.mxu0
    %v3812 = vadd.f32 0.0, %v3811
    %v3813 = vpop.f32.mrf.mxu0
    %3814 = vdwg.mxu0
    %3816 = vrot.lane.b32.xlu0 %v3765, 96
    %v3817 = vpop.permute.xlu0 %3816
    %3819 = vrot.lane.b32.xlu0 %v3766, 96
    %v3820 = vpop.permute.xlu0 %3819
    %v3822 = vsel %vm976, %v3817, 0
    %v3825 = vsel %vm976, %v3820, 0
    %3827 = vmatpush.bf16.xpose.msra.mxu0 0
    %3828 = vmatpush.bf16.xpose.msra.mxu0 0
    %3829 = vmatpush.bf16.xpose.msra.mxu0 0
    %3830 = vmatpush.bf16.xpose.msra.mxu0 0
    %3831 = vmatpush.bf16.xpose.msra.mxu0 0
    %3832 = vmatpush.bf16.xpose.msra.mxu0 0
    %3833 = vmatpush.bf16.xpose.msra.mxu0 0
    %3834 = vmatpush.bf16.xpose.msra.mxu0 %v3825
    %3835 = vmatmul.bf16.gmra.mxu0 %v3822
    %v3836 = vpop.f32.mrf.mxu0
    %v3837 = vadd.f32 %v3549, %v3836
    %v3838 = vpop.f32.mrf.mxu0
    %3839 = vdwg.mxu0
    %v3840 = vsel %vm3107, %v3837, -inf
    %3841 = vmax.xlane.f32.xlu0 %v3840
    %v3842 = vpop.xlane.xlu0 %3841
    %v3843 = vsub.f32 %v3837, %v3842
    %v3844 = vmul.f32 %v3843, 1.442695
    %v3845 = vpow.pop %v3844
    %v3846 = vsel %vm3107, %v3845, 0.0
    %3847 = vadd.xlane.f32.xlu0 %v3846
    %v3848 = vpop.xlane.xlu0 %3847
    %v3849 = vrcp.pop %v3848
    %v3850 = vmul.f32 %v3845, %v3849
    %v3851 = vpack.c.bf16 %v3850, %v3850
    %3853 = vrot.lane.b32.xlu0 %v3767, 96
    %v3854 = vpop.permute.xlu0 %3853
    %v3857 = vsel %vm3107, %v3851, 0
    %3859 = vmatpush.bf16.msra.mxu0 0
    %3860 = vmatpush.bf16.msra.mxu0 0
    %3861 = vmatpush.bf16.msra.mxu0 0
    %3862 = vmatpush.bf16.msra.mxu0 0
    %3863 = vmatpush.bf16.msra.mxu0 0
    %3864 = vmatpush.bf16.msra.mxu0 0
    %3865 = vmatpush.bf16.msra.mxu0 0
    %3866 = vmatpush.bf16.msra.mxu0 %v3854
    %3867 = vmatmul.bf16.gmra.mxu0 %v3857
    %v3868 = vpop.f32.mrf.mxu0
    %v3869 = vadd.f32 0.0, %v3868
    %v3870 = vpop.f32.mrf.mxu0
    %3871 = vdwg.mxu0
    %3872 = vrot.lane.b32.xlu0 %v3765, 64
    %v3873 = vpop.permute.xlu0 %3872
    %3874 = vrot.lane.b32.xlu0 %v3766, 64
    %v3875 = vpop.permute.xlu0 %3874
    %v3877 = vsel %vm976, %v3873, 0
    %v3880 = vsel %vm976, %v3875, 0
    %3882 = vmatpush.bf16.xpose.msra.mxu0 0
    %3883 = vmatpush.bf16.xpose.msra.mxu0 0
    %3884 = vmatpush.bf16.xpose.msra.mxu0 0
    %3885 = vmatpush.bf16.xpose.msra.mxu0 0
    %3886 = vmatpush.bf16.xpose.msra.mxu0 0
    %3887 = vmatpush.bf16.xpose.msra.mxu0 0
    %3888 = vmatpush.bf16.xpose.msra.mxu0 0
    %3889 = vmatpush.bf16.xpose.msra.mxu0 %v3880
    %3890 = vmatmul.bf16.gmra.mxu0 %v3877
    %v3891 = vpop.f32.mrf.mxu0
    %v3892 = vadd.f32 %v3549, %v3891
    %v3893 = vpop.f32.mrf.mxu0
    %3894 = vdwg.mxu0
    %v3895 = vsel %vm3107, %v3892, -inf
    %3896 = vmax.xlane.f32.xlu0 %v3895
    %v3897 = vpop.xlane.xlu0 %3896
    %v3898 = vsub.f32 %v3892, %v3897
    %v3899 = vmul.f32 %v3898, 1.442695
    %v3900 = vpow.pop %v3899
    %v3901 = vsel %vm3107, %v3900, 0.0
    %3902 = vadd.xlane.f32.xlu0 %v3901
    %v3903 = vpop.xlane.xlu0 %3902
    %v3904 = vrcp.pop %v3903
    %v3905 = vmul.f32 %v3900, %v3904
    %v3906 = vpack.c.bf16 %v3905, %v3905
    %3907 = vrot.lane.b32.xlu0 %v3767, 64
    %v3908 = vpop.permute.xlu0 %3907
    %v3911 = vsel %vm3107, %v3906, 0
    %3913 = vmatpush.bf16.msra.mxu0 0
    %3914 = vmatpush.bf16.msra.mxu0 0
    %3915 = vmatpush.bf16.msra.mxu0 0
    %3916 = vmatpush.bf16.msra.mxu0 0
    %3917 = vmatpush.bf16.msra.mxu0 0
    %3918 = vmatpush.bf16.msra.mxu0 0
    %3919 = vmatpush.bf16.msra.mxu0 0
    %3920 = vmatpush.bf16.msra.mxu0 %v3908
    %3921 = vmatmul.bf16.gmra.mxu0 %v3911
    %v3922 = vpop.f32.mrf.mxu0
    %v3923 = vadd.f32 0.0, %v3922
    %v3924 = vpop.f32.mrf.mxu0
    %3925 = vdwg.mxu0
    %3926 = vrot.lane.b32.xlu0 %v3765, 32
    %v3927 = vpop.permute.xlu0 %3926
    %3928 = vrot.lane.b32.xlu0 %v3766, 32
    %v3929 = vpop.permute.xlu0 %3928
    %v3931 = vsel %vm976, %v3927, 0
    %v3934 = vsel %vm976, %v3929, 0
    %3936 = vmatpush.bf16.xpose.msra.mxu0 0
    %3937 = vmatpush.bf16.xpose.msra.mxu0 0
    %3938 = vmatpush.bf16.xpose.msra.mxu0 0
    %3939 = vmatpush.bf16.xpose.msra.mxu0 0
    %3940 = vmatpush.bf16.xpose.msra.mxu0 0
    %3941 = vmatpush.bf16.xpose.msra.mxu0 0
    %3942 = vmatpush.bf16.xpose.msra.mxu0 0
    %3943 = vmatpush.bf16.xpose.msra.mxu0 %v3934
    %3944 = vmatmul.bf16.gmra.mxu0 %v3931
    %v3945 = vpop.f32.mrf.mxu0
    %v3946 = vadd.f32 %v3549, %v3945
    %v3947 = vpop.f32.mrf.mxu0
    %3948 = vdwg.mxu0
    %v3949 = vsel %vm3107, %v3946, -inf
    %3950 = vmax.xlane.f32.xlu0 %v3949
    %v3951 = vpop.xlane.xlu0 %3950
    %v3952 = vsub.f32 %v3946, %v3951
    %v3953 = vmul.f32 %v3952, 1.442695
    %v3954 = vpow.pop %v3953
    %v3955 = vsel %vm3107, %v3954, 0.0
    %3956 = vadd.xlane.f32.xlu0 %v3955
    %v3957 = vpop.xlane.xlu0 %3956
    %v3958 = vrcp.pop %v3957
    %v3959 = vmul.f32 %v3954, %v3958
    %v3960 = vpack.c.bf16 %v3959, %v3959
    %3961 = vrot.lane.b32.xlu0 %v3767, 32
    %v3962 = vpop.permute.xlu0 %3961
    %v3965 = vsel %vm3107, %v3960, 0
    %3967 = vmatpush.bf16.msra.mxu0 0
    %3968 = vmatpush.bf16.msra.mxu0 0
    %3969 = vmatpush.bf16.msra.mxu0 0
    %3970 = vmatpush.bf16.msra.mxu0 0
    %3971 = vmatpush.bf16.msra.mxu0 0
    %3972 = vmatpush.bf16.msra.mxu0 0
    %3973 = vmatpush.bf16.msra.mxu0 0
    %3974 = vmatpush.bf16.msra.mxu0 %v3962
    %3975 = vmatmul.bf16.gmra.mxu0 %v3965
    %v3976 = vpop.f32.mrf.mxu0
    %v3977 = vadd.f32 0.0, %v3976
    %v3978 = vpop.f32.mrf.mxu0
    %3979 = vdwg.mxu0
    %3981 = vrot.lane.b32.xlu0 %v3654, 32
    %v3982 = vpop.permute.xlu0 %3981
    %3985 = vrot.lane.b32.xlu0 %v3708, 64
    %v3986 = vpop.permute.xlu0 %3985
    %3989 = vrot.lane.b32.xlu0 %v3762, 96
    %v3990 = vpop.permute.xlu0 %3989
    %3993 = vrot.lane.b32.xlu0 %v3869, 32
    %v3994 = vpop.permute.xlu0 %3993
    %3997 = vrot.lane.b32.xlu0 %v3923, 64
    %v3998 = vpop.permute.xlu0 %3997
    %4001 = vrot.lane.b32.xlu0 %v3977, 96
    %v4002 = vpop.permute.xlu0 %4001
    %v4004 = vsel %vm976, %v3597, %v3982
    %v4005 = vsel %vm1449, %v4004, %v3986
    %v4006 = vsel %vm1451, %v4005, %v3990
    %v4007 = vsel %vm976, %v3812, %v3994
    %v4008 = vsel %vm1449, %v4007, %v3998
    %v4009 = vsel %vm1451, %v4008, %v4002
    %v4010 = vpack.c.bf16 %v4006, %v3542
    %v4011 = vpack.c.bf16 %v4009, %v3545
    %v4012 = vld [vmem:[#allocation9] sm:$0xff]
    %v4013 = vld [vmem:[#allocation9 + $0x8] sm:$0xff]
    %v4014 = vld [vmem:[#allocation9 + $0x10] sm:$0xff]
    %v4015 = vld [vmem:[#allocation9 + $0x18] sm:$0xff]
    %v4016 = vld [vmem:[#allocation9 + $0x20] sm:$0xff]
    %v4017 = vld [vmem:[#allocation9 + $0x28] sm:$0xff]
    %v4018 = vld [vmem:[#allocation9 + $0x30] sm:$0xff]
    %v4019 = vld [vmem:[#allocation9 + $0x38] sm:$0xff]
    %v4020 = vld [vmem:[#allocation9 + $0x40] sm:$0xff]
    %v4021 = vld [vmem:[#allocation9 + $0x48] sm:$0xff]
    %v4022 = vld [vmem:[#allocation9 + $0x50] sm:$0xff]
    %v4023 = vld [vmem:[#allocation9 + $0x58] sm:$0xff]
    %v4024 = vld [vmem:[#allocation9 + $0x60] sm:$0xff]
    %v4025 = vld [vmem:[#allocation9 + $0x68] sm:$0xff]
    %v4026 = vld [vmem:[#allocation9 + $0x70] sm:$0xff]
    %v4027 = vld [vmem:[#allocation9 + $0x78] sm:$0xff]
    %v4028 = vld [vmem:[#allocation9 + $0x80] sm:$0xff]
    %v4029 = vld [vmem:[#allocation9 + $0x88] sm:$0xff]
    %v4030 = vld [vmem:[#allocation9 + $0x90] sm:$0xff]
    %v4031 = vld [vmem:[#allocation9 + $0x98] sm:$0xff]
    %v4032 = vld [vmem:[#allocation9 + $0xa0] sm:$0xff]
    %v4033 = vld [vmem:[#allocation9 + $0xa8] sm:$0xff]
    %v4034 = vld [vmem:[#allocation9 + $0xb0] sm:$0xff]
    %v4035 = vld [vmem:[#allocation9 + $0xb8] sm:$0xff]
    %v4036 = vld [vmem:[#allocation9 + $0xc0] sm:$0xff]
    %v4037 = vld [vmem:[#allocation9 + $0xc8] sm:$0xff]
    %v4038 = vld [vmem:[#allocation9 + $0xd0] sm:$0xff]
    %v4039 = vld [vmem:[#allocation9 + $0xd8] sm:$0xff]
    %v4040 = vld [vmem:[#allocation9 + $0xe0] sm:$0xff]
    %v4041 = vld [vmem:[#allocation9 + $0xe8] sm:$0xff]
    %v4042 = vld [vmem:[#allocation9 + $0xf0] sm:$0xff]
    %v4043 = vld [vmem:[#allocation9 + $0xf8] sm:$0xff]
    %v4044 = vld [vmem:[%s17] sm:$0x3]
    %v4046 = vperm.slane %v4044, 0
    %v4047 = vperm.slane %v4044, 1
    %v4082 = vunpack.c.l.b16 %v4012
    %v4083 = vunpack.c.h.b16 %v4012
    %v4084 = vunpack.c.l.b16 %v4013
    %v4085 = vunpack.c.h.b16 %v4013
    %v4086 = vunpack.c.l.b16 %v4014
    %v4087 = vunpack.c.h.b16 %v4014
    %v4088 = vunpack.c.l.b16 %v4015
    %v4089 = vunpack.c.h.b16 %v4015
    %v4090 = vunpack.c.l.b16 %v4016
    %v4091 = vunpack.c.h.b16 %v4016
    %v4092 = vunpack.c.l.b16 %v4017
    %v4093 = vunpack.c.h.b16 %v4017
    %v4094 = vunpack.c.l.b16 %v4018
    %v4095 = vunpack.c.h.b16 %v4018
    %v4096 = vunpack.c.l.b16 %v4019
    %v4097 = vunpack.c.h.b16 %v4019
    %v4098 = vunpack.c.l.b16 %v4020
    %v4099 = vunpack.c.h.b16 %v4020
    %v4100 = vunpack.c.l.b16 %v4021
    %v4101 = vunpack.c.h.b16 %v4021
    %v4102 = vunpack.c.l.b16 %v4022
    %v4103 = vunpack.c.h.b16 %v4022
    %v4104 = vunpack.c.l.b16 %v4023
    %v4105 = vunpack.c.h.b16 %v4023
    %v4106 = vunpack.c.l.b16 %v4024
    %v4107 = vunpack.c.h.b16 %v4024
    %v4108 = vunpack.c.l.b16 %v4025
    %v4109 = vunpack.c.h.b16 %v4025
    %v4110 = vunpack.c.l.b16 %v4026
    %v4111 = vunpack.c.h.b16 %v4026
    %v4112 = vunpack.c.l.b16 %v4027
    %v4113 = vunpack.c.h.b16 %v4027
    %v4114 = vunpack.c.l.b16 %v4028
    %v4115 = vunpack.c.h.b16 %v4028
    %v4116 = vunpack.c.l.b16 %v4029
    %v4117 = vunpack.c.h.b16 %v4029
    %v4118 = vunpack.c.l.b16 %v4030
    %v4119 = vunpack.c.h.b16 %v4030
    %v4120 = vunpack.c.l.b16 %v4031
    %v4121 = vunpack.c.h.b16 %v4031
    %v4122 = vunpack.c.l.b16 %v4032
    %v4123 = vunpack.c.h.b16 %v4032
    %v4124 = vunpack.c.l.b16 %v4033
    %v4125 = vunpack.c.h.b16 %v4033
    %v4126 = vunpack.c.l.b16 %v4034
    %v4127 = vunpack.c.h.b16 %v4034
    %v4128 = vunpack.c.l.b16 %v4035
    %v4129 = vunpack.c.h.b16 %v4035
    %v4130 = vunpack.c.l.b16 %v4036
    %v4131 = vunpack.c.h.b16 %v4036
    %v4132 = vunpack.c.l.b16 %v4037
    %v4133 = vunpack.c.h.b16 %v4037
    %v4134 = vunpack.c.l.b16 %v4038
    %v4135 = vunpack.c.h.b16 %v4038
    %v4136 = vunpack.c.l.b16 %v4039
    %v4137 = vunpack.c.h.b16 %v4039
    %v4138 = vunpack.c.l.b16 %v4040
    %v4139 = vunpack.c.h.b16 %v4040
    %v4140 = vunpack.c.l.b16 %v4041
    %v4141 = vunpack.c.h.b16 %v4041
    %v4142 = vunpack.c.l.b16 %v4042
    %v4143 = vunpack.c.h.b16 %v4042
    %v4144 = vunpack.c.l.b16 %v4043
    %v4145 = vunpack.c.h.b16 %v4043
    %v4146 = vpack.c.b16 %v4084, %v4082
    %v4147 = vpack.c.b16 %v4085, %v4083
    %v4148 = vpack.c.b16 %v4088, %v4086
    %v4149 = vpack.c.b16 %v4089, %v4087
    %v4150 = vpack.c.b16 %v4092, %v4090
    %v4151 = vpack.c.b16 %v4093, %v4091
    %v4152 = vpack.c.b16 %v4096, %v4094
    %v4153 = vpack.c.b16 %v4097, %v4095
    %v4154 = vpack.c.b16 %v4100, %v4098
    %v4155 = vpack.c.b16 %v4101, %v4099
    %v4156 = vpack.c.b16 %v4104, %v4102
    %v4157 = vpack.c.b16 %v4105, %v4103
    %v4158 = vpack.c.b16 %v4108, %v4106
    %v4159 = vpack.c.b16 %v4109, %v4107
    %v4160 = vpack.c.b16 %v4112, %v4110
    %v4161 = vpack.c.b16 %v4113, %v4111
    %v4162 = vpack.c.b16 %v4116, %v4114
    %v4163 = vpack.c.b16 %v4117, %v4115
    %v4164 = vpack.c.b16 %v4120, %v4118
    %v4165 = vpack.c.b16 %v4121, %v4119
    %v4166 = vpack.c.b16 %v4124, %v4122
    %v4167 = vpack.c.b16 %v4125, %v4123
    %v4168 = vpack.c.b16 %v4128, %v4126
    %v4169 = vpack.c.b16 %v4129, %v4127
    %v4170 = vpack.c.b16 %v4132, %v4130
    %v4171 = vpack.c.b16 %v4133, %v4131
    %v4172 = vpack.c.b16 %v4136, %v4134
    %v4173 = vpack.c.b16 %v4137, %v4135
    %v4174 = vpack.c.b16 %v4140, %v4138
    %v4175 = vpack.c.b16 %v4141, %v4139
    %v4176 = vpack.c.b16 %v4144, %v4142
    %v4177 = vpack.c.b16 %v4145, %v4143
    %4210 = vmatpush.bf16.msra.mxu0 %v4160
    %4211 = vmatpush.bf16.msra.mxu0 %v4158
    %4212 = vmatpush.bf16.msra.mxu0 %v4156
    %4213 = vmatpush.bf16.msra.mxu0 %v4154
    %4214 = vmatpush.bf16.msra.mxu0 %v4152
    %4215 = vmatpush.bf16.msra.mxu0 %v4150
    %4216 = vmatpush.bf16.msra.mxu0 %v4148
    %4217 = vmatpush.bf16.msra.mxu0 %v4146
    %4218 = vmatmul.bf16.gmra.mxu0 %v4010
    %v4219 = vpop.f32.mrf.mxu0
    %v4220 = vadd.f32 %v4046, %v4219
    %v4221 = vpop.f32.mrf.mxu0
    %v4222 = vadd.f32 %v4046, %v4221
    %4223 = vdwg.mxu0
    %4224 = vmatpush.bf16.msra.mxu0 %v4176
    %4225 = vmatpush.bf16.msra.mxu0 %v4174
    %4226 = vmatpush.bf16.msra.mxu0 %v4172
    %4227 = vmatpush.bf16.msra.mxu0 %v4170
    %4228 = vmatpush.bf16.msra.mxu0 %v4168
    %4229 = vmatpush.bf16.msra.mxu0 %v4166
    %4230 = vmatpush.bf16.msra.mxu0 %v4164
    %4231 = vmatpush.bf16.msra.mxu0 %v4162
    %4232 = vmatmul.bf16.gmra.mxu0 %v4011
    %v4233 = vpop.f32.mrf.mxu0
    %v4234 = vadd.f32 %v4220, %v4233
    %v4235 = vpop.f32.mrf.mxu0
    %v4236 = vadd.f32 %v4222, %v4235
    %4237 = vdwg.mxu0
    %4238 = vmatpush.bf16.msra.mxu0 %v4161
    %4239 = vmatpush.bf16.msra.mxu0 %v4159
    %4240 = vmatpush.bf16.msra.mxu0 %v4157
    %4241 = vmatpush.bf16.msra.mxu0 %v4155
    %4242 = vmatpush.bf16.msra.mxu0 %v4153
    %4243 = vmatpush.bf16.msra.mxu0 %v4151
    %4244 = vmatpush.bf16.msra.mxu0 %v4149
    %4245 = vmatpush.bf16.msra.mxu0 %v4147
    %4246 = vmatmul.bf16.gmra.mxu0 %v4010
    %v4247 = vpop.f32.mrf.mxu0
    %v4248 = vadd.f32 %v4047, %v4247
    %v4249 = vpop.f32.mrf.mxu0
    %v4250 = vadd.f32 %v4047, %v4249
    %4251 = vdwg.mxu0
    %4252 = vmatpush.bf16.msra.mxu0 %v4177
    %4253 = vmatpush.bf16.msra.mxu0 %v4175
    %4254 = vmatpush.bf16.msra.mxu0 %v4173
    %4255 = vmatpush.bf16.msra.mxu0 %v4171
    %4256 = vmatpush.bf16.msra.mxu0 %v4169
    %4257 = vmatpush.bf16.msra.mxu0 %v4167
    %4258 = vmatpush.bf16.msra.mxu0 %v4165
    %4259 = vmatpush.bf16.msra.mxu0 %v4163
    %4260 = vmatmul.bf16.gmra.mxu0 %v4011
    %v4261 = vpop.f32.mrf.mxu0
    %v4262 = vadd.f32 %v4248, %v4261
    %v4263 = vpop.f32.mrf.mxu0
    %v4264 = vadd.f32 %v4250, %v4263
    %4265 = vdwg.mxu0
    %v4266 = vadd.f32 %v4234, %v2271
    %v4267 = vadd.f32 %v4262, %v2272
    %v4268 = vadd.f32 %v4236, %v2273
    %v4269 = vadd.f32 %v4264, %v2274
    %v4270 = vld [vmem:[%s18] sm:$0x3]
    %v4271 = vld [vmem:[%s19] sm:$0x3]
    %v4272 = vadd.f32 %v4266, %v4267
    %4273 = vadd.xlane.f32.xlu0 %v4272
    %v4274 = vpop.xlane.xlu0 %4273
    %v4275 = vadd.f32 %v4268, %v4269
    %4276 = vadd.xlane.f32.xlu0 %v4275
    %v4277 = vpop.xlane.xlu0 %4276
    %v4278 = vmul.f32 %v4274, %v2212
    %v4279 = vmul.f32 %v4277, %v2212
    %v4280 = vsub.f32 %v4266, %v4278
    %v4281 = vsub.f32 %v4267, %v4278
    %v4282 = vsub.f32 %v4268, %v4279
    %v4283 = vsub.f32 %v4269, %v4279
    %v4284 = vmul.f32 %v4280, %v4280
    %v4285 = vmul.f32 %v4281, %v4281
    %v4286 = vmul.f32 %v4282, %v4282
    %v4287 = vmul.f32 %v4283, %v4283
    %v4288 = vadd.f32 %v4284, %v4285
    %4289 = vadd.xlane.f32.xlu0 %v4288
    %v4290 = vpop.xlane.xlu0 %4289
    %v4291 = vadd.f32 %v4286, %v4287
    %4292 = vadd.xlane.f32.xlu0 %v4291
    %v4293 = vpop.xlane.xlu0 %4292
    %v4294 = vmul.f32 %v4290, %v2212
    %v4295 = vmul.f32 %v4293, %v2212
    %v4296 = vadd.f32 %v4294, 1e-05
    %v4297 = vadd.f32 %v4295, 1e-05
    %v4298 = vrsqrt.pop %v4296
    %v4299 = vmul.f32 %v4298, %v4296
    %v4300 = vmul.f32 %v4299, %v4298
    %v4301 = vmul.f32 0.5, %v4300
    %v4302 = vsub.f32 1.5, %v4301
    %v4303 = vmul.f32 %v4298, %v4302
    %vm4304 = vweird.f32 %v4296
    %vm4305 = vweird.f32 %v4298
    %vm4306 = vmor %vm4304, %vm4305
    %v4307 = vsel %vm4306, %v4298, %v4303
    %v4308 = vrsqrt.pop %v4297
    %v4309 = vmul.f32 %v4308, %v4297
    %v4310 = vmul.f32 %v4309, %v4308
    %v4311 = vmul.f32 0.5, %v4310
    %v4312 = vsub.f32 1.5, %v4311
    %v4313 = vmul.f32 %v4308, %v4312
    %vm4314 = vweird.f32 %v4297
    %vm4315 = vweird.f32 %v4308
    %vm4316 = vmor %vm4314, %vm4315
    %v4317 = vsel %vm4316, %v4308, %v4313
    %v4318 = vmul.f32 %v4280, %v4307
    %v4319 = vmul.f32 %v4281, %v4307
    %v4320 = vmul.f32 %v4282, %v4317
    %v4321 = vmul.f32 %v4283, %v4317
    %v4323 = vperm.slane %v4270, 0
    %v4324 = vperm.slane %v4270, 1
    %v4327 = vmul.f32 %v4318, %v4323
    %v4328 = vmul.f32 %v4319, %v4324
    %v4329 = vmul.f32 %v4320, %v4323
    %v4330 = vmul.f32 %v4321, %v4324
    %v4332 = vperm.slane %v4271, 0
    %v4333 = vperm.slane %v4271, 1
    %v4336 = vadd.f32 %v4327, %v4332
    %v4337 = vadd.f32 %v4328, %v4333
    %v4338 = vadd.f32 %v4329, %v4332
    %v4339 = vadd.f32 %v4330, %v4333
    %v4340 = vpack.c.bf16 %v4338, %v4336
    %v4341 = vpack.c.bf16 %v4339, %v4337
    %v4342 = vld [vmem:[#allocation10] sm:$0xff]
    %v4343 = vld [vmem:[#allocation10 + $0x8] sm:$0xff]
    %v4344 = vld [vmem:[#allocation10 + $0x10] sm:$0xff]
    %v4345 = vld [vmem:[#allocation10 + $0x18] sm:$0xff]
    %v4346 = vld [vmem:[#allocation10 + $0x20] sm:$0xff]
    %v4347 = vld [vmem:[#allocation10 + $0x28] sm:$0xff]
    %v4348 = vld [vmem:[#allocation10 + $0x30] sm:$0xff]
    %v4349 = vld [vmem:[#allocation10 + $0x38] sm:$0xff]
    %v4350 = vld [vmem:[#allocation10 + $0x40] sm:$0xff]
    %v4351 = vld [vmem:[#allocation10 + $0x48] sm:$0xff]
    %v4352 = vld [vmem:[#allocation10 + $0x50] sm:$0xff]
    %v4353 = vld [vmem:[#allocation10 + $0x58] sm:$0xff]
    %v4354 = vld [vmem:[#allocation10 + $0x60] sm:$0xff]
    %v4355 = vld [vmem:[#allocation10 + $0x68] sm:$0xff]
    %v4356 = vld [vmem:[#allocation10 + $0x70] sm:$0xff]
    %v4357 = vld [vmem:[#allocation10 + $0x78] sm:$0xff]
    %v4358 = vld [vmem:[#allocation10 + $0x80] sm:$0xff]
    %v4359 = vld [vmem:[#allocation10 + $0x88] sm:$0xff]
    %v4360 = vld [vmem:[#allocation10 + $0x90] sm:$0xff]
    %v4361 = vld [vmem:[#allocation10 + $0x98] sm:$0xff]
    %v4362 = vld [vmem:[#allocation10 + $0xa0] sm:$0xff]
    %v4363 = vld [vmem:[#allocation10 + $0xa8] sm:$0xff]
    %v4364 = vld [vmem:[#allocation10 + $0xb0] sm:$0xff]
    %v4365 = vld [vmem:[#allocation10 + $0xb8] sm:$0xff]
    %v4366 = vld [vmem:[#allocation10 + $0xc0] sm:$0xff]
    %v4367 = vld [vmem:[#allocation10 + $0xc8] sm:$0xff]
    %v4368 = vld [vmem:[#allocation10 + $0xd0] sm:$0xff]
    %v4369 = vld [vmem:[#allocation10 + $0xd8] sm:$0xff]
    %v4370 = vld [vmem:[#allocation10 + $0xe0] sm:$0xff]
    %v4371 = vld [vmem:[#allocation10 + $0xe8] sm:$0xff]
    %v4372 = vld [vmem:[#allocation10 + $0xf0] sm:$0xff]
    %v4373 = vld [vmem:[#allocation10 + $0xf8] sm:$0xff]
    %v4374 = vld [vmem:[#allocation10 + $0x100] sm:$0xff]
    %v4375 = vld [vmem:[#allocation10 + $0x108] sm:$0xff]
    %v4376 = vld [vmem:[#allocation10 + $0x110] sm:$0xff]
    %v4377 = vld [vmem:[#allocation10 + $0x118] sm:$0xff]
    %v4378 = vld [vmem:[#allocation10 + $0x120] sm:$0xff]
    %v4379 = vld [vmem:[#allocation10 + $0x128] sm:$0xff]
    %v4380 = vld [vmem:[#allocation10 + $0x130] sm:$0xff]
    %v4381 = vld [vmem:[#allocation10 + $0x138] sm:$0xff]
    %v4382 = vld [vmem:[#allocation10 + $0x140] sm:$0xff]
    %v4383 = vld [vmem:[#allocation10 + $0x148] sm:$0xff]
    %v4384 = vld [vmem:[#allocation10 + $0x150] sm:$0xff]
    %v4385 = vld [vmem:[#allocation10 + $0x158] sm:$0xff]
    %v4386 = vld [vmem:[#allocation10 + $0x160] sm:$0xff]
    %v4387 = vld [vmem:[#allocation10 + $0x168] sm:$0xff]
    %v4388 = vld [vmem:[#allocation10 + $0x170] sm:$0xff]
    %v4389 = vld [vmem:[#allocation10 + $0x178] sm:$0xff]
    %v4390 = vld [vmem:[#allocation10 + $0x180] sm:$0xff]
    %v4391 = vld [vmem:[#allocation10 + $0x188] sm:$0xff]
    %v4392 = vld [vmem:[#allocation10 + $0x190] sm:$0xff]
    %v4393 = vld [vmem:[#allocation10 + $0x198] sm:$0xff]
    %v4394 = vld [vmem:[#allocation10 + $0x1a0] sm:$0xff]
    %v4395 = vld [vmem:[#allocation10 + $0x1a8] sm:$0xff]
    %v4396 = vld [vmem:[#allocation10 + $0x1b0] sm:$0xff]
    %v4397 = vld [vmem:[#allocation10 + $0x1b8] sm:$0xff]
    %v4398 = vld [vmem:[#allocation10 + $0x1c0] sm:$0xff]
    %v4399 = vld [vmem:[#allocation10 + $0x1c8] sm:$0xff]
    %v4400 = vld [vmem:[#allocation10 + $0x1d0] sm:$0xff]
    %v4401 = vld [vmem:[#allocation10 + $0x1d8] sm:$0xff]
    %v4402 = vld [vmem:[#allocation10 + $0x1e0] sm:$0xff]
    %v4403 = vld [vmem:[#allocation10 + $0x1e8] sm:$0xff]
    %v4404 = vld [vmem:[#allocation10 + $0x1f0] sm:$0xff]
    %v4405 = vld [vmem:[#allocation10 + $0x1f8] sm:$0xff]
    %v4406 = vld [vmem:[%s21] sm:$0xf]
    %v4408 = vperm.slane %v4406, 0
    %v4409 = vperm.slane %v4406, 1
    %v4410 = vperm.slane %v4406, 2
    %v4411 = vperm.slane %v4406, 3
    %v4480 = vunpack.c.l.b16 %v4342
    %v4481 = vunpack.c.h.b16 %v4342
    %v4482 = vunpack.c.l.b16 %v4343
    %v4483 = vunpack.c.h.b16 %v4343
    %v4484 = vunpack.c.l.b16 %v4344
    %v4485 = vunpack.c.h.b16 %v4344
    %v4486 = vunpack.c.l.b16 %v4345
    %v4487 = vunpack.c.h.b16 %v4345
    %v4488 = vunpack.c.l.b16 %v4346
    %v4489 = vunpack.c.h.b16 %v4346
    %v4490 = vunpack.c.l.b16 %v4347
    %v4491 = vunpack.c.h.b16 %v4347
    %v4492 = vunpack.c.l.b16 %v4348
    %v4493 = vunpack.c.h.b16 %v4348
    %v4494 = vunpack.c.l.b16 %v4349
    %v4495 = vunpack.c.h.b16 %v4349
    %v4496 = vunpack.c.l.b16 %v4350
    %v4497 = vunpack.c.h.b16 %v4350
    %v4498 = vunpack.c.l.b16 %v4351
    %v4499 = vunpack.c.h.b16 %v4351
    %v4500 = vunpack.c.l.b16 %v4352
    %v4501 = vunpack.c.h.b16 %v4352
    %v4502 = vunpack.c.l.b16 %v4353
    %v4503 = vunpack.c.h.b16 %v4353
    %v4504 = vunpack.c.l.b16 %v4354
    %v4505 = vunpack.c.h.b16 %v4354
    %v4506 = vunpack.c.l.b16 %v4355
    %v4507 = vunpack.c.h.b16 %v4355
    %v4508 = vunpack.c.l.b16 %v4356
    %v4509 = vunpack.c.h.b16 %v4356
    %v4510 = vunpack.c.l.b16 %v4357
    %v4511 = vunpack.c.h.b16 %v4357
    %v4512 = vunpack.c.l.b16 %v4358
    %v4513 = vunpack.c.h.b16 %v4358
    %v4514 = vunpack.c.l.b16 %v4359
    %v4515 = vunpack.c.h.b16 %v4359
    %v4516 = vunpack.c.l.b16 %v4360
    %v4517 = vunpack.c.h.b16 %v4360
    %v4518 = vunpack.c.l.b16 %v4361
    %v4519 = vunpack.c.h.b16 %v4361
    %v4520 = vunpack.c.l.b16 %v4362
    %v4521 = vunpack.c.h.b16 %v4362
    %v4522 = vunpack.c.l.b16 %v4363
    %v4523 = vunpack.c.h.b16 %v4363
    %v4524 = vunpack.c.l.b16 %v4364
    %v4525 = vunpack.c.h.b16 %v4364
    %v4526 = vunpack.c.l.b16 %v4365
    %v4527 = vunpack.c.h.b16 %v4365
    %v4528 = vunpack.c.l.b16 %v4366
    %v4529 = vunpack.c.h.b16 %v4366
    %v4530 = vunpack.c.l.b16 %v4367
    %v4531 = vunpack.c.h.b16 %v4367
    %v4532 = vunpack.c.l.b16 %v4368
    %v4533 = vunpack.c.h.b16 %v4368
    %v4534 = vunpack.c.l.b16 %v4369
    %v4535 = vunpack.c.h.b16 %v4369
    %v4536 = vunpack.c.l.b16 %v4370
    %v4537 = vunpack.c.h.b16 %v4370
    %v4538 = vunpack.c.l.b16 %v4371
    %v4539 = vunpack.c.h.b16 %v4371
    %v4540 = vunpack.c.l.b16 %v4372
    %v4541 = vunpack.c.h.b16 %v4372
    %v4542 = vunpack.c.l.b16 %v4373
    %v4543 = vunpack.c.h.b16 %v4373
    %v4544 = vunpack.c.l.b16 %v4374
    %v4545 = vunpack.c.h.b16 %v4374
    %v4546 = vunpack.c.l.b16 %v4375
    %v4547 = vunpack.c.h.b16 %v4375
    %v4548 = vunpack.c.l.b16 %v4376
    %v4549 = vunpack.c.h.b16 %v4376
    %v4550 = vunpack.c.l.b16 %v4377
    %v4551 = vunpack.c.h.b16 %v4377
    %v4552 = vunpack.c.l.b16 %v4378
    %v4553 = vunpack.c.h.b16 %v4378
    %v4554 = vunpack.c.l.b16 %v4379
    %v4555 = vunpack.c.h.b16 %v4379
    %v4556 = vunpack.c.l.b16 %v4380
    %v4557 = vunpack.c.h.b16 %v4380
    %v4558 = vunpack.c.l.b16 %v4381
    %v4559 = vunpack.c.h.b16 %v4381
    %v4560 = vunpack.c.l.b16 %v4382
    %v4561 = vunpack.c.h.b16 %v4382
    %v4562 = vunpack.c.l.b16 %v4383
    %v4563 = vunpack.c.h.b16 %v4383
    %v4564 = vunpack.c.l.b16 %v4384
    %v4565 = vunpack.c.h.b16 %v4384
    %v4566 = vunpack.c.l.b16 %v4385
    %v4567 = vunpack.c.h.b16 %v4385
    %v4568 = vunpack.c.l.b16 %v4386
    %v4569 = vunpack.c.h.b16 %v4386
    %v4570 = vunpack.c.l.b16 %v4387
    %v4571 = vunpack.c.h.b16 %v4387
    %v4572 = vunpack.c.l.b16 %v4388
    %v4573 = vunpack.c.h.b16 %v4388
    %v4574 = vunpack.c.l.b16 %v4389
    %v4575 = vunpack.c.h.b16 %v4389
    %v4576 = vunpack.c.l.b16 %v4390
    %v4577 = vunpack.c.h.b16 %v4390
    %v4578 = vunpack.c.l.b16 %v4391
    %v4579 = vunpack.c.h.b16 %v4391
    %v4580 = vunpack.c.l.b16 %v4392
    %v4581 = vunpack.c.h.b16 %v4392
    %v4582 = vunpack.c.l.b16 %v4393
    %v4583 = vunpack.c.h.b16 %v4393
    %v4584 = vunpack.c.l.b16 %v4394
    %v4585 = vunpack.c.h.b16 %v4394
    %v4586 = vunpack.c.l.b16 %v4395
    %v4587 = vunpack.c.h.b16 %v4395
    %v4588 = vunpack.c.l.b16 %v4396
    %v4589 = vunpack.c.h.b16 %v4396
    %v4590 = vunpack.c.l.b16 %v4397
    %v4591 = vunpack.c.h.b16 %v4397
    %v4592 = vunpack.c.l.b16 %v4398
    %v4593 = vunpack.c.h.b16 %v4398
    %v4594 = vunpack.c.l.b16 %v4399
    %v4595 = vunpack.c.h.b16 %v4399
    %v4596 = vunpack.c.l.b16 %v4400
    %v4597 = vunpack.c.h.b16 %v4400
    %v4598 = vunpack.c.l.b16 %v4401
    %v4599 = vunpack.c.h.b16 %v4401
    %v4600 = vunpack.c.l.b16 %v4402
    %v4601 = vunpack.c.h.b16 %v4402
    %v4602 = vunpack.c.l.b16 %v4403
    %v4603 = vunpack.c.h.b16 %v4403
    %v4604 = vunpack.c.l.b16 %v4404
    %v4605 = vunpack.c.h.b16 %v4404
    %v4606 = vunpack.c.l.b16 %v4405
    %v4607 = vunpack.c.h.b16 %v4405
    %v4608 = vpack.c.b16 %v4484, %v4480
    %v4609 = vpack.c.b16 %v4485, %v4481
    %v4610 = vpack.c.b16 %v4486, %v4482
    %v4611 = vpack.c.b16 %v4487, %v4483
    %v4612 = vpack.c.b16 %v4492, %v4488
    %v4613 = vpack.c.b16 %v4493, %v4489
    %v4614 = vpack.c.b16 %v4494, %v4490
    %v4615 = vpack.c.b16 %v4495, %v4491
    %v4616 = vpack.c.b16 %v4500, %v4496
    %v4617 = vpack.c.b16 %v4501, %v4497
    %v4618 = vpack.c.b16 %v4502, %v4498
    %v4619 = vpack.c.b16 %v4503, %v4499
    %v4620 = vpack.c.b16 %v4508, %v4504
    %v4621 = vpack.c.b16 %v4509, %v4505
    %v4622 = vpack.c.b16 %v4510, %v4506
    %v4623 = vpack.c.b16 %v4511, %v4507
    %v4624 = vpack.c.b16 %v4516, %v4512
    %v4625 = vpack.c.b16 %v4517, %v4513
    %v4626 = vpack.c.b16 %v4518, %v4514
    %v4627 = vpack.c.b16 %v4519, %v4515
    %v4628 = vpack.c.b16 %v4524, %v4520
    %v4629 = vpack.c.b16 %v4525, %v4521
    %v4630 = vpack.c.b16 %v4526, %v4522
    %v4631 = vpack.c.b16 %v4527, %v4523
    %v4632 = vpack.c.b16 %v4532, %v4528
    %v4633 = vpack.c.b16 %v4533, %v4529
    %v4634 = vpack.c.b16 %v4534, %v4530
    %v4635 = vpack.c.b16 %v4535, %v4531
    %v4636 = vpack.c.b16 %v4540, %v4536
    %v4637 = vpack.c.b16 %v4541, %v4537
    %v4638 = vpack.c.b16 %v4542, %v4538
    %v4639 = vpack.c.b16 %v4543, %v4539
    %v4640 = vpack.c.b16 %v4548, %v4544
    %v4641 = vpack.c.b16 %v4549, %v4545
    %v4642 = vpack.c.b16 %v4550, %v4546
    %v4643 = vpack.c.b16 %v4551, %v4547
    %v4644 = vpack.c.b16 %v4556, %v4552
    %v4645 = vpack.c.b16 %v4557, %v4553
    %v4646 = vpack.c.b16 %v4558, %v4554
    %v4647 = vpack.c.b16 %v4559, %v4555
    %v4648 = vpack.c.b16 %v4564, %v4560
    %v4649 = vpack.c.b16 %v4565, %v4561
    %v4650 = vpack.c.b16 %v4566, %v4562
    %v4651 = vpack.c.b16 %v4567, %v4563
    %v4652 = vpack.c.b16 %v4572, %v4568
    %v4653 = vpack.c.b16 %v4573, %v4569
    %v4654 = vpack.c.b16 %v4574, %v4570
    %v4655 = vpack.c.b16 %v4575, %v4571
    %v4656 = vpack.c.b16 %v4580, %v4576
    %v4657 = vpack.c.b16 %v4581, %v4577
    %v4658 = vpack.c.b16 %v4582, %v4578
    %v4659 = vpack.c.b16 %v4583, %v4579
    %v4660 = vpack.c.b16 %v4588, %v4584
    %v4661 = vpack.c.b16 %v4589, %v4585
    %v4662 = vpack.c.b16 %v4590, %v4586
    %v4663 = vpack.c.b16 %v4591, %v4587
    %v4664 = vpack.c.b16 %v4596, %v4592
    %v4665 = vpack.c.b16 %v4597, %v4593
    %v4666 = vpack.c.b16 %v4598, %v4594
    %v4667 = vpack.c.b16 %v4599, %v4595
    %v4668 = vpack.c.b16 %v4604, %v4600
    %v4669 = vpack.c.b16 %v4605, %v4601
    %v4670 = vpack.c.b16 %v4606, %v4602
    %v4671 = vpack.c.b16 %v4607, %v4603
    %4736 = vmatpush.bf16.msra.mxu0 %v4636
    %4737 = vmatpush.bf16.msra.mxu0 %v4632
    %4738 = vmatpush.bf16.msra.mxu0 %v4628
    %4739 = vmatpush.bf16.msra.mxu0 %v4624
    %4740 = vmatpush.bf16.msra.mxu0 %v4620
    %4741 = vmatpush.bf16.msra.mxu0 %v4616
    %4742 = vmatpush.bf16.msra.mxu0 %v4612
    %4743 = vmatpush.bf16.msra.mxu0 %v4608
    %4744 = vmatmul.bf16.gmra.mxu0 %v4340
    %v4745 = vpop.f32.mrf.mxu0
    %v4746 = vadd.f32 %v4408, %v4745
    %v4747 = vpop.f32.mrf.mxu0
    %v4748 = vadd.f32 %v4408, %v4747
    %4749 = vdwg.mxu0
    %4750 = vmatpush.bf16.msra.mxu0 %v4668
    %4751 = vmatpush.bf16.msra.mxu0 %v4664
    %4752 = vmatpush.bf16.msra.mxu0 %v4660
    %4753 = vmatpush.bf16.msra.mxu0 %v4656
    %4754 = vmatpush.bf16.msra.mxu0 %v4652
    %4755 = vmatpush.bf16.msra.mxu0 %v4648
    %4756 = vmatpush.bf16.msra.mxu0 %v4644
    %4757 = vmatpush.bf16.msra.mxu0 %v4640
    %4758 = vmatmul.bf16.gmra.mxu0 %v4341
    %v4759 = vpop.f32.mrf.mxu0
    %v4760 = vadd.f32 %v4746, %v4759
    %v4761 = vpop.f32.mrf.mxu0
    %v4762 = vadd.f32 %v4748, %v4761
    %4763 = vdwg.mxu0
    %4764 = vmatpush.bf16.msra.mxu0 %v4637
    %4765 = vmatpush.bf16.msra.mxu0 %v4633
    %4766 = vmatpush.bf16.msra.mxu0 %v4629
    %4767 = vmatpush.bf16.msra.mxu0 %v4625
    %4768 = vmatpush.bf16.msra.mxu0 %v4621
    %4769 = vmatpush.bf16.msra.mxu0 %v4617
    %4770 = vmatpush.bf16.msra.mxu0 %v4613
    %4771 = vmatpush.bf16.msra.mxu0 %v4609
    %4772 = vmatmul.bf16.gmra.mxu0 %v4340
    %v4773 = vpop.f32.mrf.mxu0
    %v4774 = vadd.f32 %v4409, %v4773
    %v4775 = vpop.f32.mrf.mxu0
    %v4776 = vadd.f32 %v4409, %v4775
    %4777 = vdwg.mxu0
    %4778 = vmatpush.bf16.msra.mxu0 %v4669
    %4779 = vmatpush.bf16.msra.mxu0 %v4665
    %4780 = vmatpush.bf16.msra.mxu0 %v4661
    %4781 = vmatpush.bf16.msra.mxu0 %v4657
    %4782 = vmatpush.bf16.msra.mxu0 %v4653
    %4783 = vmatpush.bf16.msra.mxu0 %v4649
    %4784 = vmatpush.bf16.msra.mxu0 %v4645
    %4785 = vmatpush.bf16.msra.mxu0 %v4641
    %4786 = vmatmul.bf16.gmra.mxu0 %v4341
    %v4787 = vpop.f32.mrf.mxu0
    %v4788 = vadd.f32 %v4774, %v4787
    %v4789 = vpop.f32.mrf.mxu0
    %v4790 = vadd.f32 %v4776, %v4789
    %4791 = vdwg.mxu0
    %4792 = vmatpush.bf16.msra.mxu0 %v4638
    %4793 = vmatpush.bf16.msra.mxu0 %v4634
    %4794 = vmatpush.bf16.msra.mxu0 %v4630
    %4795 = vmatpush.bf16.msra.mxu0 %v4626
    %4796 = vmatpush.bf16.msra.mxu0 %v4622
    %4797 = vmatpush.bf16.msra.mxu0 %v4618
    %4798 = vmatpush.bf16.msra.mxu0 %v4614
    %4799 = vmatpush.bf16.msra.mxu0 %v4610
    %4800 = vmatmul.bf16.gmra.mxu0 %v4340
    %v4801 = vpop.f32.mrf.mxu0
    %v4802 = vadd.f32 %v4410, %v4801
    %v4803 = vpop.f32.mrf.mxu0
    %v4804 = vadd.f32 %v4410, %v4803
    %4805 = vdwg.mxu0
    %4806 = vmatpush.bf16.msra.mxu0 %v4670
    %4807 = vmatpush.bf16.msra.mxu0 %v4666
    %4808 = vmatpush.bf16.msra.mxu0 %v4662
    %4809 = vmatpush.bf16.msra.mxu0 %v4658
    %4810 = vmatpush.bf16.msra.mxu0 %v4654
    %4811 = vmatpush.bf16.msra.mxu0 %v4650
    %4812 = vmatpush.bf16.msra.mxu0 %v4646
    %4813 = vmatpush.bf16.msra.mxu0 %v4642
    %4814 = vmatmul.bf16.gmra.mxu0 %v4341
    %v4815 = vpop.f32.mrf.mxu0
    %v4816 = vadd.f32 %v4802, %v4815
    %v4817 = vpop.f32.mrf.mxu0
    %v4818 = vadd.f32 %v4804, %v4817
    %4819 = vdwg.mxu0
    %4820 = vmatpush.bf16.msra.mxu0 %v4639
    %4821 = vmatpush.bf16.msra.mxu0 %v4635
    %4822 = vmatpush.bf16.msra.mxu0 %v4631
    %4823 = vmatpush.bf16.msra.mxu0 %v4627
    %4824 = vmatpush.bf16.msra.mxu0 %v4623
    %4825 = vmatpush.bf16.msra.mxu0 %v4619
    %4826 = vmatpush.bf16.msra.mxu0 %v4615
    %4827 = vmatpush.bf16.msra.mxu0 %v4611
    %4828 = vmatmul.bf16.gmra.mxu0 %v4340
    %v4829 = vpop.f32.mrf.mxu0
    %v4830 = vadd.f32 %v4411, %v4829
    %v4831 = vpop.f32.mrf.mxu0
    %v4832 = vadd.f32 %v4411, %v4831
    %4833 = vdwg.mxu0
    %4834 = vmatpush.bf16.msra.mxu0 %v4671
    %4835 = vmatpush.bf16.msra.mxu0 %v4667
    %4836 = vmatpush.bf16.msra.mxu0 %v4663
    %4837 = vmatpush.bf16.msra.mxu0 %v4659
    %4838 = vmatpush.bf16.msra.mxu0 %v4655
    %4839 = vmatpush.bf16.msra.mxu0 %v4651
    %4840 = vmatpush.bf16.msra.mxu0 %v4647
    %4841 = vmatpush.bf16.msra.mxu0 %v4643
    %4842 = vmatmul.bf16.gmra.mxu0 %v4341
    %v4843 = vpop.f32.mrf.mxu0
    %v4844 = vadd.f32 %v4830, %v4843
    %v4845 = vpop.f32.mrf.mxu0
    %v4846 = vadd.f32 %v4832, %v4845
    %4847 = vdwg.mxu0
    %v4848 = vmax.f32 %v4760, 0.0
    %v4849 = vmax.f32 %v4788, 0.0
    %v4850 = vmax.f32 %v4816, 0.0
    %v4851 = vmax.f32 %v4844, 0.0
    %v4852 = vmax.f32 %v4762, 0.0
    %v4853 = vmax.f32 %v4790, 0.0
    %v4854 = vmax.f32 %v4818, 0.0
    %v4855 = vmax.f32 %v4846, 0.0
    %v4856 = vpack.c.bf16 %v4852, %v4848
    %v4857 = vpack.c.bf16 %v4853, %v4849
    %v4858 = vpack.c.bf16 %v4854, %v4850
    %v4859 = vpack.c.bf16 %v4855, %v4851
    %v4860 = vld [vmem:[#allocation12] sm:$0xff]
    %v4861 = vld [vmem:[#allocation12 + $0x8] sm:$0xff]
    %v4862 = vld [vmem:[#allocation12 + $0x10] sm:$0xff]
    %v4863 = vld [vmem:[#allocation12 + $0x18] sm:$0xff]
    %v4864 = vld [vmem:[#allocation12 + $0x20] sm:$0xff]
    %v4865 = vld [vmem:[#allocation12 + $0x28] sm:$0xff]
    %v4866 = vld [vmem:[#allocation12 + $0x30] sm:$0xff]
    %v4867 = vld [vmem:[#allocation12 + $0x38] sm:$0xff]
    %v4868 = vld [vmem:[#allocation12 + $0x40] sm:$0xff]
    %v4869 = vld [vmem:[#allocation12 + $0x48] sm:$0xff]
    %v4870 = vld [vmem:[#allocation12 + $0x50] sm:$0xff]
    %v4871 = vld [vmem:[#allocation12 + $0x58] sm:$0xff]
    %v4872 = vld [vmem:[#allocation12 + $0x60] sm:$0xff]
    %v4873 = vld [vmem:[#allocation12 + $0x68] sm:$0xff]
    %v4874 = vld [vmem:[#allocation12 + $0x70] sm:$0xff]
    %v4875 = vld [vmem:[#allocation12 + $0x78] sm:$0xff]
    %v4876 = vld [vmem:[#allocation12 + $0x80] sm:$0xff]
    %v4877 = vld [vmem:[#allocation12 + $0x88] sm:$0xff]
    %v4878 = vld [vmem:[#allocation12 + $0x90] sm:$0xff]
    %v4879 = vld [vmem:[#allocation12 + $0x98] sm:$0xff]
    %v4880 = vld [vmem:[#allocation12 + $0xa0] sm:$0xff]
    %v4881 = vld [vmem:[#allocation12 + $0xa8] sm:$0xff]
    %v4882 = vld [vmem:[#allocation12 + $0xb0] sm:$0xff]
    %v4883 = vld [vmem:[#allocation12 + $0xb8] sm:$0xff]
    %v4884 = vld [vmem:[#allocation12 + $0xc0] sm:$0xff]
    %v4885 = vld [vmem:[#allocation12 + $0xc8] sm:$0xff]
    %v4886 = vld [vmem:[#allocation12 + $0xd0] sm:$0xff]
    %v4887 = vld [vmem:[#allocation12 + $0xd8] sm:$0xff]
    %v4888 = vld [vmem:[#allocation12 + $0xe0] sm:$0xff]
    %v4889 = vld [vmem:[#allocation12 + $0xe8] sm:$0xff]
    %v4890 = vld [vmem:[#allocation12 + $0xf0] sm:$0xff]
    %v4891 = vld [vmem:[#allocation12 + $0xf8] sm:$0xff]
    %v4892 = vld [vmem:[#allocation12 + $0x100] sm:$0xff]
    %v4893 = vld [vmem:[#allocation12 + $0x108] sm:$0xff]
    %v4894 = vld [vmem:[#allocation12 + $0x110] sm:$0xff]
    %v4895 = vld [vmem:[#allocation12 + $0x118] sm:$0xff]
    %v4896 = vld [vmem:[#allocation12 + $0x120] sm:$0xff]
    %v4897 = vld [vmem:[#allocation12 + $0x128] sm:$0xff]
    %v4898 = vld [vmem:[#allocation12 + $0x130] sm:$0xff]
    %v4899 = vld [vmem:[#allocation12 + $0x138] sm:$0xff]
    %v4900 = vld [vmem:[#allocation12 + $0x140] sm:$0xff]
    %v4901 = vld [vmem:[#allocation12 + $0x148] sm:$0xff]
    %v4902 = vld [vmem:[#allocation12 + $0x150] sm:$0xff]
    %v4903 = vld [vmem:[#allocation12 + $0x158] sm:$0xff]
    %v4904 = vld [vmem:[#allocation12 + $0x160] sm:$0xff]
    %v4905 = vld [vmem:[#allocation12 + $0x168] sm:$0xff]
    %v4906 = vld [vmem:[#allocation12 + $0x170] sm:$0xff]
    %v4907 = vld [vmem:[#allocation12 + $0x178] sm:$0xff]
    %v4908 = vld [vmem:[#allocation12 + $0x180] sm:$0xff]
    %v4909 = vld [vmem:[#allocation12 + $0x188] sm:$0xff]
    %v4910 = vld [vmem:[#allocation12 + $0x190] sm:$0xff]
    %v4911 = vld [vmem:[#allocation12 + $0x198] sm:$0xff]
    %v4912 = vld [vmem:[#allocation12 + $0x1a0] sm:$0xff]
    %v4913 = vld [vmem:[#allocation12 + $0x1a8] sm:$0xff]
    %v4914 = vld [vmem:[#allocation12 + $0x1b0] sm:$0xff]
    %v4915 = vld [vmem:[#allocation12 + $0x1b8] sm:$0xff]
    %v4916 = vld [vmem:[#allocation12 + $0x1c0] sm:$0xff]
    %v4917 = vld [vmem:[#allocation12 + $0x1c8] sm:$0xff]
    %v4918 = vld [vmem:[#allocation12 + $0x1d0] sm:$0xff]
    %v4919 = vld [vmem:[#allocation12 + $0x1d8] sm:$0xff]
    %v4920 = vld [vmem:[#allocation12 + $0x1e0] sm:$0xff]
    %v4921 = vld [vmem:[#allocation12 + $0x1e8] sm:$0xff]
    %v4922 = vld [vmem:[#allocation12 + $0x1f0] sm:$0xff]
    %v4923 = vld [vmem:[#allocation12 + $0x1f8] sm:$0xff]
    %v4924 = vld [vmem:[%s23] sm:$0x3]
    %v4926 = vperm.slane %v4924, 0
    %v4927 = vperm.slane %v4924, 1
    %v4994 = vunpack.c.l.b16 %v4860
    %v4995 = vunpack.c.h.b16 %v4860
    %v4996 = vunpack.c.l.b16 %v4861
    %v4997 = vunpack.c.h.b16 %v4861
    %v4998 = vunpack.c.l.b16 %v4862
    %v4999 = vunpack.c.h.b16 %v4862
    %v5000 = vunpack.c.l.b16 %v4863
    %v5001 = vunpack.c.h.b16 %v4863
    %v5002 = vunpack.c.l.b16 %v4864
    %v5003 = vunpack.c.h.b16 %v4864
    %v5004 = vunpack.c.l.b16 %v4865
    %v5005 = vunpack.c.h.b16 %v4865
    %v5006 = vunpack.c.l.b16 %v4866
    %v5007 = vunpack.c.h.b16 %v4866
    %v5008 = vunpack.c.l.b16 %v4867
    %v5009 = vunpack.c.h.b16 %v4867
    %v5010 = vunpack.c.l.b16 %v4868
    %v5011 = vunpack.c.h.b16 %v4868
    %v5012 = vunpack.c.l.b16 %v4869
    %v5013 = vunpack.c.h.b16 %v4869
    %v5014 = vunpack.c.l.b16 %v4870
    %v5015 = vunpack.c.h.b16 %v4870
    %v5016 = vunpack.c.l.b16 %v4871
    %v5017 = vunpack.c.h.b16 %v4871
    %v5018 = vunpack.c.l.b16 %v4872
    %v5019 = vunpack.c.h.b16 %v4872
    %v5020 = vunpack.c.l.b16 %v4873
    %v5021 = vunpack.c.h.b16 %v4873
    %v5022 = vunpack.c.l.b16 %v4874
    %v5023 = vunpack.c.h.b16 %v4874
    %v5024 = vunpack.c.l.b16 %v4875
    %v5025 = vunpack.c.h.b16 %v4875
    %v5026 = vunpack.c.l.b16 %v4876
    %v5027 = vunpack.c.h.b16 %v4876
    %v5028 = vunpack.c.l.b16 %v4877
    %v5029 = vunpack.c.h.b16 %v4877
    %v5030 = vunpack.c.l.b16 %v4878
    %v5031 = vunpack.c.h.b16 %v4878
    %v5032 = vunpack.c.l.b16 %v4879
    %v5033 = vunpack.c.h.b16 %v4879
    %v5034 = vunpack.c.l.b16 %v4880
    %v5035 = vunpack.c.h.b16 %v4880
    %v5036 = vunpack.c.l.b16 %v4881
    %v5037 = vunpack.c.h.b16 %v4881
    %v5038 = vunpack.c.l.b16 %v4882
    %v5039 = vunpack.c.h.b16 %v4882
    %v5040 = vunpack.c.l.b16 %v4883
    %v5041 = vunpack.c.h.b16 %v4883
    %v5042 = vunpack.c.l.b16 %v4884
    %v5043 = vunpack.c.h.b16 %v4884
    %v5044 = vunpack.c.l.b16 %v4885
    %v5045 = vunpack.c.h.b16 %v4885
    %v5046 = vunpack.c.l.b16 %v4886
    %v5047 = vunpack.c.h.b16 %v4886
    %v5048 = vunpack.c.l.b16 %v4887
    %v5049 = vunpack.c.h.b16 %v4887
    %v5050 = vunpack.c.l.b16 %v4888
    %v5051 = vunpack.c.h.b16 %v4888
    %v5052 = vunpack.c.l.b16 %v4889
    %v5053 = vunpack.c.h.b16 %v4889
    %v5054 = vunpack.c.l.b16 %v4890
    %v5055 = vunpack.c.h.b16 %v4890
    %v5056 = vunpack.c.l.b16 %v4891
    %v5057 = vunpack.c.h.b16 %v4891
    %v5058 = vunpack.c.l.b16 %v4892
    %v5059 = vunpack.c.h.b16 %v4892
    %v5060 = vunpack.c.l.b16 %v4893
    %v5061 = vunpack.c.h.b16 %v4893
    %v5062 = vunpack.c.l.b16 %v4894
    %v5063 = vunpack.c.h.b16 %v4894
    %v5064 = vunpack.c.l.b16 %v4895
    %v5065 = vunpack.c.h.b16 %v4895
    %v5066 = vunpack.c.l.b16 %v4896
    %v5067 = vunpack.c.h.b16 %v4896
    %v5068 = vunpack.c.l.b16 %v4897
    %v5069 = vunpack.c.h.b16 %v4897
    %v5070 = vunpack.c.l.b16 %v4898
    %v5071 = vunpack.c.h.b16 %v4898
    %v5072 = vunpack.c.l.b16 %v4899
    %v5073 = vunpack.c.h.b16 %v4899
    %v5074 = vunpack.c.l.b16 %v4900
    %v5075 = vunpack.c.h.b16 %v4900
    %v5076 = vunpack.c.l.b16 %v4901
    %v5077 = vunpack.c.h.b16 %v4901
    %v5078 = vunpack.c.l.b16 %v4902
    %v5079 = vunpack.c.h.b16 %v4902
    %v5080 = vunpack.c.l.b16 %v4903
    %v5081 = vunpack.c.h.b16 %v4903
    %v5082 = vunpack.c.l.b16 %v4904
    %v5083 = vunpack.c.h.b16 %v4904
    %v5084 = vunpack.c.l.b16 %v4905
    %v5085 = vunpack.c.h.b16 %v4905
    %v5086 = vunpack.c.l.b16 %v4906
    %v5087 = vunpack.c.h.b16 %v4906
    %v5088 = vunpack.c.l.b16 %v4907
    %v5089 = vunpack.c.h.b16 %v4907
    %v5090 = vunpack.c.l.b16 %v4908
    %v5091 = vunpack.c.h.b16 %v4908
    %v5092 = vunpack.c.l.b16 %v4909
    %v5093 = vunpack.c.h.b16 %v4909
    %v5094 = vunpack.c.l.b16 %v4910
    %v5095 = vunpack.c.h.b16 %v4910
    %v5096 = vunpack.c.l.b16 %v4911
    %v5097 = vunpack.c.h.b16 %v4911
    %v5098 = vunpack.c.l.b16 %v4912
    %v5099 = vunpack.c.h.b16 %v4912
    %v5100 = vunpack.c.l.b16 %v4913
    %v5101 = vunpack.c.h.b16 %v4913
    %v5102 = vunpack.c.l.b16 %v4914
    %v5103 = vunpack.c.h.b16 %v4914
    %v5104 = vunpack.c.l.b16 %v4915
    %v5105 = vunpack.c.h.b16 %v4915
    %v5106 = vunpack.c.l.b16 %v4916
    %v5107 = vunpack.c.h.b16 %v4916
    %v5108 = vunpack.c.l.b16 %v4917
    %v5109 = vunpack.c.h.b16 %v4917
    %v5110 = vunpack.c.l.b16 %v4918
    %v5111 = vunpack.c.h.b16 %v4918
    %v5112 = vunpack.c.l.b16 %v4919
    %v5113 = vunpack.c.h.b16 %v4919
    %v5114 = vunpack.c.l.b16 %v4920
    %v5115 = vunpack.c.h.b16 %v4920
    %v5116 = vunpack.c.l.b16 %v4921
    %v5117 = vunpack.c.h.b16 %v4921
    %v5118 = vunpack.c.l.b16 %v4922
    %v5119 = vunpack.c.h.b16 %v4922
    %v5120 = vunpack.c.l.b16 %v4923
    %v5121 = vunpack.c.h.b16 %v4923
    %v5122 = vpack.c.b16 %v4996, %v4994
    %v5123 = vpack.c.b16 %v4997, %v4995
    %v5124 = vpack.c.b16 %v5000, %v4998
    %v5125 = vpack.c.b16 %v5001, %v4999
    %v5126 = vpack.c.b16 %v5004, %v5002
    %v5127 = vpack.c.b16 %v5005, %v5003
    %v5128 = vpack.c.b16 %v5008, %v5006
    %v5129 = vpack.c.b16 %v5009, %v5007
    %v5130 = vpack.c.b16 %v5012, %v5010
    %v5131 = vpack.c.b16 %v5013, %v5011
    %v5132 = vpack.c.b16 %v5016, %v5014
    %v5133 = vpack.c.b16 %v5017, %v5015
    %v5134 = vpack.c.b16 %v5020, %v5018
    %v5135 = vpack.c.b16 %v5021, %v5019
    %v5136 = vpack.c.b16 %v5024, %v5022
    %v5137 = vpack.c.b16 %v5025, %v5023
    %v5138 = vpack.c.b16 %v5028, %v5026
    %v5139 = vpack.c.b16 %v5029, %v5027
    %v5140 = vpack.c.b16 %v5032, %v5030
    %v5141 = vpack.c.b16 %v5033, %v5031
    %v5142 = vpack.c.b16 %v5036, %v5034
    %v5143 = vpack.c.b16 %v5037, %v5035
    %v5144 = vpack.c.b16 %v5040, %v5038
    %v5145 = vpack.c.b16 %v5041, %v5039
    %v5146 = vpack.c.b16 %v5044, %v5042
    %v5147 = vpack.c.b16 %v5045, %v5043
    %v5148 = vpack.c.b16 %v5048, %v5046
    %v5149 = vpack.c.b16 %v5049, %v5047
    %v5150 = vpack.c.b16 %v5052, %v5050
    %v5151 = vpack.c.b16 %v5053, %v5051
    %v5152 = vpack.c.b16 %v5056, %v5054
    %v5153 = vpack.c.b16 %v5057, %v5055
    %v5154 = vpack.c.b16 %v5060, %v5058
    %v5155 = vpack.c.b16 %v5061, %v5059
    %v5156 = vpack.c.b16 %v5064, %v5062
    %v5157 = vpack.c.b16 %v5065, %v5063
    %v5158 = vpack.c.b16 %v5068, %v5066
    %v5159 = vpack.c.b16 %v5069, %v5067
    %v5160 = vpack.c.b16 %v5072, %v5070
    %v5161 = vpack.c.b16 %v5073, %v5071
    %v5162 = vpack.c.b16 %v5076, %v5074
    %v5163 = vpack.c.b16 %v5077, %v5075
    %v5164 = vpack.c.b16 %v5080, %v5078
    %v5165 = vpack.c.b16 %v5081, %v5079
    %v5166 = vpack.c.b16 %v5084, %v5082
    %v5167 = vpack.c.b16 %v5085, %v5083
    %v5168 = vpack.c.b16 %v5088, %v5086
    %v5169 = vpack.c.b16 %v5089, %v5087
    %v5170 = vpack.c.b16 %v5092, %v5090
    %v5171 = vpack.c.b16 %v5093, %v5091
    %v5172 = vpack.c.b16 %v5096, %v5094
    %v5173 = vpack.c.b16 %v5097, %v5095
    %v5174 = vpack.c.b16 %v5100, %v5098
    %v5175 = vpack.c.b16 %v5101, %v5099
    %v5176 = vpack.c.b16 %v5104, %v5102
    %v5177 = vpack.c.b16 %v5105, %v5103
    %v5178 = vpack.c.b16 %v5108, %v5106
    %v5179 = vpack.c.b16 %v5109, %v5107
    %v5180 = vpack.c.b16 %v5112, %v5110
    %v5181 = vpack.c.b16 %v5113, %v5111
    %v5182 = vpack.c.b16 %v5116, %v5114
    %v5183 = vpack.c.b16 %v5117, %v5115
    %v5184 = vpack.c.b16 %v5120, %v5118
    %v5185 = vpack.c.b16 %v5121, %v5119
    %5250 = vmatpush.bf16.msra.mxu0 %v5136
    %5251 = vmatpush.bf16.msra.mxu0 %v5134
    %5252 = vmatpush.bf16.msra.mxu0 %v5132
    %5253 = vmatpush.bf16.msra.mxu0 %v5130
    %5254 = vmatpush.bf16.msra.mxu0 %v5128
    %5255 = vmatpush.bf16.msra.mxu0 %v5126
    %5256 = vmatpush.bf16.msra.mxu0 %v5124
    %5257 = vmatpush.bf16.msra.mxu0 %v5122
    %5258 = vmatmul.bf16.gmra.mxu0 %v4856
    %v5259 = vpop.f32.mrf.mxu0
    %v5260 = vadd.f32 %v4926, %v5259
    %v5261 = vpop.f32.mrf.mxu0
    %v5262 = vadd.f32 %v4926, %v5261
    %5263 = vdwg.mxu0
    %5264 = vmatpush.bf16.msra.mxu0 %v5152
    %5265 = vmatpush.bf16.msra.mxu0 %v5150
    %5266 = vmatpush.bf16.msra.mxu0 %v5148
    %5267 = vmatpush.bf16.msra.mxu0 %v5146
    %5268 = vmatpush.bf16.msra.mxu0 %v5144
    %5269 = vmatpush.bf16.msra.mxu0 %v5142
    %5270 = vmatpush.bf16.msra.mxu0 %v5140
    %5271 = vmatpush.bf16.msra.mxu0 %v5138
    %5272 = vmatmul.bf16.gmra.mxu0 %v4857
    %v5273 = vpop.f32.mrf.mxu0
    %v5274 = vadd.f32 %v5260, %v5273
    %v5275 = vpop.f32.mrf.mxu0
    %v5276 = vadd.f32 %v5262, %v5275
    %5277 = vdwg.mxu0
    %5278 = vmatpush.bf16.msra.mxu0 %v5168
    %5279 = vmatpush.bf16.msra.mxu0 %v5166
    %5280 = vmatpush.bf16.msra.mxu0 %v5164
    %5281 = vmatpush.bf16.msra.mxu0 %v5162
    %5282 = vmatpush.bf16.msra.mxu0 %v5160
    %5283 = vmatpush.bf16.msra.mxu0 %v5158
    %5284 = vmatpush.bf16.msra.mxu0 %v5156
    %5285 = vmatpush.bf16.msra.mxu0 %v5154
    %5286 = vmatmul.bf16.gmra.mxu0 %v4858
    %v5287 = vpop.f32.mrf.mxu0
    %v5288 = vadd.f32 %v5274, %v5287
    %v5289 = vpop.f32.mrf.mxu0
    %v5290 = vadd.f32 %v5276, %v5289
    %5291 = vdwg.mxu0
    %5292 = vmatpush.bf16.msra.mxu0 %v5184
    %5293 = vmatpush.bf16.msra.mxu0 %v5182
    %5294 = vmatpush.bf16.msra.mxu0 %v5180
    %5295 = vmatpush.bf16.msra.mxu0 %v5178
    %5296 = vmatpush.bf16.msra.mxu0 %v5176
    %5297 = vmatpush.bf16.msra.mxu0 %v5174
    %5298 = vmatpush.bf16.msra.mxu0 %v5172
    %5299 = vmatpush.bf16.msra.mxu0 %v5170
    %5300 = vmatmul.bf16.gmra.mxu0 %v4859
    %v5301 = vpop.f32.mrf.mxu0
    %v5302 = vadd.f32 %v5288, %v5301
    %v5303 = vpop.f32.mrf.mxu0
    %v5304 = vadd.f32 %v5290, %v5303
    %5305 = vdwg.mxu0
    %5306 = vmatpush.bf16.msra.mxu0 %v5137
    %5307 = vmatpush.bf16.msra.mxu0 %v5135
    %5308 = vmatpush.bf16.msra.mxu0 %v5133
    %5309 = vmatpush.bf16.msra.mxu0 %v5131
    %5310 = vmatpush.bf16.msra.mxu0 %v5129
    %5311 = vmatpush.bf16.msra.mxu0 %v5127
    %5312 = vmatpush.bf16.msra.mxu0 %v5125
    %5313 = vmatpush.bf16.msra.mxu0 %v5123
    %5314 = vmatmul.bf16.gmra.mxu0 %v4856
    %v5315 = vpop.f32.mrf.mxu0
    %v5316 = vadd.f32 %v4927, %v5315
    %v5317 = vpop.f32.mrf.mxu0
    %v5318 = vadd.f32 %v4927, %v5317
    %5319 = vdwg.mxu0
    %5320 = vmatpush.bf16.msra.mxu0 %v5153
    %5321 = vmatpush.bf16.msra.mxu0 %v5151
    %5322 = vmatpush.bf16.msra.mxu0 %v5149
    %5323 = vmatpush.bf16.msra.mxu0 %v5147
    %5324 = vmatpush.bf16.msra.mxu0 %v5145
    %5325 = vmatpush.bf16.msra.mxu0 %v5143
    %5326 = vmatpush.bf16.msra.mxu0 %v5141
    %5327 = vmatpush.bf16.msra.mxu0 %v5139
    %5328 = vmatmul.bf16.gmra.mxu0 %v4857
    %v5329 = vpop.f32.mrf.mxu0
    %v5330 = vadd.f32 %v5316, %v5329
    %v5331 = vpop.f32.mrf.mxu0
    %v5332 = vadd.f32 %v5318, %v5331
    %5333 = vdwg.mxu0
    %5334 = vmatpush.bf16.msra.mxu0 %v5169
    %5335 = vmatpush.bf16.msra.mxu0 %v5167
    %5336 = vmatpush.bf16.msra.mxu0 %v5165
    %5337 = vmatpush.bf16.msra.mxu0 %v5163
    %5338 = vmatpush.bf16.msra.mxu0 %v5161
    %5339 = vmatpush.bf16.msra.mxu0 %v5159
    %5340 = vmatpush.bf16.msra.mxu0 %v5157
    %5341 = vmatpush.bf16.msra.mxu0 %v5155
    %5342 = vmatmul.bf16.gmra.mxu0 %v4858
    %v5343 = vpop.f32.mrf.mxu0
    %v5344 = vadd.f32 %v5330, %v5343
    %v5345 = vpop.f32.mrf.mxu0
    %v5346 = vadd.f32 %v5332, %v5345
    %5347 = vdwg.mxu0
    %5348 = vmatpush.bf16.msra.mxu0 %v5185
    %5349 = vmatpush.bf16.msra.mxu0 %v5183
    %5350 = vmatpush.bf16.msra.mxu0 %v5181
    %5351 = vmatpush.bf16.msra.mxu0 %v5179
    %5352 = vmatpush.bf16.msra.mxu0 %v5177
    %5353 = vmatpush.bf16.msra.mxu0 %v5175
    %5354 = vmatpush.bf16.msra.mxu0 %v5173
    %5355 = vmatpush.bf16.msra.mxu0 %v5171
    %5356 = vmatmul.bf16.gmra.mxu0 %v4859
    %v5357 = vpop.f32.mrf.mxu0
    %v5358 = vadd.f32 %v5344, %v5357
    %v5359 = vpop.f32.mrf.mxu0
    %v5360 = vadd.f32 %v5346, %v5359
    %5361 = vdwg.mxu0
    %v5362 = vadd.f32 %v5302, %v4336
    %v5363 = vadd.f32 %v5358, %v4337
    %v5364 = vadd.f32 %v5304, %v4338
    %v5365 = vadd.f32 %v5360, %v4339
    %v5366 = vld [vmem:[%s24] sm:$0x3]
    %v5367 = vld [vmem:[%s25] sm:$0x3]
    %v5368 = vadd.f32 %v5362, %v5363
    %5369 = vadd.xlane.f32.xlu0 %v5368
    %v5370 = vpop.xlane.xlu0 %5369
    %v5371 = vadd.f32 %v5364, %v5365
    %5372 = vadd.xlane.f32.xlu0 %v5371
    %v5373 = vpop.xlane.xlu0 %5372
    %v5374 = vmul.f32 %v5370, %v2212
    %v5375 = vmul.f32 %v5373, %v2212
    %v5376 = vsub.f32 %v5362, %v5374
    %v5377 = vsub.f32 %v5363, %v5374
    %v5378 = vsub.f32 %v5364, %v5375
    %v5379 = vsub.f32 %v5365, %v5375
    %v5380 = vmul.f32 %v5376, %v5376
    %v5381 = vmul.f32 %v5377, %v5377
    %v5382 = vmul.f32 %v5378, %v5378
    %v5383 = vmul.f32 %v5379, %v5379
    %v5384 = vadd.f32 %v5380, %v5381
    %5385 = vadd.xlane.f32.xlu0 %v5384
    %v5386 = vpop.xlane.xlu0 %5385
    %v5387 = vadd.f32 %v5382, %v5383
    %5388 = vadd.xlane.f32.xlu0 %v5387
    %v5389 = vpop.xlane.xlu0 %5388
    %v5390 = vmul.f32 %v5386, %v2212
    %v5391 = vmul.f32 %v5389, %v2212
    %v5392 = vadd.f32 %v5390, 1e-05
    %v5393 = vadd.f32 %v5391, 1e-05
    %v5394 = vrsqrt.pop %v5392
    %v5395 = vmul.f32 %v5394, %v5392
    %v5396 = vmul.f32 %v5395, %v5394
    %v5397 = vmul.f32 0.5, %v5396
    %v5398 = vsub.f32 1.5, %v5397
    %v5399 = vmul.f32 %v5394, %v5398
    %vm5400 = vweird.f32 %v5392
    %vm5401 = vweird.f32 %v5394
    %vm5402 = vmor %vm5400, %vm5401
    %v5403 = vsel %vm5402, %v5394, %v5399
    %v5404 = vrsqrt.pop %v5393
    %v5405 = vmul.f32 %v5404, %v5393
    %v5406 = vmul.f32 %v5405, %v5404
    %v5407 = vmul.f32 0.5, %v5406
    %v5408 = vsub.f32 1.5, %v5407
    %v5409 = vmul.f32 %v5404, %v5408
    %vm5410 = vweird.f32 %v5393
    %vm5411 = vweird.f32 %v5404
    %vm5412 = vmor %vm5410, %vm5411
    %v5413 = vsel %vm5412, %v5404, %v5409
    %v5414 = vmul.f32 %v5376, %v5403
    %v5415 = vmul.f32 %v5377, %v5403
    %v5416 = vmul.f32 %v5378, %v5413
    %v5417 = vmul.f32 %v5379, %v5413
    %v5419 = vperm.slane %v5366, 0
    %v5420 = vperm.slane %v5366, 1
    %v5423 = vmul.f32 %v5414, %v5419
    %v5424 = vmul.f32 %v5415, %v5420
    %v5425 = vmul.f32 %v5416, %v5419
    %v5426 = vmul.f32 %v5417, %v5420
    %v5428 = vperm.slane %v5367, 0
    %v5429 = vperm.slane %v5367, 1
    %v5432 = vadd.f32 %v5423, %v5428
    %v5433 = vadd.f32 %v5424, %v5429
    %v5434 = vadd.f32 %v5425, %v5428
    %v5435 = vadd.f32 %v5426, %v5429
    %5436 = vst [vmem:[%s26] sm:$0xff] %v5432
    %5437 = vst [vmem:[%s26 + $0x8] sm:$0xff] %v5433
    %5438 = vst [vmem:[%s26 + $0x10] sm:$0xff] %v5434
    %5439 = vst [vmem:[%s26 + $0x18] sm:$0xff] %v5435
    // Predicated region
    $region134: #{decoder_layer_forward.1} parent=1 // pred_check
      _
    $region135: #{decoder_layer_forward.1} parent=1 // pred_check_branch
      %5441 = sbr.rel (0) target = $region137
    $region136: #{decoder_layer_forward.1} parent=1 // pred_region
      _
    $region137: #{decoder_layer_forward.1} parent=1 // pred_fallthru
      _
    // Predicated region
    $region138: #{decoder_layer_forward.1} parent=1 // pred_check
      _
    $region139: #{decoder_layer_forward.1} parent=1 // pred_check_branch
      %5443 = sbr.rel (0) target = $region141
    $region140: #{decoder_layer_forward.1} parent=1 // pred_region
      _
    $region141: #{decoder_layer_forward.1} parent=1 // pred_fallthru
      _
    %5444 = vsyncpa [#allocation3], 1
    %5445 = vsyncpa [#allocation5], 1
    %5446 = vsyncpa [#allocation8], 1
    %5447 = vsyncpa [#allocation11], 1

</llo_original>
